<compile_context>
chip_gen: v6e
topology: v6e:2x2x1
jax: 0.10.0
libtpu: 0.0.40
codegen_flags: <defaults>
</compile_context>

<pallas_src>
import jax
import jax.numpy as jnp
from jax.experimental import pallas as pl
from jax.experimental.pallas import tpu as pltpu

EPS = 1e-5
LANE = 128


def _vmem_specs(n):
    return [pl.BlockSpec(memory_space=pltpu.MemorySpace.VMEM) for _ in range(n)]


# ----------------------------- Pallas kernels ------------------------------

def fc_kernel(z_ref, w1_ref, b1_ref, g1_ref, be1_ref,
              w2_ref, b2_ref, g2_ref, be2_ref, out_ref):
    """Linear -> BN1d(train) -> ReLU -> Linear (column tile) -> BN1d -> ReLU.

    The grid tiles the second layer's output columns; layer 1 (tiny) is
    recomputed per tile so every grid step is independent ("parallel").
    BN1d statistics are per-column, so column tiling is numerically exact.
    """
    z = z_ref[...]                                                  # bf16
    h = jnp.dot(z, w1_ref[...], preferred_element_type=jnp.float32) + b1_ref[...]
    mu = jnp.mean(h, axis=0, keepdims=True)
    var = jnp.mean((h - mu) ** 2, axis=0, keepdims=True)
    h = jnp.maximum((h - mu) * jax.lax.rsqrt(var + EPS) * g1_ref[...] + be1_ref[...], 0.0)

    h2 = jnp.dot(h.astype(jnp.bfloat16), w2_ref[...],
                 preferred_element_type=jnp.float32) + b2_ref[...]
    mu2 = jnp.mean(h2, axis=0, keepdims=True)
    var2 = jnp.mean((h2 - mu2) ** 2, axis=0, keepdims=True)
    h2 = (h2 - mu2) * jax.lax.rsqrt(var2 + EPS) * g2_ref[...] + be2_ref[...]
    out_ref[...] = jnp.maximum(h2, 0.0).astype(out_ref.dtype)


def deconv1_kernel(p_ref, w_ref, b_ref, g_ref, be_ref, out_ref):
    """4-phase ConvTranspose2d(128->64, K4 s2 p1) -> BN2d(train) -> ReLU.

    p_ref: (4, R, 4*C_in) phase patch stack, w_ref: (4, 4*C_in, 64).
    BN2d stats couple all phases, so all 4 phase matmuls run in one body and
    the joint per-channel (per-column) stats are taken over the 4R rows.
    """
    ys = [jnp.dot(p_ref[p], w_ref[p], preferred_element_type=jnp.float32)
          for p in range(4)]
    y = jnp.concatenate(ys, axis=0) + b_ref[...]                    # (4R, 64) f32
    mu = jnp.mean(y, axis=0, keepdims=True)
    var = jnp.mean((y - mu) ** 2, axis=0, keepdims=True)
    y = (y - mu) * jax.lax.rsqrt(var + EPS) * g_ref[...] + be_ref[...]
    out_ref[...] = jnp.maximum(y, 0.0).astype(out_ref.dtype)


def deconv2_kernel(p_ref, w_ref, b_ref, out_ref):
    """One phase of ConvTranspose2d(64->C_out, K4 s2 p1) -> Tanh.

    Output columns are zero-padded to a 128-lane-dense slab; the wrapper
    slices the real channels back out (padded cols give tanh(0)=0, benign).
    """
    y = jnp.dot(p_ref[0], w_ref[0], preferred_element_type=jnp.float32) + b_ref[...]
    out_ref[0] = jnp.tanh(y)


# ------------------- 4-phase deconv helpers (cheap XLA glue) ----------------

def _phase_taps(parity):
    # (input offset, kernel tap) pairs contributing to this output parity
    # for ConvTranspose2d(K=4, stride=2, padding=1):  oy = 2*iy - 1 + kh.
    return ((0, 1), (-1, 3)) if parity == 0 else ((0, 2), (1, 0))


def _phase_patches(x_nhwc):
    """(B,H,W,C) NHWC -> (4, B*H*W, 4*C) per-phase patch matrices.

    Phase p = py*2+px produces output pixels (2m+py, 2n+px); only the 4 real
    taps are gathered (the zero-upsampled im2col carries 16, 75% zeros).
    """
    B, H, W, C = x_nhwc.shape
    xp = jnp.pad(x_nhwc, ((0, 0), (1, 1), (1, 1), (0, 0)))
    phases = []
    for py in (0, 1):
        for px in (0, 1):
            blocks = [xp[:, 1 + dy:1 + dy + H, 1 + dx:1 + dx + W, :]
                      for dy, _ in _phase_taps(py)
                      for dx, _ in _phase_taps(px)]
            phases.append(jnp.concatenate(blocks, axis=-1).reshape(B * H * W, 4 * C))
    return jnp.stack(phases, axis=0)


def _phase_weights(w):
    """PyTorch ConvTranspose2d weight (C_in, C_out, 4, 4) -> (4, 4*C_in, C_out)
    per-phase matrices matching the tap order used by `_phase_patches`."""
    mats = []
    for py in (0, 1):
        for px in (0, 1):
            blocks = [w[:, :, kh, kw]
                      for _, kh in _phase_taps(py)
                      for _, kw in _phase_taps(px)]
            mats.append(jnp.concatenate(blocks, axis=0))
    return jnp.stack(mats, axis=0)


def _pixel_shuffle(rows, B, H, W, C):
    """Rows ordered [phase, b, m, n] (any leading layout) -> (B, 2H, 2W, C)."""
    y = rows.reshape(2, 2, B, H, W, C)            # (py, px, b, m, n, c)
    y = jnp.transpose(y, (2, 3, 0, 4, 1, 5))      # (b, m, py, n, px, c)
    return y.reshape(B, 2 * H, 2 * W, C)


# ------------------------------ parameters ----------------------------------

def init_generator_params(key, input_dim=100, output_dim=1, input_size=16):
    """Deterministic init mimicking utils.initialize_weights:
    weights ~ N(0, 0.02), BN gamma ~ N(1, 0.02), biases/betas = 0."""
    s4 = input_size // 4
    F = 128 * s4 * s4
    k_in = ((input_dim + LANE - 1) // LANE) * LANE        # latent padded to lane multiple
    c_out_pad = ((output_dim + LANE - 1) // LANE) * LANE  # lane-dense final store
    ks = jax.random.split(key, 7)

    def normal(k, shape, std=0.02, mean=0.0):
        return mean + std * jax.random.normal(k, shape, dtype=jnp.float32)

    # fc layer 1 (rows zero-padded for the padded latent columns)
    w1 = jnp.pad(normal(ks[0], (input_dim, 1024)), ((0, k_in - input_dim), (0, 0)))

    # fc layer 2: permute output columns from PyTorch (c, h, w) order to NHWC
    # (h, w, c) order so the fc output is already NHWC-flattened (free reshape).
    w2 = normal(ks[2], (1024, F))
    g2 = normal(ks[3], (1, F), mean=1.0)
    idx = jnp.arange(F)
    perm = (idx % 128) * (s4 * s4) + idx // 128
    w2, g2 = w2[:, perm], g2[:, perm]

    wd1 = normal(ks[4], (128, 64, 4, 4))          # ConvTranspose2d(128->64)
    wd2 = normal(ks[6], (64, output_dim, 4, 4))   # ConvTranspose2d(64->out)
    wd2p = _phase_weights(wd2)                    # (4, 256, output_dim)
    wd2p = jnp.pad(wd2p, ((0, 0), (0, 0), (0, c_out_pad - output_dim)))

    return dict(
        w1t=w1.astype(jnp.bfloat16),
        b1=jnp.zeros((1, 1024), jnp.float32),
        g1=normal(ks[1], (1, 1024), mean=1.0),
        be1=jnp.zeros((1, 1024), jnp.float32),
        w2t=w2.astype(jnp.bfloat16),
        b2=jnp.zeros((1, F), jnp.float32),
        g2=g2,
        be2=jnp.zeros((1, F), jnp.float32),
        wd1=_phase_weights(wd1).astype(jnp.bfloat16),   # (4, 512, 64)
        bd1=jnp.zeros((1, 64), jnp.float32),
        gd1=normal(ks[5], (1, 64), mean=1.0),
        bed1=jnp.zeros((1, 64), jnp.float32),
        wd2=wd2p.astype(jnp.bfloat16),                  # (4, 256, c_out_pad)
        bd2=jnp.zeros((1, c_out_pad), jnp.float32),
    )


# ------------------------------ forward -------------------------------------

def generator_forward(params, z, *, input_size=16, output_dim=1):
    B = z.shape[0]
    s4 = input_size // 4
    F = 128 * s4 * s4
    k_in = params["w1t"].shape[0]
    c_out_pad = params["wd2"].shape[-1]

    # ---- fc block: column-tiled grid, "parallel" tiles (v7x megacore) ----
    tile_f = F if F <= 1024 else 1024
    assert F % tile_f == 0
    z_pad = jnp.pad(z, ((0, 0), (0, k_in - z.shape[1]))).astype(jnp.bfloat16)

    full = lambda shape: pl.BlockSpec(shape, lambda j: (0, 0))
    col = lambda rows: pl.BlockSpec((rows, tile_f), lambda j: (0, j))
    x_flat = pl.pallas_call(
        fc_kernel,
        grid=(F // tile_f,),
        in_specs=[full((B, k_in)), full((k_in, 1024)),
                  full((1, 1024)), full((1, 1024)), full((1, 1024)),
                  pl.BlockSpec((1024, tile_f), lambda j: (0, j)),
                  col(1), col(1), col(1)],
        out_specs=col(B),
        out_shape=jax.ShapeDtypeStruct((B, F), jnp.bfloat16),
        compiler_params=pltpu.CompilerParams(dimension_semantics=("parallel",)),
    )(z_pad, params["w1t"], params["b1"], params["g1"], params["be1"],
      params["w2t"], params["b2"], params["g2"], params["be2"])

    # fc columns are already NHWC-flattened (h, w, c) -> free reshape, no transpose
    x = x_flat.reshape(B, s4, s4, 128)

    # ---- deconv1: 4-phase ConvTranspose + BN2d + ReLU (one fused kernel) ----
    p1 = _phase_patches(x)                                   # (4, B*s4*s4, 512)
    r1 = B * s4 * s4
    y1_rows = pl.pallas_call(
        deconv1_kernel,
        out_shape=jax.ShapeDtypeStruct((4 * r1, 64), jnp.bfloat16),
        in_specs=_vmem_specs(5),
        out_specs=pl.BlockSpec(memory_space=pltpu.MemorySpace.VMEM),
    )(p1, params["wd1"], params["bd1"], params["gd1"], params["bed1"])
    H1 = 2 * s4
    y1 = _pixel_shuffle(y1_rows, B, s4, s4, 64)              # (B, H1, H1, 64) NHWC

    # ---- deconv2 + Tanh: 4 independent phases -> "parallel" grid ----
    p2 = _phase_patches(y1)                                  # (4, B*H1*H1, 256)
    r2, k2 = p2.shape[1], p2.shape[2]
    y2 = pl.pallas_call(
        deconv2_kernel,
        grid=(4,),
        in_specs=[pl.BlockSpec((1, r2, k2), lambda p: (p, 0, 0)),
                  pl.BlockSpec((1, k2, c_out_pad), lambda p: (p, 0, 0)),
                  pl.BlockSpec((1, c_out_pad), lambda p: (0, 0))],
        out_specs=pl.BlockSpec((1, r2, c_out_pad), lambda p: (p, 0, 0)),
        out_shape=jax.ShapeDtypeStruct((4, r2, c_out_pad), jnp.float32),
        compiler_params=pltpu.CompilerParams(dimension_semantics=("parallel",)),
    )(p2, params["wd2"], params["bd2"])

    y2 = y2[..., :output_dim]                                # drop lane padding
    img = _pixel_shuffle(y2, B, H1, H1, output_dim)          # (B, S, S, C) NHWC
    return jnp.transpose(img, (0, 3, 1, 2))                  # single NCHW transpose


# ------------------------------ main -----------------------------------------

if __name__ == "__main__":
    INPUT_DIM, OUTPUT_DIM, INPUT_SIZE, BATCH = 100, 1, 16, 2

    key = jax.random.PRNGKey(0)
    k_params, k_z = jax.random.split(key)
    params = init_generator_params(k_params, INPUT_DIM, OUTPUT_DIM, INPUT_SIZE)
    z = jax.random.normal(k_z, (BATCH, INPUT_DIM), dtype=jnp.float32)

    fwd = jax.jit(lambda p, zz: generator_forward(
        p, zz, input_size=INPUT_SIZE, output_dim=OUTPUT_DIM))
    out = jax.block_until_ready(fwd(params, z))

    assert out.shape == (BATCH, OUTPUT_DIM, INPUT_SIZE, INPUT_SIZE), out.shape
    assert bool(jnp.all(jnp.isfinite(out)))
    assert bool(jnp.all(jnp.abs(out) <= 1.0 + 1e-6))   # tanh range
    print("KERNEL_OK")
</pallas_src>

<mosaic_0001>
module attributes {stable_mosaic.version = 11 : i64} {
  func.func @fc_kernel(%arg0: i32, %arg1: memref<2x128xbf16, #tpu.memory_space<vmem>>, %arg2: memref<128x1024xbf16, #tpu.memory_space<vmem>>, %arg3: memref<1x1024xf32, #tpu.memory_space<vmem>>, %arg4: memref<1x1024xf32, #tpu.memory_space<vmem>>, %arg5: memref<1x1024xf32, #tpu.memory_space<vmem>>, %arg6: memref<1024x1024xbf16, #tpu.memory_space<vmem>>, %arg7: memref<1x1024xf32, #tpu.memory_space<vmem>>, %arg8: memref<1x1024xf32, #tpu.memory_space<vmem>>, %arg9: memref<1x1024xf32, #tpu.memory_space<vmem>>, %arg10: memref<2x1024xbf16, #tpu.memory_space<vmem>>) attributes {dimension_semantics = [#tpu.dimension_semantics<parallel>], iteration_bounds = array<i64: 2>, scalar_prefetch = 0 : i64, scratch_operands = 0 : i64, tpu.core_type = #tpu.core_type<tc>, window_params = [{pipeline_mode = #tpu.pipeline_mode<synchronous>, transform_indices = @transform_0, window_bounds = array<i64: 2, 128>}, {pipeline_mode = #tpu.pipeline_mode<synchronous>, transform_indices = @transform_1, window_bounds = array<i64: 128, 1024>}, {pipeline_mode = #tpu.pipeline_mode<synchronous>, transform_indices = @transform_2, window_bounds = array<i64: 1, 1024>}, {pipeline_mode = #tpu.pipeline_mode<synchronous>, transform_indices = @transform_3, window_bounds = array<i64: 1, 1024>}, {pipeline_mode = #tpu.pipeline_mode<synchronous>, transform_indices = @transform_4, window_bounds = array<i64: 1, 1024>}, {transform_indices = @transform_5, window_bounds = array<i64: 1024, 1024>}, {transform_indices = @transform_6, window_bounds = array<i64: 1, 1024>}, {transform_indices = @transform_7, window_bounds = array<i64: 1, 1024>}, {transform_indices = @transform_8, window_bounds = array<i64: 1, 1024>}, {transform_indices = @transform_9, window_bounds = array<i64: 2, 1024>}]} {
    %c0 = arith.constant 0 : index
    %c0_0 = arith.constant 0 : index
    %0 = vector.load %arg1[%c0, %c0_0] : memref<2x128xbf16, #tpu.memory_space<vmem>>, vector<2x128xbf16>
    %c0_1 = arith.constant 0 : index
    %c0_2 = arith.constant 0 : index
    %1 = vector.load %arg2[%c0_1, %c0_2] : memref<128x1024xbf16, #tpu.memory_space<vmem>>, vector<128x1024xbf16>
    %cst = arith.constant dense<0.000000e+00> : vector<2x1024xf32>
    %2 = tpu.matmul %0, %1, %cst {dimension_numbers = #tpu.dot_dimension_numbers<[1], [0], [0], [1], [0, 0, 1, 1], [], []>} : vector<2x128xbf16>, vector<128x1024xbf16>, vector<2x1024xf32> -> vector<2x1024xf32>
    %c0_3 = arith.constant 0 : index
    %c0_4 = arith.constant 0 : index
    %3 = vector.load %arg3[%c0_3, %c0_4] : memref<1x1024xf32, #tpu.memory_space<vmem>>, vector<1x1024xf32>
    %4 = vector.broadcast %3 : vector<1x1024xf32> to vector<2x1024xf32>
    %5 = arith.addf %2, %4 : vector<2x1024xf32>
    %cst_5 = arith.constant dense<0.000000e+00> : vector<1024xf32>
    %6 = vector.multi_reduction <add>, %5, %cst_5 [0] : vector<2x1024xf32> to vector<1024xf32>
    %7 = vector.shape_cast %6 : vector<1024xf32> to vector<1x1024xf32>
    %cst_6 = arith.constant 2.000000e+00 : f32
    %8 = vector.broadcast %cst_6 : f32 to vector<1x1024xf32>
    %9 = arith.divf %7, %8 : vector<1x1024xf32>
    %10 = vector.broadcast %9 : vector<1x1024xf32> to vector<2x1024xf32>
    %11 = arith.subf %5, %10 : vector<2x1024xf32>
    %12 = arith.mulf %11, %11 : vector<2x1024xf32>
    %cst_7 = arith.constant dense<0.000000e+00> : vector<1024xf32>
    %13 = vector.multi_reduction <add>, %12, %cst_7 [0] : vector<2x1024xf32> to vector<1024xf32>
    %14 = vector.shape_cast %13 : vector<1024xf32> to vector<1x1024xf32>
    %cst_8 = arith.constant 2.000000e+00 : f32
    %15 = vector.broadcast %cst_8 : f32 to vector<1x1024xf32>
    %16 = arith.divf %14, %15 : vector<1x1024xf32>
    %17 = vector.broadcast %9 : vector<1x1024xf32> to vector<2x1024xf32>
    %18 = arith.subf %5, %17 : vector<2x1024xf32>
    %cst_9 = arith.constant 9.99999974E-6 : f32
    %19 = vector.broadcast %cst_9 : f32 to vector<1x1024xf32>
    %20 = arith.addf %16, %19 : vector<1x1024xf32>
    %21 = math.rsqrt %20 : vector<1x1024xf32>
    %22 = vector.broadcast %21 : vector<1x1024xf32> to vector<2x1024xf32>
    %23 = arith.mulf %18, %22 : vector<2x1024xf32>
    %c0_10 = arith.constant 0 : index
    %c0_11 = arith.constant 0 : index
    %24 = vector.load %arg4[%c0_10, %c0_11] : memref<1x1024xf32, #tpu.memory_space<vmem>>, vector<1x1024xf32>
    %25 = vector.broadcast %24 : vector<1x1024xf32> to vector<2x1024xf32>
    %26 = arith.mulf %23, %25 : vector<2x1024xf32>
    %c0_12 = arith.constant 0 : index
    %c0_13 = arith.constant 0 : index
    %27 = vector.load %arg5[%c0_12, %c0_13] : memref<1x1024xf32, #tpu.memory_space<vmem>>, vector<1x1024xf32>
    %28 = vector.broadcast %27 : vector<1x1024xf32> to vector<2x1024xf32>
    %29 = arith.addf %26, %28 : vector<2x1024xf32>
    %cst_14 = arith.constant 0.000000e+00 : f32
    %30 = vector.broadcast %cst_14 : f32 to vector<2x1024xf32>
    %31 = arith.maximumf %29, %30 : vector<2x1024xf32>
    %32 = arith.truncf %31 : vector<2x1024xf32> to vector<2x1024xbf16>
    %c0_15 = arith.constant 0 : index
    %c0_16 = arith.constant 0 : index
    %33 = vector.load %arg6[%c0_15, %c0_16] : memref<1024x1024xbf16, #tpu.memory_space<vmem>>, vector<1024x1024xbf16>
    %cst_17 = arith.constant dense<0.000000e+00> : vector<2x1024xf32>
    %34 = tpu.matmul %32, %33, %cst_17 {dimension_numbers = #tpu.dot_dimension_numbers<[1], [0], [0], [1], [0, 0, 1, 1], [], []>} : vector<2x1024xbf16>, vector<1024x1024xbf16>, vector<2x1024xf32> -> vector<2x1024xf32>
    %c0_18 = arith.constant 0 : index
    %c0_19 = arith.constant 0 : index
    %35 = vector.load %arg7[%c0_18, %c0_19] : memref<1x1024xf32, #tpu.memory_space<vmem>>, vector<1x1024xf32>
    %36 = vector.broadcast %35 : vector<1x1024xf32> to vector<2x1024xf32>
    %37 = arith.addf %34, %36 : vector<2x1024xf32>
    %cst_20 = arith.constant dense<0.000000e+00> : vector<1024xf32>
    %38 = vector.multi_reduction <add>, %37, %cst_20 [0] : vector<2x1024xf32> to vector<1024xf32>
    %39 = vector.shape_cast %38 : vector<1024xf32> to vector<1x1024xf32>
    %cst_21 = arith.constant 2.000000e+00 : f32
    %40 = vector.broadcast %cst_21 : f32 to vector<1x1024xf32>
    %41 = arith.divf %39, %40 : vector<1x1024xf32>
    %42 = vector.broadcast %41 : vector<1x1024xf32> to vector<2x1024xf32>
    %43 = arith.subf %37, %42 : vector<2x1024xf32>
    %44 = arith.mulf %43, %43 : vector<2x1024xf32>
    %cst_22 = arith.constant dense<0.000000e+00> : vector<1024xf32>
    %45 = vector.multi_reduction <add>, %44, %cst_22 [0] : vector<2x1024xf32> to vector<1024xf32>
    %46 = vector.shape_cast %45 : vector<1024xf32> to vector<1x1024xf32>
    %cst_23 = arith.constant 2.000000e+00 : f32
    %47 = vector.broadcast %cst_23 : f32 to vector<1x1024xf32>
    %48 = arith.divf %46, %47 : vector<1x1024xf32>
    %49 = vector.broadcast %41 : vector<1x1024xf32> to vector<2x1024xf32>
    %50 = arith.subf %37, %49 : vector<2x1024xf32>
    %cst_24 = arith.constant 9.99999974E-6 : f32
    %51 = vector.broadcast %cst_24 : f32 to vector<1x1024xf32>
    %52 = arith.addf %48, %51 : vector<1x1024xf32>
    %53 = math.rsqrt %52 : vector<1x1024xf32>
    %54 = vector.broadcast %53 : vector<1x1024xf32> to vector<2x1024xf32>
    %55 = arith.mulf %50, %54 : vector<2x1024xf32>
    %c0_25 = arith.constant 0 : index
    %c0_26 = arith.constant 0 : index
    %56 = vector.load %arg8[%c0_25, %c0_26] : memref<1x1024xf32, #tpu.memory_space<vmem>>, vector<1x1024xf32>
    %57 = vector.broadcast %56 : vector<1x1024xf32> to vector<2x1024xf32>
    %58 = arith.mulf %55, %57 : vector<2x1024xf32>
    %c0_27 = arith.constant 0 : index
    %c0_28 = arith.constant 0 : index
    %59 = vector.load %arg9[%c0_27, %c0_28] : memref<1x1024xf32, #tpu.memory_space<vmem>>, vector<1x1024xf32>
    %60 = vector.broadcast %59 : vector<1x1024xf32> to vector<2x1024xf32>
    %61 = arith.addf %58, %60 : vector<2x1024xf32>
    %cst_29 = arith.constant 0.000000e+00 : f32
    %62 = vector.broadcast %cst_29 : f32 to vector<2x1024xf32>
    %63 = arith.maximumf %61, %62 : vector<2x1024xf32>
    %64 = arith.truncf %63 : vector<2x1024xf32> to vector<2x1024xbf16>
    %c0_30 = arith.constant 0 : index
    %c0_31 = arith.constant 0 : index
    %65 = vector.load %arg10[%c0_30, %c0_31] : memref<2x1024xbf16, #tpu.memory_space<vmem>>, vector<2x1024xbf16>
    tpu.vector_store %arg10[%c0_30, %c0_31], %64 {strides = array<i32>} : memref<2x1024xbf16, #tpu.memory_space<vmem>>, vector<2x1024xbf16>,
    return
  }
  func.func @transform_0(%arg0: i32) -> (i32, i32) {
    %c0_i32 = arith.constant 0 : i32
    %c0_i32_0 = arith.constant 0 : i32
    %c0_i32_1 = arith.constant 0 : i32
    return %c0_i32, %c0_i32_0 : i32, i32
  }
  func.func @transform_1(%arg0: i32) -> (i32, i32) {
    %c0_i32 = arith.constant 0 : i32
    %c0_i32_0 = arith.constant 0 : i32
    %c0_i32_1 = arith.constant 0 : i32
    return %c0_i32, %c0_i32_0 : i32, i32
  }
  func.func @transform_2(%arg0: i32) -> (i32, i32) {
    %c0_i32 = arith.constant 0 : i32
    %c0_i32_0 = arith.constant 0 : i32
    %c0_i32_1 = arith.constant 0 : i32
    return %c0_i32, %c0_i32_0 : i32, i32
  }
  func.func @transform_3(%arg0: i32) -> (i32, i32) {
    %c0_i32 = arith.constant 0 : i32
    %c0_i32_0 = arith.constant 0 : i32
    %c0_i32_1 = arith.constant 0 : i32
    return %c0_i32, %c0_i32_0 : i32, i32
  }
  func.func @transform_4(%arg0: i32) -> (i32, i32) {
    %c0_i32 = arith.constant 0 : i32
    %c0_i32_0 = arith.constant 0 : i32
    %c0_i32_1 = arith.constant 0 : i32
    return %c0_i32, %c0_i32_0 : i32, i32
  }
  func.func @transform_5(%arg0: i32) -> (i32, i32) {
    %c0_i32 = arith.constant 0 : i32
    %c0_i32_0 = arith.constant 0 : i32
    return %c0_i32, %arg0 : i32, i32
  }
  func.func @transform_6(%arg0: i32) -> (i32, i32) {
    %c0_i32 = arith.constant 0 : i32
    %c0_i32_0 = arith.constant 0 : i32
    return %c0_i32, %arg0 : i32, i32
  }
  func.func @transform_7(%arg0: i32) -> (i32, i32) {
    %c0_i32 = arith.constant 0 : i32
    %c0_i32_0 = arith.constant 0 : i32
    return %c0_i32, %arg0 : i32, i32
  }
  func.func @transform_8(%arg0: i32) -> (i32, i32) {
    %c0_i32 = arith.constant 0 : i32
    %c0_i32_0 = arith.constant 0 : i32
    return %c0_i32, %arg0 : i32, i32
  }
  func.func @transform_9(%arg0: i32) -> (i32, i32) {
    %c0_i32 = arith.constant 0 : i32
    %c0_i32_0 = arith.constant 0 : i32
    return %c0_i32, %arg0 : i32, i32
  }
}

module attributes {stable_mosaic.version = 11 : i64} {
  func.func @deconv1_kernel(%arg0: memref<4x32x512xbf16, #tpu.memory_space<vmem>>, %arg1: memref<4x512x64xbf16, #tpu.memory_space<vmem>>, %arg2: memref<1x64xf32, #tpu.memory_space<vmem>>, %arg3: memref<1x64xf32, #tpu.memory_space<vmem>>, %arg4: memref<1x64xf32, #tpu.memory_space<vmem>>, %arg5: memref<128x64xbf16, #tpu.memory_space<vmem>>) attributes {dimension_semantics = [], scalar_prefetch = 0 : i64, scratch_operands = 0 : i64, tpu.core_type = #tpu.core_type<tc>} {
    %c0 = arith.constant 0 : index
    %c0_0 = arith.constant 0 : index
    %c0_1 = arith.constant 0 : index
    %0 = vector.load %arg0[%c0, %c0_0, %c0_1] : memref<4x32x512xbf16, #tpu.memory_space<vmem>>, vector<1x32x512xbf16>
    %1 = vector.shape_cast %0 : vector<1x32x512xbf16> to vector<32x512xbf16>
    %c0_2 = arith.constant 0 : index
    %c0_3 = arith.constant 0 : index
    %c0_4 = arith.constant 0 : index
    %2 = vector.load %arg1[%c0_2, %c0_3, %c0_4] : memref<4x512x64xbf16, #tpu.memory_space<vmem>>, vector<1x512x64xbf16>
    %3 = vector.shape_cast %2 : vector<1x512x64xbf16> to vector<512x64xbf16>
    %cst = arith.constant dense<0.000000e+00> : vector<32x64xf32>
    %4 = tpu.matmul %1, %3, %cst {dimension_numbers = #tpu.dot_dimension_numbers<[1], [0], [0], [1], [0, 0, 1, 1], [], []>} : vector<32x512xbf16>, vector<512x64xbf16>, vector<32x64xf32> -> vector<32x64xf32>
    %c1 = arith.constant 1 : index
    %c0_5 = arith.constant 0 : index
    %c0_6 = arith.constant 0 : index
    %5 = vector.load %arg0[%c1, %c0_5, %c0_6] : memref<4x32x512xbf16, #tpu.memory_space<vmem>>, vector<1x32x512xbf16>
    %6 = vector.shape_cast %5 : vector<1x32x512xbf16> to vector<32x512xbf16>
    %c1_7 = arith.constant 1 : index
    %c0_8 = arith.constant 0 : index
    %c0_9 = arith.constant 0 : index
    %7 = vector.load %arg1[%c1_7, %c0_8, %c0_9] : memref<4x512x64xbf16, #tpu.memory_space<vmem>>, vector<1x512x64xbf16>
    %8 = vector.shape_cast %7 : vector<1x512x64xbf16> to vector<512x64xbf16>
    %cst_10 = arith.constant dense<0.000000e+00> : vector<32x64xf32>
    %9 = tpu.matmul %6, %8, %cst_10 {dimension_numbers = #tpu.dot_dimension_numbers<[1], [0], [0], [1], [0, 0, 1, 1], [], []>} : vector<32x512xbf16>, vector<512x64xbf16>, vector<32x64xf32> -> vector<32x64xf32>
    %c2 = arith.constant 2 : index
    %c0_11 = arith.constant 0 : index
    %c0_12 = arith.constant 0 : index
    %10 = vector.load %arg0[%c2, %c0_11, %c0_12] : memref<4x32x512xbf16, #tpu.memory_space<vmem>>, vector<1x32x512xbf16>
    %11 = vector.shape_cast %10 : vector<1x32x512xbf16> to vector<32x512xbf16>
    %c2_13 = arith.constant 2 : index
    %c0_14 = arith.constant 0 : index
    %c0_15 = arith.constant 0 : index
    %12 = vector.load %arg1[%c2_13, %c0_14, %c0_15] : memref<4x512x64xbf16, #tpu.memory_space<vmem>>, vector<1x512x64xbf16>
    %13 = vector.shape_cast %12 : vector<1x512x64xbf16> to vector<512x64xbf16>
    %cst_16 = arith.constant dense<0.000000e+00> : vector<32x64xf32>
    %14 = tpu.matmul %11, %13, %cst_16 {dimension_numbers = #tpu.dot_dimension_numbers<[1], [0], [0], [1], [0, 0, 1, 1], [], []>} : vector<32x512xbf16>, vector<512x64xbf16>, vector<32x64xf32> -> vector<32x64xf32>
    %c3 = arith.constant 3 : index
    %c0_17 = arith.constant 0 : index
    %c0_18 = arith.constant 0 : index
    %15 = vector.load %arg0[%c3, %c0_17, %c0_18] : memref<4x32x512xbf16, #tpu.memory_space<vmem>>, vector<1x32x512xbf16>
    %16 = vector.shape_cast %15 : vector<1x32x512xbf16> to vector<32x512xbf16>
    %c3_19 = arith.constant 3 : index
    %c0_20 = arith.constant 0 : index
    %c0_21 = arith.constant 0 : index
    %17 = vector.load %arg1[%c3_19, %c0_20, %c0_21] : memref<4x512x64xbf16, #tpu.memory_space<vmem>>, vector<1x512x64xbf16>
    %18 = vector.shape_cast %17 : vector<1x512x64xbf16> to vector<512x64xbf16>
    %cst_22 = arith.constant dense<0.000000e+00> : vector<32x64xf32>
    %19 = tpu.matmul %16, %18, %cst_22 {dimension_numbers = #tpu.dot_dimension_numbers<[1], [0], [0], [1], [0, 0, 1, 1], [], []>} : vector<32x512xbf16>, vector<512x64xbf16>, vector<32x64xf32> -> vector<32x64xf32>
    %20 = tpu.concatenate %4, %9, %14, %19 in 0 : vector<32x64xf32>, vector<32x64xf32>, vector<32x64xf32>, vector<32x64xf32> -> vector<128x64xf32>
    %c0_23 = arith.constant 0 : index
    %c0_24 = arith.constant 0 : index
    %21 = vector.load %arg2[%c0_23, %c0_24] : memref<1x64xf32, #tpu.memory_space<vmem>>, vector<1x64xf32>
    %22 = vector.broadcast %21 : vector<1x64xf32> to vector<128x64xf32>
    %23 = arith.addf %20, %22 : vector<128x64xf32>
    %cst_25 = arith.constant dense<0.000000e+00> : vector<64xf32>
    %24 = vector.multi_reduction <add>, %23, %cst_25 [0] : vector<128x64xf32> to vector<64xf32>
    %25 = vector.shape_cast %24 : vector<64xf32> to vector<1x64xf32>
    %cst_26 = arith.constant 1.280000e+02 : f32
    %26 = vector.broadcast %cst_26 : f32 to vector<1x64xf32>
    %27 = arith.divf %25, %26 : vector<1x64xf32>
    %28 = vector.broadcast %27 : vector<1x64xf32> to vector<128x64xf32>
    %29 = arith.subf %23, %28 : vector<128x64xf32>
    %30 = arith.mulf %29, %29 : vector<128x64xf32>
    %cst_27 = arith.constant dense<0.000000e+00> : vector<64xf32>
    %31 = vector.multi_reduction <add>, %30, %cst_27 [0] : vector<128x64xf32> to vector<64xf32>
    %32 = vector.shape_cast %31 : vector<64xf32> to vector<1x64xf32>
    %cst_28 = arith.constant 1.280000e+02 : f32
    %33 = vector.broadcast %cst_28 : f32 to vector<1x64xf32>
    %34 = arith.divf %32, %33 : vector<1x64xf32>
    %35 = vector.broadcast %27 : vector<1x64xf32> to vector<128x64xf32>
    %36 = arith.subf %23, %35 : vector<128x64xf32>
    %cst_29 = arith.constant 9.99999974E-6 : f32
    %37 = vector.broadcast %cst_29 : f32 to vector<1x64xf32>
    %38 = arith.addf %34, %37 : vector<1x64xf32>
    %39 = math.rsqrt %38 : vector<1x64xf32>
    %40 = vector.broadcast %39 : vector<1x64xf32> to vector<128x64xf32>
    %41 = arith.mulf %36, %40 : vector<128x64xf32>
    %c0_30 = arith.constant 0 : index
    %c0_31 = arith.constant 0 : index
    %42 = vector.load %arg3[%c0_30, %c0_31] : memref<1x64xf32, #tpu.memory_space<vmem>>, vector<1x64xf32>
    %43 = vector.broadcast %42 : vector<1x64xf32> to vector<128x64xf32>
    %44 = arith.mulf %41, %43 : vector<128x64xf32>
    %c0_32 = arith.constant 0 : index
    %c0_33 = arith.constant 0 : index
    %45 = vector.load %arg4[%c0_32, %c0_33] : memref<1x64xf32, #tpu.memory_space<vmem>>, vector<1x64xf32>
    %46 = vector.broadcast %45 : vector<1x64xf32> to vector<128x64xf32>
    %47 = arith.addf %44, %46 : vector<128x64xf32>
    %cst_34 = arith.constant 0.000000e+00 : f32
    %48 = vector.broadcast %cst_34 : f32 to vector<128x64xf32>
    %49 = arith.maximumf %47, %48 : vector<128x64xf32>
    %50 = arith.truncf %49 : vector<128x64xf32> to vector<128x64xbf16>
    %c0_35 = arith.constant 0 : index
    %c0_36 = arith.constant 0 : index
    %51 = vector.load %arg5[%c0_35, %c0_36] : memref<128x64xbf16, #tpu.memory_space<vmem>>, vector<128x64xbf16>
    tpu.vector_store %arg5[%c0_35, %c0_36], %50 {strides = array<i32>} : memref<128x64xbf16, #tpu.memory_space<vmem>>, vector<128x64xbf16>,
    return
  }
}

module attributes {stable_mosaic.version = 11 : i64} {
  func.func @deconv2_kernel(%arg0: i32, %arg1: memref<1x128x256xbf16, #tpu.memory_space<vmem>>, %arg2: memref<1x256x128xbf16, #tpu.memory_space<vmem>>, %arg3: memref<1x128xf32, #tpu.memory_space<vmem>>, %arg4: memref<1x128x128xf32, #tpu.memory_space<vmem>>) attributes {dimension_semantics = [#tpu.dimension_semantics<parallel>], iteration_bounds = array<i64: 4>, scalar_prefetch = 0 : i64, scratch_operands = 0 : i64, tpu.core_type = #tpu.core_type<tc>, window_params = [{transform_indices = @transform_0, window_bounds = array<i64: 1, 128, 256>}, {transform_indices = @transform_1, window_bounds = array<i64: 1, 256, 128>}, {pipeline_mode = #tpu.pipeline_mode<synchronous>, transform_indices = @transform_2, window_bounds = array<i64: 1, 128>}, {transform_indices = @transform_3, window_bounds = array<i64: 1, 128, 128>}]} {
    %c0 = arith.constant 0 : index
    %c0_0 = arith.constant 0 : index
    %c0_1 = arith.constant 0 : index
    %0 = vector.load %arg1[%c0, %c0_0, %c0_1] : memref<1x128x256xbf16, #tpu.memory_space<vmem>>, vector<1x128x256xbf16>
    %1 = vector.shape_cast %0 : vector<1x128x256xbf16> to vector<128x256xbf16>
    %c0_2 = arith.constant 0 : index
    %c0_3 = arith.constant 0 : index
    %c0_4 = arith.constant 0 : index
    %2 = vector.load %arg2[%c0_2, %c0_3, %c0_4] : memref<1x256x128xbf16, #tpu.memory_space<vmem>>, vector<1x256x128xbf16>
    %3 = vector.shape_cast %2 : vector<1x256x128xbf16> to vector<256x128xbf16>
    %cst = arith.constant dense<0.000000e+00> : vector<128x128xf32>
    %4 = tpu.matmul %1, %3, %cst {dimension_numbers = #tpu.dot_dimension_numbers<[1], [0], [0], [1], [0, 0, 1, 1], [], []>} : vector<128x256xbf16>, vector<256x128xbf16>, vector<128x128xf32> -> vector<128x128xf32>
    %c0_5 = arith.constant 0 : index
    %c0_6 = arith.constant 0 : index
    %5 = vector.load %arg3[%c0_5, %c0_6] : memref<1x128xf32, #tpu.memory_space<vmem>>, vector<1x128xf32>
    %6 = vector.broadcast %5 : vector<1x128xf32> to vector<128x128xf32>
    %7 = arith.addf %4, %6 : vector<128x128xf32>
    %8 = math.tanh %7 : vector<128x128xf32>
    %c0_7 = arith.constant 0 : index
    %c0_8 = arith.constant 0 : index
    %c0_9 = arith.constant 0 : index
    %9 = vector.load %arg4[%c0_7, %c0_8, %c0_9] : memref<1x128x128xf32, #tpu.memory_space<vmem>>, vector<1x128x128xf32>
    %10 = vector.shape_cast %9 : vector<1x128x128xf32> to vector<128x128xf32>
    %11 = vector.shape_cast %8 : vector<128x128xf32> to vector<1x128x128xf32>
    tpu.vector_store %arg4[%c0_7, %c0_8, %c0_9], %11 {strides = array<i32>} : memref<1x128x128xf32, #tpu.memory_space<vmem>>, vector<1x128x128xf32>,
    return
  }
  func.func @transform_0(%arg0: i32) -> (i32, i32, i32) {
    %c0_i32 = arith.constant 0 : i32
    %c0_i32_0 = arith.constant 0 : i32
    %c0_i32_1 = arith.constant 0 : i32
    return %arg0, %c0_i32, %c0_i32_0 : i32, i32, i32
  }
  func.func @transform_1(%arg0: i32) -> (i32, i32, i32) {
    %c0_i32 = arith.constant 0 : i32
    %c0_i32_0 = arith.constant 0 : i32
    %c0_i32_1 = arith.constant 0 : i32
    return %arg0, %c0_i32, %c0_i32_0 : i32, i32, i32
  }
  func.func @transform_2(%arg0: i32) -> (i32, i32) {
    %c0_i32 = arith.constant 0 : i32
    %c0_i32_0 = arith.constant 0 : i32
    %c0_i32_1 = arith.constant 0 : i32
    return %c0_i32, %c0_i32_0 : i32, i32
  }
  func.func @transform_3(%arg0: i32) -> (i32, i32, i32) {
    %c0_i32 = arith.constant 0 : i32
    %c0_i32_0 = arith.constant 0 : i32
    %c0_i32_1 = arith.constant 0 : i32
    return %arg0, %c0_i32, %c0_i32_0 : i32, i32, i32
  }
}

</mosaic_0001>

<llo_original>
// kernel: _lambda_.4
$region0: #{_lambda_.4}
  #allocation0 [shape = 'u32[]', space=smem, size = 0x4, offset = 0x4, fixed_abs, tag = 'smem constant byte address 0x4 - core index']
  #allocation1 [shape = 'u32[144,128]{1,0:T(1,128)}', space=vmem, size = 0x12000, scoped, tag = 'internal scratch']
  %s0 = inlined_call_operand.vmem [shape: bf16[4,32,512], index: 0, kind: input, shape index: {}]
  %s1 = inlined_call_operand.vmem [shape: bf16[4,512,64], index: 1, kind: input, shape index: {}]
  %s2 = inlined_call_operand.vmem [shape: f32[1,64], index: 2, kind: input, shape index: {}]
  %s3 = inlined_call_operand.vmem [shape: f32[1,64], index: 3, kind: input, shape index: {}]
  %s4 = inlined_call_operand.vmem [shape: f32[1,64], index: 4, kind: input, shape index: {}]
  %s5 = inlined_call_operand.vmem [shape: bf16[128,64], index: 5, kind: output, shape index: {}]
  %s6 = sld [smem:[#allocation0]]
  $region30: #{_lambda_.4} parent=0
    _
  %s8 = ssub.s32 1, %s6
  %s9 = scalar_select 0, %s8, %s6
  // Predicated region
  $region2: #{_lambda_.4} parent=0 // pred_check
    _
  $region3: #{_lambda_.4} parent=0 // pred_check_branch
    %11 = sbr.rel (0) target = $region5
  $region4: #{_lambda_.4} parent=0 // pred_region
    _
  $region5: #{_lambda_.4} parent=0 // pred_fallthru
    _
  // Predicated region
  $region6: #{_lambda_.4} parent=0 // pred_check
    _
  $region7: #{_lambda_.4} parent=0 // pred_check_branch
    %13 = sbr.rel (0) target = $region9
  $region8: #{_lambda_.4} parent=0 // pred_region
    _
  $region9: #{_lambda_.4} parent=0 // pred_fallthru
    _
  // Predicated region
  $region10: #{_lambda_.4} parent=0 // pred_check
    _
  $region11: #{_lambda_.4} parent=0 // pred_check_branch
    %15 = sbr.rel (0) target = $region13
  $region12: #{_lambda_.4} parent=0 // pred_region
    _
  $region13: #{_lambda_.4} parent=0 // pred_fallthru
    _
  // Predicated region
  $region14: #{_lambda_.4} parent=0 // pred_check
    _
  $region15: #{_lambda_.4} parent=0 // pred_check_branch
    %17 = sbr.rel (0) target = $region17
  $region16: #{_lambda_.4} parent=0 // pred_region
    _
  $region17: #{_lambda_.4} parent=0 // pred_fallthru
    _
  // Predicated region
  $region18: #{_lambda_.4} parent=0 // pred_check
    _
  $region19: #{_lambda_.4} parent=0 // pred_check_branch
    %19 = sbr.rel (0) target = $region21
  $region20: #{_lambda_.4} parent=0 // pred_region
    _
  $region21: #{_lambda_.4} parent=0 // pred_fallthru
    _
  %v21 = vld [vmem:[%s0] sm:$0xff]
  %v22 = vld [vmem:[%s0 + $0x8] sm:$0xff]
  %v23 = vld [vmem:[%s0 + $0x10] sm:$0xff]
  %v24 = vld [vmem:[%s0 + $0x18] sm:$0xff]
  %v25 = vld [vmem:[%s0 + $0x20] sm:$0xff]
  %v26 = vld [vmem:[%s0 + $0x28] sm:$0xff]
  %v27 = vld [vmem:[%s0 + $0x30] sm:$0xff]
  %v28 = vld [vmem:[%s0 + $0x38] sm:$0xff]
  %v29 = vld [vmem:[%s1] sm:$0xf]
  %v30 = vld [vmem:[%s1 + $0x4] sm:$0xf]
  %v31 = vld [vmem:[%s1 + $0x8] sm:$0xf]
  %v32 = vld [vmem:[%s1 + $0xc] sm:$0xf]
  %v33 = vld [vmem:[%s1 + $0x10] sm:$0xf]
  %v34 = vld [vmem:[%s1 + $0x14] sm:$0xf]
  %v35 = vld [vmem:[%s1 + $0x18] sm:$0xf]
  %v36 = vld [vmem:[%s1 + $0x1c] sm:$0xf]
  %v37 = vld [vmem:[%s1 + $0x20] sm:$0xf]
  %v38 = vld [vmem:[%s1 + $0x24] sm:$0xf]
  %v39 = vld [vmem:[%s1 + $0x28] sm:$0xf]
  %v40 = vld [vmem:[%s1 + $0x2c] sm:$0xf]
  %v41 = vld [vmem:[%s1 + $0x30] sm:$0xf]
  %v42 = vld [vmem:[%s1 + $0x34] sm:$0xf]
  %v43 = vld [vmem:[%s1 + $0x38] sm:$0xf]
  %v44 = vld [vmem:[%s1 + $0x3c] sm:$0xf]
  %v45 = vld [vmem:[%s1 + $0x40] sm:$0xf]
  %v46 = vld [vmem:[%s1 + $0x44] sm:$0xf]
  %v47 = vld [vmem:[%s1 + $0x48] sm:$0xf]
  %v48 = vld [vmem:[%s1 + $0x4c] sm:$0xf]
  %v49 = vld [vmem:[%s1 + $0x50] sm:$0xf]
  %v50 = vld [vmem:[%s1 + $0x54] sm:$0xf]
  %v51 = vld [vmem:[%s1 + $0x58] sm:$0xf]
  %v52 = vld [vmem:[%s1 + $0x5c] sm:$0xf]
  %v53 = vld [vmem:[%s1 + $0x60] sm:$0xf]
  %v54 = vld [vmem:[%s1 + $0x64] sm:$0xf]
  %v55 = vld [vmem:[%s1 + $0x68] sm:$0xf]
  %v56 = vld [vmem:[%s1 + $0x6c] sm:$0xf]
  %v57 = vld [vmem:[%s1 + $0x70] sm:$0xf]
  %v58 = vld [vmem:[%s1 + $0x74] sm:$0xf]
  %v59 = vld [vmem:[%s1 + $0x78] sm:$0xf]
  %v60 = vld [vmem:[%s1 + $0x7c] sm:$0xf]
  %v61 = vld [vmem:[%s1 + $0x80] sm:$0xf]
  %v62 = vld [vmem:[%s1 + $0x84] sm:$0xf]
  %v63 = vld [vmem:[%s1 + $0x88] sm:$0xf]
  %v64 = vld [vmem:[%s1 + $0x8c] sm:$0xf]
  %v65 = vld [vmem:[%s1 + $0x90] sm:$0xf]
  %v66 = vld [vmem:[%s1 + $0x94] sm:$0xf]
  %v67 = vld [vmem:[%s1 + $0x98] sm:$0xf]
  %v68 = vld [vmem:[%s1 + $0x9c] sm:$0xf]
  %v69 = vld [vmem:[%s1 + $0xa0] sm:$0xf]
  %v70 = vld [vmem:[%s1 + $0xa4] sm:$0xf]
  %v71 = vld [vmem:[%s1 + $0xa8] sm:$0xf]
  %v72 = vld [vmem:[%s1 + $0xac] sm:$0xf]
  %v73 = vld [vmem:[%s1 + $0xb0] sm:$0xf]
  %v74 = vld [vmem:[%s1 + $0xb4] sm:$0xf]
  %v75 = vld [vmem:[%s1 + $0xb8] sm:$0xf]
  %v76 = vld [vmem:[%s1 + $0xbc] sm:$0xf]
  %v77 = vld [vmem:[%s1 + $0xc0] sm:$0xf]
  %v78 = vld [vmem:[%s1 + $0xc4] sm:$0xf]
  %v79 = vld [vmem:[%s1 + $0xc8] sm:$0xf]
  %v80 = vld [vmem:[%s1 + $0xcc] sm:$0xf]
  %v81 = vld [vmem:[%s1 + $0xd0] sm:$0xf]
  %v82 = vld [vmem:[%s1 + $0xd4] sm:$0xf]
  %v83 = vld [vmem:[%s1 + $0xd8] sm:$0xf]
  %v84 = vld [vmem:[%s1 + $0xdc] sm:$0xf]
  %v85 = vld [vmem:[%s1 + $0xe0] sm:$0xf]
  %v86 = vld [vmem:[%s1 + $0xe4] sm:$0xf]
  %v87 = vld [vmem:[%s1 + $0xe8] sm:$0xf]
  %v88 = vld [vmem:[%s1 + $0xec] sm:$0xf]
  %v89 = vld [vmem:[%s1 + $0xf0] sm:$0xf]
  %v90 = vld [vmem:[%s1 + $0xf4] sm:$0xf]
  %v91 = vld [vmem:[%s1 + $0xf8] sm:$0xf]
  %v92 = vld [vmem:[%s1 + $0xfc] sm:$0xf]
  %v101 = vunpack.c.l.b16 %v21
  %v102 = vunpack.c.h.b16 %v21
  %v103 = vunpack.c.l.b16 %v22
  %v104 = vunpack.c.h.b16 %v22
  %v105 = vunpack.c.l.b16 %v23
  %v106 = vunpack.c.h.b16 %v23
  %v107 = vunpack.c.l.b16 %v24
  %v108 = vunpack.c.h.b16 %v24
  %v109 = vunpack.c.l.b16 %v25
  %v110 = vunpack.c.h.b16 %v25
  %v111 = vunpack.c.l.b16 %v26
  %v112 = vunpack.c.h.b16 %v26
  %v113 = vunpack.c.l.b16 %v27
  %v114 = vunpack.c.h.b16 %v27
  %v115 = vunpack.c.l.b16 %v28
  %v116 = vunpack.c.h.b16 %v28
  %v117 = vpack.c.b16 %v105, %v101
  %v118 = vpack.c.b16 %v106, %v102
  %v119 = vpack.c.b16 %v107, %v103
  %v120 = vpack.c.b16 %v108, %v104
  %v121 = vpack.c.b16 %v113, %v109
  %v122 = vpack.c.b16 %v114, %v110
  %v123 = vpack.c.b16 %v115, %v111
  %v124 = vpack.c.b16 %v116, %v112
  %v197 = vunpack.c.l.b16 %v29
  %v198 = vunpack.c.l.b16 %v30
  %v199 = vunpack.c.l.b16 %v31
  %v200 = vunpack.c.l.b16 %v32
  %v201 = vunpack.c.l.b16 %v33
  %v202 = vunpack.c.l.b16 %v34
  %v203 = vunpack.c.l.b16 %v35
  %v204 = vunpack.c.l.b16 %v36
  %v205 = vunpack.c.l.b16 %v37
  %v206 = vunpack.c.l.b16 %v38
  %v207 = vunpack.c.l.b16 %v39
  %v208 = vunpack.c.l.b16 %v40
  %v209 = vunpack.c.l.b16 %v41
  %v210 = vunpack.c.l.b16 %v42
  %v211 = vunpack.c.l.b16 %v43
  %v212 = vunpack.c.l.b16 %v44
  %v213 = vunpack.c.l.b16 %v45
  %v214 = vunpack.c.l.b16 %v46
  %v215 = vunpack.c.l.b16 %v47
  %v216 = vunpack.c.l.b16 %v48
  %v217 = vunpack.c.l.b16 %v49
  %v218 = vunpack.c.l.b16 %v50
  %v219 = vunpack.c.l.b16 %v51
  %v220 = vunpack.c.l.b16 %v52
  %v221 = vunpack.c.l.b16 %v53
  %v222 = vunpack.c.l.b16 %v54
  %v223 = vunpack.c.l.b16 %v55
  %v224 = vunpack.c.l.b16 %v56
  %v225 = vunpack.c.l.b16 %v57
  %v226 = vunpack.c.l.b16 %v58
  %v227 = vunpack.c.l.b16 %v59
  %v228 = vunpack.c.l.b16 %v60
  %v229 = vunpack.c.l.b16 %v61
  %v230 = vunpack.c.l.b16 %v62
  %v231 = vunpack.c.l.b16 %v63
  %v232 = vunpack.c.l.b16 %v64
  %v233 = vunpack.c.l.b16 %v65
  %v234 = vunpack.c.l.b16 %v66
  %v235 = vunpack.c.l.b16 %v67
  %v236 = vunpack.c.l.b16 %v68
  %v237 = vunpack.c.l.b16 %v69
  %v238 = vunpack.c.l.b16 %v70
  %v239 = vunpack.c.l.b16 %v71
  %v240 = vunpack.c.l.b16 %v72
  %v241 = vunpack.c.l.b16 %v73
  %v242 = vunpack.c.l.b16 %v74
  %v243 = vunpack.c.l.b16 %v75
  %v244 = vunpack.c.l.b16 %v76
  %v245 = vunpack.c.l.b16 %v77
  %v246 = vunpack.c.l.b16 %v78
  %v247 = vunpack.c.l.b16 %v79
  %v248 = vunpack.c.l.b16 %v80
  %v249 = vunpack.c.l.b16 %v81
  %v250 = vunpack.c.l.b16 %v82
  %v251 = vunpack.c.l.b16 %v83
  %v252 = vunpack.c.l.b16 %v84
  %v253 = vunpack.c.l.b16 %v85
  %v254 = vunpack.c.l.b16 %v86
  %v255 = vunpack.c.l.b16 %v87
  %v256 = vunpack.c.l.b16 %v88
  %v257 = vunpack.c.l.b16 %v89
  %v258 = vunpack.c.l.b16 %v90
  %v259 = vunpack.c.l.b16 %v91
  %v260 = vunpack.c.l.b16 %v92
  %v261 = vpack.c.b16 %v198, %v197
  %v262 = vpack.c.b16 %v200, %v199
  %v263 = vpack.c.b16 %v202, %v201
  %v264 = vpack.c.b16 %v204, %v203
  %v265 = vpack.c.b16 %v206, %v205
  %v266 = vpack.c.b16 %v208, %v207
  %v267 = vpack.c.b16 %v210, %v209
  %v268 = vpack.c.b16 %v212, %v211
  %v269 = vpack.c.b16 %v214, %v213
  %v270 = vpack.c.b16 %v216, %v215
  %v271 = vpack.c.b16 %v218, %v217
  %v272 = vpack.c.b16 %v220, %v219
  %v273 = vpack.c.b16 %v222, %v221
  %v274 = vpack.c.b16 %v224, %v223
  %v275 = vpack.c.b16 %v226, %v225
  %v276 = vpack.c.b16 %v228, %v227
  %v277 = vpack.c.b16 %v230, %v229
  %v278 = vpack.c.b16 %v232, %v231
  %v279 = vpack.c.b16 %v234, %v233
  %v280 = vpack.c.b16 %v236, %v235
  %v281 = vpack.c.b16 %v238, %v237
  %v282 = vpack.c.b16 %v240, %v239
  %v283 = vpack.c.b16 %v242, %v241
  %v284 = vpack.c.b16 %v244, %v243
  %v285 = vpack.c.b16 %v246, %v245
  %v286 = vpack.c.b16 %v248, %v247
  %v287 = vpack.c.b16 %v250, %v249
  %v288 = vpack.c.b16 %v252, %v251
  %v289 = vpack.c.b16 %v254, %v253
  %v290 = vpack.c.b16 %v256, %v255
  %v291 = vpack.c.b16 %v258, %v257
  %v292 = vpack.c.b16 %v260, %v259
  %325 = vmatprep.subr.bf16.mxu0 0
  %326 = vmatpush1.bf16.msra.mxu0 %v268
  %327 = vmatprep.subr.bf16.mxu0 0
  %328 = vmatpush1.bf16.msra.mxu0 %v267
  %329 = vmatprep.subr.bf16.mxu0 0
  %330 = vmatpush1.bf16.msra.mxu0 %v266
  %331 = vmatprep.subr.bf16.mxu0 0
  %332 = vmatpush1.bf16.msra.mxu0 %v265
  %333 = vmatprep.subr.bf16.mxu0 0
  %334 = vmatpush1.bf16.msra.mxu0 %v264
  %335 = vmatprep.subr.bf16.mxu0 0
  %336 = vmatpush1.bf16.msra.mxu0 %v263
  %337 = vmatprep.subr.bf16.mxu0 0
  %338 = vmatpush1.bf16.msra.mxu0 %v262
  %339 = vmatprep.subr.bf16.mxu0 0
  %340 = vmatpush1.bf16.msra.mxu0 %v261
  %341 = vmatprep.subr.bf16.mxu0 0
  %342 = vmatpush2.bf16.msra.mxu0 %v276
  %343 = vmatprep.subr.bf16.mxu0 0
  %344 = vmatpush2.bf16.msra.mxu0 %v275
  %345 = vmatprep.subr.bf16.mxu0 0
  %346 = vmatpush2.bf16.msra.mxu0 %v274
  %347 = vmatprep.subr.bf16.mxu0 0
  %348 = vmatpush2.bf16.msra.mxu0 %v273
  %349 = vmatprep.subr.bf16.mxu0 0
  %350 = vmatpush2.bf16.msra.mxu0 %v272
  %351 = vmatprep.subr.bf16.mxu0 0
  %352 = vmatpush2.bf16.msra.mxu0 %v271
  %353 = vmatprep.subr.bf16.mxu0 0
  %354 = vmatpush2.bf16.msra.mxu0 %v270
  %355 = vmatprep.subr.bf16.mxu0 0
  %356 = vmatpush2.bf16.msra.mxu0 %v269
  %357 = vmatprep.mubr.bf16.mxu0 %v118
  %358 = vmatmul.mubr.bf16.gmra.mxu0 %v117
  %v359 = vpop.f32.mrf.mxu0
  %v360 = vadd.f32 0.0, %v359
  %v361 = vpop.f32.mrf.mxu0
  %v362 = vpop.f32.mrf.mxu0
  %v363 = vadd.f32 0.0, %v362
  %v364 = vpop.f32.mrf.mxu0
  %365 = vmatprep.mubr.bf16.mxu0 %v122
  %366 = vmatmul.mubr.bf16.gmra.mxu0 %v121
  %v367 = vpop.f32.mrf.mxu0
  %v368 = vadd.f32 0.0, %v367
  %v369 = vpop.f32.mrf.mxu0
  %v370 = vpop.f32.mrf.mxu0
  %v371 = vadd.f32 0.0, %v370
  %v372 = vpop.f32.mrf.mxu0
  %373 = vdwg.mxu0
  %374 = vmatprep.subr.bf16.mxu0 0
  %375 = vmatpush1.bf16.msra.mxu0 %v284
  %376 = vmatprep.subr.bf16.mxu0 0
  %377 = vmatpush1.bf16.msra.mxu0 %v283
  %378 = vmatprep.subr.bf16.mxu0 0
  %379 = vmatpush1.bf16.msra.mxu0 %v282
  %380 = vmatprep.subr.bf16.mxu0 0
  %381 = vmatpush1.bf16.msra.mxu0 %v281
  %382 = vmatprep.subr.bf16.mxu0 0
  %383 = vmatpush1.bf16.msra.mxu0 %v280
  %384 = vmatprep.subr.bf16.mxu0 0
  %385 = vmatpush1.bf16.msra.mxu0 %v279
  %386 = vmatprep.subr.bf16.mxu0 0
  %387 = vmatpush1.bf16.msra.mxu0 %v278
  %388 = vmatprep.subr.bf16.mxu0 0
  %389 = vmatpush1.bf16.msra.mxu0 %v277
  %390 = vmatprep.subr.bf16.mxu0 0
  %391 = vmatpush2.bf16.msra.mxu0 %v292
  %392 = vmatprep.subr.bf16.mxu0 0
  %393 = vmatpush2.bf16.msra.mxu0 %v291
  %394 = vmatprep.subr.bf16.mxu0 0
  %395 = vmatpush2.bf16.msra.mxu0 %v290
  %396 = vmatprep.subr.bf16.mxu0 0
  %397 = vmatpush2.bf16.msra.mxu0 %v289
  %398 = vmatprep.subr.bf16.mxu0 0
  %399 = vmatpush2.bf16.msra.mxu0 %v288
  %400 = vmatprep.subr.bf16.mxu0 0
  %401 = vmatpush2.bf16.msra.mxu0 %v287
  %402 = vmatprep.subr.bf16.mxu0 0
  %403 = vmatpush2.bf16.msra.mxu0 %v286
  %404 = vmatprep.subr.bf16.mxu0 0
  %405 = vmatpush2.bf16.msra.mxu0 %v285
  %406 = vmatprep.mubr.bf16.mxu0 %v120
  %407 = vmatmul.mubr.bf16.gmra.mxu0 %v119
  %v408 = vpop.f32.mrf.mxu0
  %v409 = vadd.f32 %v360, %v408
  %v410 = vpop.f32.mrf.mxu0
  %v411 = vpop.f32.mrf.mxu0
  %v412 = vadd.f32 %v363, %v411
  %v413 = vpop.f32.mrf.mxu0
  %414 = vmatprep.mubr.bf16.mxu0 %v124
  %415 = vmatmul.mubr.bf16.gmra.mxu0 %v123
  %v416 = vpop.f32.mrf.mxu0
  %v417 = vadd.f32 %v368, %v416
  %v418 = vpop.f32.mrf.mxu0
  %v419 = vpop.f32.mrf.mxu0
  %v420 = vadd.f32 %v371, %v419
  %v421 = vpop.f32.mrf.mxu0
  %422 = vdwg.mxu0
  %s423 = scalar_lea.vmem %s0, 64
  %v424 = vld [vmem:[%s423] sm:$0xff]
  %v425 = vld [vmem:[%s423 + $0x8] sm:$0xff]
  %v426 = vld [vmem:[%s423 + $0x10] sm:$0xff]
  %v427 = vld [vmem:[%s423 + $0x18] sm:$0xff]
  %v428 = vld [vmem:[%s423 + $0x20] sm:$0xff]
  %v429 = vld [vmem:[%s423 + $0x28] sm:$0xff]
  %v430 = vld [vmem:[%s423 + $0x30] sm:$0xff]
  %v431 = vld [vmem:[%s423 + $0x38] sm:$0xff]
  %s432 = scalar_lea.vmem %s1, 256
  %v433 = vld [vmem:[%s432] sm:$0xf]
  %v434 = vld [vmem:[%s432 + $0x4] sm:$0xf]
  %v435 = vld [vmem:[%s432 + $0x8] sm:$0xf]
  %v436 = vld [vmem:[%s432 + $0xc] sm:$0xf]
  %v437 = vld [vmem:[%s432 + $0x10] sm:$0xf]
  %v438 = vld [vmem:[%s432 + $0x14] sm:$0xf]
  %v439 = vld [vmem:[%s432 + $0x18] sm:$0xf]
  %v440 = vld [vmem:[%s432 + $0x1c] sm:$0xf]
  %v441 = vld [vmem:[%s432 + $0x20] sm:$0xf]
  %v442 = vld [vmem:[%s432 + $0x24] sm:$0xf]
  %v443 = vld [vmem:[%s432 + $0x28] sm:$0xf]
  %v444 = vld [vmem:[%s432 + $0x2c] sm:$0xf]
  %v445 = vld [vmem:[%s432 + $0x30] sm:$0xf]
  %v446 = vld [vmem:[%s432 + $0x34] sm:$0xf]
  %v447 = vld [vmem:[%s432 + $0x38] sm:$0xf]
  %v448 = vld [vmem:[%s432 + $0x3c] sm:$0xf]
  %v449 = vld [vmem:[%s432 + $0x40] sm:$0xf]
  %v450 = vld [vmem:[%s432 + $0x44] sm:$0xf]
  %v451 = vld [vmem:[%s432 + $0x48] sm:$0xf]
  %v452 = vld [vmem:[%s432 + $0x4c] sm:$0xf]
  %v453 = vld [vmem:[%s432 + $0x50] sm:$0xf]
  %v454 = vld [vmem:[%s432 + $0x54] sm:$0xf]
  %v455 = vld [vmem:[%s432 + $0x58] sm:$0xf]
  %v456 = vld [vmem:[%s432 + $0x5c] sm:$0xf]
  %v457 = vld [vmem:[%s432 + $0x60] sm:$0xf]
  %v458 = vld [vmem:[%s432 + $0x64] sm:$0xf]
  %v459 = vld [vmem:[%s432 + $0x68] sm:$0xf]
  %v460 = vld [vmem:[%s432 + $0x6c] sm:$0xf]
  %v461 = vld [vmem:[%s432 + $0x70] sm:$0xf]
  %v462 = vld [vmem:[%s432 + $0x74] sm:$0xf]
  %v463 = vld [vmem:[%s432 + $0x78] sm:$0xf]
  %v464 = vld [vmem:[%s432 + $0x7c] sm:$0xf]
  %v465 = vld [vmem:[%s432 + $0x80] sm:$0xf]
  %v466 = vld [vmem:[%s432 + $0x84] sm:$0xf]
  %v467 = vld [vmem:[%s432 + $0x88] sm:$0xf]
  %v468 = vld [vmem:[%s432 + $0x8c] sm:$0xf]
  %v469 = vld [vmem:[%s432 + $0x90] sm:$0xf]
  %v470 = vld [vmem:[%s432 + $0x94] sm:$0xf]
  %v471 = vld [vmem:[%s432 + $0x98] sm:$0xf]
  %v472 = vld [vmem:[%s432 + $0x9c] sm:$0xf]
  %v473 = vld [vmem:[%s432 + $0xa0] sm:$0xf]
  %v474 = vld [vmem:[%s432 + $0xa4] sm:$0xf]
  %v475 = vld [vmem:[%s432 + $0xa8] sm:$0xf]
  %v476 = vld [vmem:[%s432 + $0xac] sm:$0xf]
  %v477 = vld [vmem:[%s432 + $0xb0] sm:$0xf]
  %v478 = vld [vmem:[%s432 + $0xb4] sm:$0xf]
  %v479 = vld [vmem:[%s432 + $0xb8] sm:$0xf]
  %v480 = vld [vmem:[%s432 + $0xbc] sm:$0xf]
  %v481 = vld [vmem:[%s432 + $0xc0] sm:$0xf]
  %v482 = vld [vmem:[%s432 + $0xc4] sm:$0xf]
  %v483 = vld [vmem:[%s432 + $0xc8] sm:$0xf]
  %v484 = vld [vmem:[%s432 + $0xcc] sm:$0xf]
  %v485 = vld [vmem:[%s432 + $0xd0] sm:$0xf]
  %v486 = vld [vmem:[%s432 + $0xd4] sm:$0xf]
  %v487 = vld [vmem:[%s432 + $0xd8] sm:$0xf]
  %v488 = vld [vmem:[%s432 + $0xdc] sm:$0xf]
  %v489 = vld [vmem:[%s432 + $0xe0] sm:$0xf]
  %v490 = vld [vmem:[%s432 + $0xe4] sm:$0xf]
  %v491 = vld [vmem:[%s432 + $0xe8] sm:$0xf]
  %v492 = vld [vmem:[%s432 + $0xec] sm:$0xf]
  %v493 = vld [vmem:[%s432 + $0xf0] sm:$0xf]
  %v494 = vld [vmem:[%s432 + $0xf4] sm:$0xf]
  %v495 = vld [vmem:[%s432 + $0xf8] sm:$0xf]
  %v496 = vld [vmem:[%s432 + $0xfc] sm:$0xf]
  %v505 = vunpack.c.l.b16 %v424
  %v506 = vunpack.c.h.b16 %v424
  %v507 = vunpack.c.l.b16 %v425
  %v508 = vunpack.c.h.b16 %v425
  %v509 = vunpack.c.l.b16 %v426
  %v510 = vunpack.c.h.b16 %v426
  %v511 = vunpack.c.l.b16 %v427
  %v512 = vunpack.c.h.b16 %v427
  %v513 = vunpack.c.l.b16 %v428
  %v514 = vunpack.c.h.b16 %v428
  %v515 = vunpack.c.l.b16 %v429
  %v516 = vunpack.c.h.b16 %v429
  %v517 = vunpack.c.l.b16 %v430
  %v518 = vunpack.c.h.b16 %v430
  %v519 = vunpack.c.l.b16 %v431
  %v520 = vunpack.c.h.b16 %v431
  %v521 = vpack.c.b16 %v509, %v505
  %v522 = vpack.c.b16 %v510, %v506
  %v523 = vpack.c.b16 %v511, %v507
  %v524 = vpack.c.b16 %v512, %v508
  %v525 = vpack.c.b16 %v517, %v513
  %v526 = vpack.c.b16 %v518, %v514
  %v527 = vpack.c.b16 %v519, %v515
  %v528 = vpack.c.b16 %v520, %v516
  %v601 = vunpack.c.l.b16 %v433
  %v602 = vunpack.c.l.b16 %v434
  %v603 = vunpack.c.l.b16 %v435
  %v604 = vunpack.c.l.b16 %v436
  %v605 = vunpack.c.l.b16 %v437
  %v606 = vunpack.c.l.b16 %v438
  %v607 = vunpack.c.l.b16 %v439
  %v608 = vunpack.c.l.b16 %v440
  %v609 = vunpack.c.l.b16 %v441
  %v610 = vunpack.c.l.b16 %v442
  %v611 = vunpack.c.l.b16 %v443
  %v612 = vunpack.c.l.b16 %v444
  %v613 = vunpack.c.l.b16 %v445
  %v614 = vunpack.c.l.b16 %v446
  %v615 = vunpack.c.l.b16 %v447
  %v616 = vunpack.c.l.b16 %v448
  %v617 = vunpack.c.l.b16 %v449
  %v618 = vunpack.c.l.b16 %v450
  %v619 = vunpack.c.l.b16 %v451
  %v620 = vunpack.c.l.b16 %v452
  %v621 = vunpack.c.l.b16 %v453
  %v622 = vunpack.c.l.b16 %v454
  %v623 = vunpack.c.l.b16 %v455
  %v624 = vunpack.c.l.b16 %v456
  %v625 = vunpack.c.l.b16 %v457
  %v626 = vunpack.c.l.b16 %v458
  %v627 = vunpack.c.l.b16 %v459
  %v628 = vunpack.c.l.b16 %v460
  %v629 = vunpack.c.l.b16 %v461
  %v630 = vunpack.c.l.b16 %v462
  %v631 = vunpack.c.l.b16 %v463
  %v632 = vunpack.c.l.b16 %v464
  %v633 = vunpack.c.l.b16 %v465
  %v634 = vunpack.c.l.b16 %v466
  %v635 = vunpack.c.l.b16 %v467
  %v636 = vunpack.c.l.b16 %v468
  %v637 = vunpack.c.l.b16 %v469
  %v638 = vunpack.c.l.b16 %v470
  %v639 = vunpack.c.l.b16 %v471
  %v640 = vunpack.c.l.b16 %v472
  %v641 = vunpack.c.l.b16 %v473
  %v642 = vunpack.c.l.b16 %v474
  %v643 = vunpack.c.l.b16 %v475
  %v644 = vunpack.c.l.b16 %v476
  %v645 = vunpack.c.l.b16 %v477
  %v646 = vunpack.c.l.b16 %v478
  %v647 = vunpack.c.l.b16 %v479
  %v648 = vunpack.c.l.b16 %v480
  %v649 = vunpack.c.l.b16 %v481
  %v650 = vunpack.c.l.b16 %v482
  %v651 = vunpack.c.l.b16 %v483
  %v652 = vunpack.c.l.b16 %v484
  %v653 = vunpack.c.l.b16 %v485
  %v654 = vunpack.c.l.b16 %v486
  %v655 = vunpack.c.l.b16 %v487
  %v656 = vunpack.c.l.b16 %v488
  %v657 = vunpack.c.l.b16 %v489
  %v658 = vunpack.c.l.b16 %v490
  %v659 = vunpack.c.l.b16 %v491
  %v660 = vunpack.c.l.b16 %v492
  %v661 = vunpack.c.l.b16 %v493
  %v662 = vunpack.c.l.b16 %v494
  %v663 = vunpack.c.l.b16 %v495
  %v664 = vunpack.c.l.b16 %v496
  %v665 = vpack.c.b16 %v602, %v601
  %v666 = vpack.c.b16 %v604, %v603
  %v667 = vpack.c.b16 %v606, %v605
  %v668 = vpack.c.b16 %v608, %v607
  %v669 = vpack.c.b16 %v610, %v609
  %v670 = vpack.c.b16 %v612, %v611
  %v671 = vpack.c.b16 %v614, %v613
  %v672 = vpack.c.b16 %v616, %v615
  %v673 = vpack.c.b16 %v618, %v617
  %v674 = vpack.c.b16 %v620, %v619
  %v675 = vpack.c.b16 %v622, %v621
  %v676 = vpack.c.b16 %v624, %v623
  %v677 = vpack.c.b16 %v626, %v625
  %v678 = vpack.c.b16 %v628, %v627
  %v679 = vpack.c.b16 %v630, %v629
  %v680 = vpack.c.b16 %v632, %v631
  %v681 = vpack.c.b16 %v634, %v633
  %v682 = vpack.c.b16 %v636, %v635
  %v683 = vpack.c.b16 %v638, %v637
  %v684 = vpack.c.b16 %v640, %v639
  %v685 = vpack.c.b16 %v642, %v641
  %v686 = vpack.c.b16 %v644, %v643
  %v687 = vpack.c.b16 %v646, %v645
  %v688 = vpack.c.b16 %v648, %v647
  %v689 = vpack.c.b16 %v650, %v649
  %v690 = vpack.c.b16 %v652, %v651
  %v691 = vpack.c.b16 %v654, %v653
  %v692 = vpack.c.b16 %v656, %v655
  %v693 = vpack.c.b16 %v658, %v657
  %v694 = vpack.c.b16 %v660, %v659
  %v695 = vpack.c.b16 %v662, %v661
  %v696 = vpack.c.b16 %v664, %v663
  %729 = vmatprep.subr.bf16.mxu0 0
  %730 = vmatpush1.bf16.msra.mxu0 %v672
  %731 = vmatprep.subr.bf16.mxu0 0
  %732 = vmatpush1.bf16.msra.mxu0 %v671
  %733 = vmatprep.subr.bf16.mxu0 0
  %734 = vmatpush1.bf16.msra.mxu0 %v670
  %735 = vmatprep.subr.bf16.mxu0 0
  %736 = vmatpush1.bf16.msra.mxu0 %v669
  %737 = vmatprep.subr.bf16.mxu0 0
  %738 = vmatpush1.bf16.msra.mxu0 %v668
  %739 = vmatprep.subr.bf16.mxu0 0
  %740 = vmatpush1.bf16.msra.mxu0 %v667
  %741 = vmatprep.subr.bf16.mxu0 0
  %742 = vmatpush1.bf16.msra.mxu0 %v666
  %743 = vmatprep.subr.bf16.mxu0 0
  %744 = vmatpush1.bf16.msra.mxu0 %v665
  %745 = vmatprep.subr.bf16.mxu0 0
  %746 = vmatpush2.bf16.msra.mxu0 %v680
  %747 = vmatprep.subr.bf16.mxu0 0
  %748 = vmatpush2.bf16.msra.mxu0 %v679
  %749 = vmatprep.subr.bf16.mxu0 0
  %750 = vmatpush2.bf16.msra.mxu0 %v678
  %751 = vmatprep.subr.bf16.mxu0 0
  %752 = vmatpush2.bf16.msra.mxu0 %v677
  %753 = vmatprep.subr.bf16.mxu0 0
  %754 = vmatpush2.bf16.msra.mxu0 %v676
  %755 = vmatprep.subr.bf16.mxu0 0
  %756 = vmatpush2.bf16.msra.mxu0 %v675
  %757 = vmatprep.subr.bf16.mxu0 0
  %758 = vmatpush2.bf16.msra.mxu0 %v674
  %759 = vmatprep.subr.bf16.mxu0 0
  %760 = vmatpush2.bf16.msra.mxu0 %v673
  %761 = vmatprep.mubr.bf16.mxu0 %v522
  %762 = vmatmul.mubr.bf16.gmra.mxu0 %v521
  %v763 = vpop.f32.mrf.mxu0
  %v764 = vadd.f32 0.0, %v763
  %v765 = vpop.f32.mrf.mxu0
  %v766 = vpop.f32.mrf.mxu0
  %v767 = vadd.f32 0.0, %v766
  %v768 = vpop.f32.mrf.mxu0
  %769 = vmatprep.mubr.bf16.mxu0 %v526
  %770 = vmatmul.mubr.bf16.gmra.mxu0 %v525
  %v771 = vpop.f32.mrf.mxu0
  %v772 = vadd.f32 0.0, %v771
  %v773 = vpop.f32.mrf.mxu0
  %v774 = vpop.f32.mrf.mxu0
  %v775 = vadd.f32 0.0, %v774
  %v776 = vpop.f32.mrf.mxu0
  %777 = vdwg.mxu0
  %778 = vmatprep.subr.bf16.mxu0 0
  %779 = vmatpush1.bf16.msra.mxu0 %v688
  %780 = vmatprep.subr.bf16.mxu0 0
  %781 = vmatpush1.bf16.msra.mxu0 %v687
  %782 = vmatprep.subr.bf16.mxu0 0
  %783 = vmatpush1.bf16.msra.mxu0 %v686
  %784 = vmatprep.subr.bf16.mxu0 0
  %785 = vmatpush1.bf16.msra.mxu0 %v685
  %786 = vmatprep.subr.bf16.mxu0 0
  %787 = vmatpush1.bf16.msra.mxu0 %v684
  %788 = vmatprep.subr.bf16.mxu0 0
  %789 = vmatpush1.bf16.msra.mxu0 %v683
  %790 = vmatprep.subr.bf16.mxu0 0
  %791 = vmatpush1.bf16.msra.mxu0 %v682
  %792 = vmatprep.subr.bf16.mxu0 0
  %793 = vmatpush1.bf16.msra.mxu0 %v681
  %794 = vmatprep.subr.bf16.mxu0 0
  %795 = vmatpush2.bf16.msra.mxu0 %v696
  %796 = vmatprep.subr.bf16.mxu0 0
  %797 = vmatpush2.bf16.msra.mxu0 %v695
  %798 = vmatprep.subr.bf16.mxu0 0
  %799 = vmatpush2.bf16.msra.mxu0 %v694
  %800 = vmatprep.subr.bf16.mxu0 0
  %801 = vmatpush2.bf16.msra.mxu0 %v693
  %802 = vmatprep.subr.bf16.mxu0 0
  %803 = vmatpush2.bf16.msra.mxu0 %v692
  %804 = vmatprep.subr.bf16.mxu0 0
  %805 = vmatpush2.bf16.msra.mxu0 %v691
  %806 = vmatprep.subr.bf16.mxu0 0
  %807 = vmatpush2.bf16.msra.mxu0 %v690
  %808 = vmatprep.subr.bf16.mxu0 0
  %809 = vmatpush2.bf16.msra.mxu0 %v689
  %810 = vmatprep.mubr.bf16.mxu0 %v524
  %811 = vmatmul.mubr.bf16.gmra.mxu0 %v523
  %v812 = vpop.f32.mrf.mxu0
  %v813 = vadd.f32 %v764, %v812
  %v814 = vpop.f32.mrf.mxu0
  %v815 = vpop.f32.mrf.mxu0
  %v816 = vadd.f32 %v767, %v815
  %v817 = vpop.f32.mrf.mxu0
  %818 = vmatprep.mubr.bf16.mxu0 %v528
  %819 = vmatmul.mubr.bf16.gmra.mxu0 %v527
  %v820 = vpop.f32.mrf.mxu0
  %v821 = vadd.f32 %v772, %v820
  %v822 = vpop.f32.mrf.mxu0
  %v823 = vpop.f32.mrf.mxu0
  %v824 = vadd.f32 %v775, %v823
  %v825 = vpop.f32.mrf.mxu0
  %826 = vdwg.mxu0
  %s827 = scalar_lea.vmem %s0, 128
  %v828 = vld [vmem:[%s827] sm:$0xff]
  %v829 = vld [vmem:[%s827 + $0x8] sm:$0xff]
  %v830 = vld [vmem:[%s827 + $0x10] sm:$0xff]
  %v831 = vld [vmem:[%s827 + $0x18] sm:$0xff]
  %v832 = vld [vmem:[%s827 + $0x20] sm:$0xff]
  %v833 = vld [vmem:[%s827 + $0x28] sm:$0xff]
  %v834 = vld [vmem:[%s827 + $0x30] sm:$0xff]
  %v835 = vld [vmem:[%s827 + $0x38] sm:$0xff]
  %s836 = scalar_lea.vmem %s1, 512
  %v837 = vld [vmem:[%s836] sm:$0xf]
  %v838 = vld [vmem:[%s836 + $0x4] sm:$0xf]
  %v839 = vld [vmem:[%s836 + $0x8] sm:$0xf]
  %v840 = vld [vmem:[%s836 + $0xc] sm:$0xf]
  %v841 = vld [vmem:[%s836 + $0x10] sm:$0xf]
  %v842 = vld [vmem:[%s836 + $0x14] sm:$0xf]
  %v843 = vld [vmem:[%s836 + $0x18] sm:$0xf]
  %v844 = vld [vmem:[%s836 + $0x1c] sm:$0xf]
  %v845 = vld [vmem:[%s836 + $0x20] sm:$0xf]
  %v846 = vld [vmem:[%s836 + $0x24] sm:$0xf]
  %v847 = vld [vmem:[%s836 + $0x28] sm:$0xf]
  %v848 = vld [vmem:[%s836 + $0x2c] sm:$0xf]
  %v849 = vld [vmem:[%s836 + $0x30] sm:$0xf]
  %v850 = vld [vmem:[%s836 + $0x34] sm:$0xf]
  %v851 = vld [vmem:[%s836 + $0x38] sm:$0xf]
  %v852 = vld [vmem:[%s836 + $0x3c] sm:$0xf]
  %v853 = vld [vmem:[%s836 + $0x40] sm:$0xf]
  %v854 = vld [vmem:[%s836 + $0x44] sm:$0xf]
  %v855 = vld [vmem:[%s836 + $0x48] sm:$0xf]
  %v856 = vld [vmem:[%s836 + $0x4c] sm:$0xf]
  %v857 = vld [vmem:[%s836 + $0x50] sm:$0xf]
  %v858 = vld [vmem:[%s836 + $0x54] sm:$0xf]
  %v859 = vld [vmem:[%s836 + $0x58] sm:$0xf]
  %v860 = vld [vmem:[%s836 + $0x5c] sm:$0xf]
  %v861 = vld [vmem:[%s836 + $0x60] sm:$0xf]
  %v862 = vld [vmem:[%s836 + $0x64] sm:$0xf]
  %v863 = vld [vmem:[%s836 + $0x68] sm:$0xf]
  %v864 = vld [vmem:[%s836 + $0x6c] sm:$0xf]
  %v865 = vld [vmem:[%s836 + $0x70] sm:$0xf]
  %v866 = vld [vmem:[%s836 + $0x74] sm:$0xf]
  %v867 = vld [vmem:[%s836 + $0x78] sm:$0xf]
  %v868 = vld [vmem:[%s836 + $0x7c] sm:$0xf]
  %v869 = vld [vmem:[%s836 + $0x80] sm:$0xf]
  %v870 = vld [vmem:[%s836 + $0x84] sm:$0xf]
  %v871 = vld [vmem:[%s836 + $0x88] sm:$0xf]
  %v872 = vld [vmem:[%s836 + $0x8c] sm:$0xf]
  %v873 = vld [vmem:[%s836 + $0x90] sm:$0xf]
  %v874 = vld [vmem:[%s836 + $0x94] sm:$0xf]
  %v875 = vld [vmem:[%s836 + $0x98] sm:$0xf]
  %v876 = vld [vmem:[%s836 + $0x9c] sm:$0xf]
  %v877 = vld [vmem:[%s836 + $0xa0] sm:$0xf]
  %v878 = vld [vmem:[%s836 + $0xa4] sm:$0xf]
  %v879 = vld [vmem:[%s836 + $0xa8] sm:$0xf]
  %v880 = vld [vmem:[%s836 + $0xac] sm:$0xf]
  %v881 = vld [vmem:[%s836 + $0xb0] sm:$0xf]
  %v882 = vld [vmem:[%s836 + $0xb4] sm:$0xf]
  %v883 = vld [vmem:[%s836 + $0xb8] sm:$0xf]
  %v884 = vld [vmem:[%s836 + $0xbc] sm:$0xf]
  %v885 = vld [vmem:[%s836 + $0xc0] sm:$0xf]
  %v886 = vld [vmem:[%s836 + $0xc4] sm:$0xf]
  %v887 = vld [vmem:[%s836 + $0xc8] sm:$0xf]
  %v888 = vld [vmem:[%s836 + $0xcc] sm:$0xf]
  %v889 = vld [vmem:[%s836 + $0xd0] sm:$0xf]
  %v890 = vld [vmem:[%s836 + $0xd4] sm:$0xf]
  %v891 = vld [vmem:[%s836 + $0xd8] sm:$0xf]
  %v892 = vld [vmem:[%s836 + $0xdc] sm:$0xf]
  %v893 = vld [vmem:[%s836 + $0xe0] sm:$0xf]
  %v894 = vld [vmem:[%s836 + $0xe4] sm:$0xf]
  %v895 = vld [vmem:[%s836 + $0xe8] sm:$0xf]
  %v896 = vld [vmem:[%s836 + $0xec] sm:$0xf]
  %v897 = vld [vmem:[%s836 + $0xf0] sm:$0xf]
  %v898 = vld [vmem:[%s836 + $0xf4] sm:$0xf]
  %v899 = vld [vmem:[%s836 + $0xf8] sm:$0xf]
  %v900 = vld [vmem:[%s836 + $0xfc] sm:$0xf]
  %v909 = vunpack.c.l.b16 %v828
  %v910 = vunpack.c.h.b16 %v828
  %v911 = vunpack.c.l.b16 %v829
  %v912 = vunpack.c.h.b16 %v829
  %v913 = vunpack.c.l.b16 %v830
  %v914 = vunpack.c.h.b16 %v830
  %v915 = vunpack.c.l.b16 %v831
  %v916 = vunpack.c.h.b16 %v831
  %v917 = vunpack.c.l.b16 %v832
  %v918 = vunpack.c.h.b16 %v832
  %v919 = vunpack.c.l.b16 %v833
  %v920 = vunpack.c.h.b16 %v833
  %v921 = vunpack.c.l.b16 %v834
  %v922 = vunpack.c.h.b16 %v834
  %v923 = vunpack.c.l.b16 %v835
  %v924 = vunpack.c.h.b16 %v835
  %v925 = vpack.c.b16 %v913, %v909
  %v926 = vpack.c.b16 %v914, %v910
  %v927 = vpack.c.b16 %v915, %v911
  %v928 = vpack.c.b16 %v916, %v912
  %v929 = vpack.c.b16 %v921, %v917
  %v930 = vpack.c.b16 %v922, %v918
  %v931 = vpack.c.b16 %v923, %v919
  %v932 = vpack.c.b16 %v924, %v920
  %v1005 = vunpack.c.l.b16 %v837
  %v1006 = vunpack.c.l.b16 %v838
  %v1007 = vunpack.c.l.b16 %v839
  %v1008 = vunpack.c.l.b16 %v840
  %v1009 = vunpack.c.l.b16 %v841
  %v1010 = vunpack.c.l.b16 %v842
  %v1011 = vunpack.c.l.b16 %v843
  %v1012 = vunpack.c.l.b16 %v844
  %v1013 = vunpack.c.l.b16 %v845
  %v1014 = vunpack.c.l.b16 %v846
  %v1015 = vunpack.c.l.b16 %v847
  %v1016 = vunpack.c.l.b16 %v848
  %v1017 = vunpack.c.l.b16 %v849
  %v1018 = vunpack.c.l.b16 %v850
  %v1019 = vunpack.c.l.b16 %v851
  %v1020 = vunpack.c.l.b16 %v852
  %v1021 = vunpack.c.l.b16 %v853
  %v1022 = vunpack.c.l.b16 %v854
  %v1023 = vunpack.c.l.b16 %v855
  %v1024 = vunpack.c.l.b16 %v856
  %v1025 = vunpack.c.l.b16 %v857
  %v1026 = vunpack.c.l.b16 %v858
  %v1027 = vunpack.c.l.b16 %v859
  %v1028 = vunpack.c.l.b16 %v860
  %v1029 = vunpack.c.l.b16 %v861
  %v1030 = vunpack.c.l.b16 %v862
  %v1031 = vunpack.c.l.b16 %v863
  %v1032 = vunpack.c.l.b16 %v864
  %v1033 = vunpack.c.l.b16 %v865
  %v1034 = vunpack.c.l.b16 %v866
  %v1035 = vunpack.c.l.b16 %v867
  %v1036 = vunpack.c.l.b16 %v868
  %v1037 = vunpack.c.l.b16 %v869
  %v1038 = vunpack.c.l.b16 %v870
  %v1039 = vunpack.c.l.b16 %v871
  %v1040 = vunpack.c.l.b16 %v872
  %v1041 = vunpack.c.l.b16 %v873
  %v1042 = vunpack.c.l.b16 %v874
  %v1043 = vunpack.c.l.b16 %v875
  %v1044 = vunpack.c.l.b16 %v876
  %v1045 = vunpack.c.l.b16 %v877
  %v1046 = vunpack.c.l.b16 %v878
  %v1047 = vunpack.c.l.b16 %v879
  %v1048 = vunpack.c.l.b16 %v880
  %v1049 = vunpack.c.l.b16 %v881
  %v1050 = vunpack.c.l.b16 %v882
  %v1051 = vunpack.c.l.b16 %v883
  %v1052 = vunpack.c.l.b16 %v884
  %v1053 = vunpack.c.l.b16 %v885
  %v1054 = vunpack.c.l.b16 %v886
  %v1055 = vunpack.c.l.b16 %v887
  %v1056 = vunpack.c.l.b16 %v888
  %v1057 = vunpack.c.l.b16 %v889
  %v1058 = vunpack.c.l.b16 %v890
  %v1059 = vunpack.c.l.b16 %v891
  %v1060 = vunpack.c.l.b16 %v892
  %v1061 = vunpack.c.l.b16 %v893
  %v1062 = vunpack.c.l.b16 %v894
  %v1063 = vunpack.c.l.b16 %v895
  %v1064 = vunpack.c.l.b16 %v896
  %v1065 = vunpack.c.l.b16 %v897
  %v1066 = vunpack.c.l.b16 %v898
  %v1067 = vunpack.c.l.b16 %v899
  %v1068 = vunpack.c.l.b16 %v900
  %v1069 = vpack.c.b16 %v1006, %v1005
  %v1070 = vpack.c.b16 %v1008, %v1007
  %v1071 = vpack.c.b16 %v1010, %v1009
  %v1072 = vpack.c.b16 %v1012, %v1011
  %v1073 = vpack.c.b16 %v1014, %v1013
  %v1074 = vpack.c.b16 %v1016, %v1015
  %v1075 = vpack.c.b16 %v1018, %v1017
  %v1076 = vpack.c.b16 %v1020, %v1019
  %v1077 = vpack.c.b16 %v1022, %v1021
  %v1078 = vpack.c.b16 %v1024, %v1023
  %v1079 = vpack.c.b16 %v1026, %v1025
  %v1080 = vpack.c.b16 %v1028, %v1027
  %v1081 = vpack.c.b16 %v1030, %v1029
  %v1082 = vpack.c.b16 %v1032, %v1031
  %v1083 = vpack.c.b16 %v1034, %v1033
  %v1084 = vpack.c.b16 %v1036, %v1035
  %v1085 = vpack.c.b16 %v1038, %v1037
  %v1086 = vpack.c.b16 %v1040, %v1039
  %v1087 = vpack.c.b16 %v1042, %v1041
  %v1088 = vpack.c.b16 %v1044, %v1043
  %v1089 = vpack.c.b16 %v1046, %v1045
  %v1090 = vpack.c.b16 %v1048, %v1047
  %v1091 = vpack.c.b16 %v1050, %v1049
  %v1092 = vpack.c.b16 %v1052, %v1051
  %v1093 = vpack.c.b16 %v1054, %v1053
  %v1094 = vpack.c.b16 %v1056, %v1055
  %v1095 = vpack.c.b16 %v1058, %v1057
  %v1096 = vpack.c.b16 %v1060, %v1059
  %v1097 = vpack.c.b16 %v1062, %v1061
  %v1098 = vpack.c.b16 %v1064, %v1063
  %v1099 = vpack.c.b16 %v1066, %v1065
  %v1100 = vpack.c.b16 %v1068, %v1067
  %1133 = vmatprep.subr.bf16.mxu0 0
  %1134 = vmatpush1.bf16.msra.mxu0 %v1076
  %1135 = vmatprep.subr.bf16.mxu0 0
  %1136 = vmatpush1.bf16.msra.mxu0 %v1075
  %1137 = vmatprep.subr.bf16.mxu0 0
  %1138 = vmatpush1.bf16.msra.mxu0 %v1074
  %1139 = vmatprep.subr.bf16.mxu0 0
  %1140 = vmatpush1.bf16.msra.mxu0 %v1073
  %1141 = vmatprep.subr.bf16.mxu0 0
  %1142 = vmatpush1.bf16.msra.mxu0 %v1072
  %1143 = vmatprep.subr.bf16.mxu0 0
  %1144 = vmatpush1.bf16.msra.mxu0 %v1071
  %1145 = vmatprep.subr.bf16.mxu0 0
  %1146 = vmatpush1.bf16.msra.mxu0 %v1070
  %1147 = vmatprep.subr.bf16.mxu0 0
  %1148 = vmatpush1.bf16.msra.mxu0 %v1069
  %1149 = vmatprep.subr.bf16.mxu0 0
  %1150 = vmatpush2.bf16.msra.mxu0 %v1084
  %1151 = vmatprep.subr.bf16.mxu0 0
  %1152 = vmatpush2.bf16.msra.mxu0 %v1083
  %1153 = vmatprep.subr.bf16.mxu0 0
  %1154 = vmatpush2.bf16.msra.mxu0 %v1082
  %1155 = vmatprep.subr.bf16.mxu0 0
  %1156 = vmatpush2.bf16.msra.mxu0 %v1081
  %1157 = vmatprep.subr.bf16.mxu0 0
  %1158 = vmatpush2.bf16.msra.mxu0 %v1080
  %1159 = vmatprep.subr.bf16.mxu0 0
  %1160 = vmatpush2.bf16.msra.mxu0 %v1079
  %1161 = vmatprep.subr.bf16.mxu0 0
  %1162 = vmatpush2.bf16.msra.mxu0 %v1078
  %1163 = vmatprep.subr.bf16.mxu0 0
  %1164 = vmatpush2.bf16.msra.mxu0 %v1077
  %1165 = vmatprep.mubr.bf16.mxu0 %v926
  %1166 = vmatmul.mubr.bf16.gmra.mxu0 %v925
  %v1167 = vpop.f32.mrf.mxu0
  %v1168 = vadd.f32 0.0, %v1167
  %v1169 = vpop.f32.mrf.mxu0
  %v1170 = vpop.f32.mrf.mxu0
  %v1171 = vadd.f32 0.0, %v1170
  %v1172 = vpop.f32.mrf.mxu0
  %1173 = vmatprep.mubr.bf16.mxu0 %v930
  %1174 = vmatmul.mubr.bf16.gmra.mxu0 %v929
  %v1175 = vpop.f32.mrf.mxu0
  %v1176 = vadd.f32 0.0, %v1175
  %v1177 = vpop.f32.mrf.mxu0
  %v1178 = vpop.f32.mrf.mxu0
  %v1179 = vadd.f32 0.0, %v1178
  %v1180 = vpop.f32.mrf.mxu0
  %1181 = vdwg.mxu0
  %1182 = vmatprep.subr.bf16.mxu0 0
  %1183 = vmatpush1.bf16.msra.mxu0 %v1092
  %1184 = vmatprep.subr.bf16.mxu0 0
  %1185 = vmatpush1.bf16.msra.mxu0 %v1091
  %1186 = vmatprep.subr.bf16.mxu0 0
  %1187 = vmatpush1.bf16.msra.mxu0 %v1090
  %1188 = vmatprep.subr.bf16.mxu0 0
  %1189 = vmatpush1.bf16.msra.mxu0 %v1089
  %1190 = vmatprep.subr.bf16.mxu0 0
  %1191 = vmatpush1.bf16.msra.mxu0 %v1088
  %1192 = vmatprep.subr.bf16.mxu0 0
  %1193 = vmatpush1.bf16.msra.mxu0 %v1087
  %1194 = vmatprep.subr.bf16.mxu0 0
  %1195 = vmatpush1.bf16.msra.mxu0 %v1086
  %1196 = vmatprep.subr.bf16.mxu0 0
  %1197 = vmatpush1.bf16.msra.mxu0 %v1085
  %1198 = vmatprep.subr.bf16.mxu0 0
  %1199 = vmatpush2.bf16.msra.mxu0 %v1100
  %1200 = vmatprep.subr.bf16.mxu0 0
  %1201 = vmatpush2.bf16.msra.mxu0 %v1099
  %1202 = vmatprep.subr.bf16.mxu0 0
  %1203 = vmatpush2.bf16.msra.mxu0 %v1098
  %1204 = vmatprep.subr.bf16.mxu0 0
  %1205 = vmatpush2.bf16.msra.mxu0 %v1097
  %1206 = vmatprep.subr.bf16.mxu0 0
  %1207 = vmatpush2.bf16.msra.mxu0 %v1096
  %1208 = vmatprep.subr.bf16.mxu0 0
  %1209 = vmatpush2.bf16.msra.mxu0 %v1095
  %1210 = vmatprep.subr.bf16.mxu0 0
  %1211 = vmatpush2.bf16.msra.mxu0 %v1094
  %1212 = vmatprep.subr.bf16.mxu0 0
  %1213 = vmatpush2.bf16.msra.mxu0 %v1093
  %1214 = vmatprep.mubr.bf16.mxu0 %v928
  %1215 = vmatmul.mubr.bf16.gmra.mxu0 %v927
  %v1216 = vpop.f32.mrf.mxu0
  %v1217 = vadd.f32 %v1168, %v1216
  %v1218 = vpop.f32.mrf.mxu0
  %v1219 = vpop.f32.mrf.mxu0
  %v1220 = vadd.f32 %v1171, %v1219
  %v1221 = vpop.f32.mrf.mxu0
  %1222 = vmatprep.mubr.bf16.mxu0 %v932
  %1223 = vmatmul.mubr.bf16.gmra.mxu0 %v931
  %v1224 = vpop.f32.mrf.mxu0
  %v1225 = vadd.f32 %v1176, %v1224
  %v1226 = vpop.f32.mrf.mxu0
  %v1227 = vpop.f32.mrf.mxu0
  %v1228 = vadd.f32 %v1179, %v1227
  %v1229 = vpop.f32.mrf.mxu0
  %1230 = vdwg.mxu0
  %s1231 = scalar_lea.vmem %s0, 192
  %v1232 = vld [vmem:[%s1231] sm:$0xff]
  %v1233 = vld [vmem:[%s1231 + $0x8] sm:$0xff]
  %v1234 = vld [vmem:[%s1231 + $0x10] sm:$0xff]
  %v1235 = vld [vmem:[%s1231 + $0x18] sm:$0xff]
  %v1236 = vld [vmem:[%s1231 + $0x20] sm:$0xff]
  %v1237 = vld [vmem:[%s1231 + $0x28] sm:$0xff]
  %v1238 = vld [vmem:[%s1231 + $0x30] sm:$0xff]
  %v1239 = vld [vmem:[%s1231 + $0x38] sm:$0xff]
  %s1240 = scalar_lea.vmem %s1, 768
  %v1241 = vld [vmem:[%s1240] sm:$0xf]
  %v1242 = vld [vmem:[%s1240 + $0x4] sm:$0xf]
  %v1243 = vld [vmem:[%s1240 + $0x8] sm:$0xf]
  %v1244 = vld [vmem:[%s1240 + $0xc] sm:$0xf]
  %v1245 = vld [vmem:[%s1240 + $0x10] sm:$0xf]
  %v1246 = vld [vmem:[%s1240 + $0x14] sm:$0xf]
  %v1247 = vld [vmem:[%s1240 + $0x18] sm:$0xf]
  %v1248 = vld [vmem:[%s1240 + $0x1c] sm:$0xf]
  %v1249 = vld [vmem:[%s1240 + $0x20] sm:$0xf]
  %v1250 = vld [vmem:[%s1240 + $0x24] sm:$0xf]
  %v1251 = vld [vmem:[%s1240 + $0x28] sm:$0xf]
  %v1252 = vld [vmem:[%s1240 + $0x2c] sm:$0xf]
  %v1253 = vld [vmem:[%s1240 + $0x30] sm:$0xf]
  %v1254 = vld [vmem:[%s1240 + $0x34] sm:$0xf]
  %v1255 = vld [vmem:[%s1240 + $0x38] sm:$0xf]
  %v1256 = vld [vmem:[%s1240 + $0x3c] sm:$0xf]
  %v1257 = vld [vmem:[%s1240 + $0x40] sm:$0xf]
  %v1258 = vld [vmem:[%s1240 + $0x44] sm:$0xf]
  %v1259 = vld [vmem:[%s1240 + $0x48] sm:$0xf]
  %v1260 = vld [vmem:[%s1240 + $0x4c] sm:$0xf]
  %v1261 = vld [vmem:[%s1240 + $0x50] sm:$0xf]
  %v1262 = vld [vmem:[%s1240 + $0x54] sm:$0xf]
  %v1263 = vld [vmem:[%s1240 + $0x58] sm:$0xf]
  %v1264 = vld [vmem:[%s1240 + $0x5c] sm:$0xf]
  %v1265 = vld [vmem:[%s1240 + $0x60] sm:$0xf]
  %v1266 = vld [vmem:[%s1240 + $0x64] sm:$0xf]
  %v1267 = vld [vmem:[%s1240 + $0x68] sm:$0xf]
  %v1268 = vld [vmem:[%s1240 + $0x6c] sm:$0xf]
  %v1269 = vld [vmem:[%s1240 + $0x70] sm:$0xf]
  %v1270 = vld [vmem:[%s1240 + $0x74] sm:$0xf]
  %v1271 = vld [vmem:[%s1240 + $0x78] sm:$0xf]
  %v1272 = vld [vmem:[%s1240 + $0x7c] sm:$0xf]
  %v1273 = vld [vmem:[%s1240 + $0x80] sm:$0xf]
  %v1274 = vld [vmem:[%s1240 + $0x84] sm:$0xf]
  %v1275 = vld [vmem:[%s1240 + $0x88] sm:$0xf]
  %v1276 = vld [vmem:[%s1240 + $0x8c] sm:$0xf]
  %v1277 = vld [vmem:[%s1240 + $0x90] sm:$0xf]
  %v1278 = vld [vmem:[%s1240 + $0x94] sm:$0xf]
  %v1279 = vld [vmem:[%s1240 + $0x98] sm:$0xf]
  %v1280 = vld [vmem:[%s1240 + $0x9c] sm:$0xf]
  %v1281 = vld [vmem:[%s1240 + $0xa0] sm:$0xf]
  %v1282 = vld [vmem:[%s1240 + $0xa4] sm:$0xf]
  %v1283 = vld [vmem:[%s1240 + $0xa8] sm:$0xf]
  %v1284 = vld [vmem:[%s1240 + $0xac] sm:$0xf]
  %v1285 = vld [vmem:[%s1240 + $0xb0] sm:$0xf]
  %v1286 = vld [vmem:[%s1240 + $0xb4] sm:$0xf]
  %v1287 = vld [vmem:[%s1240 + $0xb8] sm:$0xf]
  %v1288 = vld [vmem:[%s1240 + $0xbc] sm:$0xf]
  %v1289 = vld [vmem:[%s1240 + $0xc0] sm:$0xf]
  %v1290 = vld [vmem:[%s1240 + $0xc4] sm:$0xf]
  %v1291 = vld [vmem:[%s1240 + $0xc8] sm:$0xf]
  %v1292 = vld [vmem:[%s1240 + $0xcc] sm:$0xf]
  %v1293 = vld [vmem:[%s1240 + $0xd0] sm:$0xf]
  %v1294 = vld [vmem:[%s1240 + $0xd4] sm:$0xf]
  %v1295 = vld [vmem:[%s1240 + $0xd8] sm:$0xf]
  %v1296 = vld [vmem:[%s1240 + $0xdc] sm:$0xf]
  %v1297 = vld [vmem:[%s1240 + $0xe0] sm:$0xf]
  %v1298 = vld [vmem:[%s1240 + $0xe4] sm:$0xf]
  %v1299 = vld [vmem:[%s1240 + $0xe8] sm:$0xf]
  %v1300 = vld [vmem:[%s1240 + $0xec] sm:$0xf]
  %v1301 = vld [vmem:[%s1240 + $0xf0] sm:$0xf]
  %v1302 = vld [vmem:[%s1240 + $0xf4] sm:$0xf]
  %v1303 = vld [vmem:[%s1240 + $0xf8] sm:$0xf]
  %v1304 = vld [vmem:[%s1240 + $0xfc] sm:$0xf]
  %v1313 = vunpack.c.l.b16 %v1232
  %v1314 = vunpack.c.h.b16 %v1232
  %v1315 = vunpack.c.l.b16 %v1233
  %v1316 = vunpack.c.h.b16 %v1233
  %v1317 = vunpack.c.l.b16 %v1234
  %v1318 = vunpack.c.h.b16 %v1234
  %v1319 = vunpack.c.l.b16 %v1235
  %v1320 = vunpack.c.h.b16 %v1235
  %v1321 = vunpack.c.l.b16 %v1236
  %v1322 = vunpack.c.h.b16 %v1236
  %v1323 = vunpack.c.l.b16 %v1237
  %v1324 = vunpack.c.h.b16 %v1237
  %v1325 = vunpack.c.l.b16 %v1238
  %v1326 = vunpack.c.h.b16 %v1238
  %v1327 = vunpack.c.l.b16 %v1239
  %v1328 = vunpack.c.h.b16 %v1239
  %v1329 = vpack.c.b16 %v1317, %v1313
  %v1330 = vpack.c.b16 %v1318, %v1314
  %v1331 = vpack.c.b16 %v1319, %v1315
  %v1332 = vpack.c.b16 %v1320, %v1316
  %v1333 = vpack.c.b16 %v1325, %v1321
  %v1334 = vpack.c.b16 %v1326, %v1322
  %v1335 = vpack.c.b16 %v1327, %v1323
  %v1336 = vpack.c.b16 %v1328, %v1324
  %v1409 = vunpack.c.l.b16 %v1241
  %v1410 = vunpack.c.l.b16 %v1242
  %v1411 = vunpack.c.l.b16 %v1243
  %v1412 = vunpack.c.l.b16 %v1244
  %v1413 = vunpack.c.l.b16 %v1245
  %v1414 = vunpack.c.l.b16 %v1246
  %v1415 = vunpack.c.l.b16 %v1247
  %v1416 = vunpack.c.l.b16 %v1248
  %v1417 = vunpack.c.l.b16 %v1249
  %v1418 = vunpack.c.l.b16 %v1250
  %v1419 = vunpack.c.l.b16 %v1251
  %v1420 = vunpack.c.l.b16 %v1252
  %v1421 = vunpack.c.l.b16 %v1253
  %v1422 = vunpack.c.l.b16 %v1254
  %v1423 = vunpack.c.l.b16 %v1255
  %v1424 = vunpack.c.l.b16 %v1256
  %v1425 = vunpack.c.l.b16 %v1257
  %v1426 = vunpack.c.l.b16 %v1258
  %v1427 = vunpack.c.l.b16 %v1259
  %v1428 = vunpack.c.l.b16 %v1260
  %v1429 = vunpack.c.l.b16 %v1261
  %v1430 = vunpack.c.l.b16 %v1262
  %v1431 = vunpack.c.l.b16 %v1263
  %v1432 = vunpack.c.l.b16 %v1264
  %v1433 = vunpack.c.l.b16 %v1265
  %v1434 = vunpack.c.l.b16 %v1266
  %v1435 = vunpack.c.l.b16 %v1267
  %v1436 = vunpack.c.l.b16 %v1268
  %v1437 = vunpack.c.l.b16 %v1269
  %v1438 = vunpack.c.l.b16 %v1270
  %v1439 = vunpack.c.l.b16 %v1271
  %v1440 = vunpack.c.l.b16 %v1272
  %v1441 = vunpack.c.l.b16 %v1273
  %v1442 = vunpack.c.l.b16 %v1274
  %v1443 = vunpack.c.l.b16 %v1275
  %v1444 = vunpack.c.l.b16 %v1276
  %v1445 = vunpack.c.l.b16 %v1277
  %v1446 = vunpack.c.l.b16 %v1278
  %v1447 = vunpack.c.l.b16 %v1279
  %v1448 = vunpack.c.l.b16 %v1280
  %v1449 = vunpack.c.l.b16 %v1281
  %v1450 = vunpack.c.l.b16 %v1282
  %v1451 = vunpack.c.l.b16 %v1283
  %v1452 = vunpack.c.l.b16 %v1284
  %v1453 = vunpack.c.l.b16 %v1285
  %v1454 = vunpack.c.l.b16 %v1286
  %v1455 = vunpack.c.l.b16 %v1287
  %v1456 = vunpack.c.l.b16 %v1288
  %v1457 = vunpack.c.l.b16 %v1289
  %v1458 = vunpack.c.l.b16 %v1290
  %v1459 = vunpack.c.l.b16 %v1291
  %v1460 = vunpack.c.l.b16 %v1292
  %v1461 = vunpack.c.l.b16 %v1293
  %v1462 = vunpack.c.l.b16 %v1294
  %v1463 = vunpack.c.l.b16 %v1295
  %v1464 = vunpack.c.l.b16 %v1296
  %v1465 = vunpack.c.l.b16 %v1297
  %v1466 = vunpack.c.l.b16 %v1298
  %v1467 = vunpack.c.l.b16 %v1299
  %v1468 = vunpack.c.l.b16 %v1300
  %v1469 = vunpack.c.l.b16 %v1301
  %v1470 = vunpack.c.l.b16 %v1302
  %v1471 = vunpack.c.l.b16 %v1303
  %v1472 = vunpack.c.l.b16 %v1304
  %v1473 = vpack.c.b16 %v1410, %v1409
  %v1474 = vpack.c.b16 %v1412, %v1411
  %v1475 = vpack.c.b16 %v1414, %v1413
  %v1476 = vpack.c.b16 %v1416, %v1415
  %v1477 = vpack.c.b16 %v1418, %v1417
  %v1478 = vpack.c.b16 %v1420, %v1419
  %v1479 = vpack.c.b16 %v1422, %v1421
  %v1480 = vpack.c.b16 %v1424, %v1423
  %v1481 = vpack.c.b16 %v1426, %v1425
  %v1482 = vpack.c.b16 %v1428, %v1427
  %v1483 = vpack.c.b16 %v1430, %v1429
  %v1484 = vpack.c.b16 %v1432, %v1431
  %v1485 = vpack.c.b16 %v1434, %v1433
  %v1486 = vpack.c.b16 %v1436, %v1435
  %v1487 = vpack.c.b16 %v1438, %v1437
  %v1488 = vpack.c.b16 %v1440, %v1439
  %v1489 = vpack.c.b16 %v1442, %v1441
  %v1490 = vpack.c.b16 %v1444, %v1443
  %v1491 = vpack.c.b16 %v1446, %v1445
  %v1492 = vpack.c.b16 %v1448, %v1447
  %v1493 = vpack.c.b16 %v1450, %v1449
  %v1494 = vpack.c.b16 %v1452, %v1451
  %v1495 = vpack.c.b16 %v1454, %v1453
  %v1496 = vpack.c.b16 %v1456, %v1455
  %v1497 = vpack.c.b16 %v1458, %v1457
  %v1498 = vpack.c.b16 %v1460, %v1459
  %v1499 = vpack.c.b16 %v1462, %v1461
  %v1500 = vpack.c.b16 %v1464, %v1463
  %v1501 = vpack.c.b16 %v1466, %v1465
  %v1502 = vpack.c.b16 %v1468, %v1467
  %v1503 = vpack.c.b16 %v1470, %v1469
  %v1504 = vpack.c.b16 %v1472, %v1471
  %1537 = vmatprep.subr.bf16.mxu0 0
  %1538 = vmatpush1.bf16.msra.mxu0 %v1480
  %1539 = vmatprep.subr.bf16.mxu0 0
  %1540 = vmatpush1.bf16.msra.mxu0 %v1479
  %1541 = vmatprep.subr.bf16.mxu0 0
  %1542 = vmatpush1.bf16.msra.mxu0 %v1478
  %1543 = vmatprep.subr.bf16.mxu0 0
  %1544 = vmatpush1.bf16.msra.mxu0 %v1477
  %1545 = vmatprep.subr.bf16.mxu0 0
  %1546 = vmatpush1.bf16.msra.mxu0 %v1476
  %1547 = vmatprep.subr.bf16.mxu0 0
  %1548 = vmatpush1.bf16.msra.mxu0 %v1475
  %1549 = vmatprep.subr.bf16.mxu0 0
  %1550 = vmatpush1.bf16.msra.mxu0 %v1474
  %1551 = vmatprep.subr.bf16.mxu0 0
  %1552 = vmatpush1.bf16.msra.mxu0 %v1473
  %1553 = vmatprep.subr.bf16.mxu0 0
  %1554 = vmatpush2.bf16.msra.mxu0 %v1488
  %1555 = vmatprep.subr.bf16.mxu0 0
  %1556 = vmatpush2.bf16.msra.mxu0 %v1487
  %1557 = vmatprep.subr.bf16.mxu0 0
  %1558 = vmatpush2.bf16.msra.mxu0 %v1486
  %1559 = vmatprep.subr.bf16.mxu0 0
  %1560 = vmatpush2.bf16.msra.mxu0 %v1485
  %1561 = vmatprep.subr.bf16.mxu0 0
  %1562 = vmatpush2.bf16.msra.mxu0 %v1484
  %1563 = vmatprep.subr.bf16.mxu0 0
  %1564 = vmatpush2.bf16.msra.mxu0 %v1483
  %1565 = vmatprep.subr.bf16.mxu0 0
  %1566 = vmatpush2.bf16.msra.mxu0 %v1482
  %1567 = vmatprep.subr.bf16.mxu0 0
  %1568 = vmatpush2.bf16.msra.mxu0 %v1481
  %1569 = vmatprep.mubr.bf16.mxu0 %v1330
  %1570 = vmatmul.mubr.bf16.gmra.mxu0 %v1329
  %v1571 = vpop.f32.mrf.mxu0
  %v1572 = vadd.f32 0.0, %v1571
  %v1573 = vpop.f32.mrf.mxu0
  %v1574 = vpop.f32.mrf.mxu0
  %v1575 = vadd.f32 0.0, %v1574
  %v1576 = vpop.f32.mrf.mxu0
  %1577 = vmatprep.mubr.bf16.mxu0 %v1334
  %1578 = vmatmul.mubr.bf16.gmra.mxu0 %v1333
  %v1579 = vpop.f32.mrf.mxu0
  %v1580 = vadd.f32 0.0, %v1579
  %v1581 = vpop.f32.mrf.mxu0
  %v1582 = vpop.f32.mrf.mxu0
  %v1583 = vadd.f32 0.0, %v1582
  %v1584 = vpop.f32.mrf.mxu0
  %1585 = vdwg.mxu0
  %1586 = vmatprep.subr.bf16.mxu0 0
  %1587 = vmatpush1.bf16.msra.mxu0 %v1496
  %1588 = vmatprep.subr.bf16.mxu0 0
  %1589 = vmatpush1.bf16.msra.mxu0 %v1495
  %1590 = vmatprep.subr.bf16.mxu0 0
  %1591 = vmatpush1.bf16.msra.mxu0 %v1494
  %1592 = vmatprep.subr.bf16.mxu0 0
  %1593 = vmatpush1.bf16.msra.mxu0 %v1493
  %1594 = vmatprep.subr.bf16.mxu0 0
  %1595 = vmatpush1.bf16.msra.mxu0 %v1492
  %1596 = vmatprep.subr.bf16.mxu0 0
  %1597 = vmatpush1.bf16.msra.mxu0 %v1491
  %1598 = vmatprep.subr.bf16.mxu0 0
  %1599 = vmatpush1.bf16.msra.mxu0 %v1490
  %1600 = vmatprep.subr.bf16.mxu0 0
  %1601 = vmatpush1.bf16.msra.mxu0 %v1489
  %1602 = vmatprep.subr.bf16.mxu0 0
  %1603 = vmatpush2.bf16.msra.mxu0 %v1504
  %1604 = vmatprep.subr.bf16.mxu0 0
  %1605 = vmatpush2.bf16.msra.mxu0 %v1503
  %1606 = vmatprep.subr.bf16.mxu0 0
  %1607 = vmatpush2.bf16.msra.mxu0 %v1502
  %1608 = vmatprep.subr.bf16.mxu0 0
  %1609 = vmatpush2.bf16.msra.mxu0 %v1501
  %1610 = vmatprep.subr.bf16.mxu0 0
  %1611 = vmatpush2.bf16.msra.mxu0 %v1500
  %1612 = vmatprep.subr.bf16.mxu0 0
  %1613 = vmatpush2.bf16.msra.mxu0 %v1499
  %1614 = vmatprep.subr.bf16.mxu0 0
  %1615 = vmatpush2.bf16.msra.mxu0 %v1498
  %1616 = vmatprep.subr.bf16.mxu0 0
  %1617 = vmatpush2.bf16.msra.mxu0 %v1497
  %1618 = vmatprep.mubr.bf16.mxu0 %v1332
  %1619 = vmatmul.mubr.bf16.gmra.mxu0 %v1331
  %v1620 = vpop.f32.mrf.mxu0
  %v1621 = vadd.f32 %v1572, %v1620
  %v1622 = vpop.f32.mrf.mxu0
  %v1623 = vpop.f32.mrf.mxu0
  %v1624 = vadd.f32 %v1575, %v1623
  %v1625 = vpop.f32.mrf.mxu0
  %1626 = vmatprep.mubr.bf16.mxu0 %v1336
  %1627 = vmatmul.mubr.bf16.gmra.mxu0 %v1335
  %v1628 = vpop.f32.mrf.mxu0
  %v1629 = vadd.f32 %v1580, %v1628
  %v1630 = vpop.f32.mrf.mxu0
  %v1631 = vpop.f32.mrf.mxu0
  %v1632 = vadd.f32 %v1583, %v1631
  %v1633 = vpop.f32.mrf.mxu0
  %1634 = vdwg.mxu0
  %v1635 = vld [vmem:[%s2] sm:$0x1]
  %v1637 = vlaneseq
  %v1638 = vshrl.u32 %v1637, 7
  %v1639 = vsub.s32 0, %v1638
  %v1640 = vrot.slane %v1635, %v1639
  %v1642 = vadd.f32 %v409, %v1640
  %v1643 = vadd.f32 %v412, %v1640
  %v1644 = vadd.f32 %v417, %v1640
  %v1645 = vadd.f32 %v420, %v1640
  %v1646 = vadd.f32 %v813, %v1640
  %v1647 = vadd.f32 %v816, %v1640
  %v1648 = vadd.f32 %v821, %v1640
  %v1649 = vadd.f32 %v824, %v1640
  %v1650 = vadd.f32 %v1217, %v1640
  %v1651 = vadd.f32 %v1220, %v1640
  %v1652 = vadd.f32 %v1225, %v1640
  %v1653 = vadd.f32 %v1228, %v1640
  %v1654 = vadd.f32 %v1621, %v1640
  %v1655 = vadd.f32 %v1624, %v1640
  %v1656 = vadd.f32 %v1629, %v1640
  %v1657 = vadd.f32 %v1632, %v1640
  %vm1658 = vcmask 523264
  %v1659 = vsel %vm1658, %v1642, 0.0
  %v1660 = vsel %vm1658, %v1643, 0.0
  %v1661 = vadd.f32 %v1659, %v1660
  %v1662 = vsel %vm1658, %v1644, 0.0
  %v1663 = vadd.f32 %v1661, %v1662
  %v1664 = vsel %vm1658, %v1645, 0.0
  %v1665 = vadd.f32 %v1663, %v1664
  %v1666 = vsel %vm1658, %v1646, 0.0
  %v1667 = vadd.f32 %v1665, %v1666
  %v1668 = vsel %vm1658, %v1647, 0.0
  %v1669 = vadd.f32 %v1667, %v1668
  %v1670 = vsel %vm1658, %v1648, 0.0
  %v1671 = vadd.f32 %v1669, %v1670
  %v1672 = vsel %vm1658, %v1649, 0.0
  %v1673 = vadd.f32 %v1671, %v1672
  %v1674 = vsel %vm1658, %v1650, 0.0
  %v1675 = vadd.f32 %v1673, %v1674
  %v1676 = vsel %vm1658, %v1651, 0.0
  %v1677 = vadd.f32 %v1675, %v1676
  %v1678 = vsel %vm1658, %v1652, 0.0
  %v1679 = vadd.f32 %v1677, %v1678
  %v1680 = vsel %vm1658, %v1653, 0.0
  %v1681 = vadd.f32 %v1679, %v1680
  %v1682 = vsel %vm1658, %v1654, 0.0
  %v1683 = vadd.f32 %v1681, %v1682
  %v1684 = vsel %vm1658, %v1655, 0.0
  %v1685 = vadd.f32 %v1683, %v1684
  %v1686 = vsel %vm1658, %v1656, 0.0
  %v1687 = vadd.f32 %v1685, %v1686
  %v1688 = vsel %vm1658, %v1657, 0.0
  %v1689 = vadd.f32 %v1687, %v1688
  %v1690 = vrot.slane %v1689, 4
  %v1691 = vadd.f32 %v1689, %v1690
  %v1692 = vrot.slane %v1691, 2
  %v1693 = vadd.f32 %v1691, %v1692
  %v1694 = vrot.slane %v1693, 1
  %v1695 = vadd.f32 %v1693, %v1694
  %v1696 = vrcp.pop 128.0
  %v1697 = vmul.f32 %v1695, %v1696
  %v1698 = vsub.f32 %v1642, %v1697
  %v1699 = vsub.f32 %v1643, %v1697
  %v1700 = vsub.f32 %v1644, %v1697
  %v1701 = vsub.f32 %v1645, %v1697
  %v1702 = vsub.f32 %v1646, %v1697
  %v1703 = vsub.f32 %v1647, %v1697
  %v1704 = vsub.f32 %v1648, %v1697
  %v1705 = vsub.f32 %v1649, %v1697
  %v1706 = vsub.f32 %v1650, %v1697
  %v1707 = vsub.f32 %v1651, %v1697
  %v1708 = vsub.f32 %v1652, %v1697
  %v1709 = vsub.f32 %v1653, %v1697
  %v1710 = vsub.f32 %v1654, %v1697
  %v1711 = vsub.f32 %v1655, %v1697
  %v1712 = vsub.f32 %v1656, %v1697
  %v1713 = vsub.f32 %v1657, %v1697
  %v1714 = vmul.f32 %v1698, %v1698
  %v1715 = vmul.f32 %v1699, %v1699
  %v1716 = vmul.f32 %v1700, %v1700
  %v1717 = vmul.f32 %v1701, %v1701
  %v1718 = vmul.f32 %v1702, %v1702
  %v1719 = vmul.f32 %v1703, %v1703
  %v1720 = vmul.f32 %v1704, %v1704
  %v1721 = vmul.f32 %v1705, %v1705
  %v1722 = vmul.f32 %v1706, %v1706
  %v1723 = vmul.f32 %v1707, %v1707
  %v1724 = vmul.f32 %v1708, %v1708
  %v1725 = vmul.f32 %v1709, %v1709
  %v1726 = vmul.f32 %v1710, %v1710
  %v1727 = vmul.f32 %v1711, %v1711
  %v1728 = vmul.f32 %v1712, %v1712
  %v1729 = vmul.f32 %v1713, %v1713
  %v1730 = vsel %vm1658, %v1714, 0.0
  %v1731 = vsel %vm1658, %v1715, 0.0
  %v1732 = vadd.f32 %v1730, %v1731
  %v1733 = vsel %vm1658, %v1716, 0.0
  %v1734 = vadd.f32 %v1732, %v1733
  %v1735 = vsel %vm1658, %v1717, 0.0
  %v1736 = vadd.f32 %v1734, %v1735
  %v1737 = vsel %vm1658, %v1718, 0.0
  %v1738 = vadd.f32 %v1736, %v1737
  %v1739 = vsel %vm1658, %v1719, 0.0
  %v1740 = vadd.f32 %v1738, %v1739
  %v1741 = vsel %vm1658, %v1720, 0.0
  %v1742 = vadd.f32 %v1740, %v1741
  %v1743 = vsel %vm1658, %v1721, 0.0
  %v1744 = vadd.f32 %v1742, %v1743
  %v1745 = vsel %vm1658, %v1722, 0.0
  %v1746 = vadd.f32 %v1744, %v1745
  %v1747 = vsel %vm1658, %v1723, 0.0
  %v1748 = vadd.f32 %v1746, %v1747
  %v1749 = vsel %vm1658, %v1724, 0.0
  %v1750 = vadd.f32 %v1748, %v1749
  %v1751 = vsel %vm1658, %v1725, 0.0
  %v1752 = vadd.f32 %v1750, %v1751
  %v1753 = vsel %vm1658, %v1726, 0.0
  %v1754 = vadd.f32 %v1752, %v1753
  %v1755 = vsel %vm1658, %v1727, 0.0
  %v1756 = vadd.f32 %v1754, %v1755
  %v1757 = vsel %vm1658, %v1728, 0.0
  %v1758 = vadd.f32 %v1756, %v1757
  %v1759 = vsel %vm1658, %v1729, 0.0
  %v1760 = vadd.f32 %v1758, %v1759
  %v1761 = vrot.slane %v1760, 4
  %v1762 = vadd.f32 %v1760, %v1761
  %v1763 = vrot.slane %v1762, 2
  %v1764 = vadd.f32 %v1762, %v1763
  %v1765 = vrot.slane %v1764, 1
  %v1766 = vadd.f32 %v1764, %v1765
  %v1767 = vmul.f32 %v1766, %v1696
  %v1768 = vadd.f32 %v1767, 1e-05
  %v1769 = vrsqrt.pop %v1768
  %v1770 = vmul.f32 %v1698, %v1769
  %v1771 = vmul.f32 %v1699, %v1769
  %v1772 = vmul.f32 %v1700, %v1769
  %v1773 = vmul.f32 %v1701, %v1769
  %v1774 = vmul.f32 %v1702, %v1769
  %v1775 = vmul.f32 %v1703, %v1769
  %v1776 = vmul.f32 %v1704, %v1769
  %v1777 = vmul.f32 %v1705, %v1769
  %v1778 = vmul.f32 %v1706, %v1769
  %v1779 = vmul.f32 %v1707, %v1769
  %v1780 = vmul.f32 %v1708, %v1769
  %v1781 = vmul.f32 %v1709, %v1769
  %v1782 = vmul.f32 %v1710, %v1769
  %v1783 = vmul.f32 %v1711, %v1769
  %v1784 = vmul.f32 %v1712, %v1769
  %v1785 = vmul.f32 %v1713, %v1769
  %v1786 = vld [vmem:[%s3] sm:$0x1]
  %v1788 = vlaneseq
  %v1789 = vshrl.u32 %v1788, 7
  %v1790 = vsub.s32 0, %v1789
  %v1791 = vrot.slane %v1786, %v1790
  %v1793 = vmul.f32 %v1770, %v1791
  %v1794 = vmul.f32 %v1771, %v1791
  %v1795 = vmul.f32 %v1772, %v1791
  %v1796 = vmul.f32 %v1773, %v1791
  %v1797 = vmul.f32 %v1774, %v1791
  %v1798 = vmul.f32 %v1775, %v1791
  %v1799 = vmul.f32 %v1776, %v1791
  %v1800 = vmul.f32 %v1777, %v1791
  %v1801 = vmul.f32 %v1778, %v1791
  %v1802 = vmul.f32 %v1779, %v1791
  %v1803 = vmul.f32 %v1780, %v1791
  %v1804 = vmul.f32 %v1781, %v1791
  %v1805 = vmul.f32 %v1782, %v1791
  %v1806 = vmul.f32 %v1783, %v1791
  %v1807 = vmul.f32 %v1784, %v1791
  %v1808 = vmul.f32 %v1785, %v1791
  %v1809 = vld [vmem:[%s4] sm:$0x1]
  %v1811 = vlaneseq
  %v1812 = vshrl.u32 %v1811, 7
  %v1813 = vsub.s32 0, %v1812
  %v1814 = vrot.slane %v1809, %v1813
  %v1816 = vadd.f32 %v1793, %v1814
  %v1817 = vadd.f32 %v1794, %v1814
  %v1818 = vadd.f32 %v1795, %v1814
  %v1819 = vadd.f32 %v1796, %v1814
  %v1820 = vadd.f32 %v1797, %v1814
  %v1821 = vadd.f32 %v1798, %v1814
  %v1822 = vadd.f32 %v1799, %v1814
  %v1823 = vadd.f32 %v1800, %v1814
  %v1824 = vadd.f32 %v1801, %v1814
  %v1825 = vadd.f32 %v1802, %v1814
  %v1826 = vadd.f32 %v1803, %v1814
  %v1827 = vadd.f32 %v1804, %v1814
  %v1828 = vadd.f32 %v1805, %v1814
  %v1829 = vadd.f32 %v1806, %v1814
  %v1830 = vadd.f32 %v1807, %v1814
  %v1831 = vadd.f32 %v1808, %v1814
  %v1832 = vmax.f32 %v1816, 0.0
  %v1833 = vmax.f32 %v1817, 0.0
  %v1834 = vmax.f32 %v1818, 0.0
  %v1835 = vmax.f32 %v1819, 0.0
  %v1836 = vmax.f32 %v1820, 0.0
  %v1837 = vmax.f32 %v1821, 0.0
  %v1838 = vmax.f32 %v1822, 0.0
  %v1839 = vmax.f32 %v1823, 0.0
  %v1840 = vmax.f32 %v1824, 0.0
  %v1841 = vmax.f32 %v1825, 0.0
  %v1842 = vmax.f32 %v1826, 0.0
  %v1843 = vmax.f32 %v1827, 0.0
  %v1844 = vmax.f32 %v1828, 0.0
  %v1845 = vmax.f32 %v1829, 0.0
  %v1846 = vmax.f32 %v1830, 0.0
  %v1847 = vmax.f32 %v1831, 0.0
  %v1848 = vpack.c.bf16 %v1833, %v1832
  %v1849 = vpack.c.bf16 %v1835, %v1834
  %v1850 = vpack.c.bf16 %v1837, %v1836
  %v1851 = vpack.c.bf16 %v1839, %v1838
  %v1852 = vpack.c.bf16 %v1841, %v1840
  %v1853 = vpack.c.bf16 %v1843, %v1842
  %v1854 = vpack.c.bf16 %v1845, %v1844
  %v1855 = vpack.c.bf16 %v1847, %v1846
  %v1864 = vunpack.c.l.b16 %v1848
  %v1865 = vunpack.c.h.b16 %v1848
  %v1866 = vunpack.c.l.b16 %v1849
  %v1867 = vunpack.c.h.b16 %v1849
  %v1868 = vunpack.c.l.b16 %v1850
  %v1869 = vunpack.c.h.b16 %v1850
  %v1870 = vunpack.c.l.b16 %v1851
  %v1871 = vunpack.c.h.b16 %v1851
  %v1872 = vunpack.c.l.b16 %v1852
  %v1873 = vunpack.c.h.b16 %v1852
  %v1874 = vunpack.c.l.b16 %v1853
  %v1875 = vunpack.c.h.b16 %v1853
  %v1876 = vunpack.c.l.b16 %v1854
  %v1877 = vunpack.c.h.b16 %v1854
  %v1878 = vunpack.c.l.b16 %v1855
  %v1879 = vunpack.c.h.b16 %v1855
  %v1880 = vpack.c.b16 %v1864, %v1864
  %v1881 = vpack.c.b16 %v1865, %v1865
  %v1882 = vpack.c.b16 %v1866, %v1866
  %v1883 = vpack.c.b16 %v1867, %v1867
  %v1884 = vpack.c.b16 %v1868, %v1868
  %v1885 = vpack.c.b16 %v1869, %v1869
  %v1886 = vpack.c.b16 %v1870, %v1870
  %v1887 = vpack.c.b16 %v1871, %v1871
  %v1888 = vpack.c.b16 %v1872, %v1872
  %v1889 = vpack.c.b16 %v1873, %v1873
  %v1890 = vpack.c.b16 %v1874, %v1874
  %v1891 = vpack.c.b16 %v1875, %v1875
  %v1892 = vpack.c.b16 %v1876, %v1876
  %v1893 = vpack.c.b16 %v1877, %v1877
  %v1894 = vpack.c.b16 %v1878, %v1878
  %v1895 = vpack.c.b16 %v1879, %v1879
  %vm1912 = vcmask 519168
  %1913 = vst.msk [vmem:[%s5] sm:$0xf] %vm1912, %v1880
  %1914 = vst.msk [vmem:[%s5 + $0x4] sm:$0xf] %vm1912, %v1881
  %1915 = vst.msk [vmem:[%s5 + $0x8] sm:$0xf] %vm1912, %v1882
  %1916 = vst.msk [vmem:[%s5 + $0xc] sm:$0xf] %vm1912, %v1883
  %1917 = vst.msk [vmem:[%s5 + $0x10] sm:$0xf] %vm1912, %v1884
  %1918 = vst.msk [vmem:[%s5 + $0x14] sm:$0xf] %vm1912, %v1885
  %1919 = vst.msk [vmem:[%s5 + $0x18] sm:$0xf] %vm1912, %v1886
  %1920 = vst.msk [vmem:[%s5 + $0x1c] sm:$0xf] %vm1912, %v1887
  %1921 = vst.msk [vmem:[%s5 + $0x20] sm:$0xf] %vm1912, %v1888
  %1922 = vst.msk [vmem:[%s5 + $0x24] sm:$0xf] %vm1912, %v1889
  %1923 = vst.msk [vmem:[%s5 + $0x28] sm:$0xf] %vm1912, %v1890
  %1924 = vst.msk [vmem:[%s5 + $0x2c] sm:$0xf] %vm1912, %v1891
  %1925 = vst.msk [vmem:[%s5 + $0x30] sm:$0xf] %vm1912, %v1892
  %1926 = vst.msk [vmem:[%s5 + $0x34] sm:$0xf] %vm1912, %v1893
  %1927 = vst.msk [vmem:[%s5 + $0x38] sm:$0xf] %vm1912, %v1894
  %1928 = vst.msk [vmem:[%s5 + $0x3c] sm:$0xf] %vm1912, %v1895
  // Predicated region
  $region22: #{_lambda_.4} parent=0 // pred_check
    _
  $region23: #{_lambda_.4} parent=0 // pred_check_branch
    %1930 = sbr.rel (0) target = $region25
  $region24: #{_lambda_.4} parent=0 // pred_region
    _
  $region25: #{_lambda_.4} parent=0 // pred_fallthru
    _
  // Predicated region
  $region26: #{_lambda_.4} parent=0 // pred_check
    _
  $region27: #{_lambda_.4} parent=0 // pred_check_branch
    %1932 = sbr.rel (0) target = $region29
  $region28: #{_lambda_.4} parent=0 // pred_region
    _
  $region29: #{_lambda_.4} parent=0 // pred_fallthru
    _

// kernel: _lambda_.5
$region0: #{_lambda_.5}
  #allocation0 [shape = 'u32[]', space=smem, size = 0x4, offset = 0x4, fixed_abs, tag = 'smem constant byte address 0x4 - core index']
  #allocation1 [shape = 'u32[144,128]{1,0:T(1,128)}', space=vmem, size = 0x12000, scoped, tag = 'internal scratch']
  %s0 = inlined_call_operand.vmem [shape: bf16[4,128,256], index: 0, kind: input, shape index: {}]
  %s1 = inlined_call_operand.vmem [shape: bf16[4,256,128], index: 1, kind: input, shape index: {}]
  %s2 = inlined_call_operand.vmem [shape: f32[1,128], index: 2, kind: input, shape index: {}]
  %s3 = inlined_call_operand.vmem [shape: f32[4,128,128], index: 3, kind: output, shape index: {}]
  %s4 = sld [smem:[#allocation0]]
  $region45: #{_lambda_.5} parent=0
    _
  %s6 = ssub.s32 1, %s4
  %s7 = scalar_select 0, %s6, %s4
  loop: start=0, step=1, limit=6
  $region2: #{_lambda_.5} parent=0 // loop_pre_header
    _
  $region3: #{_lambda_.5} parent=0 // loop_header
    %s9 = sphi 0, %s13
    %p10 = scmp.ge.s32.totalorder %s9, 6
    %s19 = sphi 0, %s21
    %s22 = sphi 0, %s19
    %s23 = sphi 0, %s22
    %s39 = sphi 0, %s23
    %s45 = sphi 0, %s47
    %s48 = sphi 0, %s45
    %s49 = sphi 0, %s48
    %s65 = sphi 0, %s49
    %s69 = sphi 0, %s69
    %s71 = sphi 0, %s69
    %s72 = sphi 0, %s71
    %s86 = sphi 0, %s72
    %s92 = sphi 0, %s94
    %s95 = sphi 0, %s92
    %s96 = sphi 0, %s95
    %s112 = sphi 0, %s96
  $region4: #{_lambda_.5} parent=0 // loop_header_branch
    %12 = sbr.rel (%p10) target = $region8
  $region5: #{_lambda_.5} parent=0 // loop_body
    %s14 = ssub.s32 %s9, 1
    %s15 = ssub.s32 %s9, 2
    %s16 = sadd.s32 %s9, 1
    %s17 = ssub.s32 %s9, %s16
    %p18 = scmp.eq.s32.totalorder %s17, 0
    %s20 = sadd.s32 %s19, 1
    %s21 = scalar_select %p18, %s19, %s20
    %p24 = pneg %p18
    %p25 = scmp.eq.s32.totalorder %s9, 3
    %p26 = por %p24, %p25
    %p27 = scmp.ne.s32.totalorder %s19, %s22
    %p28 = scmp.eq.s32.totalorder %s9, 0
    %p29 = por %p27, %p28
    %p30 = scmp.ne.s32.totalorder %s19, %s22
    %p31 = scmp.eq.s32.totalorder %s14, 3
    %p32 = por %p30, %p31
    %p33 = scmp.ne.s32.totalorder %s22, %s23
    %p34 = scmp.eq.s32.totalorder %s14, 0
    %p35 = por %p33, %p34
    %p36 = scmp.ne.s32.totalorder %s22, %s23
    %p37 = scmp.eq.s32.totalorder %s15, 3
    %p38 = por %p36, %p37
    %p40 = scmp.ne.s32.totalorder %s23, %s39
    %p41 = scmp.eq.s32.totalorder %s15, 0
    %p42 = por %p40, %p41
    %s43 = ssub.s32 %s9, %s16
    %p44 = scmp.eq.s32.totalorder %s43, 0
    %s46 = sadd.s32 %s45, 1
    %s47 = scalar_select %p44, %s45, %s46
    %p50 = pneg %p44
    %p51 = scmp.eq.s32.totalorder %s9, 3
    %p52 = por %p50, %p51
    %p53 = scmp.ne.s32.totalorder %s45, %s48
    %p54 = scmp.eq.s32.totalorder %s9, 0
    %p55 = por %p53, %p54
    %p56 = scmp.ne.s32.totalorder %s45, %s48
    %p57 = scmp.eq.s32.totalorder %s14, 3
    %p58 = por %p56, %p57
    %p59 = scmp.ne.s32.totalorder %s48, %s49
    %p60 = scmp.eq.s32.totalorder %s14, 0
    %p61 = por %p59, %p60
    %p62 = scmp.ne.s32.totalorder %s48, %s49
    %p63 = scmp.eq.s32.totalorder %s15, 3
    %p64 = por %p62, %p63
    %p66 = scmp.ne.s32.totalorder %s49, %s65
    %p67 = scmp.eq.s32.totalorder %s15, 0
    %p68 = por %p66, %p67
    %s70 = sadd.s32 %s69, 1
    %p73 = scmp.eq.s32.totalorder %s9, 3
    %p74 = scmp.ne.s32.totalorder %s69, %s71
    %p75 = scmp.eq.s32.totalorder %s9, 0
    %p76 = por %p74, %p75
    %p77 = scmp.ne.s32.totalorder %s69, %s71
    %p78 = scmp.eq.s32.totalorder %s14, 3
    %p79 = por %p77, %p78
    %p80 = scmp.ne.s32.totalorder %s71, %s72
    %p81 = scmp.eq.s32.totalorder %s14, 0
    %p82 = por %p80, %p81
    %p83 = scmp.ne.s32.totalorder %s71, %s72
    %p84 = scmp.eq.s32.totalorder %s15, 3
    %p85 = por %p83, %p84
    %p87 = scmp.ne.s32.totalorder %s72, %s86
    %p88 = scmp.eq.s32.totalorder %s15, 0
    %p89 = por %p87, %p88
    %s90 = ssub.s32 %s9, %s16
    %p91 = scmp.eq.s32.totalorder %s90, 0
    %s93 = sadd.s32 %s92, 1
    %s94 = scalar_select %p91, %s92, %s93
    %p97 = pneg %p91
    %p98 = scmp.eq.s32.totalorder %s9, 3
    %p99 = por %p97, %p98
    %p100 = scmp.ne.s32.totalorder %s92, %s95
    %p101 = scmp.eq.s32.totalorder %s9, 0
    %p102 = por %p100, %p101
    %p103 = scmp.ne.s32.totalorder %s92, %s95
    %p104 = scmp.eq.s32.totalorder %s14, 3
    %p105 = por %p103, %p104
    %p106 = scmp.ne.s32.totalorder %s95, %s96
    %p107 = scmp.eq.s32.totalorder %s14, 0
    %p108 = por %p106, %p107
    %p109 = scmp.ne.s32.totalorder %s95, %s96
    %p110 = scmp.eq.s32.totalorder %s15, 3
    %p111 = por %p109, %p110
    %p113 = scmp.ne.s32.totalorder %s96, %s112
    %p114 = scmp.eq.s32.totalorder %s15, 0
    %p115 = por %p113, %p114
    %p116 = scmp.le.s32.totalorder 1, %s9
    %p117 = scmp.lt.s32.totalorder %s9, 5
    %p118 = pnand %p116, %p117
    %p119 = pneg %p118
    // Predicated region
    $region9: #{_lambda_.5} parent=5 // pred_check
      _
    $region10: #{_lambda_.5} parent=5 // pred_check_branch
      %121 = sbr.rel (%p118) target = $region12
    $region11: #{_lambda_.5} parent=5 // pred_region
      %s122 = ssub.s32 %s9, 1
      // Predicated region
      $region13: #{_lambda_.5} parent=11 // pred_check
        %p123 = pneg %p82
      $region14: #{_lambda_.5} parent=11 // pred_check_branch
        %125 = sbr.rel (%p123) target = $region16
      $region15: #{_lambda_.5} parent=11 // pred_region
        _
      $region16: #{_lambda_.5} parent=11 // pred_fallthru
        _
    $region12: #{_lambda_.5} parent=5 // pred_fallthru
      _
    %p126 = scmp.lt.s32.totalorder %s9, 4
    // Predicated region
    $region17: #{_lambda_.5} parent=5 // pred_check
      %p127 = pneg %p126
    $region18: #{_lambda_.5} parent=5 // pred_check_branch
      %129 = sbr.rel (%p127) target = $region20
    $region19: #{_lambda_.5} parent=5 // pred_region
      // Predicated region
      $region21: #{_lambda_.5} parent=19 // pred_check
        %p130 = pneg %p29
      $region22: #{_lambda_.5} parent=19 // pred_check_branch
        %132 = sbr.rel (%p130) target = $region24
      $region23: #{_lambda_.5} parent=19 // pred_region
        %p133 = scmp.lt.s32.totalorder %s9, 3
        %s134 = scalar_select %p133, %s9, 3
        %s135 = smul.addr %s134, 32
        %s136 = smul.addr %s135, 4
        %s137 = scalar_lea.vmem %s0, %s136
      $region24: #{_lambda_.5} parent=19 // pred_fallthru
        _
      // Predicated region
      $region25: #{_lambda_.5} parent=19 // pred_check
        %p138 = pneg %p55
      $region26: #{_lambda_.5} parent=19 // pred_check_branch
        %140 = sbr.rel (%p138) target = $region28
      $region27: #{_lambda_.5} parent=19 // pred_region
        %p141 = scmp.lt.s32.totalorder %s9, 3
        %s142 = scalar_select %p141, %s9, 3
        %s143 = smul.addr %s142, 32
        %s144 = smul.addr %s143, 4
        %s145 = scalar_lea.vmem %s1, %s144
      $region28: #{_lambda_.5} parent=19 // pred_fallthru
        _
    $region20: #{_lambda_.5} parent=5 // pred_fallthru
      _
    %p146 = scmp.le.s32.totalorder 1, %s9
    %p147 = scmp.lt.s32.totalorder %s9, 5
    %p148 = pnand %p146, %p147
    %p149 = pneg %p148
    // Predicated region
    $region29: #{_lambda_.5} parent=5 // pred_check
      _
    $region30: #{_lambda_.5} parent=5 // pred_check_branch
      %151 = sbr.rel (%p148) target = $region32
    $region31: #{_lambda_.5} parent=5 // pred_region
      %s152 = ssub.s32 %s9, 1
      %p153 = scmp.lt.s32.totalorder %s14, 3
      %s154 = scalar_select %p153, %s14, 3
      %s155 = smul.addr %s154, 32
      %s156 = smul.addr %s155, 4
      %s157 = scalar_lea.vmem %s0, %s156
      %p158 = pneg %p35
      %p159 = pneg %p32
      %p160 = scmp.lt.s32.totalorder %s14, 3
      %s161 = scalar_select %p160, %s14, 3
      %s162 = smul.addr %s161, 32
      %s163 = smul.addr %s162, 4
      %s164 = scalar_lea.vmem %s1, %s163
      %p165 = pneg %p61
      %p166 = pneg %p58
      %p167 = pneg %p82
      %p168 = pneg %p79
      %p169 = pneg %p108
      %p170 = pneg %p105
      %p171 = scmp.lt.s32.totalorder %s14, 3
      %s172 = scalar_select %p171, %s14, 3
      %s173 = smul.addr %s172, 16
      %s174 = smul.addr %s173, 8
      %s175 = scalar_lea.vmem %s3, %s174
      %p176 = scmp.lt.s32.totalorder %s14, 3
      %s177 = scalar_select %p176, %s14, 3
      %s178 = smul.addr %s177, 32
      %s179 = smul.addr %s178, 4
      %s180 = scalar_lea.vmem %s0, %s179
      %p181 = scmp.lt.s32.totalorder %s14, 3
      %s182 = scalar_select %p181, %s14, 3
      %s183 = smul.addr %s182, 32
      %s184 = smul.addr %s183, 4
      %s185 = scalar_lea.vmem %s1, %s184
      %p186 = scmp.lt.s32.totalorder %s14, 3
      %s187 = scalar_select %p186, %s14, 3
      %s188 = smul.addr %s187, 16
      %s189 = smul.addr %s188, 8
      %s190 = scalar_lea.vmem %s3, %s189
      %v192 = vld [vmem:[%s180] sm:$0xff]
      %v193 = vld [vmem:[%s180 + $0x8] sm:$0xff]
      %v194 = vld [vmem:[%s180 + $0x10] sm:$0xff]
      %v195 = vld [vmem:[%s180 + $0x18] sm:$0xff]
      %v196 = vld [vmem:[%s180 + $0x20] sm:$0xff]
      %v197 = vld [vmem:[%s180 + $0x28] sm:$0xff]
      %v198 = vld [vmem:[%s180 + $0x30] sm:$0xff]
      %v199 = vld [vmem:[%s180 + $0x38] sm:$0xff]
      %v200 = vld [vmem:[%s180 + $0x40] sm:$0xff]
      %v201 = vld [vmem:[%s180 + $0x48] sm:$0xff]
      %v202 = vld [vmem:[%s180 + $0x50] sm:$0xff]
      %v203 = vld [vmem:[%s180 + $0x58] sm:$0xff]
      %v204 = vld [vmem:[%s180 + $0x60] sm:$0xff]
      %v205 = vld [vmem:[%s180 + $0x68] sm:$0xff]
      %v206 = vld [vmem:[%s180 + $0x70] sm:$0xff]
      %v207 = vld [vmem:[%s180 + $0x78] sm:$0xff]
      %v208 = vld [vmem:[%s185] sm:$0xf]
      %v209 = vld [vmem:[%s185 + $0x4] sm:$0xf]
      %v210 = vld [vmem:[%s185 + $0x8] sm:$0xf]
      %v211 = vld [vmem:[%s185 + $0xc] sm:$0xf]
      %v212 = vld [vmem:[%s185 + $0x10] sm:$0xf]
      %v213 = vld [vmem:[%s185 + $0x14] sm:$0xf]
      %v214 = vld [vmem:[%s185 + $0x18] sm:$0xf]
      %v215 = vld [vmem:[%s185 + $0x1c] sm:$0xf]
      %v216 = vld [vmem:[%s185 + $0x20] sm:$0xf]
      %v217 = vld [vmem:[%s185 + $0x24] sm:$0xf]
      %v218 = vld [vmem:[%s185 + $0x28] sm:$0xf]
      %v219 = vld [vmem:[%s185 + $0x2c] sm:$0xf]
      %v220 = vld [vmem:[%s185 + $0x30] sm:$0xf]
      %v221 = vld [vmem:[%s185 + $0x34] sm:$0xf]
      %v222 = vld [vmem:[%s185 + $0x38] sm:$0xf]
      %v223 = vld [vmem:[%s185 + $0x3c] sm:$0xf]
      %v224 = vld [vmem:[%s185 + $0x40] sm:$0xf]
      %v225 = vld [vmem:[%s185 + $0x44] sm:$0xf]
      %v226 = vld [vmem:[%s185 + $0x48] sm:$0xf]
      %v227 = vld [vmem:[%s185 + $0x4c] sm:$0xf]
      %v228 = vld [vmem:[%s185 + $0x50] sm:$0xf]
      %v229 = vld [vmem:[%s185 + $0x54] sm:$0xf]
      %v230 = vld [vmem:[%s185 + $0x58] sm:$0xf]
      %v231 = vld [vmem:[%s185 + $0x5c] sm:$0xf]
      %v232 = vld [vmem:[%s185 + $0x60] sm:$0xf]
      %v233 = vld [vmem:[%s185 + $0x64] sm:$0xf]
      %v234 = vld [vmem:[%s185 + $0x68] sm:$0xf]
      %v235 = vld [vmem:[%s185 + $0x6c] sm:$0xf]
      %v236 = vld [vmem:[%s185 + $0x70] sm:$0xf]
      %v237 = vld [vmem:[%s185 + $0x74] sm:$0xf]
      %v238 = vld [vmem:[%s185 + $0x78] sm:$0xf]
      %v239 = vld [vmem:[%s185 + $0x7c] sm:$0xf]
      %v240 = vld [vmem:[%s2] sm:$0x1]
      %v242 = vlaneseq
      %v243 = vshrl.u32 %v242, 7
      %v244 = vsub.s32 0, %v243
      %v245 = vrot.slane %v240, %v244
      %v263 = vunpack.c.l.b16 %v192
      %v264 = vunpack.c.h.b16 %v192
      %v265 = vunpack.c.l.b16 %v193
      %v266 = vunpack.c.h.b16 %v193
      %v267 = vunpack.c.l.b16 %v194
      %v268 = vunpack.c.h.b16 %v194
      %v269 = vunpack.c.l.b16 %v195
      %v270 = vunpack.c.h.b16 %v195
      %v271 = vunpack.c.l.b16 %v196
      %v272 = vunpack.c.h.b16 %v196
      %v273 = vunpack.c.l.b16 %v197
      %v274 = vunpack.c.h.b16 %v197
      %v275 = vunpack.c.l.b16 %v198
      %v276 = vunpack.c.h.b16 %v198
      %v277 = vunpack.c.l.b16 %v199
      %v278 = vunpack.c.h.b16 %v199
      %v279 = vunpack.c.l.b16 %v200
      %v280 = vunpack.c.h.b16 %v200
      %v281 = vunpack.c.l.b16 %v201
      %v282 = vunpack.c.h.b16 %v201
      %v283 = vunpack.c.l.b16 %v202
      %v284 = vunpack.c.h.b16 %v202
      %v285 = vunpack.c.l.b16 %v203
      %v286 = vunpack.c.h.b16 %v203
      %v287 = vunpack.c.l.b16 %v204
      %v288 = vunpack.c.h.b16 %v204
      %v289 = vunpack.c.l.b16 %v205
      %v290 = vunpack.c.h.b16 %v205
      %v291 = vunpack.c.l.b16 %v206
      %v292 = vunpack.c.h.b16 %v206
      %v293 = vunpack.c.l.b16 %v207
      %v294 = vunpack.c.h.b16 %v207
      %v295 = vpack.c.b16 %v265, %v263
      %v296 = vpack.c.b16 %v266, %v264
      %v297 = vpack.c.b16 %v269, %v267
      %v298 = vpack.c.b16 %v270, %v268
      %v299 = vpack.c.b16 %v273, %v271
      %v300 = vpack.c.b16 %v274, %v272
      %v301 = vpack.c.b16 %v277, %v275
      %v302 = vpack.c.b16 %v278, %v276
      %v303 = vpack.c.b16 %v281, %v279
      %v304 = vpack.c.b16 %v282, %v280
      %v305 = vpack.c.b16 %v285, %v283
      %v306 = vpack.c.b16 %v286, %v284
      %v307 = vpack.c.b16 %v289, %v287
      %v308 = vpack.c.b16 %v290, %v288
      %v309 = vpack.c.b16 %v293, %v291
      %v310 = vpack.c.b16 %v294, %v292
      %v359 = vunpack.c.l.b16 %v208
      %v360 = vunpack.c.l.b16 %v209
      %v361 = vunpack.c.l.b16 %v210
      %v362 = vunpack.c.l.b16 %v211
      %v363 = vunpack.c.l.b16 %v212
      %v364 = vunpack.c.l.b16 %v213
      %v365 = vunpack.c.l.b16 %v214
      %v366 = vunpack.c.l.b16 %v215
      %v367 = vunpack.c.l.b16 %v216
      %v368 = vunpack.c.l.b16 %v217
      %v369 = vunpack.c.l.b16 %v218
      %v370 = vunpack.c.l.b16 %v219
      %v371 = vunpack.c.l.b16 %v220
      %v372 = vunpack.c.l.b16 %v221
      %v373 = vunpack.c.l.b16 %v222
      %v374 = vunpack.c.l.b16 %v223
      %v375 = vunpack.c.l.b16 %v224
      %v376 = vunpack.c.l.b16 %v225
      %v377 = vunpack.c.l.b16 %v226
      %v378 = vunpack.c.l.b16 %v227
      %v379 = vunpack.c.l.b16 %v228
      %v380 = vunpack.c.l.b16 %v229
      %v381 = vunpack.c.l.b16 %v230
      %v382 = vunpack.c.l.b16 %v231
      %v383 = vunpack.c.l.b16 %v232
      %v384 = vunpack.c.l.b16 %v233
      %v385 = vunpack.c.l.b16 %v234
      %v386 = vunpack.c.l.b16 %v235
      %v387 = vunpack.c.l.b16 %v236
      %v388 = vunpack.c.l.b16 %v237
      %v389 = vunpack.c.l.b16 %v238
      %v390 = vunpack.c.l.b16 %v239
      %v391 = vpack.c.b16 %v360, %v359
      %v392 = vpack.c.b16 %v362, %v361
      %v393 = vpack.c.b16 %v364, %v363
      %v394 = vpack.c.b16 %v366, %v365
      %v395 = vpack.c.b16 %v368, %v367
      %v396 = vpack.c.b16 %v370, %v369
      %v397 = vpack.c.b16 %v372, %v371
      %v398 = vpack.c.b16 %v374, %v373
      %v399 = vpack.c.b16 %v376, %v375
      %v400 = vpack.c.b16 %v378, %v377
      %v401 = vpack.c.b16 %v380, %v379
      %v402 = vpack.c.b16 %v382, %v381
      %v403 = vpack.c.b16 %v384, %v383
      %v404 = vpack.c.b16 %v386, %v385
      %v405 = vpack.c.b16 %v388, %v387
      %v406 = vpack.c.b16 %v390, %v389
      %423 = vmatprep.subr.bf16.mxu0 0
      %424 = vmatpush1.bf16.msra.mxu0 %v398
      %425 = vmatprep.subr.bf16.mxu0 0
      %426 = vmatpush1.bf16.msra.mxu0 %v397
      %427 = vmatprep.subr.bf16.mxu0 0
      %428 = vmatpush1.bf16.msra.mxu0 %v396
      %429 = vmatprep.subr.bf16.mxu0 0
      %430 = vmatpush1.bf16.msra.mxu0 %v395
      %431 = vmatprep.subr.bf16.mxu0 0
      %432 = vmatpush1.bf16.msra.mxu0 %v394
      %433 = vmatprep.subr.bf16.mxu0 0
      %434 = vmatpush1.bf16.msra.mxu0 %v393
      %435 = vmatprep.subr.bf16.mxu0 0
      %436 = vmatpush1.bf16.msra.mxu0 %v392
      %437 = vmatprep.subr.bf16.mxu0 0
      %438 = vmatpush1.bf16.msra.mxu0 %v391
      %439 = vmatprep.subr.bf16.mxu0 0
      %440 = vmatpush2.bf16.msra.mxu0 %v406
      %441 = vmatprep.subr.bf16.mxu0 0
      %442 = vmatpush2.bf16.msra.mxu0 %v405
      %443 = vmatprep.subr.bf16.mxu0 0
      %444 = vmatpush2.bf16.msra.mxu0 %v404
      %445 = vmatprep.subr.bf16.mxu0 0
      %446 = vmatpush2.bf16.msra.mxu0 %v403
      %447 = vmatprep.subr.bf16.mxu0 0
      %448 = vmatpush2.bf16.msra.mxu0 %v402
      %449 = vmatprep.subr.bf16.mxu0 0
      %450 = vmatpush2.bf16.msra.mxu0 %v401
      %451 = vmatprep.subr.bf16.mxu0 0
      %452 = vmatpush2.bf16.msra.mxu0 %v400
      %453 = vmatprep.subr.bf16.mxu0 0
      %454 = vmatpush2.bf16.msra.mxu0 %v399
      %455 = vmatprep.mubr.bf16.mxu0 %v296
      %456 = vmatmul.mubr.bf16.gmra.mxu0 %v295
      %v457 = vpop.f32.mrf.mxu0
      %v458 = vadd.f32 %v245, %v457
      %v459 = vpop.f32.mrf.mxu0
      %v460 = vpop.f32.mrf.mxu0
      %v461 = vadd.f32 %v245, %v460
      %v462 = vpop.f32.mrf.mxu0
      %463 = vmatprep.mubr.bf16.mxu0 %v298
      %464 = vmatmul.mubr.bf16.gmra.mxu0 %v297
      %v465 = vpop.f32.mrf.mxu0
      %v466 = vadd.f32 %v245, %v465
      %v467 = vpop.f32.mrf.mxu0
      %v468 = vpop.f32.mrf.mxu0
      %v469 = vadd.f32 %v245, %v468
      %v470 = vpop.f32.mrf.mxu0
      %471 = vmatprep.mubr.bf16.mxu0 %v300
      %472 = vmatmul.mubr.bf16.gmra.mxu0 %v299
      %v473 = vpop.f32.mrf.mxu0
      %v474 = vadd.f32 %v245, %v473
      %v475 = vpop.f32.mrf.mxu0
      %v476 = vpop.f32.mrf.mxu0
      %v477 = vadd.f32 %v245, %v476
      %v478 = vpop.f32.mrf.mxu0
      %479 = vmatprep.mubr.bf16.mxu0 %v302
      %480 = vmatmul.mubr.bf16.gmra.mxu0 %v301
      %v481 = vpop.f32.mrf.mxu0
      %v482 = vadd.f32 %v245, %v481
      %v483 = vpop.f32.mrf.mxu0
      %v484 = vpop.f32.mrf.mxu0
      %v485 = vadd.f32 %v245, %v484
      %v486 = vpop.f32.mrf.mxu0
      %487 = vmatprep.mubr.bf16.mxu0 %v304
      %488 = vmatmul.mubr.bf16.gmra.mxu0 %v303
      %v489 = vpop.f32.mrf.mxu0
      %v490 = vadd.f32 %v245, %v489
      %v491 = vpop.f32.mrf.mxu0
      %v492 = vpop.f32.mrf.mxu0
      %v493 = vadd.f32 %v245, %v492
      %v494 = vpop.f32.mrf.mxu0
      %495 = vmatprep.mubr.bf16.mxu0 %v306
      %496 = vmatmul.mubr.bf16.gmra.mxu0 %v305
      %v497 = vpop.f32.mrf.mxu0
      %v498 = vadd.f32 %v245, %v497
      %v499 = vpop.f32.mrf.mxu0
      %v500 = vpop.f32.mrf.mxu0
      %v501 = vadd.f32 %v245, %v500
      %v502 = vpop.f32.mrf.mxu0
      %503 = vmatprep.mubr.bf16.mxu0 %v308
      %504 = vmatmul.mubr.bf16.gmra.mxu0 %v307
      %v505 = vpop.f32.mrf.mxu0
      %v506 = vadd.f32 %v245, %v505
      %v507 = vpop.f32.mrf.mxu0
      %v508 = vpop.f32.mrf.mxu0
      %v509 = vadd.f32 %v245, %v508
      %v510 = vpop.f32.mrf.mxu0
      %511 = vmatprep.mubr.bf16.mxu0 %v310
      %512 = vmatmul.mubr.bf16.gmra.mxu0 %v309
      %v513 = vpop.f32.mrf.mxu0
      %v514 = vadd.f32 %v245, %v513
      %v515 = vpop.f32.mrf.mxu0
      %v516 = vpop.f32.mrf.mxu0
      %v517 = vadd.f32 %v245, %v516
      %v518 = vpop.f32.mrf.mxu0
      %519 = vdwg.mxu0
      %v520 = vtanh.pop %v458
      %v521 = vtanh.pop %v461
      %v522 = vtanh.pop %v466
      %v523 = vtanh.pop %v469
      %v524 = vtanh.pop %v474
      %v525 = vtanh.pop %v477
      %v526 = vtanh.pop %v482
      %v527 = vtanh.pop %v485
      %v528 = vtanh.pop %v490
      %v529 = vtanh.pop %v493
      %v530 = vtanh.pop %v498
      %v531 = vtanh.pop %v501
      %v532 = vtanh.pop %v506
      %v533 = vtanh.pop %v509
      %v534 = vtanh.pop %v514
      %v535 = vtanh.pop %v517
      %536 = vst [vmem:[%s190] sm:$0xff] %v520
      %537 = vst [vmem:[%s190 + $0x8] sm:$0xff] %v521
      %538 = vst [vmem:[%s190 + $0x10] sm:$0xff] %v522
      %539 = vst [vmem:[%s190 + $0x18] sm:$0xff] %v523
      %540 = vst [vmem:[%s190 + $0x20] sm:$0xff] %v524
      %541 = vst [vmem:[%s190 + $0x28] sm:$0xff] %v525
      %542 = vst [vmem:[%s190 + $0x30] sm:$0xff] %v526
      %543 = vst [vmem:[%s190 + $0x38] sm:$0xff] %v527
      %544 = vst [vmem:[%s190 + $0x40] sm:$0xff] %v528
      %545 = vst [vmem:[%s190 + $0x48] sm:$0xff] %v529
      %546 = vst [vmem:[%s190 + $0x50] sm:$0xff] %v530
      %547 = vst [vmem:[%s190 + $0x58] sm:$0xff] %v531
      %548 = vst [vmem:[%s190 + $0x60] sm:$0xff] %v532
      %549 = vst [vmem:[%s190 + $0x68] sm:$0xff] %v533
      %550 = vst [vmem:[%s190 + $0x70] sm:$0xff] %v534
      %551 = vst [vmem:[%s190 + $0x78] sm:$0xff] %v535
      %p552 = scmp.lt.s32.totalorder %s14, 3
      %s553 = scalar_select %p552, %s14, 3
      %s554 = smul.addr %s553, 16
      %s555 = smul.addr %s554, 8
      %s556 = scalar_lea.vmem %s3, %s555
      // Predicated region
      $region33: #{_lambda_.5} parent=31 // pred_check
        %p557 = pneg %p105
      $region34: #{_lambda_.5} parent=31 // pred_check_branch
        %559 = sbr.rel (%p557) target = $region36
      $region35: #{_lambda_.5} parent=31 // pred_region
        _
      $region36: #{_lambda_.5} parent=31 // pred_fallthru
        _
    $region32: #{_lambda_.5} parent=5 // pred_fallthru
      _
    %p560 = scmp.le.s32.totalorder 2, %s9
    // Predicated region
    $region37: #{_lambda_.5} parent=5 // pred_check
      %p561 = pneg %p560
    $region38: #{_lambda_.5} parent=5 // pred_check_branch
      %563 = sbr.rel (%p561) target = $region40
    $region39: #{_lambda_.5} parent=5 // pred_region
      %s564 = ssub.s32 %s9, 2
      // Predicated region
      $region41: #{_lambda_.5} parent=39 // pred_check
        %p565 = pneg %p111
      $region42: #{_lambda_.5} parent=39 // pred_check_branch
        %567 = sbr.rel (%p565) target = $region44
      $region43: #{_lambda_.5} parent=39 // pred_region
        %p568 = scmp.lt.s32.totalorder %s15, 3
        %s569 = scalar_select %p568, %s15, 3
        %s570 = smul.addr %s569, 16
        %s571 = smul.addr %s570, 8
        %s572 = scalar_lea.vmem %s3, %s571
      $region44: #{_lambda_.5} parent=39 // pred_fallthru
        _
    $region40: #{_lambda_.5} parent=5 // pred_fallthru
      _
  $region6: #{_lambda_.5} parent=0 // loop_footer
    %s13 = sadd.s32 1, %s9
  $region7: #{_lambda_.5} parent=0 // loop_footer_branch
    %8 = sbr.rel target = $region3
  $region8: #{_lambda_.5} parent=0 // loop_exit
    _

// kernel: _lambda_.3
$region0: #{_lambda_.3}
  #allocation0 [shape = 'u32[]', space=smem, size = 0x4, offset = 0x4, fixed_abs, tag = 'smem constant byte address 0x4 - core index']
  #allocation1 [shape = 'u32[144,128]{1,0:T(1,128)}', space=vmem, size = 0x12000, scoped, tag = 'internal scratch']
  %s0 = inlined_call_operand.vmem [shape: bf16[2,128], index: 0, kind: input, shape index: {}]
  %s1 = inlined_call_operand.hbm [shape: bf16[128,1024], index: 1, kind: input, shape index: {}]
  %s2 = inlined_call_operand.hbm [shape: f32[1,1024], index: 2, kind: input, shape index: {}]
  %s3 = inlined_call_operand.hbm [shape: f32[1,1024], index: 3, kind: input, shape index: {}]
  %s4 = inlined_call_operand.hbm [shape: f32[1,1024], index: 4, kind: input, shape index: {}]
  %s5 = inlined_call_operand.hbm [shape: bf16[1024,2048], index: 5, kind: input, shape index: {}]
  %s6 = inlined_call_operand.hbm [shape: f32[1,2048], index: 6, kind: input, shape index: {}]
  %s7 = inlined_call_operand.hbm [shape: f32[1,2048], index: 7, kind: input, shape index: {}]
  %s8 = inlined_call_operand.hbm [shape: f32[1,2048], index: 8, kind: input, shape index: {}]
  %s9 = inlined_call_operand.vmem [shape: bf16[2,2048], index: 9, kind: output, shape index: {}]
  %s10 = sld [smem:[#allocation0]]
  $region101: #{_lambda_.3} parent=0
    _
  %s12 = ssub.s32 1, %s10
  %s13 = scalar_select 0, %s12, %s10
  $region1: #{_lambda_.3} parent=0
    #allocation2 [shape = 'u8[262144]{0}', space=vmem, size = 0x40000, scoped, tag = 'input window, operand 1, single buffered']
    #allocation3 [shape = 's32[2]{0}', space=sflag, size = 0x8, scoped, tag = 'scoped memory for _lambda_.3']
    #allocation4 [shape = 'u8[4096]{0}', space=vmem, size = 0x1000, scoped, tag = 'input window, operand 2, single buffered']
    #allocation5 [shape = 's32[1]{0}', space=sflag, size = 0x4, scoped, tag = 'scoped memory for _lambda_.3']
    #allocation6 [shape = 'u8[4096]{0}', space=vmem, size = 0x1000, scoped, tag = 'input window, operand 3, single buffered']
    #allocation7 [shape = 'u8[4096]{0}', space=vmem, size = 0x1000, scoped, tag = 'input window, operand 4, single buffered']
    #allocation8 [shape = 's32[1]{0}', space=sflag, size = 0x4, scoped, tag = 'scoped memory for _lambda_.3']
    #allocation9 [shape = 'u8[4194304]{0}', space=vmem, size = 0x400000, scoped, tag = 'input window, operand 5']
    #allocation10 [shape = 'u8[8192]{0}', space=vmem, size = 0x2000, scoped, tag = 'input window, operand 6']
    #allocation11 [shape = 'u8[8192]{0}', space=vmem, size = 0x2000, scoped, tag = 'input window, operand 7']
    #allocation12 [shape = 'u8[8192]{0}', space=vmem, size = 0x2000, scoped, tag = 'input window, operand 8']
    %14 = vsyncpa [#allocation3], 0
    %15 = vsyncpa [#allocation5], 0
    %16 = vsyncpa [#allocation8], 0
    loop: start=0, step=1, limit=4
    $region2: #{_lambda_.3} parent=1 // loop_pre_header
      _
    $region3: #{_lambda_.3} parent=1 // loop_header
      %s18 = sphi 0, %s22
      %p19 = scmp.ge.s32.totalorder %s18, 4
      %s26 = sphi 0, %s26
      %s28 = sphi 0, %s26
      %s29 = sphi 0, %s28
      %s43 = sphi 0, %s29
      %s47 = sphi 0, %s47
      %s49 = sphi 0, %s47
      %s50 = sphi 0, %s49
      %s64 = sphi 0, %s50
      %s68 = sphi 0, %s68
      %s70 = sphi 0, %s68
      %s71 = sphi 0, %s70
      %s85 = sphi 0, %s71
      %s89 = sphi 0, %s89
      %s91 = sphi 0, %s89
      %s92 = sphi 0, %s91
      %s106 = sphi 0, %s92
      %s110 = sphi 0, %s110
      %s112 = sphi 0, %s110
      %s113 = sphi 0, %s112
      %s127 = sphi 0, %s113
      %s133 = sphi 0, %s135
      %s136 = sphi 0, %s133
      %s137 = sphi 0, %s136
      %s153 = sphi 0, %s137
      %s159 = sphi 0, %s161
      %s162 = sphi 0, %s159
      %s163 = sphi 0, %s162
      %s179 = sphi 0, %s163
      %s185 = sphi 0, %s187
      %s188 = sphi 0, %s185
      %s189 = sphi 0, %s188
      %s205 = sphi 0, %s189
      %s211 = sphi 0, %s213
      %s214 = sphi 0, %s211
      %s215 = sphi 0, %s214
      %s231 = sphi 0, %s215
      %s237 = sphi 0, %s239
      %s240 = sphi 0, %s237
      %s241 = sphi 0, %s240
      %s257 = sphi 0, %s241
    $region4: #{_lambda_.3} parent=1 // loop_header_branch
      %21 = sbr.rel (%p19) target = $region8
    $region5: #{_lambda_.3} parent=1 // loop_body
      %s23 = ssub.s32 %s18, 1
      %s24 = ssub.s32 %s18, 2
      %s25 = sadd.s32 %s18, 1
      %s27 = sadd.s32 %s26, 1
      %p30 = scmp.eq.s32.totalorder %s18, 1
      %p31 = scmp.ne.s32.totalorder %s26, %s28
      %p32 = scmp.eq.s32.totalorder %s18, 0
      %p33 = por %p31, %p32
      %p34 = scmp.ne.s32.totalorder %s26, %s28
      %p35 = scmp.eq.s32.totalorder %s23, 1
      %p36 = por %p34, %p35
      %p37 = scmp.ne.s32.totalorder %s28, %s29
      %p38 = scmp.eq.s32.totalorder %s23, 0
      %p39 = por %p37, %p38
      %p40 = scmp.ne.s32.totalorder %s28, %s29
      %p41 = scmp.eq.s32.totalorder %s24, 1
      %p42 = por %p40, %p41
      %p44 = scmp.ne.s32.totalorder %s29, %s43
      %p45 = scmp.eq.s32.totalorder %s24, 0
      %p46 = por %p44, %p45
      %s48 = sadd.s32 %s47, 1
      %p51 = scmp.eq.s32.totalorder %s18, 1
      %p52 = scmp.ne.s32.totalorder %s47, %s49
      %p53 = scmp.eq.s32.totalorder %s18, 0
      %p54 = por %p52, %p53
      %p55 = scmp.ne.s32.totalorder %s47, %s49
      %p56 = scmp.eq.s32.totalorder %s23, 1
      %p57 = por %p55, %p56
      %p58 = scmp.ne.s32.totalorder %s49, %s50
      %p59 = scmp.eq.s32.totalorder %s23, 0
      %p60 = por %p58, %p59
      %p61 = scmp.ne.s32.totalorder %s49, %s50
      %p62 = scmp.eq.s32.totalorder %s24, 1
      %p63 = por %p61, %p62
      %p65 = scmp.ne.s32.totalorder %s50, %s64
      %p66 = scmp.eq.s32.totalorder %s24, 0
      %p67 = por %p65, %p66
      %s69 = sadd.s32 %s68, 1
      %p72 = scmp.eq.s32.totalorder %s18, 1
      %p73 = scmp.ne.s32.totalorder %s68, %s70
      %p74 = scmp.eq.s32.totalorder %s18, 0
      %p75 = por %p73, %p74
      %p76 = scmp.ne.s32.totalorder %s68, %s70
      %p77 = scmp.eq.s32.totalorder %s23, 1
      %p78 = por %p76, %p77
      %p79 = scmp.ne.s32.totalorder %s70, %s71
      %p80 = scmp.eq.s32.totalorder %s23, 0
      %p81 = por %p79, %p80
      %p82 = scmp.ne.s32.totalorder %s70, %s71
      %p83 = scmp.eq.s32.totalorder %s24, 1
      %p84 = por %p82, %p83
      %p86 = scmp.ne.s32.totalorder %s71, %s85
      %p87 = scmp.eq.s32.totalorder %s24, 0
      %p88 = por %p86, %p87
      %s90 = sadd.s32 %s89, 1
      %p93 = scmp.eq.s32.totalorder %s18, 1
      %p94 = scmp.ne.s32.totalorder %s89, %s91
      %p95 = scmp.eq.s32.totalorder %s18, 0
      %p96 = por %p94, %p95
      %p97 = scmp.ne.s32.totalorder %s89, %s91
      %p98 = scmp.eq.s32.totalorder %s23, 1
      %p99 = por %p97, %p98
      %p100 = scmp.ne.s32.totalorder %s91, %s92
      %p101 = scmp.eq.s32.totalorder %s23, 0
      %p102 = por %p100, %p101
      %p103 = scmp.ne.s32.totalorder %s91, %s92
      %p104 = scmp.eq.s32.totalorder %s24, 1
      %p105 = por %p103, %p104
      %p107 = scmp.ne.s32.totalorder %s92, %s106
      %p108 = scmp.eq.s32.totalorder %s24, 0
      %p109 = por %p107, %p108
      %s111 = sadd.s32 %s110, 1
      %p114 = scmp.eq.s32.totalorder %s18, 1
      %p115 = scmp.ne.s32.totalorder %s110, %s112
      %p116 = scmp.eq.s32.totalorder %s18, 0
      %p117 = por %p115, %p116
      %p118 = scmp.ne.s32.totalorder %s110, %s112
      %p119 = scmp.eq.s32.totalorder %s23, 1
      %p120 = por %p118, %p119
      %p121 = scmp.ne.s32.totalorder %s112, %s113
      %p122 = scmp.eq.s32.totalorder %s23, 0
      %p123 = por %p121, %p122
      %p124 = scmp.ne.s32.totalorder %s112, %s113
      %p125 = scmp.eq.s32.totalorder %s24, 1
      %p126 = por %p124, %p125
      %p128 = scmp.ne.s32.totalorder %s113, %s127
      %p129 = scmp.eq.s32.totalorder %s24, 0
      %p130 = por %p128, %p129
      %s131 = ssub.s32 %s18, %s25
      %p132 = scmp.eq.s32.totalorder %s131, 0
      %s134 = sadd.s32 %s133, 1
      %s135 = scalar_select %p132, %s133, %s134
      %p138 = pneg %p132
      %p139 = scmp.eq.s32.totalorder %s18, 1
      %p140 = por %p138, %p139
      %p141 = scmp.ne.s32.totalorder %s133, %s136
      %p142 = scmp.eq.s32.totalorder %s18, 0
      %p143 = por %p141, %p142
      %p144 = scmp.ne.s32.totalorder %s133, %s136
      %p145 = scmp.eq.s32.totalorder %s23, 1
      %p146 = por %p144, %p145
      %p147 = scmp.ne.s32.totalorder %s136, %s137
      %p148 = scmp.eq.s32.totalorder %s23, 0
      %p149 = por %p147, %p148
      %p150 = scmp.ne.s32.totalorder %s136, %s137
      %p151 = scmp.eq.s32.totalorder %s24, 1
      %p152 = por %p150, %p151
      %p154 = scmp.ne.s32.totalorder %s137, %s153
      %p155 = scmp.eq.s32.totalorder %s24, 0
      %p156 = por %p154, %p155
      %s157 = ssub.s32 %s18, %s25
      %p158 = scmp.eq.s32.totalorder %s157, 0
      %s160 = sadd.s32 %s159, 1
      %s161 = scalar_select %p158, %s159, %s160
      %p164 = pneg %p158
      %p165 = scmp.eq.s32.totalorder %s18, 1
      %p166 = por %p164, %p165
      %p167 = scmp.ne.s32.totalorder %s159, %s162
      %p168 = scmp.eq.s32.totalorder %s18, 0
      %p169 = por %p167, %p168
      %p170 = scmp.ne.s32.totalorder %s159, %s162
      %p171 = scmp.eq.s32.totalorder %s23, 1
      %p172 = por %p170, %p171
      %p173 = scmp.ne.s32.totalorder %s162, %s163
      %p174 = scmp.eq.s32.totalorder %s23, 0
      %p175 = por %p173, %p174
      %p176 = scmp.ne.s32.totalorder %s162, %s163
      %p177 = scmp.eq.s32.totalorder %s24, 1
      %p178 = por %p176, %p177
      %p180 = scmp.ne.s32.totalorder %s163, %s179
      %p181 = scmp.eq.s32.totalorder %s24, 0
      %p182 = por %p180, %p181
      %s183 = ssub.s32 %s18, %s25
      %p184 = scmp.eq.s32.totalorder %s183, 0
      %s186 = sadd.s32 %s185, 1
      %s187 = scalar_select %p184, %s185, %s186
      %p190 = pneg %p184
      %p191 = scmp.eq.s32.totalorder %s18, 1
      %p192 = por %p190, %p191
      %p193 = scmp.ne.s32.totalorder %s185, %s188
      %p194 = scmp.eq.s32.totalorder %s18, 0
      %p195 = por %p193, %p194
      %p196 = scmp.ne.s32.totalorder %s185, %s188
      %p197 = scmp.eq.s32.totalorder %s23, 1
      %p198 = por %p196, %p197
      %p199 = scmp.ne.s32.totalorder %s188, %s189
      %p200 = scmp.eq.s32.totalorder %s23, 0
      %p201 = por %p199, %p200
      %p202 = scmp.ne.s32.totalorder %s188, %s189
      %p203 = scmp.eq.s32.totalorder %s24, 1
      %p204 = por %p202, %p203
      %p206 = scmp.ne.s32.totalorder %s189, %s205
      %p207 = scmp.eq.s32.totalorder %s24, 0
      %p208 = por %p206, %p207
      %s209 = ssub.s32 %s18, %s25
      %p210 = scmp.eq.s32.totalorder %s209, 0
      %s212 = sadd.s32 %s211, 1
      %s213 = scalar_select %p210, %s211, %s212
      %p216 = pneg %p210
      %p217 = scmp.eq.s32.totalorder %s18, 1
      %p218 = por %p216, %p217
      %p219 = scmp.ne.s32.totalorder %s211, %s214
      %p220 = scmp.eq.s32.totalorder %s18, 0
      %p221 = por %p219, %p220
      %p222 = scmp.ne.s32.totalorder %s211, %s214
      %p223 = scmp.eq.s32.totalorder %s23, 1
      %p224 = por %p222, %p223
      %p225 = scmp.ne.s32.totalorder %s214, %s215
      %p226 = scmp.eq.s32.totalorder %s23, 0
      %p227 = por %p225, %p226
      %p228 = scmp.ne.s32.totalorder %s214, %s215
      %p229 = scmp.eq.s32.totalorder %s24, 1
      %p230 = por %p228, %p229
      %p232 = scmp.ne.s32.totalorder %s215, %s231
      %p233 = scmp.eq.s32.totalorder %s24, 0
      %p234 = por %p232, %p233
      %s235 = ssub.s32 %s18, %s25
      %p236 = scmp.eq.s32.totalorder %s235, 0
      %s238 = sadd.s32 %s237, 1
      %s239 = scalar_select %p236, %s237, %s238
      %p242 = pneg %p236
      %p243 = scmp.eq.s32.totalorder %s18, 1
      %p244 = por %p242, %p243
      %p245 = scmp.ne.s32.totalorder %s237, %s240
      %p246 = scmp.eq.s32.totalorder %s18, 0
      %p247 = por %p245, %p246
      %p248 = scmp.ne.s32.totalorder %s237, %s240
      %p249 = scmp.eq.s32.totalorder %s23, 1
      %p250 = por %p248, %p249
      %p251 = scmp.ne.s32.totalorder %s240, %s241
      %p252 = scmp.eq.s32.totalorder %s23, 0
      %p253 = por %p251, %p252
      %p254 = scmp.ne.s32.totalorder %s240, %s241
      %p255 = scmp.eq.s32.totalorder %s24, 1
      %p256 = por %p254, %p255
      %p258 = scmp.ne.s32.totalorder %s241, %s257
      %p259 = scmp.eq.s32.totalorder %s24, 0
      %p260 = por %p258, %p259
      %p261 = scmp.le.s32.totalorder 1, %s18
      %p262 = scmp.lt.s32.totalorder %s18, 3
      %p263 = pnand %p261, %p262
      %p264 = pneg %p263
      // Predicated region
      $region9: #{_lambda_.3} parent=5 // pred_check
        _
      $region10: #{_lambda_.3} parent=5 // pred_check_branch
        %266 = sbr.rel (%p263) target = $region12
      $region11: #{_lambda_.3} parent=5 // pred_region
        %s267 = ssub.s32 %s18, 1
        // Predicated region
        $region13: #{_lambda_.3} parent=11 // pred_check
          %p268 = pneg %p39
        $region14: #{_lambda_.3} parent=11 // pred_check_branch
          %270 = sbr.rel (%p268) target = $region16
        $region15: #{_lambda_.3} parent=11 // pred_region
          _
        $region16: #{_lambda_.3} parent=11 // pred_fallthru
          _
        // Predicated region
        $region17: #{_lambda_.3} parent=11 // pred_check
          %p271 = pneg %p60
        $region18: #{_lambda_.3} parent=11 // pred_check_branch
          %273 = sbr.rel (%p271) target = $region20
        $region19: #{_lambda_.3} parent=11 // pred_region
          %s275 = ssub.s32 8192, 8192
          %276 = vsyncadd [#allocation3], %s275
          %s277 = sshll.u32 [#allocation2], 4
          %s278 = int_to_ptr.vmem [resolvable:$true] %s277
          %283 = dma.hbm_to_vmem [thread:$0]  %s1, 8192, %s278, [#allocation3], 512, 512, 32
        $region20: #{_lambda_.3} parent=11 // pred_fallthru
          _
        // Predicated region
        $region21: #{_lambda_.3} parent=11 // pred_check
          %p284 = pneg %p81
        $region22: #{_lambda_.3} parent=11 // pred_check_branch
          %286 = sbr.rel (%p284) target = $region24
        $region23: #{_lambda_.3} parent=11 // pred_region
          %s288 = ssub.s32 128, 128
          %289 = vsyncadd [#allocation5], %s288
          %s291 = sshll.u32 [#allocation4], 4
          %s292 = int_to_ptr.vmem [resolvable:$true] %s291
          %294 = dma.hbm_to_vmem [thread:$0]  %s2, 128, %s292, [#allocation5]
        $region24: #{_lambda_.3} parent=11 // pred_fallthru
          _
        // Predicated region
        $region25: #{_lambda_.3} parent=11 // pred_check
          %p295 = pneg %p102
        $region26: #{_lambda_.3} parent=11 // pred_check_branch
          %297 = sbr.rel (%p295) target = $region28
        $region27: #{_lambda_.3} parent=11 // pred_region
          %s299 = ssub.s32 128, 128
          %300 = vsyncadd [#allocation5], %s299
          %s302 = sshll.u32 [#allocation6], 4
          %s303 = int_to_ptr.vmem [resolvable:$true] %s302
          %305 = dma.hbm_to_vmem [thread:$0]  %s3, 128, %s303, [#allocation5]
        $region28: #{_lambda_.3} parent=11 // pred_fallthru
          _
        // Predicated region
        $region29: #{_lambda_.3} parent=11 // pred_check
          %p306 = pneg %p123
        $region30: #{_lambda_.3} parent=11 // pred_check_branch
          %308 = sbr.rel (%p306) target = $region32
        $region31: #{_lambda_.3} parent=11 // pred_region
          %s310 = ssub.s32 128, 128
          %311 = vsyncadd [#allocation8], %s310
          %s313 = sshll.u32 [#allocation7], 4
          %s314 = int_to_ptr.vmem [resolvable:$true] %s313
          %316 = dma.hbm_to_vmem [thread:$0]  %s4, 128, %s314, [#allocation8]
        $region32: #{_lambda_.3} parent=11 // pred_fallthru
          _
      $region12: #{_lambda_.3} parent=5 // pred_fallthru
        _
      %p317 = scmp.lt.s32.totalorder %s18, 2
      // Predicated region
      $region33: #{_lambda_.3} parent=5 // pred_check
        %p318 = pneg %p317
      $region34: #{_lambda_.3} parent=5 // pred_check_branch
        %320 = sbr.rel (%p318) target = $region36
      $region35: #{_lambda_.3} parent=5 // pred_region
        // Predicated region
        $region37: #{_lambda_.3} parent=35 // pred_check
          %p321 = pneg %p143
        $region38: #{_lambda_.3} parent=35 // pred_check_branch
          %323 = sbr.rel (%p321) target = $region40
        $region39: #{_lambda_.3} parent=35 // pred_region
          %s324 = sand.u32 %s18, 1
          %s325 = scalar_lea.sflag [#allocation3], %s324
          %s326 = sand.u32 %s133, 1
          %s327 = smul.addr %s326, 4096
          %s328 = scalar_lea.vmem [#allocation9], %s327
          %s329 = smul.u32 8, %s18
          %s331 = ssub.s32 65536, 65536
          %332 = vsyncadd %s325, %s331
          %s333 = smul.addr %s329, 64
          %s334 = scalar_lea.hbm %s5, %s333
          %s335 = sshll.u32 %s328, 4
          %s336 = int_to_ptr.vmem [resolvable:$true] %s335
          %341 = dma.hbm_to_vmem [thread:$0]  %s334, 65536, %s336, %s325, 1024, 512, 32
        $region40: #{_lambda_.3} parent=35 // pred_fallthru
          _
        // Predicated region
        $region41: #{_lambda_.3} parent=35 // pred_check
          %p342 = pneg %p169
        $region42: #{_lambda_.3} parent=35 // pred_check_branch
          %344 = sbr.rel (%p342) target = $region44
        $region43: #{_lambda_.3} parent=35 // pred_region
          %s345 = sand.u32 %s18, 1
          %s346 = scalar_lea.sflag [#allocation3], %s345
          %s347 = sand.u32 %s159, 1
          %s348 = smul.addr %s347, 8
          %s349 = scalar_lea.vmem [#allocation10], %s348
          %s350 = smul.u32 8, %s18
          %s352 = ssub.s32 128, 128
          %353 = vsyncadd %s346, %s352
          %s354 = smul.addr %s350, 16
          %s355 = scalar_lea.hbm %s6, %s354
          %s357 = sshll.u32 %s349, 4
          %s358 = int_to_ptr.vmem [resolvable:$true] %s357
          %360 = dma.hbm_to_vmem [thread:$0]  %s355, 128, %s358, %s346
        $region44: #{_lambda_.3} parent=35 // pred_fallthru
          _
        // Predicated region
        $region45: #{_lambda_.3} parent=35 // pred_check
          %p361 = pneg %p195
        $region46: #{_lambda_.3} parent=35 // pred_check_branch
          %363 = sbr.rel (%p361) target = $region48
        $region47: #{_lambda_.3} parent=35 // pred_region
          %s364 = sand.u32 %s18, 1
          %s365 = scalar_lea.sflag [#allocation3], %s364
          %s366 = sand.u32 %s185, 1
          %s367 = smul.addr %s366, 8
          %s368 = scalar_lea.vmem [#allocation11], %s367
          %s369 = smul.u32 8, %s18
          %s371 = ssub.s32 128, 128
          %372 = vsyncadd %s365, %s371
          %s373 = smul.addr %s369, 16
          %s374 = scalar_lea.hbm %s7, %s373
          %s376 = sshll.u32 %s368, 4
          %s377 = int_to_ptr.vmem [resolvable:$true] %s376
          %379 = dma.hbm_to_vmem [thread:$0]  %s374, 128, %s377, %s365
        $region48: #{_lambda_.3} parent=35 // pred_fallthru
          _
        // Predicated region
        $region49: #{_lambda_.3} parent=35 // pred_check
          %p380 = pneg %p221
        $region50: #{_lambda_.3} parent=35 // pred_check_branch
          %382 = sbr.rel (%p380) target = $region52
        $region51: #{_lambda_.3} parent=35 // pred_region
          %s383 = sand.u32 %s18, 1
          %s384 = scalar_lea.sflag [#allocation3], %s383
          %s385 = sand.u32 %s211, 1
          %s386 = smul.addr %s385, 8
          %s387 = scalar_lea.vmem [#allocation12], %s386
          %s388 = smul.u32 8, %s18
          %s390 = ssub.s32 128, 128
          %391 = vsyncadd %s384, %s390
          %s392 = smul.addr %s388, 16
          %s393 = scalar_lea.hbm %s8, %s392
          %s395 = sshll.u32 %s387, 4
          %s396 = int_to_ptr.vmem [resolvable:$true] %s395
          %398 = dma.hbm_to_vmem [thread:$0]  %s393, 128, %s396, %s384
        $region52: #{_lambda_.3} parent=35 // pred_fallthru
          _
      $region36: #{_lambda_.3} parent=5 // pred_fallthru
        _
      %p399 = scmp.le.s32.totalorder 1, %s18
      %p400 = scmp.lt.s32.totalorder %s18, 3
      %p401 = pnand %p399, %p400
      %p402 = pneg %p401
      // Predicated region
      $region53: #{_lambda_.3} parent=5 // pred_check
        _
      $region54: #{_lambda_.3} parent=5 // pred_check_branch
        %404 = sbr.rel (%p401) target = $region56
      $region55: #{_lambda_.3} parent=5 // pred_region
        %s405 = ssub.s32 %s18, 1
        // Predicated region
        $region57: #{_lambda_.3} parent=55 // pred_check
          %p406 = pneg %p60
        $region58: #{_lambda_.3} parent=55 // pred_check_branch
          %408 = sbr.rel (%p406) target = $region60
        $region59: #{_lambda_.3} parent=55 // pred_region
          %409 = dma.done [#allocation3], 8192
        $region60: #{_lambda_.3} parent=55 // pred_fallthru
          _
        // Predicated region
        $region61: #{_lambda_.3} parent=55 // pred_check
          %p410 = pneg %p81
        $region62: #{_lambda_.3} parent=55 // pred_check_branch
          %412 = sbr.rel (%p410) target = $region64
        $region63: #{_lambda_.3} parent=55 // pred_region
          %413 = dma.done [#allocation5], 128
        $region64: #{_lambda_.3} parent=55 // pred_fallthru
          _
        // Predicated region
        $region65: #{_lambda_.3} parent=55 // pred_check
          %p414 = pneg %p102
        $region66: #{_lambda_.3} parent=55 // pred_check_branch
          %416 = sbr.rel (%p414) target = $region68
        $region67: #{_lambda_.3} parent=55 // pred_region
          %417 = dma.done [#allocation5], 128
        $region68: #{_lambda_.3} parent=55 // pred_fallthru
          _
        // Predicated region
        $region69: #{_lambda_.3} parent=55 // pred_check
          %p418 = pneg %p123
        $region70: #{_lambda_.3} parent=55 // pred_check_branch
          %420 = sbr.rel (%p418) target = $region72
        $region71: #{_lambda_.3} parent=55 // pred_region
          %421 = dma.done [#allocation8], 128
        $region72: #{_lambda_.3} parent=55 // pred_fallthru
          _
        %s422 = sand.u32 %s23, 1
        %s423 = scalar_lea.sflag [#allocation3], %s422
        %s424 = sand.u32 %s136, 1
        %s425 = smul.addr %s424, 4096
        %s426 = scalar_lea.vmem [#allocation9], %s425
        // Predicated region
        $region73: #{_lambda_.3} parent=55 // pred_check
          %p427 = pneg %p149
        $region74: #{_lambda_.3} parent=55 // pred_check_branch
          %429 = sbr.rel (%p427) target = $region76
        $region75: #{_lambda_.3} parent=55 // pred_region
          %430 = dma.done %s423, 65536
        $region76: #{_lambda_.3} parent=55 // pred_fallthru
          _
        %s431 = sand.u32 %s23, 1
        %s432 = scalar_lea.sflag [#allocation3], %s431
        %s433 = sand.u32 %s162, 1
        %s434 = smul.addr %s433, 8
        %s435 = scalar_lea.vmem [#allocation10], %s434
        // Predicated region
        $region77: #{_lambda_.3} parent=55 // pred_check
          %p436 = pneg %p175
        $region78: #{_lambda_.3} parent=55 // pred_check_branch
          %438 = sbr.rel (%p436) target = $region80
        $region79: #{_lambda_.3} parent=55 // pred_region
          %439 = dma.done %s432, 128
        $region80: #{_lambda_.3} parent=55 // pred_fallthru
          _
        %s440 = sand.u32 %s23, 1
        %s441 = scalar_lea.sflag [#allocation3], %s440
        %s442 = sand.u32 %s188, 1
        %s443 = smul.addr %s442, 8
        %s444 = scalar_lea.vmem [#allocation11], %s443
        // Predicated region
        $region81: #{_lambda_.3} parent=55 // pred_check
          %p445 = pneg %p201
        $region82: #{_lambda_.3} parent=55 // pred_check_branch
          %447 = sbr.rel (%p445) target = $region84
        $region83: #{_lambda_.3} parent=55 // pred_region
          %448 = dma.done %s441, 128
        $region84: #{_lambda_.3} parent=55 // pred_fallthru
          _
        %s449 = sand.u32 %s23, 1
        %s450 = scalar_lea.sflag [#allocation3], %s449
        %s451 = sand.u32 %s214, 1
        %s452 = smul.addr %s451, 8
        %s453 = scalar_lea.vmem [#allocation12], %s452
        // Predicated region
        $region85: #{_lambda_.3} parent=55 // pred_check
          %p454 = pneg %p227
        $region86: #{_lambda_.3} parent=55 // pred_check_branch
          %456 = sbr.rel (%p454) target = $region88
        $region87: #{_lambda_.3} parent=55 // pred_region
          %457 = dma.done %s450, 128
        $region88: #{_lambda_.3} parent=55 // pred_fallthru
          _
        %p458 = pneg %p39
        %p459 = pneg %p36
        %p460 = pneg %p60
        %p461 = pneg %p57
        %p462 = pneg %p81
        %p463 = pneg %p78
        %p464 = pneg %p102
        %p465 = pneg %p99
        %p466 = pneg %p123
        %p467 = pneg %p120
        %s468 = sand.u32 %s23, 1
        %s469 = scalar_lea.sflag [#allocation3], %s468
        %s470 = sand.u32 %s136, 1
        %s471 = smul.addr %s470, 4096
        %s472 = scalar_lea.vmem [#allocation9], %s471
        %p473 = pneg %p149
        %p474 = pneg %p146
        %s475 = sand.u32 %s23, 1
        %s476 = scalar_lea.sflag [#allocation3], %s475
        %s477 = sand.u32 %s162, 1
        %s478 = smul.addr %s477, 8
        %s479 = scalar_lea.vmem [#allocation10], %s478
        %p480 = pneg %p175
        %p481 = pneg %p172
        %s482 = sand.u32 %s23, 1
        %s483 = scalar_lea.sflag [#allocation3], %s482
        %s484 = sand.u32 %s188, 1
        %s485 = smul.addr %s484, 8
        %s486 = scalar_lea.vmem [#allocation11], %s485
        %p487 = pneg %p201
        %p488 = pneg %p198
        %s489 = sand.u32 %s23, 1
        %s490 = scalar_lea.sflag [#allocation3], %s489
        %s491 = sand.u32 %s214, 1
        %s492 = smul.addr %s491, 8
        %s493 = scalar_lea.vmem [#allocation12], %s492
        %p494 = pneg %p227
        %p495 = pneg %p224
        %p496 = pneg %p253
        %p497 = pneg %p250
        %s498 = smul.u32 8, %s23
        %p499 = scmp.lt.s32.totalorder %s498, 15
        %s500 = scalar_select %p499, %s498, 15
        %s501 = scalar_lea.vmem %s9, %s500
        %s502 = smul.u32 8, %s23
        %s503 = smul.u32 8, %s23
        %s504 = smul.u32 8, %s23
        %s505 = smul.u32 8, %s23
        %s506 = smul.u32 8, %s23
        %p507 = scmp.lt.s32.totalorder %s506, 15
        %s508 = scalar_select %p507, %s506, 15
        %s509 = scalar_lea.vmem %s9, %s508
        %s510 = smul.u32 8, %s23
        %v512 = vld [vmem:[%s0] sm:$0x1]
        %v513 = vld [vmem:[#allocation2] sm:$0xff]
        %v514 = vld [vmem:[#allocation2 + $0x8] sm:$0xff]
        %v515 = vld [vmem:[#allocation2 + $0x10] sm:$0xff]
        %v516 = vld [vmem:[#allocation2 + $0x18] sm:$0xff]
        %v517 = vld [vmem:[#allocation2 + $0x20] sm:$0xff]
        %v518 = vld [vmem:[#allocation2 + $0x28] sm:$0xff]
        %v519 = vld [vmem:[#allocation2 + $0x30] sm:$0xff]
        %v520 = vld [vmem:[#allocation2 + $0x38] sm:$0xff]
        %v521 = vld [vmem:[#allocation2 + $0x40] sm:$0xff]
        %v522 = vld [vmem:[#allocation2 + $0x48] sm:$0xff]
        %v523 = vld [vmem:[#allocation2 + $0x50] sm:$0xff]
        %v524 = vld [vmem:[#allocation2 + $0x58] sm:$0xff]
        %v525 = vld [vmem:[#allocation2 + $0x60] sm:$0xff]
        %v526 = vld [vmem:[#allocation2 + $0x68] sm:$0xff]
        %v527 = vld [vmem:[#allocation2 + $0x70] sm:$0xff]
        %v528 = vld [vmem:[#allocation2 + $0x78] sm:$0xff]
        %v529 = vld [vmem:[#allocation2 + $0x80] sm:$0xff]
        %v530 = vld [vmem:[#allocation2 + $0x88] sm:$0xff]
        %v531 = vld [vmem:[#allocation2 + $0x90] sm:$0xff]
        %v532 = vld [vmem:[#allocation2 + $0x98] sm:$0xff]
        %v533 = vld [vmem:[#allocation2 + $0xa0] sm:$0xff]
        %v534 = vld [vmem:[#allocation2 + $0xa8] sm:$0xff]
        %v535 = vld [vmem:[#allocation2 + $0xb0] sm:$0xff]
        %v536 = vld [vmem:[#allocation2 + $0xb8] sm:$0xff]
        %v537 = vld [vmem:[#allocation2 + $0xc0] sm:$0xff]
        %v538 = vld [vmem:[#allocation2 + $0xc8] sm:$0xff]
        %v539 = vld [vmem:[#allocation2 + $0xd0] sm:$0xff]
        %v540 = vld [vmem:[#allocation2 + $0xd8] sm:$0xff]
        %v541 = vld [vmem:[#allocation2 + $0xe0] sm:$0xff]
        %v542 = vld [vmem:[#allocation2 + $0xe8] sm:$0xff]
        %v543 = vld [vmem:[#allocation2 + $0xf0] sm:$0xff]
        %v544 = vld [vmem:[#allocation2 + $0xf8] sm:$0xff]
        %v545 = vld [vmem:[#allocation2 + $0x100] sm:$0xff]
        %v546 = vld [vmem:[#allocation2 + $0x108] sm:$0xff]
        %v547 = vld [vmem:[#allocation2 + $0x110] sm:$0xff]
        %v548 = vld [vmem:[#allocation2 + $0x118] sm:$0xff]
        %v549 = vld [vmem:[#allocation2 + $0x120] sm:$0xff]
        %v550 = vld [vmem:[#allocation2 + $0x128] sm:$0xff]
        %v551 = vld [vmem:[#allocation2 + $0x130] sm:$0xff]
        %v552 = vld [vmem:[#allocation2 + $0x138] sm:$0xff]
        %v553 = vld [vmem:[#allocation2 + $0x140] sm:$0xff]
        %v554 = vld [vmem:[#allocation2 + $0x148] sm:$0xff]
        %v555 = vld [vmem:[#allocation2 + $0x150] sm:$0xff]
        %v556 = vld [vmem:[#allocation2 + $0x158] sm:$0xff]
        %v557 = vld [vmem:[#allocation2 + $0x160] sm:$0xff]
        %v558 = vld [vmem:[#allocation2 + $0x168] sm:$0xff]
        %v559 = vld [vmem:[#allocation2 + $0x170] sm:$0xff]
        %v560 = vld [vmem:[#allocation2 + $0x178] sm:$0xff]
        %v561 = vld [vmem:[#allocation2 + $0x180] sm:$0xff]
        %v562 = vld [vmem:[#allocation2 + $0x188] sm:$0xff]
        %v563 = vld [vmem:[#allocation2 + $0x190] sm:$0xff]
        %v564 = vld [vmem:[#allocation2 + $0x198] sm:$0xff]
        %v565 = vld [vmem:[#allocation2 + $0x1a0] sm:$0xff]
        %v566 = vld [vmem:[#allocation2 + $0x1a8] sm:$0xff]
        %v567 = vld [vmem:[#allocation2 + $0x1b0] sm:$0xff]
        %v568 = vld [vmem:[#allocation2 + $0x1b8] sm:$0xff]
        %v569 = vld [vmem:[#allocation2 + $0x1c0] sm:$0xff]
        %v570 = vld [vmem:[#allocation2 + $0x1c8] sm:$0xff]
        %v571 = vld [vmem:[#allocation2 + $0x1d0] sm:$0xff]
        %v572 = vld [vmem:[#allocation2 + $0x1d8] sm:$0xff]
        %v573 = vld [vmem:[#allocation2 + $0x1e0] sm:$0xff]
        %v574 = vld [vmem:[#allocation2 + $0x1e8] sm:$0xff]
        %v575 = vld [vmem:[#allocation2 + $0x1f0] sm:$0xff]
        %v576 = vld [vmem:[#allocation2 + $0x1f8] sm:$0xff]
        %v577 = vld [vmem:[#allocation4] sm:$0xff]
        %v579 = vlaneseq
        %v580 = vshrl.u32 %v579, 7
        %v581 = vsub.s32 0, %v580
        %v582 = vrot.slane %v577, %v581
        %v583 = vlaneseq
        %v584 = vshrl.u32 %v583, 7
        %v585 = vsub.s32 1, %v584
        %v586 = vrot.slane %v577, %v585
        %v587 = vlaneseq
        %v588 = vshrl.u32 %v587, 7
        %v589 = vsub.s32 2, %v588
        %v590 = vrot.slane %v577, %v589
        %v591 = vlaneseq
        %v592 = vshrl.u32 %v591, 7
        %v593 = vsub.s32 3, %v592
        %v594 = vrot.slane %v577, %v593
        %v595 = vlaneseq
        %v596 = vshrl.u32 %v595, 7
        %v597 = vsub.s32 4, %v596
        %v598 = vrot.slane %v577, %v597
        %v599 = vlaneseq
        %v600 = vshrl.u32 %v599, 7
        %v601 = vsub.s32 5, %v600
        %v602 = vrot.slane %v577, %v601
        %v603 = vlaneseq
        %v604 = vshrl.u32 %v603, 7
        %v605 = vsub.s32 6, %v604
        %v606 = vrot.slane %v577, %v605
        %v607 = vlaneseq
        %v608 = vshrl.u32 %v607, 7
        %v609 = vsub.s32 7, %v608
        %v610 = vrot.slane %v577, %v609
        %v683 = vunpack.c.l.b16 %v513
        %v684 = vunpack.c.h.b16 %v513
        %v685 = vunpack.c.l.b16 %v514
        %v686 = vunpack.c.h.b16 %v514
        %v687 = vunpack.c.l.b16 %v515
        %v688 = vunpack.c.h.b16 %v515
        %v689 = vunpack.c.l.b16 %v516
        %v690 = vunpack.c.h.b16 %v516
        %v691 = vunpack.c.l.b16 %v517
        %v692 = vunpack.c.h.b16 %v517
        %v693 = vunpack.c.l.b16 %v518
        %v694 = vunpack.c.h.b16 %v518
        %v695 = vunpack.c.l.b16 %v519
        %v696 = vunpack.c.h.b16 %v519
        %v697 = vunpack.c.l.b16 %v520
        %v698 = vunpack.c.h.b16 %v520
        %v699 = vunpack.c.l.b16 %v521
        %v700 = vunpack.c.h.b16 %v521
        %v701 = vunpack.c.l.b16 %v522
        %v702 = vunpack.c.h.b16 %v522
        %v703 = vunpack.c.l.b16 %v523
        %v704 = vunpack.c.h.b16 %v523
        %v705 = vunpack.c.l.b16 %v524
        %v706 = vunpack.c.h.b16 %v524
        %v707 = vunpack.c.l.b16 %v525
        %v708 = vunpack.c.h.b16 %v525
        %v709 = vunpack.c.l.b16 %v526
        %v710 = vunpack.c.h.b16 %v526
        %v711 = vunpack.c.l.b16 %v527
        %v712 = vunpack.c.h.b16 %v527
        %v713 = vunpack.c.l.b16 %v528
        %v714 = vunpack.c.h.b16 %v528
        %v715 = vunpack.c.l.b16 %v529
        %v716 = vunpack.c.h.b16 %v529
        %v717 = vunpack.c.l.b16 %v530
        %v718 = vunpack.c.h.b16 %v530
        %v719 = vunpack.c.l.b16 %v531
        %v720 = vunpack.c.h.b16 %v531
        %v721 = vunpack.c.l.b16 %v532
        %v722 = vunpack.c.h.b16 %v532
        %v723 = vunpack.c.l.b16 %v533
        %v724 = vunpack.c.h.b16 %v533
        %v725 = vunpack.c.l.b16 %v534
        %v726 = vunpack.c.h.b16 %v534
        %v727 = vunpack.c.l.b16 %v535
        %v728 = vunpack.c.h.b16 %v535
        %v729 = vunpack.c.l.b16 %v536
        %v730 = vunpack.c.h.b16 %v536
        %v731 = vunpack.c.l.b16 %v537
        %v732 = vunpack.c.h.b16 %v537
        %v733 = vunpack.c.l.b16 %v538
        %v734 = vunpack.c.h.b16 %v538
        %v735 = vunpack.c.l.b16 %v539
        %v736 = vunpack.c.h.b16 %v539
        %v737 = vunpack.c.l.b16 %v540
        %v738 = vunpack.c.h.b16 %v540
        %v739 = vunpack.c.l.b16 %v541
        %v740 = vunpack.c.h.b16 %v541
        %v741 = vunpack.c.l.b16 %v542
        %v742 = vunpack.c.h.b16 %v542
        %v743 = vunpack.c.l.b16 %v543
        %v744 = vunpack.c.h.b16 %v543
        %v745 = vunpack.c.l.b16 %v544
        %v746 = vunpack.c.h.b16 %v544
        %v747 = vunpack.c.l.b16 %v545
        %v748 = vunpack.c.h.b16 %v545
        %v749 = vunpack.c.l.b16 %v546
        %v750 = vunpack.c.h.b16 %v546
        %v751 = vunpack.c.l.b16 %v547
        %v752 = vunpack.c.h.b16 %v547
        %v753 = vunpack.c.l.b16 %v548
        %v754 = vunpack.c.h.b16 %v548
        %v755 = vunpack.c.l.b16 %v549
        %v756 = vunpack.c.h.b16 %v549
        %v757 = vunpack.c.l.b16 %v550
        %v758 = vunpack.c.h.b16 %v550
        %v759 = vunpack.c.l.b16 %v551
        %v760 = vunpack.c.h.b16 %v551
        %v761 = vunpack.c.l.b16 %v552
        %v762 = vunpack.c.h.b16 %v552
        %v763 = vunpack.c.l.b16 %v553
        %v764 = vunpack.c.h.b16 %v553
        %v765 = vunpack.c.l.b16 %v554
        %v766 = vunpack.c.h.b16 %v554
        %v767 = vunpack.c.l.b16 %v555
        %v768 = vunpack.c.h.b16 %v555
        %v769 = vunpack.c.l.b16 %v556
        %v770 = vunpack.c.h.b16 %v556
        %v771 = vunpack.c.l.b16 %v557
        %v772 = vunpack.c.h.b16 %v557
        %v773 = vunpack.c.l.b16 %v558
        %v774 = vunpack.c.h.b16 %v558
        %v775 = vunpack.c.l.b16 %v559
        %v776 = vunpack.c.h.b16 %v559
        %v777 = vunpack.c.l.b16 %v560
        %v778 = vunpack.c.h.b16 %v560
        %v779 = vunpack.c.l.b16 %v561
        %v780 = vunpack.c.h.b16 %v561
        %v781 = vunpack.c.l.b16 %v562
        %v782 = vunpack.c.h.b16 %v562
        %v783 = vunpack.c.l.b16 %v563
        %v784 = vunpack.c.h.b16 %v563
        %v785 = vunpack.c.l.b16 %v564
        %v786 = vunpack.c.h.b16 %v564
        %v787 = vunpack.c.l.b16 %v565
        %v788 = vunpack.c.h.b16 %v565
        %v789 = vunpack.c.l.b16 %v566
        %v790 = vunpack.c.h.b16 %v566
        %v791 = vunpack.c.l.b16 %v567
        %v792 = vunpack.c.h.b16 %v567
        %v793 = vunpack.c.l.b16 %v568
        %v794 = vunpack.c.h.b16 %v568
        %v795 = vunpack.c.l.b16 %v569
        %v796 = vunpack.c.h.b16 %v569
        %v797 = vunpack.c.l.b16 %v570
        %v798 = vunpack.c.h.b16 %v570
        %v799 = vunpack.c.l.b16 %v571
        %v800 = vunpack.c.h.b16 %v571
        %v801 = vunpack.c.l.b16 %v572
        %v802 = vunpack.c.h.b16 %v572
        %v803 = vunpack.c.l.b16 %v573
        %v804 = vunpack.c.h.b16 %v573
        %v805 = vunpack.c.l.b16 %v574
        %v806 = vunpack.c.h.b16 %v574
        %v807 = vunpack.c.l.b16 %v575
        %v808 = vunpack.c.h.b16 %v575
        %v809 = vunpack.c.l.b16 %v576
        %v810 = vunpack.c.h.b16 %v576
        %v811 = vpack.c.b16 %v691, %v683
        %v812 = vpack.c.b16 %v692, %v684
        %v813 = vpack.c.b16 %v693, %v685
        %v814 = vpack.c.b16 %v694, %v686
        %v815 = vpack.c.b16 %v695, %v687
        %v816 = vpack.c.b16 %v696, %v688
        %v817 = vpack.c.b16 %v697, %v689
        %v818 = vpack.c.b16 %v698, %v690
        %v819 = vpack.c.b16 %v707, %v699
        %v820 = vpack.c.b16 %v708, %v700
        %v821 = vpack.c.b16 %v709, %v701
        %v822 = vpack.c.b16 %v710, %v702
        %v823 = vpack.c.b16 %v711, %v703
        %v824 = vpack.c.b16 %v712, %v704
        %v825 = vpack.c.b16 %v713, %v705
        %v826 = vpack.c.b16 %v714, %v706
        %v827 = vpack.c.b16 %v723, %v715
        %v828 = vpack.c.b16 %v724, %v716
        %v829 = vpack.c.b16 %v725, %v717
        %v830 = vpack.c.b16 %v726, %v718
        %v831 = vpack.c.b16 %v727, %v719
        %v832 = vpack.c.b16 %v728, %v720
        %v833 = vpack.c.b16 %v729, %v721
        %v834 = vpack.c.b16 %v730, %v722
        %v835 = vpack.c.b16 %v739, %v731
        %v836 = vpack.c.b16 %v740, %v732
        %v837 = vpack.c.b16 %v741, %v733
        %v838 = vpack.c.b16 %v742, %v734
        %v839 = vpack.c.b16 %v743, %v735
        %v840 = vpack.c.b16 %v744, %v736
        %v841 = vpack.c.b16 %v745, %v737
        %v842 = vpack.c.b16 %v746, %v738
        %v843 = vpack.c.b16 %v755, %v747
        %v844 = vpack.c.b16 %v756, %v748
        %v845 = vpack.c.b16 %v757, %v749
        %v846 = vpack.c.b16 %v758, %v750
        %v847 = vpack.c.b16 %v759, %v751
        %v848 = vpack.c.b16 %v760, %v752
        %v849 = vpack.c.b16 %v761, %v753
        %v850 = vpack.c.b16 %v762, %v754
        %v851 = vpack.c.b16 %v771, %v763
        %v852 = vpack.c.b16 %v772, %v764
        %v853 = vpack.c.b16 %v773, %v765
        %v854 = vpack.c.b16 %v774, %v766
        %v855 = vpack.c.b16 %v775, %v767
        %v856 = vpack.c.b16 %v776, %v768
        %v857 = vpack.c.b16 %v777, %v769
        %v858 = vpack.c.b16 %v778, %v770
        %v859 = vpack.c.b16 %v787, %v779
        %v860 = vpack.c.b16 %v788, %v780
        %v861 = vpack.c.b16 %v789, %v781
        %v862 = vpack.c.b16 %v790, %v782
        %v863 = vpack.c.b16 %v791, %v783
        %v864 = vpack.c.b16 %v792, %v784
        %v865 = vpack.c.b16 %v793, %v785
        %v866 = vpack.c.b16 %v794, %v786
        %v867 = vpack.c.b16 %v803, %v795
        %v868 = vpack.c.b16 %v804, %v796
        %v869 = vpack.c.b16 %v805, %v797
        %v870 = vpack.c.b16 %v806, %v798
        %v871 = vpack.c.b16 %v807, %v799
        %v872 = vpack.c.b16 %v808, %v800
        %v873 = vpack.c.b16 %v809, %v801
        %v874 = vpack.c.b16 %v810, %v802
        %939 = vmatprep.subr.bf16.mxu0 %v868
        %940 = vmatpush1.bf16.msra.mxu0 %v867
        %941 = vmatprep.subr.bf16.mxu0 %v860
        %942 = vmatpush1.bf16.msra.mxu0 %v859
        %943 = vmatprep.subr.bf16.mxu0 %v852
        %944 = vmatpush1.bf16.msra.mxu0 %v851
        %945 = vmatprep.subr.bf16.mxu0 %v844
        %946 = vmatpush1.bf16.msra.mxu0 %v843
        %947 = vmatprep.subr.bf16.mxu0 %v836
        %948 = vmatpush1.bf16.msra.mxu0 %v835
        %949 = vmatprep.subr.bf16.mxu0 %v828
        %950 = vmatpush1.bf16.msra.mxu0 %v827
        %951 = vmatprep.subr.bf16.mxu0 %v820
        %952 = vmatpush1.bf16.msra.mxu0 %v819
        %953 = vmatprep.subr.bf16.mxu0 %v812
        %954 = vmatpush1.bf16.msra.mxu0 %v811
        %955 = vmatprep.subr.bf16.mxu0 0
        %956 = vmatpush2.bf16.msra.mxu0 0
        %957 = vmatprep.subr.bf16.mxu0 0
        %958 = vmatpush2.bf16.msra.mxu0 0
        %959 = vmatprep.subr.bf16.mxu0 0
        %960 = vmatpush2.bf16.msra.mxu0 0
        %961 = vmatprep.subr.bf16.mxu0 0
        %962 = vmatpush2.bf16.msra.mxu0 0
        %963 = vmatprep.subr.bf16.mxu0 0
        %964 = vmatpush2.bf16.msra.mxu0 0
        %965 = vmatprep.subr.bf16.mxu0 0
        %966 = vmatpush2.bf16.msra.mxu0 0
        %967 = vmatprep.subr.bf16.mxu0 0
        %968 = vmatpush2.bf16.msra.mxu0 0
        %969 = vmatprep.subr.bf16.mxu0 0
        %970 = vmatpush2.bf16.msra.mxu0 0
        %971 = vmatprep.mubr.bf16.mxu0 0
        %972 = vmatmul.mubr.bf16.gmra.mxu0 %v512
        %v973 = vpop.f32.mrf.mxu0
        %v974 = vadd.f32 %v582, %v973
        %v975 = vpop.f32.mrf.mxu0
        %v976 = vadd.f32 %v586, %v975
        %v977 = vpop.f32.mrf.mxu0
        %v978 = vpop.f32.mrf.mxu0
        %979 = vdwg.mxu0
        %980 = vmatprep.subr.bf16.mxu0 %v870
        %981 = vmatpush1.bf16.msra.mxu0 %v869
        %982 = vmatprep.subr.bf16.mxu0 %v862
        %983 = vmatpush1.bf16.msra.mxu0 %v861
        %984 = vmatprep.subr.bf16.mxu0 %v854
        %985 = vmatpush1.bf16.msra.mxu0 %v853
        %986 = vmatprep.subr.bf16.mxu0 %v846
        %987 = vmatpush1.bf16.msra.mxu0 %v845
        %988 = vmatprep.subr.bf16.mxu0 %v838
        %989 = vmatpush1.bf16.msra.mxu0 %v837
        %990 = vmatprep.subr.bf16.mxu0 %v830
        %991 = vmatpush1.bf16.msra.mxu0 %v829
        %992 = vmatprep.subr.bf16.mxu0 %v822
        %993 = vmatpush1.bf16.msra.mxu0 %v821
        %994 = vmatprep.subr.bf16.mxu0 %v814
        %995 = vmatpush1.bf16.msra.mxu0 %v813
        %996 = vmatprep.subr.bf16.mxu0 0
        %997 = vmatpush2.bf16.msra.mxu0 0
        %998 = vmatprep.subr.bf16.mxu0 0
        %999 = vmatpush2.bf16.msra.mxu0 0
        %1000 = vmatprep.subr.bf16.mxu0 0
        %1001 = vmatpush2.bf16.msra.mxu0 0
        %1002 = vmatprep.subr.bf16.mxu0 0
        %1003 = vmatpush2.bf16.msra.mxu0 0
        %1004 = vmatprep.subr.bf16.mxu0 0
        %1005 = vmatpush2.bf16.msra.mxu0 0
        %1006 = vmatprep.subr.bf16.mxu0 0
        %1007 = vmatpush2.bf16.msra.mxu0 0
        %1008 = vmatprep.subr.bf16.mxu0 0
        %1009 = vmatpush2.bf16.msra.mxu0 0
        %1010 = vmatprep.subr.bf16.mxu0 0
        %1011 = vmatpush2.bf16.msra.mxu0 0
        %1012 = vmatprep.mubr.bf16.mxu0 0
        %1013 = vmatmul.mubr.bf16.gmra.mxu0 %v512
        %v1014 = vpop.f32.mrf.mxu0
        %v1015 = vadd.f32 %v590, %v1014
        %v1016 = vpop.f32.mrf.mxu0
        %v1017 = vadd.f32 %v594, %v1016
        %v1018 = vpop.f32.mrf.mxu0
        %v1019 = vpop.f32.mrf.mxu0
        %1020 = vdwg.mxu0
        %1021 = vmatprep.subr.bf16.mxu0 %v872
        %1022 = vmatpush1.bf16.msra.mxu0 %v871
        %1023 = vmatprep.subr.bf16.mxu0 %v864
        %1024 = vmatpush1.bf16.msra.mxu0 %v863
        %1025 = vmatprep.subr.bf16.mxu0 %v856
        %1026 = vmatpush1.bf16.msra.mxu0 %v855
        %1027 = vmatprep.subr.bf16.mxu0 %v848
        %1028 = vmatpush1.bf16.msra.mxu0 %v847
        %1029 = vmatprep.subr.bf16.mxu0 %v840
        %1030 = vmatpush1.bf16.msra.mxu0 %v839
        %1031 = vmatprep.subr.bf16.mxu0 %v832
        %1032 = vmatpush1.bf16.msra.mxu0 %v831
        %1033 = vmatprep.subr.bf16.mxu0 %v824
        %1034 = vmatpush1.bf16.msra.mxu0 %v823
        %1035 = vmatprep.subr.bf16.mxu0 %v816
        %1036 = vmatpush1.bf16.msra.mxu0 %v815
        %1037 = vmatprep.subr.bf16.mxu0 0
        %1038 = vmatpush2.bf16.msra.mxu0 0
        %1039 = vmatprep.subr.bf16.mxu0 0
        %1040 = vmatpush2.bf16.msra.mxu0 0
        %1041 = vmatprep.subr.bf16.mxu0 0
        %1042 = vmatpush2.bf16.msra.mxu0 0
        %1043 = vmatprep.subr.bf16.mxu0 0
        %1044 = vmatpush2.bf16.msra.mxu0 0
        %1045 = vmatprep.subr.bf16.mxu0 0
        %1046 = vmatpush2.bf16.msra.mxu0 0
        %1047 = vmatprep.subr.bf16.mxu0 0
        %1048 = vmatpush2.bf16.msra.mxu0 0
        %1049 = vmatprep.subr.bf16.mxu0 0
        %1050 = vmatpush2.bf16.msra.mxu0 0
        %1051 = vmatprep.subr.bf16.mxu0 0
        %1052 = vmatpush2.bf16.msra.mxu0 0
        %1053 = vmatprep.mubr.bf16.mxu0 0
        %1054 = vmatmul.mubr.bf16.gmra.mxu0 %v512
        %v1055 = vpop.f32.mrf.mxu0
        %v1056 = vadd.f32 %v598, %v1055
        %v1057 = vpop.f32.mrf.mxu0
        %v1058 = vadd.f32 %v602, %v1057
        %v1059 = vpop.f32.mrf.mxu0
        %v1060 = vpop.f32.mrf.mxu0
        %1061 = vdwg.mxu0
        %1062 = vmatprep.subr.bf16.mxu0 %v874
        %1063 = vmatpush1.bf16.msra.mxu0 %v873
        %1064 = vmatprep.subr.bf16.mxu0 %v866
        %1065 = vmatpush1.bf16.msra.mxu0 %v865
        %1066 = vmatprep.subr.bf16.mxu0 %v858
        %1067 = vmatpush1.bf16.msra.mxu0 %v857
        %1068 = vmatprep.subr.bf16.mxu0 %v850
        %1069 = vmatpush1.bf16.msra.mxu0 %v849
        %1070 = vmatprep.subr.bf16.mxu0 %v842
        %1071 = vmatpush1.bf16.msra.mxu0 %v841
        %1072 = vmatprep.subr.bf16.mxu0 %v834
        %1073 = vmatpush1.bf16.msra.mxu0 %v833
        %1074 = vmatprep.subr.bf16.mxu0 %v826
        %1075 = vmatpush1.bf16.msra.mxu0 %v825
        %1076 = vmatprep.subr.bf16.mxu0 %v818
        %1077 = vmatpush1.bf16.msra.mxu0 %v817
        %1078 = vmatprep.subr.bf16.mxu0 0
        %1079 = vmatpush2.bf16.msra.mxu0 0
        %1080 = vmatprep.subr.bf16.mxu0 0
        %1081 = vmatpush2.bf16.msra.mxu0 0
        %1082 = vmatprep.subr.bf16.mxu0 0
        %1083 = vmatpush2.bf16.msra.mxu0 0
        %1084 = vmatprep.subr.bf16.mxu0 0
        %1085 = vmatpush2.bf16.msra.mxu0 0
        %1086 = vmatprep.subr.bf16.mxu0 0
        %1087 = vmatpush2.bf16.msra.mxu0 0
        %1088 = vmatprep.subr.bf16.mxu0 0
        %1089 = vmatpush2.bf16.msra.mxu0 0
        %1090 = vmatprep.subr.bf16.mxu0 0
        %1091 = vmatpush2.bf16.msra.mxu0 0
        %1092 = vmatprep.subr.bf16.mxu0 0
        %1093 = vmatpush2.bf16.msra.mxu0 0
        %1094 = vmatprep.mubr.bf16.mxu0 0
        %1095 = vmatmul.mubr.bf16.gmra.mxu0 %v512
        %v1096 = vpop.f32.mrf.mxu0
        %v1097 = vadd.f32 %v606, %v1096
        %v1098 = vpop.f32.mrf.mxu0
        %v1099 = vadd.f32 %v610, %v1098
        %v1100 = vpop.f32.mrf.mxu0
        %v1101 = vpop.f32.mrf.mxu0
        %1102 = vdwg.mxu0
        %vm1103 = vcmask 1041408
        %v1104 = vsel %vm1103, %v974, 0.0
        %v1105 = vrot.slane %v1104, 4
        %v1106 = vadd.f32 %v1104, %v1105
        %v1107 = vrot.slane %v1106, 2
        %v1108 = vadd.f32 %v1106, %v1107
        %v1109 = vrot.slane %v1108, 1
        %v1110 = vadd.f32 %v1108, %v1109
        %v1111 = vsel %vm1103, %v976, 0.0
        %v1112 = vrot.slane %v1111, 4
        %v1113 = vadd.f32 %v1111, %v1112
        %v1114 = vrot.slane %v1113, 2
        %v1115 = vadd.f32 %v1113, %v1114
        %v1116 = vrot.slane %v1115, 1
        %v1117 = vadd.f32 %v1115, %v1116
        %v1118 = vsel %vm1103, %v1015, 0.0
        %v1119 = vrot.slane %v1118, 4
        %v1120 = vadd.f32 %v1118, %v1119
        %v1121 = vrot.slane %v1120, 2
        %v1122 = vadd.f32 %v1120, %v1121
        %v1123 = vrot.slane %v1122, 1
        %v1124 = vadd.f32 %v1122, %v1123
        %v1125 = vsel %vm1103, %v1017, 0.0
        %v1126 = vrot.slane %v1125, 4
        %v1127 = vadd.f32 %v1125, %v1126
        %v1128 = vrot.slane %v1127, 2
        %v1129 = vadd.f32 %v1127, %v1128
        %v1130 = vrot.slane %v1129, 1
        %v1131 = vadd.f32 %v1129, %v1130
        %v1132 = vsel %vm1103, %v1056, 0.0
        %v1133 = vrot.slane %v1132, 4
        %v1134 = vadd.f32 %v1132, %v1133
        %v1135 = vrot.slane %v1134, 2
        %v1136 = vadd.f32 %v1134, %v1135
        %v1137 = vrot.slane %v1136, 1
        %v1138 = vadd.f32 %v1136, %v1137
        %v1139 = vsel %vm1103, %v1058, 0.0
        %v1140 = vrot.slane %v1139, 4
        %v1141 = vadd.f32 %v1139, %v1140
        %v1142 = vrot.slane %v1141, 2
        %v1143 = vadd.f32 %v1141, %v1142
        %v1144 = vrot.slane %v1143, 1
        %v1145 = vadd.f32 %v1143, %v1144
        %v1146 = vsel %vm1103, %v1097, 0.0
        %v1147 = vrot.slane %v1146, 4
        %v1148 = vadd.f32 %v1146, %v1147
        %v1149 = vrot.slane %v1148, 2
        %v1150 = vadd.f32 %v1148, %v1149
        %v1151 = vrot.slane %v1150, 1
        %v1152 = vadd.f32 %v1150, %v1151
        %v1153 = vsel %vm1103, %v1099, 0.0
        %v1154 = vrot.slane %v1153, 4
        %v1155 = vadd.f32 %v1153, %v1154
        %v1156 = vrot.slane %v1155, 2
        %v1157 = vadd.f32 %v1155, %v1156
        %v1158 = vrot.slane %v1157, 1
        %v1159 = vadd.f32 %v1157, %v1158
        %v1160 = vrcp.pop 2.0
        %v1161 = vmul.f32 %v1110, %v1160
        %v1162 = vmul.f32 %v1117, %v1160
        %v1163 = vmul.f32 %v1124, %v1160
        %v1164 = vmul.f32 %v1131, %v1160
        %v1165 = vmul.f32 %v1138, %v1160
        %v1166 = vmul.f32 %v1145, %v1160
        %v1167 = vmul.f32 %v1152, %v1160
        %v1168 = vmul.f32 %v1159, %v1160
        %v1169 = vsub.f32 %v974, %v1161
        %v1170 = vsub.f32 %v976, %v1162
        %v1171 = vsub.f32 %v1015, %v1163
        %v1172 = vsub.f32 %v1017, %v1164
        %v1173 = vsub.f32 %v1056, %v1165
        %v1174 = vsub.f32 %v1058, %v1166
        %v1175 = vsub.f32 %v1097, %v1167
        %v1176 = vsub.f32 %v1099, %v1168
        %v1177 = vmul.f32 %v1169, %v1169
        %v1178 = vmul.f32 %v1170, %v1170
        %v1179 = vmul.f32 %v1171, %v1171
        %v1180 = vmul.f32 %v1172, %v1172
        %v1181 = vmul.f32 %v1173, %v1173
        %v1182 = vmul.f32 %v1174, %v1174
        %v1183 = vmul.f32 %v1175, %v1175
        %v1184 = vmul.f32 %v1176, %v1176
        %v1185 = vsel %vm1103, %v1177, 0.0
        %v1186 = vrot.slane %v1185, 4
        %v1187 = vadd.f32 %v1185, %v1186
        %v1188 = vrot.slane %v1187, 2
        %v1189 = vadd.f32 %v1187, %v1188
        %v1190 = vrot.slane %v1189, 1
        %v1191 = vadd.f32 %v1189, %v1190
        %v1192 = vsel %vm1103, %v1178, 0.0
        %v1193 = vrot.slane %v1192, 4
        %v1194 = vadd.f32 %v1192, %v1193
        %v1195 = vrot.slane %v1194, 2
        %v1196 = vadd.f32 %v1194, %v1195
        %v1197 = vrot.slane %v1196, 1
        %v1198 = vadd.f32 %v1196, %v1197
        %v1199 = vsel %vm1103, %v1179, 0.0
        %v1200 = vrot.slane %v1199, 4
        %v1201 = vadd.f32 %v1199, %v1200
        %v1202 = vrot.slane %v1201, 2
        %v1203 = vadd.f32 %v1201, %v1202
        %v1204 = vrot.slane %v1203, 1
        %v1205 = vadd.f32 %v1203, %v1204
        %v1206 = vsel %vm1103, %v1180, 0.0
        %v1207 = vrot.slane %v1206, 4
        %v1208 = vadd.f32 %v1206, %v1207
        %v1209 = vrot.slane %v1208, 2
        %v1210 = vadd.f32 %v1208, %v1209
        %v1211 = vrot.slane %v1210, 1
        %v1212 = vadd.f32 %v1210, %v1211
        %v1213 = vsel %vm1103, %v1181, 0.0
        %v1214 = vrot.slane %v1213, 4
        %v1215 = vadd.f32 %v1213, %v1214
        %v1216 = vrot.slane %v1215, 2
        %v1217 = vadd.f32 %v1215, %v1216
        %v1218 = vrot.slane %v1217, 1
        %v1219 = vadd.f32 %v1217, %v1218
        %v1220 = vsel %vm1103, %v1182, 0.0
        %v1221 = vrot.slane %v1220, 4
        %v1222 = vadd.f32 %v1220, %v1221
        %v1223 = vrot.slane %v1222, 2
        %v1224 = vadd.f32 %v1222, %v1223
        %v1225 = vrot.slane %v1224, 1
        %v1226 = vadd.f32 %v1224, %v1225
        %v1227 = vsel %vm1103, %v1183, 0.0
        %v1228 = vrot.slane %v1227, 4
        %v1229 = vadd.f32 %v1227, %v1228
        %v1230 = vrot.slane %v1229, 2
        %v1231 = vadd.f32 %v1229, %v1230
        %v1232 = vrot.slane %v1231, 1
        %v1233 = vadd.f32 %v1231, %v1232
        %v1234 = vsel %vm1103, %v1184, 0.0
        %v1235 = vrot.slane %v1234, 4
        %v1236 = vadd.f32 %v1234, %v1235
        %v1237 = vrot.slane %v1236, 2
        %v1238 = vadd.f32 %v1236, %v1237
        %v1239 = vrot.slane %v1238, 1
        %v1240 = vadd.f32 %v1238, %v1239
        %v1241 = vmul.f32 %v1191, %v1160
        %v1242 = vmul.f32 %v1198, %v1160
        %v1243 = vmul.f32 %v1205, %v1160
        %v1244 = vmul.f32 %v1212, %v1160
        %v1245 = vmul.f32 %v1219, %v1160
        %v1246 = vmul.f32 %v1226, %v1160
        %v1247 = vmul.f32 %v1233, %v1160
        %v1248 = vmul.f32 %v1240, %v1160
        %v1249 = vadd.f32 %v1241, 1e-05
        %v1250 = vadd.f32 %v1242, 1e-05
        %v1251 = vadd.f32 %v1243, 1e-05
        %v1252 = vadd.f32 %v1244, 1e-05
        %v1253 = vadd.f32 %v1245, 1e-05
        %v1254 = vadd.f32 %v1246, 1e-05
        %v1255 = vadd.f32 %v1247, 1e-05
        %v1256 = vadd.f32 %v1248, 1e-05
        %v1257 = vrsqrt.pop %v1249
        %v1258 = vrsqrt.pop %v1250
        %v1259 = vrsqrt.pop %v1251
        %v1260 = vrsqrt.pop %v1252
        %v1261 = vrsqrt.pop %v1253
        %v1262 = vrsqrt.pop %v1254
        %v1263 = vrsqrt.pop %v1255
        %v1264 = vrsqrt.pop %v1256
        %v1265 = vmul.f32 %v1169, %v1257
        %v1266 = vmul.f32 %v1170, %v1258
        %v1267 = vmul.f32 %v1171, %v1259
        %v1268 = vmul.f32 %v1172, %v1260
        %v1269 = vmul.f32 %v1173, %v1261
        %v1270 = vmul.f32 %v1174, %v1262
        %v1271 = vmul.f32 %v1175, %v1263
        %v1272 = vmul.f32 %v1176, %v1264
        %v1273 = vld [vmem:[#allocation6] sm:$0xff]
        %v1275 = vlaneseq
        %v1276 = vshrl.u32 %v1275, 7
        %v1277 = vsub.s32 0, %v1276
        %v1278 = vrot.slane %v1273, %v1277
        %v1279 = vlaneseq
        %v1280 = vshrl.u32 %v1279, 7
        %v1281 = vsub.s32 1, %v1280
        %v1282 = vrot.slane %v1273, %v1281
        %v1283 = vlaneseq
        %v1284 = vshrl.u32 %v1283, 7
        %v1285 = vsub.s32 2, %v1284
        %v1286 = vrot.slane %v1273, %v1285
        %v1287 = vlaneseq
        %v1288 = vshrl.u32 %v1287, 7
        %v1289 = vsub.s32 3, %v1288
        %v1290 = vrot.slane %v1273, %v1289
        %v1291 = vlaneseq
        %v1292 = vshrl.u32 %v1291, 7
        %v1293 = vsub.s32 4, %v1292
        %v1294 = vrot.slane %v1273, %v1293
        %v1295 = vlaneseq
        %v1296 = vshrl.u32 %v1295, 7
        %v1297 = vsub.s32 5, %v1296
        %v1298 = vrot.slane %v1273, %v1297
        %v1299 = vlaneseq
        %v1300 = vshrl.u32 %v1299, 7
        %v1301 = vsub.s32 6, %v1300
        %v1302 = vrot.slane %v1273, %v1301
        %v1303 = vlaneseq
        %v1304 = vshrl.u32 %v1303, 7
        %v1305 = vsub.s32 7, %v1304
        %v1306 = vrot.slane %v1273, %v1305
        %v1315 = vmul.f32 %v1265, %v1278
        %v1316 = vmul.f32 %v1266, %v1282
        %v1317 = vmul.f32 %v1267, %v1286
        %v1318 = vmul.f32 %v1268, %v1290
        %v1319 = vmul.f32 %v1269, %v1294
        %v1320 = vmul.f32 %v1270, %v1298
        %v1321 = vmul.f32 %v1271, %v1302
        %v1322 = vmul.f32 %v1272, %v1306
        %v1323 = vld [vmem:[#allocation7] sm:$0xff]
        %v1325 = vlaneseq
        %v1326 = vshrl.u32 %v1325, 7
        %v1327 = vsub.s32 0, %v1326
        %v1328 = vrot.slane %v1323, %v1327
        %v1329 = vlaneseq
        %v1330 = vshrl.u32 %v1329, 7
        %v1331 = vsub.s32 1, %v1330
        %v1332 = vrot.slane %v1323, %v1331
        %v1333 = vlaneseq
        %v1334 = vshrl.u32 %v1333, 7
        %v1335 = vsub.s32 2, %v1334
        %v1336 = vrot.slane %v1323, %v1335
        %v1337 = vlaneseq
        %v1338 = vshrl.u32 %v1337, 7
        %v1339 = vsub.s32 3, %v1338
        %v1340 = vrot.slane %v1323, %v1339
        %v1341 = vlaneseq
        %v1342 = vshrl.u32 %v1341, 7
        %v1343 = vsub.s32 4, %v1342
        %v1344 = vrot.slane %v1323, %v1343
        %v1345 = vlaneseq
        %v1346 = vshrl.u32 %v1345, 7
        %v1347 = vsub.s32 5, %v1346
        %v1348 = vrot.slane %v1323, %v1347
        %v1349 = vlaneseq
        %v1350 = vshrl.u32 %v1349, 7
        %v1351 = vsub.s32 6, %v1350
        %v1352 = vrot.slane %v1323, %v1351
        %v1353 = vlaneseq
        %v1354 = vshrl.u32 %v1353, 7
        %v1355 = vsub.s32 7, %v1354
        %v1356 = vrot.slane %v1323, %v1355
        %v1365 = vadd.f32 %v1315, %v1328
        %v1366 = vadd.f32 %v1316, %v1332
        %v1367 = vadd.f32 %v1317, %v1336
        %v1368 = vadd.f32 %v1318, %v1340
        %v1369 = vadd.f32 %v1319, %v1344
        %v1370 = vadd.f32 %v1320, %v1348
        %v1371 = vadd.f32 %v1321, %v1352
        %v1372 = vadd.f32 %v1322, %v1356
        %v1373 = vmax.f32 %v1365, 0.0
        %v1374 = vmax.f32 %v1366, 0.0
        %v1375 = vmax.f32 %v1367, 0.0
        %v1376 = vmax.f32 %v1368, 0.0
        %v1377 = vmax.f32 %v1369, 0.0
        %v1378 = vmax.f32 %v1370, 0.0
        %v1379 = vmax.f32 %v1371, 0.0
        %v1380 = vmax.f32 %v1372, 0.0
        %v1381 = vpack.c.bf16 %v1373, %v1373
        %v1382 = vpack.c.bf16 %v1374, %v1374
        %v1383 = vpack.c.bf16 %v1375, %v1375
        %v1384 = vpack.c.bf16 %v1376, %v1376
        %v1385 = vpack.c.bf16 %v1377, %v1377
        %v1386 = vpack.c.bf16 %v1378, %v1378
        %v1387 = vpack.c.bf16 %v1379, %v1379
        %v1388 = vpack.c.bf16 %v1380, %v1380
        %v1389 = vld [vmem:[%s426] sm:$0xff]
        %v1390 = vld [vmem:[%s426 + $0x8] sm:$0xff]
        %v1391 = vld [vmem:[%s426 + $0x10] sm:$0xff]
        %v1392 = vld [vmem:[%s426 + $0x18] sm:$0xff]
        %v1393 = vld [vmem:[%s426 + $0x20] sm:$0xff]
        %v1394 = vld [vmem:[%s426 + $0x28] sm:$0xff]
        %v1395 = vld [vmem:[%s426 + $0x30] sm:$0xff]
        %v1396 = vld [vmem:[%s426 + $0x38] sm:$0xff]
        %v1397 = vld [vmem:[%s426 + $0x40] sm:$0xff]
        %v1398 = vld [vmem:[%s426 + $0x48] sm:$0xff]
        %v1399 = vld [vmem:[%s426 + $0x50] sm:$0xff]
        %v1400 = vld [vmem:[%s426 + $0x58] sm:$0xff]
        %v1401 = vld [vmem:[%s426 + $0x60] sm:$0xff]
        %v1402 = vld [vmem:[%s426 + $0x68] sm:$0xff]
        %v1403 = vld [vmem:[%s426 + $0x70] sm:$0xff]
        %v1404 = vld [vmem:[%s426 + $0x78] sm:$0xff]
        %v1405 = vld [vmem:[%s426 + $0x80] sm:$0xff]
        %v1406 = vld [vmem:[%s426 + $0x88] sm:$0xff]
        %v1407 = vld [vmem:[%s426 + $0x90] sm:$0xff]
        %v1408 = vld [vmem:[%s426 + $0x98] sm:$0xff]
        %v1409 = vld [vmem:[%s426 + $0xa0] sm:$0xff]
        %v1410 = vld [vmem:[%s426 + $0xa8] sm:$0xff]
        %v1411 = vld [vmem:[%s426 + $0xb0] sm:$0xff]
        %v1412 = vld [vmem:[%s426 + $0xb8] sm:$0xff]
        %v1413 = vld [vmem:[%s426 + $0xc0] sm:$0xff]
        %v1414 = vld [vmem:[%s426 + $0xc8] sm:$0xff]
        %v1415 = vld [vmem:[%s426 + $0xd0] sm:$0xff]
        %v1416 = vld [vmem:[%s426 + $0xd8] sm:$0xff]
        %v1417 = vld [vmem:[%s426 + $0xe0] sm:$0xff]
        %v1418 = vld [vmem:[%s426 + $0xe8] sm:$0xff]
        %v1419 = vld [vmem:[%s426 + $0xf0] sm:$0xff]
        %v1420 = vld [vmem:[%s426 + $0xf8] sm:$0xff]
        %v1421 = vld [vmem:[%s426 + $0x100] sm:$0xff]
        %v1422 = vld [vmem:[%s426 + $0x108] sm:$0xff]
        %v1423 = vld [vmem:[%s426 + $0x110] sm:$0xff]
        %v1424 = vld [vmem:[%s426 + $0x118] sm:$0xff]
        %v1425 = vld [vmem:[%s426 + $0x120] sm:$0xff]
        %v1426 = vld [vmem:[%s426 + $0x128] sm:$0xff]
        %v1427 = vld [vmem:[%s426 + $0x130] sm:$0xff]
        %v1428 = vld [vmem:[%s426 + $0x138] sm:$0xff]
        %v1429 = vld [vmem:[%s426 + $0x140] sm:$0xff]
        %v1430 = vld [vmem:[%s426 + $0x148] sm:$0xff]
        %v1431 = vld [vmem:[%s426 + $0x150] sm:$0xff]
        %v1432 = vld [vmem:[%s426 + $0x158] sm:$0xff]
        %v1433 = vld [vmem:[%s426 + $0x160] sm:$0xff]
        %v1434 = vld [vmem:[%s426 + $0x168] sm:$0xff]
        %v1435 = vld [vmem:[%s426 + $0x170] sm:$0xff]
        %v1436 = vld [vmem:[%s426 + $0x178] sm:$0xff]
        %v1437 = vld [vmem:[%s426 + $0x180] sm:$0xff]
        %v1438 = vld [vmem:[%s426 + $0x188] sm:$0xff]
        %v1439 = vld [vmem:[%s426 + $0x190] sm:$0xff]
        %v1440 = vld [vmem:[%s426 + $0x198] sm:$0xff]
        %v1441 = vld [vmem:[%s426 + $0x1a0] sm:$0xff]
        %v1442 = vld [vmem:[%s426 + $0x1a8] sm:$0xff]
        %v1443 = vld [vmem:[%s426 + $0x1b0] sm:$0xff]
        %v1444 = vld [vmem:[%s426 + $0x1b8] sm:$0xff]
        %v1445 = vld [vmem:[%s426 + $0x1c0] sm:$0xff]
        %v1446 = vld [vmem:[%s426 + $0x1c8] sm:$0xff]
        %v1447 = vld [vmem:[%s426 + $0x1d0] sm:$0xff]
        %v1448 = vld [vmem:[%s426 + $0x1d8] sm:$0xff]
        %v1449 = vld [vmem:[%s426 + $0x1e0] sm:$0xff]
        %v1450 = vld [vmem:[%s426 + $0x1e8] sm:$0xff]
        %v1451 = vld [vmem:[%s426 + $0x1f0] sm:$0xff]
        %v1452 = vld [vmem:[%s426 + $0x1f8] sm:$0xff]
        %v1453 = vld [vmem:[%s426 + $0x200] sm:$0xff]
        %v1454 = vld [vmem:[%s426 + $0x208] sm:$0xff]
        %v1455 = vld [vmem:[%s426 + $0x210] sm:$0xff]
        %v1456 = vld [vmem:[%s426 + $0x218] sm:$0xff]
        %v1457 = vld [vmem:[%s426 + $0x220] sm:$0xff]
        %v1458 = vld [vmem:[%s426 + $0x228] sm:$0xff]
        %v1459 = vld [vmem:[%s426 + $0x230] sm:$0xff]
        %v1460 = vld [vmem:[%s426 + $0x238] sm:$0xff]
        %v1461 = vld [vmem:[%s426 + $0x240] sm:$0xff]
        %v1462 = vld [vmem:[%s426 + $0x248] sm:$0xff]
        %v1463 = vld [vmem:[%s426 + $0x250] sm:$0xff]
        %v1464 = vld [vmem:[%s426 + $0x258] sm:$0xff]
        %v1465 = vld [vmem:[%s426 + $0x260] sm:$0xff]
        %v1466 = vld [vmem:[%s426 + $0x268] sm:$0xff]
        %v1467 = vld [vmem:[%s426 + $0x270] sm:$0xff]
        %v1468 = vld [vmem:[%s426 + $0x278] sm:$0xff]
        %v1469 = vld [vmem:[%s426 + $0x280] sm:$0xff]
        %v1470 = vld [vmem:[%s426 + $0x288] sm:$0xff]
        %v1471 = vld [vmem:[%s426 + $0x290] sm:$0xff]
        %v1472 = vld [vmem:[%s426 + $0x298] sm:$0xff]
        %v1473 = vld [vmem:[%s426 + $0x2a0] sm:$0xff]
        %v1474 = vld [vmem:[%s426 + $0x2a8] sm:$0xff]
        %v1475 = vld [vmem:[%s426 + $0x2b0] sm:$0xff]
        %v1476 = vld [vmem:[%s426 + $0x2b8] sm:$0xff]
        %v1477 = vld [vmem:[%s426 + $0x2c0] sm:$0xff]
        %v1478 = vld [vmem:[%s426 + $0x2c8] sm:$0xff]
        %v1479 = vld [vmem:[%s426 + $0x2d0] sm:$0xff]
        %v1480 = vld [vmem:[%s426 + $0x2d8] sm:$0xff]
        %v1481 = vld [vmem:[%s426 + $0x2e0] sm:$0xff]
        %v1482 = vld [vmem:[%s426 + $0x2e8] sm:$0xff]
        %v1483 = vld [vmem:[%s426 + $0x2f0] sm:$0xff]
        %v1484 = vld [vmem:[%s426 + $0x2f8] sm:$0xff]
        %v1485 = vld [vmem:[%s426 + $0x300] sm:$0xff]
        %v1486 = vld [vmem:[%s426 + $0x308] sm:$0xff]
        %v1487 = vld [vmem:[%s426 + $0x310] sm:$0xff]
        %v1488 = vld [vmem:[%s426 + $0x318] sm:$0xff]
        %v1489 = vld [vmem:[%s426 + $0x320] sm:$0xff]
        %v1490 = vld [vmem:[%s426 + $0x328] sm:$0xff]
        %v1491 = vld [vmem:[%s426 + $0x330] sm:$0xff]
        %v1492 = vld [vmem:[%s426 + $0x338] sm:$0xff]
        %v1493 = vld [vmem:[%s426 + $0x340] sm:$0xff]
        %v1494 = vld [vmem:[%s426 + $0x348] sm:$0xff]
        %v1495 = vld [vmem:[%s426 + $0x350] sm:$0xff]
        %v1496 = vld [vmem:[%s426 + $0x358] sm:$0xff]
        %v1497 = vld [vmem:[%s426 + $0x360] sm:$0xff]
        %v1498 = vld [vmem:[%s426 + $0x368] sm:$0xff]
        %v1499 = vld [vmem:[%s426 + $0x370] sm:$0xff]
        %v1500 = vld [vmem:[%s426 + $0x378] sm:$0xff]
        %v1501 = vld [vmem:[%s426 + $0x380] sm:$0xff]
        %v1502 = vld [vmem:[%s426 + $0x388] sm:$0xff]
        %v1503 = vld [vmem:[%s426 + $0x390] sm:$0xff]
        %v1504 = vld [vmem:[%s426 + $0x398] sm:$0xff]
        %v1505 = vld [vmem:[%s426 + $0x3a0] sm:$0xff]
        %v1506 = vld [vmem:[%s426 + $0x3a8] sm:$0xff]
        %v1507 = vld [vmem:[%s426 + $0x3b0] sm:$0xff]
        %v1508 = vld [vmem:[%s426 + $0x3b8] sm:$0xff]
        %v1509 = vld [vmem:[%s426 + $0x3c0] sm:$0xff]
        %v1510 = vld [vmem:[%s426 + $0x3c8] sm:$0xff]
        %v1511 = vld [vmem:[%s426 + $0x3d0] sm:$0xff]
        %v1512 = vld [vmem:[%s426 + $0x3d8] sm:$0xff]
        %v1513 = vld [vmem:[%s426 + $0x3e0] sm:$0xff]
        %v1514 = vld [vmem:[%s426 + $0x3e8] sm:$0xff]
        %v1515 = vld [vmem:[%s426 + $0x3f0] sm:$0xff]
        %v1516 = vld [vmem:[%s426 + $0x3f8] sm:$0xff]
        %v1517 = vld [vmem:[%s426 + $0x400] sm:$0xff]
        %v1518 = vld [vmem:[%s426 + $0x408] sm:$0xff]
        %v1519 = vld [vmem:[%s426 + $0x410] sm:$0xff]
        %v1520 = vld [vmem:[%s426 + $0x418] sm:$0xff]
        %v1521 = vld [vmem:[%s426 + $0x420] sm:$0xff]
        %v1522 = vld [vmem:[%s426 + $0x428] sm:$0xff]
        %v1523 = vld [vmem:[%s426 + $0x430] sm:$0xff]
        %v1524 = vld [vmem:[%s426 + $0x438] sm:$0xff]
        %v1525 = vld [vmem:[%s426 + $0x440] sm:$0xff]
        %v1526 = vld [vmem:[%s426 + $0x448] sm:$0xff]
        %v1527 = vld [vmem:[%s426 + $0x450] sm:$0xff]
        %v1528 = vld [vmem:[%s426 + $0x458] sm:$0xff]
        %v1529 = vld [vmem:[%s426 + $0x460] sm:$0xff]
        %v1530 = vld [vmem:[%s426 + $0x468] sm:$0xff]
        %v1531 = vld [vmem:[%s426 + $0x470] sm:$0xff]
        %v1532 = vld [vmem:[%s426 + $0x478] sm:$0xff]
        %v1533 = vld [vmem:[%s426 + $0x480] sm:$0xff]
        %v1534 = vld [vmem:[%s426 + $0x488] sm:$0xff]
        %v1535 = vld [vmem:[%s426 + $0x490] sm:$0xff]
        %v1536 = vld [vmem:[%s426 + $0x498] sm:$0xff]
        %v1537 = vld [vmem:[%s426 + $0x4a0] sm:$0xff]
        %v1538 = vld [vmem:[%s426 + $0x4a8] sm:$0xff]
        %v1539 = vld [vmem:[%s426 + $0x4b0] sm:$0xff]
        %v1540 = vld [vmem:[%s426 + $0x4b8] sm:$0xff]
        %v1541 = vld [vmem:[%s426 + $0x4c0] sm:$0xff]
        %v1542 = vld [vmem:[%s426 + $0x4c8] sm:$0xff]
        %v1543 = vld [vmem:[%s426 + $0x4d0] sm:$0xff]
        %v1544 = vld [vmem:[%s426 + $0x4d8] sm:$0xff]
        %v1545 = vld [vmem:[%s426 + $0x4e0] sm:$0xff]
        %v1546 = vld [vmem:[%s426 + $0x4e8] sm:$0xff]
        %v1547 = vld [vmem:[%s426 + $0x4f0] sm:$0xff]
        %v1548 = vld [vmem:[%s426 + $0x4f8] sm:$0xff]
        %v1549 = vld [vmem:[%s426 + $0x500] sm:$0xff]
        %v1550 = vld [vmem:[%s426 + $0x508] sm:$0xff]
        %v1551 = vld [vmem:[%s426 + $0x510] sm:$0xff]
        %v1552 = vld [vmem:[%s426 + $0x518] sm:$0xff]
        %v1553 = vld [vmem:[%s426 + $0x520] sm:$0xff]
        %v1554 = vld [vmem:[%s426 + $0x528] sm:$0xff]
        %v1555 = vld [vmem:[%s426 + $0x530] sm:$0xff]
        %v1556 = vld [vmem:[%s426 + $0x538] sm:$0xff]
        %v1557 = vld [vmem:[%s426 + $0x540] sm:$0xff]
        %v1558 = vld [vmem:[%s426 + $0x548] sm:$0xff]
        %v1559 = vld [vmem:[%s426 + $0x550] sm:$0xff]
        %v1560 = vld [vmem:[%s426 + $0x558] sm:$0xff]
        %v1561 = vld [vmem:[%s426 + $0x560] sm:$0xff]
        %v1562 = vld [vmem:[%s426 + $0x568] sm:$0xff]
        %v1563 = vld [vmem:[%s426 + $0x570] sm:$0xff]
        %v1564 = vld [vmem:[%s426 + $0x578] sm:$0xff]
        %v1565 = vld [vmem:[%s426 + $0x580] sm:$0xff]
        %v1566 = vld [vmem:[%s426 + $0x588] sm:$0xff]
        %v1567 = vld [vmem:[%s426 + $0x590] sm:$0xff]
        %v1568 = vld [vmem:[%s426 + $0x598] sm:$0xff]
        %v1569 = vld [vmem:[%s426 + $0x5a0] sm:$0xff]
        %v1570 = vld [vmem:[%s426 + $0x5a8] sm:$0xff]
        %v1571 = vld [vmem:[%s426 + $0x5b0] sm:$0xff]
        %v1572 = vld [vmem:[%s426 + $0x5b8] sm:$0xff]
        %v1573 = vld [vmem:[%s426 + $0x5c0] sm:$0xff]
        %v1574 = vld [vmem:[%s426 + $0x5c8] sm:$0xff]
        %v1575 = vld [vmem:[%s426 + $0x5d0] sm:$0xff]
        %v1576 = vld [vmem:[%s426 + $0x5d8] sm:$0xff]
        %v1577 = vld [vmem:[%s426 + $0x5e0] sm:$0xff]
        %v1578 = vld [vmem:[%s426 + $0x5e8] sm:$0xff]
        %v1579 = vld [vmem:[%s426 + $0x5f0] sm:$0xff]
        %v1580 = vld [vmem:[%s426 + $0x5f8] sm:$0xff]
        %v1581 = vld [vmem:[%s426 + $0x600] sm:$0xff]
        %v1582 = vld [vmem:[%s426 + $0x608] sm:$0xff]
        %v1583 = vld [vmem:[%s426 + $0x610] sm:$0xff]
        %v1584 = vld [vmem:[%s426 + $0x618] sm:$0xff]
        %v1585 = vld [vmem:[%s426 + $0x620] sm:$0xff]
        %v1586 = vld [vmem:[%s426 + $0x628] sm:$0xff]
        %v1587 = vld [vmem:[%s426 + $0x630] sm:$0xff]
        %v1588 = vld [vmem:[%s426 + $0x638] sm:$0xff]
        %v1589 = vld [vmem:[%s426 + $0x640] sm:$0xff]
        %v1590 = vld [vmem:[%s426 + $0x648] sm:$0xff]
        %v1591 = vld [vmem:[%s426 + $0x650] sm:$0xff]
        %v1592 = vld [vmem:[%s426 + $0x658] sm:$0xff]
        %v1593 = vld [vmem:[%s426 + $0x660] sm:$0xff]
        %v1594 = vld [vmem:[%s426 + $0x668] sm:$0xff]
        %v1595 = vld [vmem:[%s426 + $0x670] sm:$0xff]
        %v1596 = vld [vmem:[%s426 + $0x678] sm:$0xff]
        %v1597 = vld [vmem:[%s426 + $0x680] sm:$0xff]
        %v1598 = vld [vmem:[%s426 + $0x688] sm:$0xff]
        %v1599 = vld [vmem:[%s426 + $0x690] sm:$0xff]
        %v1600 = vld [vmem:[%s426 + $0x698] sm:$0xff]
        %v1601 = vld [vmem:[%s426 + $0x6a0] sm:$0xff]
        %v1602 = vld [vmem:[%s426 + $0x6a8] sm:$0xff]
        %v1603 = vld [vmem:[%s426 + $0x6b0] sm:$0xff]
        %v1604 = vld [vmem:[%s426 + $0x6b8] sm:$0xff]
        %v1605 = vld [vmem:[%s426 + $0x6c0] sm:$0xff]
        %v1606 = vld [vmem:[%s426 + $0x6c8] sm:$0xff]
        %v1607 = vld [vmem:[%s426 + $0x6d0] sm:$0xff]
        %v1608 = vld [vmem:[%s426 + $0x6d8] sm:$0xff]
        %v1609 = vld [vmem:[%s426 + $0x6e0] sm:$0xff]
        %v1610 = vld [vmem:[%s426 + $0x6e8] sm:$0xff]
        %v1611 = vld [vmem:[%s426 + $0x6f0] sm:$0xff]
        %v1612 = vld [vmem:[%s426 + $0x6f8] sm:$0xff]
        %v1613 = vld [vmem:[%s426 + $0x700] sm:$0xff]
        %v1614 = vld [vmem:[%s426 + $0x708] sm:$0xff]
        %v1615 = vld [vmem:[%s426 + $0x710] sm:$0xff]
        %v1616 = vld [vmem:[%s426 + $0x718] sm:$0xff]
        %v1617 = vld [vmem:[%s426 + $0x720] sm:$0xff]
        %v1618 = vld [vmem:[%s426 + $0x728] sm:$0xff]
        %v1619 = vld [vmem:[%s426 + $0x730] sm:$0xff]
        %v1620 = vld [vmem:[%s426 + $0x738] sm:$0xff]
        %v1621 = vld [vmem:[%s426 + $0x740] sm:$0xff]
        %v1622 = vld [vmem:[%s426 + $0x748] sm:$0xff]
        %v1623 = vld [vmem:[%s426 + $0x750] sm:$0xff]
        %v1624 = vld [vmem:[%s426 + $0x758] sm:$0xff]
        %v1625 = vld [vmem:[%s426 + $0x760] sm:$0xff]
        %v1626 = vld [vmem:[%s426 + $0x768] sm:$0xff]
        %v1627 = vld [vmem:[%s426 + $0x770] sm:$0xff]
        %v1628 = vld [vmem:[%s426 + $0x778] sm:$0xff]
        %v1629 = vld [vmem:[%s426 + $0x780] sm:$0xff]
        %v1630 = vld [vmem:[%s426 + $0x788] sm:$0xff]
        %v1631 = vld [vmem:[%s426 + $0x790] sm:$0xff]
        %v1632 = vld [vmem:[%s426 + $0x798] sm:$0xff]
        %v1633 = vld [vmem:[%s426 + $0x7a0] sm:$0xff]
        %v1634 = vld [vmem:[%s426 + $0x7a8] sm:$0xff]
        %v1635 = vld [vmem:[%s426 + $0x7b0] sm:$0xff]
        %v1636 = vld [vmem:[%s426 + $0x7b8] sm:$0xff]
        %v1637 = vld [vmem:[%s426 + $0x7c0] sm:$0xff]
        %v1638 = vld [vmem:[%s426 + $0x7c8] sm:$0xff]
        %v1639 = vld [vmem:[%s426 + $0x7d0] sm:$0xff]
        %v1640 = vld [vmem:[%s426 + $0x7d8] sm:$0xff]
        %v1641 = vld [vmem:[%s426 + $0x7e0] sm:$0xff]
        %v1642 = vld [vmem:[%s426 + $0x7e8] sm:$0xff]
        %v1643 = vld [vmem:[%s426 + $0x7f0] sm:$0xff]
        %v1644 = vld [vmem:[%s426 + $0x7f8] sm:$0xff]
        %v1645 = vld [vmem:[%s426 + $0x800] sm:$0xff]
        %v1646 = vld [vmem:[%s426 + $0x808] sm:$0xff]
        %v1647 = vld [vmem:[%s426 + $0x810] sm:$0xff]
        %v1648 = vld [vmem:[%s426 + $0x818] sm:$0xff]
        %v1649 = vld [vmem:[%s426 + $0x820] sm:$0xff]
        %v1650 = vld [vmem:[%s426 + $0x828] sm:$0xff]
        %v1651 = vld [vmem:[%s426 + $0x830] sm:$0xff]
        %v1652 = vld [vmem:[%s426 + $0x838] sm:$0xff]
        %v1653 = vld [vmem:[%s426 + $0x840] sm:$0xff]
        %v1654 = vld [vmem:[%s426 + $0x848] sm:$0xff]
        %v1655 = vld [vmem:[%s426 + $0x850] sm:$0xff]
        %v1656 = vld [vmem:[%s426 + $0x858] sm:$0xff]
        %v1657 = vld [vmem:[%s426 + $0x860] sm:$0xff]
        %v1658 = vld [vmem:[%s426 + $0x868] sm:$0xff]
        %v1659 = vld [vmem:[%s426 + $0x870] sm:$0xff]
        %v1660 = vld [vmem:[%s426 + $0x878] sm:$0xff]
        %v1661 = vld [vmem:[%s426 + $0x880] sm:$0xff]
        %v1662 = vld [vmem:[%s426 + $0x888] sm:$0xff]
        %v1663 = vld [vmem:[%s426 + $0x890] sm:$0xff]
        %v1664 = vld [vmem:[%s426 + $0x898] sm:$0xff]
        %v1665 = vld [vmem:[%s426 + $0x8a0] sm:$0xff]
        %v1666 = vld [vmem:[%s426 + $0x8a8] sm:$0xff]
        %v1667 = vld [vmem:[%s426 + $0x8b0] sm:$0xff]
        %v1668 = vld [vmem:[%s426 + $0x8b8] sm:$0xff]
        %v1669 = vld [vmem:[%s426 + $0x8c0] sm:$0xff]
        %v1670 = vld [vmem:[%s426 + $0x8c8] sm:$0xff]
        %v1671 = vld [vmem:[%s426 + $0x8d0] sm:$0xff]
        %v1672 = vld [vmem:[%s426 + $0x8d8] sm:$0xff]
        %v1673 = vld [vmem:[%s426 + $0x8e0] sm:$0xff]
        %v1674 = vld [vmem:[%s426 + $0x8e8] sm:$0xff]
        %v1675 = vld [vmem:[%s426 + $0x8f0] sm:$0xff]
        %v1676 = vld [vmem:[%s426 + $0x8f8] sm:$0xff]
        %v1677 = vld [vmem:[%s426 + $0x900] sm:$0xff]
        %v1678 = vld [vmem:[%s426 + $0x908] sm:$0xff]
        %v1679 = vld [vmem:[%s426 + $0x910] sm:$0xff]
        %v1680 = vld [vmem:[%s426 + $0x918] sm:$0xff]
        %v1681 = vld [vmem:[%s426 + $0x920] sm:$0xff]
        %v1682 = vld [vmem:[%s426 + $0x928] sm:$0xff]
        %v1683 = vld [vmem:[%s426 + $0x930] sm:$0xff]
        %v1684 = vld [vmem:[%s426 + $0x938] sm:$0xff]
        %v1685 = vld [vmem:[%s426 + $0x940] sm:$0xff]
        %v1686 = vld [vmem:[%s426 + $0x948] sm:$0xff]
        %v1687 = vld [vmem:[%s426 + $0x950] sm:$0xff]
        %v1688 = vld [vmem:[%s426 + $0x958] sm:$0xff]
        %v1689 = vld [vmem:[%s426 + $0x960] sm:$0xff]
        %v1690 = vld [vmem:[%s426 + $0x968] sm:$0xff]
        %v1691 = vld [vmem:[%s426 + $0x970] sm:$0xff]
        %v1692 = vld [vmem:[%s426 + $0x978] sm:$0xff]
        %v1693 = vld [vmem:[%s426 + $0x980] sm:$0xff]
        %v1694 = vld [vmem:[%s426 + $0x988] sm:$0xff]
        %v1695 = vld [vmem:[%s426 + $0x990] sm:$0xff]
        %v1696 = vld [vmem:[%s426 + $0x998] sm:$0xff]
        %v1697 = vld [vmem:[%s426 + $0x9a0] sm:$0xff]
        %v1698 = vld [vmem:[%s426 + $0x9a8] sm:$0xff]
        %v1699 = vld [vmem:[%s426 + $0x9b0] sm:$0xff]
        %v1700 = vld [vmem:[%s426 + $0x9b8] sm:$0xff]
        %v1701 = vld [vmem:[%s426 + $0x9c0] sm:$0xff]
        %v1702 = vld [vmem:[%s426 + $0x9c8] sm:$0xff]
        %v1703 = vld [vmem:[%s426 + $0x9d0] sm:$0xff]
        %v1704 = vld [vmem:[%s426 + $0x9d8] sm:$0xff]
        %v1705 = vld [vmem:[%s426 + $0x9e0] sm:$0xff]
        %v1706 = vld [vmem:[%s426 + $0x9e8] sm:$0xff]
        %v1707 = vld [vmem:[%s426 + $0x9f0] sm:$0xff]
        %v1708 = vld [vmem:[%s426 + $0x9f8] sm:$0xff]
        %v1709 = vld [vmem:[%s426 + $0xa00] sm:$0xff]
        %v1710 = vld [vmem:[%s426 + $0xa08] sm:$0xff]
        %v1711 = vld [vmem:[%s426 + $0xa10] sm:$0xff]
        %v1712 = vld [vmem:[%s426 + $0xa18] sm:$0xff]
        %v1713 = vld [vmem:[%s426 + $0xa20] sm:$0xff]
        %v1714 = vld [vmem:[%s426 + $0xa28] sm:$0xff]
        %v1715 = vld [vmem:[%s426 + $0xa30] sm:$0xff]
        %v1716 = vld [vmem:[%s426 + $0xa38] sm:$0xff]
        %v1717 = vld [vmem:[%s426 + $0xa40] sm:$0xff]
        %v1718 = vld [vmem:[%s426 + $0xa48] sm:$0xff]
        %v1719 = vld [vmem:[%s426 + $0xa50] sm:$0xff]
        %v1720 = vld [vmem:[%s426 + $0xa58] sm:$0xff]
        %v1721 = vld [vmem:[%s426 + $0xa60] sm:$0xff]
        %v1722 = vld [vmem:[%s426 + $0xa68] sm:$0xff]
        %v1723 = vld [vmem:[%s426 + $0xa70] sm:$0xff]
        %v1724 = vld [vmem:[%s426 + $0xa78] sm:$0xff]
        %v1725 = vld [vmem:[%s426 + $0xa80] sm:$0xff]
        %v1726 = vld [vmem:[%s426 + $0xa88] sm:$0xff]
        %v1727 = vld [vmem:[%s426 + $0xa90] sm:$0xff]
        %v1728 = vld [vmem:[%s426 + $0xa98] sm:$0xff]
        %v1729 = vld [vmem:[%s426 + $0xaa0] sm:$0xff]
        %v1730 = vld [vmem:[%s426 + $0xaa8] sm:$0xff]
        %v1731 = vld [vmem:[%s426 + $0xab0] sm:$0xff]
        %v1732 = vld [vmem:[%s426 + $0xab8] sm:$0xff]
        %v1733 = vld [vmem:[%s426 + $0xac0] sm:$0xff]
        %v1734 = vld [vmem:[%s426 + $0xac8] sm:$0xff]
        %v1735 = vld [vmem:[%s426 + $0xad0] sm:$0xff]
        %v1736 = vld [vmem:[%s426 + $0xad8] sm:$0xff]
        %v1737 = vld [vmem:[%s426 + $0xae0] sm:$0xff]
        %v1738 = vld [vmem:[%s426 + $0xae8] sm:$0xff]
        %v1739 = vld [vmem:[%s426 + $0xaf0] sm:$0xff]
        %v1740 = vld [vmem:[%s426 + $0xaf8] sm:$0xff]
        %v1741 = vld [vmem:[%s426 + $0xb00] sm:$0xff]
        %v1742 = vld [vmem:[%s426 + $0xb08] sm:$0xff]
        %v1743 = vld [vmem:[%s426 + $0xb10] sm:$0xff]
        %v1744 = vld [vmem:[%s426 + $0xb18] sm:$0xff]
        %v1745 = vld [vmem:[%s426 + $0xb20] sm:$0xff]
        %v1746 = vld [vmem:[%s426 + $0xb28] sm:$0xff]
        %v1747 = vld [vmem:[%s426 + $0xb30] sm:$0xff]
        %v1748 = vld [vmem:[%s426 + $0xb38] sm:$0xff]
        %v1749 = vld [vmem:[%s426 + $0xb40] sm:$0xff]
        %v1750 = vld [vmem:[%s426 + $0xb48] sm:$0xff]
        %v1751 = vld [vmem:[%s426 + $0xb50] sm:$0xff]
        %v1752 = vld [vmem:[%s426 + $0xb58] sm:$0xff]
        %v1753 = vld [vmem:[%s426 + $0xb60] sm:$0xff]
        %v1754 = vld [vmem:[%s426 + $0xb68] sm:$0xff]
        %v1755 = vld [vmem:[%s426 + $0xb70] sm:$0xff]
        %v1756 = vld [vmem:[%s426 + $0xb78] sm:$0xff]
        %v1757 = vld [vmem:[%s426 + $0xb80] sm:$0xff]
        %v1758 = vld [vmem:[%s426 + $0xb88] sm:$0xff]
        %v1759 = vld [vmem:[%s426 + $0xb90] sm:$0xff]
        %v1760 = vld [vmem:[%s426 + $0xb98] sm:$0xff]
        %v1761 = vld [vmem:[%s426 + $0xba0] sm:$0xff]
        %v1762 = vld [vmem:[%s426 + $0xba8] sm:$0xff]
        %v1763 = vld [vmem:[%s426 + $0xbb0] sm:$0xff]
        %v1764 = vld [vmem:[%s426 + $0xbb8] sm:$0xff]
        %v1765 = vld [vmem:[%s426 + $0xbc0] sm:$0xff]
        %v1766 = vld [vmem:[%s426 + $0xbc8] sm:$0xff]
        %v1767 = vld [vmem:[%s426 + $0xbd0] sm:$0xff]
        %v1768 = vld [vmem:[%s426 + $0xbd8] sm:$0xff]
        %v1769 = vld [vmem:[%s426 + $0xbe0] sm:$0xff]
        %v1770 = vld [vmem:[%s426 + $0xbe8] sm:$0xff]
        %v1771 = vld [vmem:[%s426 + $0xbf0] sm:$0xff]
        %v1772 = vld [vmem:[%s426 + $0xbf8] sm:$0xff]
        %v1773 = vld [vmem:[%s426 + $0xc00] sm:$0xff]
        %v1774 = vld [vmem:[%s426 + $0xc08] sm:$0xff]
        %v1775 = vld [vmem:[%s426 + $0xc10] sm:$0xff]
        %v1776 = vld [vmem:[%s426 + $0xc18] sm:$0xff]
        %v1777 = vld [vmem:[%s426 + $0xc20] sm:$0xff]
        %v1778 = vld [vmem:[%s426 + $0xc28] sm:$0xff]
        %v1779 = vld [vmem:[%s426 + $0xc30] sm:$0xff]
        %v1780 = vld [vmem:[%s426 + $0xc38] sm:$0xff]
        %v1781 = vld [vmem:[%s426 + $0xc40] sm:$0xff]
        %v1782 = vld [vmem:[%s426 + $0xc48] sm:$0xff]
        %v1783 = vld [vmem:[%s426 + $0xc50] sm:$0xff]
        %v1784 = vld [vmem:[%s426 + $0xc58] sm:$0xff]
        %v1785 = vld [vmem:[%s426 + $0xc60] sm:$0xff]
        %v1786 = vld [vmem:[%s426 + $0xc68] sm:$0xff]
        %v1787 = vld [vmem:[%s426 + $0xc70] sm:$0xff]
        %v1788 = vld [vmem:[%s426 + $0xc78] sm:$0xff]
        %v1789 = vld [vmem:[%s426 + $0xc80] sm:$0xff]
        %v1790 = vld [vmem:[%s426 + $0xc88] sm:$0xff]
        %v1791 = vld [vmem:[%s426 + $0xc90] sm:$0xff]
        %v1792 = vld [vmem:[%s426 + $0xc98] sm:$0xff]
        %v1793 = vld [vmem:[%s426 + $0xca0] sm:$0xff]
        %v1794 = vld [vmem:[%s426 + $0xca8] sm:$0xff]
        %v1795 = vld [vmem:[%s426 + $0xcb0] sm:$0xff]
        %v1796 = vld [vmem:[%s426 + $0xcb8] sm:$0xff]
        %v1797 = vld [vmem:[%s426 + $0xcc0] sm:$0xff]
        %v1798 = vld [vmem:[%s426 + $0xcc8] sm:$0xff]
        %v1799 = vld [vmem:[%s426 + $0xcd0] sm:$0xff]
        %v1800 = vld [vmem:[%s426 + $0xcd8] sm:$0xff]
        %v1801 = vld [vmem:[%s426 + $0xce0] sm:$0xff]
        %v1802 = vld [vmem:[%s426 + $0xce8] sm:$0xff]
        %v1803 = vld [vmem:[%s426 + $0xcf0] sm:$0xff]
        %v1804 = vld [vmem:[%s426 + $0xcf8] sm:$0xff]
        %v1805 = vld [vmem:[%s426 + $0xd00] sm:$0xff]
        %v1806 = vld [vmem:[%s426 + $0xd08] sm:$0xff]
        %v1807 = vld [vmem:[%s426 + $0xd10] sm:$0xff]
        %v1808 = vld [vmem:[%s426 + $0xd18] sm:$0xff]
        %v1809 = vld [vmem:[%s426 + $0xd20] sm:$0xff]
        %v1810 = vld [vmem:[%s426 + $0xd28] sm:$0xff]
        %v1811 = vld [vmem:[%s426 + $0xd30] sm:$0xff]
        %v1812 = vld [vmem:[%s426 + $0xd38] sm:$0xff]
        %v1813 = vld [vmem:[%s426 + $0xd40] sm:$0xff]
        %v1814 = vld [vmem:[%s426 + $0xd48] sm:$0xff]
        %v1815 = vld [vmem:[%s426 + $0xd50] sm:$0xff]
        %v1816 = vld [vmem:[%s426 + $0xd58] sm:$0xff]
        %v1817 = vld [vmem:[%s426 + $0xd60] sm:$0xff]
        %v1818 = vld [vmem:[%s426 + $0xd68] sm:$0xff]
        %v1819 = vld [vmem:[%s426 + $0xd70] sm:$0xff]
        %v1820 = vld [vmem:[%s426 + $0xd78] sm:$0xff]
        %v1821 = vld [vmem:[%s426 + $0xd80] sm:$0xff]
        %v1822 = vld [vmem:[%s426 + $0xd88] sm:$0xff]
        %v1823 = vld [vmem:[%s426 + $0xd90] sm:$0xff]
        %v1824 = vld [vmem:[%s426 + $0xd98] sm:$0xff]
        %v1825 = vld [vmem:[%s426 + $0xda0] sm:$0xff]
        %v1826 = vld [vmem:[%s426 + $0xda8] sm:$0xff]
        %v1827 = vld [vmem:[%s426 + $0xdb0] sm:$0xff]
        %v1828 = vld [vmem:[%s426 + $0xdb8] sm:$0xff]
        %v1829 = vld [vmem:[%s426 + $0xdc0] sm:$0xff]
        %v1830 = vld [vmem:[%s426 + $0xdc8] sm:$0xff]
        %v1831 = vld [vmem:[%s426 + $0xdd0] sm:$0xff]
        %v1832 = vld [vmem:[%s426 + $0xdd8] sm:$0xff]
        %v1833 = vld [vmem:[%s426 + $0xde0] sm:$0xff]
        %v1834 = vld [vmem:[%s426 + $0xde8] sm:$0xff]
        %v1835 = vld [vmem:[%s426 + $0xdf0] sm:$0xff]
        %v1836 = vld [vmem:[%s426 + $0xdf8] sm:$0xff]
        %v1837 = vld [vmem:[%s426 + $0xe00] sm:$0xff]
        %v1838 = vld [vmem:[%s426 + $0xe08] sm:$0xff]
        %v1839 = vld [vmem:[%s426 + $0xe10] sm:$0xff]
        %v1840 = vld [vmem:[%s426 + $0xe18] sm:$0xff]
        %v1841 = vld [vmem:[%s426 + $0xe20] sm:$0xff]
        %v1842 = vld [vmem:[%s426 + $0xe28] sm:$0xff]
        %v1843 = vld [vmem:[%s426 + $0xe30] sm:$0xff]
        %v1844 = vld [vmem:[%s426 + $0xe38] sm:$0xff]
        %v1845 = vld [vmem:[%s426 + $0xe40] sm:$0xff]
        %v1846 = vld [vmem:[%s426 + $0xe48] sm:$0xff]
        %v1847 = vld [vmem:[%s426 + $0xe50] sm:$0xff]
        %v1848 = vld [vmem:[%s426 + $0xe58] sm:$0xff]
        %v1849 = vld [vmem:[%s426 + $0xe60] sm:$0xff]
        %v1850 = vld [vmem:[%s426 + $0xe68] sm:$0xff]
        %v1851 = vld [vmem:[%s426 + $0xe70] sm:$0xff]
        %v1852 = vld [vmem:[%s426 + $0xe78] sm:$0xff]
        %v1853 = vld [vmem:[%s426 + $0xe80] sm:$0xff]
        %v1854 = vld [vmem:[%s426 + $0xe88] sm:$0xff]
        %v1855 = vld [vmem:[%s426 + $0xe90] sm:$0xff]
        %v1856 = vld [vmem:[%s426 + $0xe98] sm:$0xff]
        %v1857 = vld [vmem:[%s426 + $0xea0] sm:$0xff]
        %v1858 = vld [vmem:[%s426 + $0xea8] sm:$0xff]
        %v1859 = vld [vmem:[%s426 + $0xeb0] sm:$0xff]
        %v1860 = vld [vmem:[%s426 + $0xeb8] sm:$0xff]
        %v1861 = vld [vmem:[%s426 + $0xec0] sm:$0xff]
        %v1862 = vld [vmem:[%s426 + $0xec8] sm:$0xff]
        %v1863 = vld [vmem:[%s426 + $0xed0] sm:$0xff]
        %v1864 = vld [vmem:[%s426 + $0xed8] sm:$0xff]
        %v1865 = vld [vmem:[%s426 + $0xee0] sm:$0xff]
        %v1866 = vld [vmem:[%s426 + $0xee8] sm:$0xff]
        %v1867 = vld [vmem:[%s426 + $0xef0] sm:$0xff]
        %v1868 = vld [vmem:[%s426 + $0xef8] sm:$0xff]
        %v1869 = vld [vmem:[%s426 + $0xf00] sm:$0xff]
        %v1870 = vld [vmem:[%s426 + $0xf08] sm:$0xff]
        %v1871 = vld [vmem:[%s426 + $0xf10] sm:$0xff]
        %v1872 = vld [vmem:[%s426 + $0xf18] sm:$0xff]
        %v1873 = vld [vmem:[%s426 + $0xf20] sm:$0xff]
        %v1874 = vld [vmem:[%s426 + $0xf28] sm:$0xff]
        %v1875 = vld [vmem:[%s426 + $0xf30] sm:$0xff]
        %v1876 = vld [vmem:[%s426 + $0xf38] sm:$0xff]
        %v1877 = vld [vmem:[%s426 + $0xf40] sm:$0xff]
        %v1878 = vld [vmem:[%s426 + $0xf48] sm:$0xff]
        %v1879 = vld [vmem:[%s426 + $0xf50] sm:$0xff]
        %v1880 = vld [vmem:[%s426 + $0xf58] sm:$0xff]
        %v1881 = vld [vmem:[%s426 + $0xf60] sm:$0xff]
        %v1882 = vld [vmem:[%s426 + $0xf68] sm:$0xff]
        %v1883 = vld [vmem:[%s426 + $0xf70] sm:$0xff]
        %v1884 = vld [vmem:[%s426 + $0xf78] sm:$0xff]
        %v1885 = vld [vmem:[%s426 + $0xf80] sm:$0xff]
        %v1886 = vld [vmem:[%s426 + $0xf88] sm:$0xff]
        %v1887 = vld [vmem:[%s426 + $0xf90] sm:$0xff]
        %v1888 = vld [vmem:[%s426 + $0xf98] sm:$0xff]
        %v1889 = vld [vmem:[%s426 + $0xfa0] sm:$0xff]
        %v1890 = vld [vmem:[%s426 + $0xfa8] sm:$0xff]
        %v1891 = vld [vmem:[%s426 + $0xfb0] sm:$0xff]
        %v1892 = vld [vmem:[%s426 + $0xfb8] sm:$0xff]
        %v1893 = vld [vmem:[%s426 + $0xfc0] sm:$0xff]
        %v1894 = vld [vmem:[%s426 + $0xfc8] sm:$0xff]
        %v1895 = vld [vmem:[%s426 + $0xfd0] sm:$0xff]
        %v1896 = vld [vmem:[%s426 + $0xfd8] sm:$0xff]
        %v1897 = vld [vmem:[%s426 + $0xfe0] sm:$0xff]
        %v1898 = vld [vmem:[%s426 + $0xfe8] sm:$0xff]
        %v1899 = vld [vmem:[%s426 + $0xff0] sm:$0xff]
        %v1900 = vld [vmem:[%s426 + $0xff8] sm:$0xff]
        %v1901 = vld [vmem:[%s435] sm:$0xff]
        %v1903 = vlaneseq
        %v1904 = vshrl.u32 %v1903, 7
        %v1905 = vsub.s32 0, %v1904
        %v1906 = vrot.slane %v1901, %v1905
        %v1907 = vlaneseq
        %v1908 = vshrl.u32 %v1907, 7
        %v1909 = vsub.s32 1, %v1908
        %v1910 = vrot.slane %v1901, %v1909
        %v1911 = vlaneseq
        %v1912 = vshrl.u32 %v1911, 7
        %v1913 = vsub.s32 2, %v1912
        %v1914 = vrot.slane %v1901, %v1913
        %v1915 = vlaneseq
        %v1916 = vshrl.u32 %v1915, 7
        %v1917 = vsub.s32 3, %v1916
        %v1918 = vrot.slane %v1901, %v1917
        %v1919 = vlaneseq
        %v1920 = vshrl.u32 %v1919, 7
        %v1921 = vsub.s32 4, %v1920
        %v1922 = vrot.slane %v1901, %v1921
        %v1923 = vlaneseq
        %v1924 = vshrl.u32 %v1923, 7
        %v1925 = vsub.s32 5, %v1924
        %v1926 = vrot.slane %v1901, %v1925
        %v1927 = vlaneseq
        %v1928 = vshrl.u32 %v1927, 7
        %v1929 = vsub.s32 6, %v1928
        %v1930 = vrot.slane %v1901, %v1929
        %v1931 = vlaneseq
        %v1932 = vshrl.u32 %v1931, 7
        %v1933 = vsub.s32 7, %v1932
        %v1934 = vrot.slane %v1901, %v1933
        %v2455 = vunpack.c.l.b16 %v1389
        %v2456 = vunpack.c.h.b16 %v1389
        %v2457 = vunpack.c.l.b16 %v1390
        %v2458 = vunpack.c.h.b16 %v1390
        %v2459 = vunpack.c.l.b16 %v1391
        %v2460 = vunpack.c.h.b16 %v1391
        %v2461 = vunpack.c.l.b16 %v1392
        %v2462 = vunpack.c.h.b16 %v1392
        %v2463 = vunpack.c.l.b16 %v1393
        %v2464 = vunpack.c.h.b16 %v1393
        %v2465 = vunpack.c.l.b16 %v1394
        %v2466 = vunpack.c.h.b16 %v1394
        %v2467 = vunpack.c.l.b16 %v1395
        %v2468 = vunpack.c.h.b16 %v1395
        %v2469 = vunpack.c.l.b16 %v1396
        %v2470 = vunpack.c.h.b16 %v1396
        %v2471 = vunpack.c.l.b16 %v1397
        %v2472 = vunpack.c.h.b16 %v1397
        %v2473 = vunpack.c.l.b16 %v1398
        %v2474 = vunpack.c.h.b16 %v1398
        %v2475 = vunpack.c.l.b16 %v1399
        %v2476 = vunpack.c.h.b16 %v1399
        %v2477 = vunpack.c.l.b16 %v1400
        %v2478 = vunpack.c.h.b16 %v1400
        %v2479 = vunpack.c.l.b16 %v1401
        %v2480 = vunpack.c.h.b16 %v1401
        %v2481 = vunpack.c.l.b16 %v1402
        %v2482 = vunpack.c.h.b16 %v1402
        %v2483 = vunpack.c.l.b16 %v1403
        %v2484 = vunpack.c.h.b16 %v1403
        %v2485 = vunpack.c.l.b16 %v1404
        %v2486 = vunpack.c.h.b16 %v1404
        %v2487 = vunpack.c.l.b16 %v1405
        %v2488 = vunpack.c.h.b16 %v1405
        %v2489 = vunpack.c.l.b16 %v1406
        %v2490 = vunpack.c.h.b16 %v1406
        %v2491 = vunpack.c.l.b16 %v1407
        %v2492 = vunpack.c.h.b16 %v1407
        %v2493 = vunpack.c.l.b16 %v1408
        %v2494 = vunpack.c.h.b16 %v1408
        %v2495 = vunpack.c.l.b16 %v1409
        %v2496 = vunpack.c.h.b16 %v1409
        %v2497 = vunpack.c.l.b16 %v1410
        %v2498 = vunpack.c.h.b16 %v1410
        %v2499 = vunpack.c.l.b16 %v1411
        %v2500 = vunpack.c.h.b16 %v1411
        %v2501 = vunpack.c.l.b16 %v1412
        %v2502 = vunpack.c.h.b16 %v1412
        %v2503 = vunpack.c.l.b16 %v1413
        %v2504 = vunpack.c.h.b16 %v1413
        %v2505 = vunpack.c.l.b16 %v1414
        %v2506 = vunpack.c.h.b16 %v1414
        %v2507 = vunpack.c.l.b16 %v1415
        %v2508 = vunpack.c.h.b16 %v1415
        %v2509 = vunpack.c.l.b16 %v1416
        %v2510 = vunpack.c.h.b16 %v1416
        %v2511 = vunpack.c.l.b16 %v1417
        %v2512 = vunpack.c.h.b16 %v1417
        %v2513 = vunpack.c.l.b16 %v1418
        %v2514 = vunpack.c.h.b16 %v1418
        %v2515 = vunpack.c.l.b16 %v1419
        %v2516 = vunpack.c.h.b16 %v1419
        %v2517 = vunpack.c.l.b16 %v1420
        %v2518 = vunpack.c.h.b16 %v1420
        %v2519 = vunpack.c.l.b16 %v1421
        %v2520 = vunpack.c.h.b16 %v1421
        %v2521 = vunpack.c.l.b16 %v1422
        %v2522 = vunpack.c.h.b16 %v1422
        %v2523 = vunpack.c.l.b16 %v1423
        %v2524 = vunpack.c.h.b16 %v1423
        %v2525 = vunpack.c.l.b16 %v1424
        %v2526 = vunpack.c.h.b16 %v1424
        %v2527 = vunpack.c.l.b16 %v1425
        %v2528 = vunpack.c.h.b16 %v1425
        %v2529 = vunpack.c.l.b16 %v1426
        %v2530 = vunpack.c.h.b16 %v1426
        %v2531 = vunpack.c.l.b16 %v1427
        %v2532 = vunpack.c.h.b16 %v1427
        %v2533 = vunpack.c.l.b16 %v1428
        %v2534 = vunpack.c.h.b16 %v1428
        %v2535 = vunpack.c.l.b16 %v1429
        %v2536 = vunpack.c.h.b16 %v1429
        %v2537 = vunpack.c.l.b16 %v1430
        %v2538 = vunpack.c.h.b16 %v1430
        %v2539 = vunpack.c.l.b16 %v1431
        %v2540 = vunpack.c.h.b16 %v1431
        %v2541 = vunpack.c.l.b16 %v1432
        %v2542 = vunpack.c.h.b16 %v1432
        %v2543 = vunpack.c.l.b16 %v1433
        %v2544 = vunpack.c.h.b16 %v1433
        %v2545 = vunpack.c.l.b16 %v1434
        %v2546 = vunpack.c.h.b16 %v1434
        %v2547 = vunpack.c.l.b16 %v1435
        %v2548 = vunpack.c.h.b16 %v1435
        %v2549 = vunpack.c.l.b16 %v1436
        %v2550 = vunpack.c.h.b16 %v1436
        %v2551 = vunpack.c.l.b16 %v1437
        %v2552 = vunpack.c.h.b16 %v1437
        %v2553 = vunpack.c.l.b16 %v1438
        %v2554 = vunpack.c.h.b16 %v1438
        %v2555 = vunpack.c.l.b16 %v1439
        %v2556 = vunpack.c.h.b16 %v1439
        %v2557 = vunpack.c.l.b16 %v1440
        %v2558 = vunpack.c.h.b16 %v1440
        %v2559 = vunpack.c.l.b16 %v1441
        %v2560 = vunpack.c.h.b16 %v1441
        %v2561 = vunpack.c.l.b16 %v1442
        %v2562 = vunpack.c.h.b16 %v1442
        %v2563 = vunpack.c.l.b16 %v1443
        %v2564 = vunpack.c.h.b16 %v1443
        %v2565 = vunpack.c.l.b16 %v1444
        %v2566 = vunpack.c.h.b16 %v1444
        %v2567 = vunpack.c.l.b16 %v1445
        %v2568 = vunpack.c.h.b16 %v1445
        %v2569 = vunpack.c.l.b16 %v1446
        %v2570 = vunpack.c.h.b16 %v1446
        %v2571 = vunpack.c.l.b16 %v1447
        %v2572 = vunpack.c.h.b16 %v1447
        %v2573 = vunpack.c.l.b16 %v1448
        %v2574 = vunpack.c.h.b16 %v1448
        %v2575 = vunpack.c.l.b16 %v1449
        %v2576 = vunpack.c.h.b16 %v1449
        %v2577 = vunpack.c.l.b16 %v1450
        %v2578 = vunpack.c.h.b16 %v1450
        %v2579 = vunpack.c.l.b16 %v1451
        %v2580 = vunpack.c.h.b16 %v1451
        %v2581 = vunpack.c.l.b16 %v1452
        %v2582 = vunpack.c.h.b16 %v1452
        %v2583 = vunpack.c.l.b16 %v1453
        %v2584 = vunpack.c.h.b16 %v1453
        %v2585 = vunpack.c.l.b16 %v1454
        %v2586 = vunpack.c.h.b16 %v1454
        %v2587 = vunpack.c.l.b16 %v1455
        %v2588 = vunpack.c.h.b16 %v1455
        %v2589 = vunpack.c.l.b16 %v1456
        %v2590 = vunpack.c.h.b16 %v1456
        %v2591 = vunpack.c.l.b16 %v1457
        %v2592 = vunpack.c.h.b16 %v1457
        %v2593 = vunpack.c.l.b16 %v1458
        %v2594 = vunpack.c.h.b16 %v1458
        %v2595 = vunpack.c.l.b16 %v1459
        %v2596 = vunpack.c.h.b16 %v1459
        %v2597 = vunpack.c.l.b16 %v1460
        %v2598 = vunpack.c.h.b16 %v1460
        %v2599 = vunpack.c.l.b16 %v1461
        %v2600 = vunpack.c.h.b16 %v1461
        %v2601 = vunpack.c.l.b16 %v1462
        %v2602 = vunpack.c.h.b16 %v1462
        %v2603 = vunpack.c.l.b16 %v1463
        %v2604 = vunpack.c.h.b16 %v1463
        %v2605 = vunpack.c.l.b16 %v1464
        %v2606 = vunpack.c.h.b16 %v1464
        %v2607 = vunpack.c.l.b16 %v1465
        %v2608 = vunpack.c.h.b16 %v1465
        %v2609 = vunpack.c.l.b16 %v1466
        %v2610 = vunpack.c.h.b16 %v1466
        %v2611 = vunpack.c.l.b16 %v1467
        %v2612 = vunpack.c.h.b16 %v1467
        %v2613 = vunpack.c.l.b16 %v1468
        %v2614 = vunpack.c.h.b16 %v1468
        %v2615 = vunpack.c.l.b16 %v1469
        %v2616 = vunpack.c.h.b16 %v1469
        %v2617 = vunpack.c.l.b16 %v1470
        %v2618 = vunpack.c.h.b16 %v1470
        %v2619 = vunpack.c.l.b16 %v1471
        %v2620 = vunpack.c.h.b16 %v1471
        %v2621 = vunpack.c.l.b16 %v1472
        %v2622 = vunpack.c.h.b16 %v1472
        %v2623 = vunpack.c.l.b16 %v1473
        %v2624 = vunpack.c.h.b16 %v1473
        %v2625 = vunpack.c.l.b16 %v1474
        %v2626 = vunpack.c.h.b16 %v1474
        %v2627 = vunpack.c.l.b16 %v1475
        %v2628 = vunpack.c.h.b16 %v1475
        %v2629 = vunpack.c.l.b16 %v1476
        %v2630 = vunpack.c.h.b16 %v1476
        %v2631 = vunpack.c.l.b16 %v1477
        %v2632 = vunpack.c.h.b16 %v1477
        %v2633 = vunpack.c.l.b16 %v1478
        %v2634 = vunpack.c.h.b16 %v1478
        %v2635 = vunpack.c.l.b16 %v1479
        %v2636 = vunpack.c.h.b16 %v1479
        %v2637 = vunpack.c.l.b16 %v1480
        %v2638 = vunpack.c.h.b16 %v1480
        %v2639 = vunpack.c.l.b16 %v1481
        %v2640 = vunpack.c.h.b16 %v1481
        %v2641 = vunpack.c.l.b16 %v1482
        %v2642 = vunpack.c.h.b16 %v1482
        %v2643 = vunpack.c.l.b16 %v1483
        %v2644 = vunpack.c.h.b16 %v1483
        %v2645 = vunpack.c.l.b16 %v1484
        %v2646 = vunpack.c.h.b16 %v1484
        %v2647 = vunpack.c.l.b16 %v1485
        %v2648 = vunpack.c.h.b16 %v1485
        %v2649 = vunpack.c.l.b16 %v1486
        %v2650 = vunpack.c.h.b16 %v1486
        %v2651 = vunpack.c.l.b16 %v1487
        %v2652 = vunpack.c.h.b16 %v1487
        %v2653 = vunpack.c.l.b16 %v1488
        %v2654 = vunpack.c.h.b16 %v1488
        %v2655 = vunpack.c.l.b16 %v1489
        %v2656 = vunpack.c.h.b16 %v1489
        %v2657 = vunpack.c.l.b16 %v1490
        %v2658 = vunpack.c.h.b16 %v1490
        %v2659 = vunpack.c.l.b16 %v1491
        %v2660 = vunpack.c.h.b16 %v1491
        %v2661 = vunpack.c.l.b16 %v1492
        %v2662 = vunpack.c.h.b16 %v1492
        %v2663 = vunpack.c.l.b16 %v1493
        %v2664 = vunpack.c.h.b16 %v1493
        %v2665 = vunpack.c.l.b16 %v1494
        %v2666 = vunpack.c.h.b16 %v1494
        %v2667 = vunpack.c.l.b16 %v1495
        %v2668 = vunpack.c.h.b16 %v1495
        %v2669 = vunpack.c.l.b16 %v1496
        %v2670 = vunpack.c.h.b16 %v1496
        %v2671 = vunpack.c.l.b16 %v1497
        %v2672 = vunpack.c.h.b16 %v1497
        %v2673 = vunpack.c.l.b16 %v1498
        %v2674 = vunpack.c.h.b16 %v1498
        %v2675 = vunpack.c.l.b16 %v1499
        %v2676 = vunpack.c.h.b16 %v1499
        %v2677 = vunpack.c.l.b16 %v1500
        %v2678 = vunpack.c.h.b16 %v1500
        %v2679 = vunpack.c.l.b16 %v1501
        %v2680 = vunpack.c.h.b16 %v1501
        %v2681 = vunpack.c.l.b16 %v1502
        %v2682 = vunpack.c.h.b16 %v1502
        %v2683 = vunpack.c.l.b16 %v1503
        %v2684 = vunpack.c.h.b16 %v1503
        %v2685 = vunpack.c.l.b16 %v1504
        %v2686 = vunpack.c.h.b16 %v1504
        %v2687 = vunpack.c.l.b16 %v1505
        %v2688 = vunpack.c.h.b16 %v1505
        %v2689 = vunpack.c.l.b16 %v1506
        %v2690 = vunpack.c.h.b16 %v1506
        %v2691 = vunpack.c.l.b16 %v1507
        %v2692 = vunpack.c.h.b16 %v1507
        %v2693 = vunpack.c.l.b16 %v1508
        %v2694 = vunpack.c.h.b16 %v1508
        %v2695 = vunpack.c.l.b16 %v1509
        %v2696 = vunpack.c.h.b16 %v1509
        %v2697 = vunpack.c.l.b16 %v1510
        %v2698 = vunpack.c.h.b16 %v1510
        %v2699 = vunpack.c.l.b16 %v1511
        %v2700 = vunpack.c.h.b16 %v1511
        %v2701 = vunpack.c.l.b16 %v1512
        %v2702 = vunpack.c.h.b16 %v1512
        %v2703 = vunpack.c.l.b16 %v1513
        %v2704 = vunpack.c.h.b16 %v1513
        %v2705 = vunpack.c.l.b16 %v1514
        %v2706 = vunpack.c.h.b16 %v1514
        %v2707 = vunpack.c.l.b16 %v1515
        %v2708 = vunpack.c.h.b16 %v1515
        %v2709 = vunpack.c.l.b16 %v1516
        %v2710 = vunpack.c.h.b16 %v1516
        %v2711 = vunpack.c.l.b16 %v1517
        %v2712 = vunpack.c.h.b16 %v1517
        %v2713 = vunpack.c.l.b16 %v1518
        %v2714 = vunpack.c.h.b16 %v1518
        %v2715 = vunpack.c.l.b16 %v1519
        %v2716 = vunpack.c.h.b16 %v1519
        %v2717 = vunpack.c.l.b16 %v1520
        %v2718 = vunpack.c.h.b16 %v1520
        %v2719 = vunpack.c.l.b16 %v1521
        %v2720 = vunpack.c.h.b16 %v1521
        %v2721 = vunpack.c.l.b16 %v1522
        %v2722 = vunpack.c.h.b16 %v1522
        %v2723 = vunpack.c.l.b16 %v1523
        %v2724 = vunpack.c.h.b16 %v1523
        %v2725 = vunpack.c.l.b16 %v1524
        %v2726 = vunpack.c.h.b16 %v1524
        %v2727 = vunpack.c.l.b16 %v1525
        %v2728 = vunpack.c.h.b16 %v1525
        %v2729 = vunpack.c.l.b16 %v1526
        %v2730 = vunpack.c.h.b16 %v1526
        %v2731 = vunpack.c.l.b16 %v1527
        %v2732 = vunpack.c.h.b16 %v1527
        %v2733 = vunpack.c.l.b16 %v1528
        %v2734 = vunpack.c.h.b16 %v1528
        %v2735 = vunpack.c.l.b16 %v1529
        %v2736 = vunpack.c.h.b16 %v1529
        %v2737 = vunpack.c.l.b16 %v1530
        %v2738 = vunpack.c.h.b16 %v1530
        %v2739 = vunpack.c.l.b16 %v1531
        %v2740 = vunpack.c.h.b16 %v1531
        %v2741 = vunpack.c.l.b16 %v1532
        %v2742 = vunpack.c.h.b16 %v1532
        %v2743 = vunpack.c.l.b16 %v1533
        %v2744 = vunpack.c.h.b16 %v1533
        %v2745 = vunpack.c.l.b16 %v1534
        %v2746 = vunpack.c.h.b16 %v1534
        %v2747 = vunpack.c.l.b16 %v1535
        %v2748 = vunpack.c.h.b16 %v1535
        %v2749 = vunpack.c.l.b16 %v1536
        %v2750 = vunpack.c.h.b16 %v1536
        %v2751 = vunpack.c.l.b16 %v1537
        %v2752 = vunpack.c.h.b16 %v1537
        %v2753 = vunpack.c.l.b16 %v1538
        %v2754 = vunpack.c.h.b16 %v1538
        %v2755 = vunpack.c.l.b16 %v1539
        %v2756 = vunpack.c.h.b16 %v1539
        %v2757 = vunpack.c.l.b16 %v1540
        %v2758 = vunpack.c.h.b16 %v1540
        %v2759 = vunpack.c.l.b16 %v1541
        %v2760 = vunpack.c.h.b16 %v1541
        %v2761 = vunpack.c.l.b16 %v1542
        %v2762 = vunpack.c.h.b16 %v1542
        %v2763 = vunpack.c.l.b16 %v1543
        %v2764 = vunpack.c.h.b16 %v1543
        %v2765 = vunpack.c.l.b16 %v1544
        %v2766 = vunpack.c.h.b16 %v1544
        %v2767 = vunpack.c.l.b16 %v1545
        %v2768 = vunpack.c.h.b16 %v1545
        %v2769 = vunpack.c.l.b16 %v1546
        %v2770 = vunpack.c.h.b16 %v1546
        %v2771 = vunpack.c.l.b16 %v1547
        %v2772 = vunpack.c.h.b16 %v1547
        %v2773 = vunpack.c.l.b16 %v1548
        %v2774 = vunpack.c.h.b16 %v1548
        %v2775 = vunpack.c.l.b16 %v1549
        %v2776 = vunpack.c.h.b16 %v1549
        %v2777 = vunpack.c.l.b16 %v1550
        %v2778 = vunpack.c.h.b16 %v1550
        %v2779 = vunpack.c.l.b16 %v1551
        %v2780 = vunpack.c.h.b16 %v1551
        %v2781 = vunpack.c.l.b16 %v1552
        %v2782 = vunpack.c.h.b16 %v1552
        %v2783 = vunpack.c.l.b16 %v1553
        %v2784 = vunpack.c.h.b16 %v1553
        %v2785 = vunpack.c.l.b16 %v1554
        %v2786 = vunpack.c.h.b16 %v1554
        %v2787 = vunpack.c.l.b16 %v1555
        %v2788 = vunpack.c.h.b16 %v1555
        %v2789 = vunpack.c.l.b16 %v1556
        %v2790 = vunpack.c.h.b16 %v1556
        %v2791 = vunpack.c.l.b16 %v1557
        %v2792 = vunpack.c.h.b16 %v1557
        %v2793 = vunpack.c.l.b16 %v1558
        %v2794 = vunpack.c.h.b16 %v1558
        %v2795 = vunpack.c.l.b16 %v1559
        %v2796 = vunpack.c.h.b16 %v1559
        %v2797 = vunpack.c.l.b16 %v1560
        %v2798 = vunpack.c.h.b16 %v1560
        %v2799 = vunpack.c.l.b16 %v1561
        %v2800 = vunpack.c.h.b16 %v1561
        %v2801 = vunpack.c.l.b16 %v1562
        %v2802 = vunpack.c.h.b16 %v1562
        %v2803 = vunpack.c.l.b16 %v1563
        %v2804 = vunpack.c.h.b16 %v1563
        %v2805 = vunpack.c.l.b16 %v1564
        %v2806 = vunpack.c.h.b16 %v1564
        %v2807 = vunpack.c.l.b16 %v1565
        %v2808 = vunpack.c.h.b16 %v1565
        %v2809 = vunpack.c.l.b16 %v1566
        %v2810 = vunpack.c.h.b16 %v1566
        %v2811 = vunpack.c.l.b16 %v1567
        %v2812 = vunpack.c.h.b16 %v1567
        %v2813 = vunpack.c.l.b16 %v1568
        %v2814 = vunpack.c.h.b16 %v1568
        %v2815 = vunpack.c.l.b16 %v1569
        %v2816 = vunpack.c.h.b16 %v1569
        %v2817 = vunpack.c.l.b16 %v1570
        %v2818 = vunpack.c.h.b16 %v1570
        %v2819 = vunpack.c.l.b16 %v1571
        %v2820 = vunpack.c.h.b16 %v1571
        %v2821 = vunpack.c.l.b16 %v1572
        %v2822 = vunpack.c.h.b16 %v1572
        %v2823 = vunpack.c.l.b16 %v1573
        %v2824 = vunpack.c.h.b16 %v1573
        %v2825 = vunpack.c.l.b16 %v1574
        %v2826 = vunpack.c.h.b16 %v1574
        %v2827 = vunpack.c.l.b16 %v1575
        %v2828 = vunpack.c.h.b16 %v1575
        %v2829 = vunpack.c.l.b16 %v1576
        %v2830 = vunpack.c.h.b16 %v1576
        %v2831 = vunpack.c.l.b16 %v1577
        %v2832 = vunpack.c.h.b16 %v1577
        %v2833 = vunpack.c.l.b16 %v1578
        %v2834 = vunpack.c.h.b16 %v1578
        %v2835 = vunpack.c.l.b16 %v1579
        %v2836 = vunpack.c.h.b16 %v1579
        %v2837 = vunpack.c.l.b16 %v1580
        %v2838 = vunpack.c.h.b16 %v1580
        %v2839 = vunpack.c.l.b16 %v1581
        %v2840 = vunpack.c.h.b16 %v1581
        %v2841 = vunpack.c.l.b16 %v1582
        %v2842 = vunpack.c.h.b16 %v1582
        %v2843 = vunpack.c.l.b16 %v1583
        %v2844 = vunpack.c.h.b16 %v1583
        %v2845 = vunpack.c.l.b16 %v1584
        %v2846 = vunpack.c.h.b16 %v1584
        %v2847 = vunpack.c.l.b16 %v1585
        %v2848 = vunpack.c.h.b16 %v1585
        %v2849 = vunpack.c.l.b16 %v1586
        %v2850 = vunpack.c.h.b16 %v1586
        %v2851 = vunpack.c.l.b16 %v1587
        %v2852 = vunpack.c.h.b16 %v1587
        %v2853 = vunpack.c.l.b16 %v1588
        %v2854 = vunpack.c.h.b16 %v1588
        %v2855 = vunpack.c.l.b16 %v1589
        %v2856 = vunpack.c.h.b16 %v1589
        %v2857 = vunpack.c.l.b16 %v1590
        %v2858 = vunpack.c.h.b16 %v1590
        %v2859 = vunpack.c.l.b16 %v1591
        %v2860 = vunpack.c.h.b16 %v1591
        %v2861 = vunpack.c.l.b16 %v1592
        %v2862 = vunpack.c.h.b16 %v1592
        %v2863 = vunpack.c.l.b16 %v1593
        %v2864 = vunpack.c.h.b16 %v1593
        %v2865 = vunpack.c.l.b16 %v1594
        %v2866 = vunpack.c.h.b16 %v1594
        %v2867 = vunpack.c.l.b16 %v1595
        %v2868 = vunpack.c.h.b16 %v1595
        %v2869 = vunpack.c.l.b16 %v1596
        %v2870 = vunpack.c.h.b16 %v1596
        %v2871 = vunpack.c.l.b16 %v1597
        %v2872 = vunpack.c.h.b16 %v1597
        %v2873 = vunpack.c.l.b16 %v1598
        %v2874 = vunpack.c.h.b16 %v1598
        %v2875 = vunpack.c.l.b16 %v1599
        %v2876 = vunpack.c.h.b16 %v1599
        %v2877 = vunpack.c.l.b16 %v1600
        %v2878 = vunpack.c.h.b16 %v1600
        %v2879 = vunpack.c.l.b16 %v1601
        %v2880 = vunpack.c.h.b16 %v1601
        %v2881 = vunpack.c.l.b16 %v1602
        %v2882 = vunpack.c.h.b16 %v1602
        %v2883 = vunpack.c.l.b16 %v1603
        %v2884 = vunpack.c.h.b16 %v1603
        %v2885 = vunpack.c.l.b16 %v1604
        %v2886 = vunpack.c.h.b16 %v1604
        %v2887 = vunpack.c.l.b16 %v1605
        %v2888 = vunpack.c.h.b16 %v1605
        %v2889 = vunpack.c.l.b16 %v1606
        %v2890 = vunpack.c.h.b16 %v1606
        %v2891 = vunpack.c.l.b16 %v1607
        %v2892 = vunpack.c.h.b16 %v1607
        %v2893 = vunpack.c.l.b16 %v1608
        %v2894 = vunpack.c.h.b16 %v1608
        %v2895 = vunpack.c.l.b16 %v1609
        %v2896 = vunpack.c.h.b16 %v1609
        %v2897 = vunpack.c.l.b16 %v1610
        %v2898 = vunpack.c.h.b16 %v1610
        %v2899 = vunpack.c.l.b16 %v1611
        %v2900 = vunpack.c.h.b16 %v1611
        %v2901 = vunpack.c.l.b16 %v1612
        %v2902 = vunpack.c.h.b16 %v1612
        %v2903 = vunpack.c.l.b16 %v1613
        %v2904 = vunpack.c.h.b16 %v1613
        %v2905 = vunpack.c.l.b16 %v1614
        %v2906 = vunpack.c.h.b16 %v1614
        %v2907 = vunpack.c.l.b16 %v1615
        %v2908 = vunpack.c.h.b16 %v1615
        %v2909 = vunpack.c.l.b16 %v1616
        %v2910 = vunpack.c.h.b16 %v1616
        %v2911 = vunpack.c.l.b16 %v1617
        %v2912 = vunpack.c.h.b16 %v1617
        %v2913 = vunpack.c.l.b16 %v1618
        %v2914 = vunpack.c.h.b16 %v1618
        %v2915 = vunpack.c.l.b16 %v1619
        %v2916 = vunpack.c.h.b16 %v1619
        %v2917 = vunpack.c.l.b16 %v1620
        %v2918 = vunpack.c.h.b16 %v1620
        %v2919 = vunpack.c.l.b16 %v1621
        %v2920 = vunpack.c.h.b16 %v1621
        %v2921 = vunpack.c.l.b16 %v1622
        %v2922 = vunpack.c.h.b16 %v1622
        %v2923 = vunpack.c.l.b16 %v1623
        %v2924 = vunpack.c.h.b16 %v1623
        %v2925 = vunpack.c.l.b16 %v1624
        %v2926 = vunpack.c.h.b16 %v1624
        %v2927 = vunpack.c.l.b16 %v1625
        %v2928 = vunpack.c.h.b16 %v1625
        %v2929 = vunpack.c.l.b16 %v1626
        %v2930 = vunpack.c.h.b16 %v1626
        %v2931 = vunpack.c.l.b16 %v1627
        %v2932 = vunpack.c.h.b16 %v1627
        %v2933 = vunpack.c.l.b16 %v1628
        %v2934 = vunpack.c.h.b16 %v1628
        %v2935 = vunpack.c.l.b16 %v1629
        %v2936 = vunpack.c.h.b16 %v1629
        %v2937 = vunpack.c.l.b16 %v1630
        %v2938 = vunpack.c.h.b16 %v1630
        %v2939 = vunpack.c.l.b16 %v1631
        %v2940 = vunpack.c.h.b16 %v1631
        %v2941 = vunpack.c.l.b16 %v1632
        %v2942 = vunpack.c.h.b16 %v1632
        %v2943 = vunpack.c.l.b16 %v1633
        %v2944 = vunpack.c.h.b16 %v1633
        %v2945 = vunpack.c.l.b16 %v1634
        %v2946 = vunpack.c.h.b16 %v1634
        %v2947 = vunpack.c.l.b16 %v1635
        %v2948 = vunpack.c.h.b16 %v1635
        %v2949 = vunpack.c.l.b16 %v1636
        %v2950 = vunpack.c.h.b16 %v1636
        %v2951 = vunpack.c.l.b16 %v1637
        %v2952 = vunpack.c.h.b16 %v1637
        %v2953 = vunpack.c.l.b16 %v1638
        %v2954 = vunpack.c.h.b16 %v1638
        %v2955 = vunpack.c.l.b16 %v1639
        %v2956 = vunpack.c.h.b16 %v1639
        %v2957 = vunpack.c.l.b16 %v1640
        %v2958 = vunpack.c.h.b16 %v1640
        %v2959 = vunpack.c.l.b16 %v1641
        %v2960 = vunpack.c.h.b16 %v1641
        %v2961 = vunpack.c.l.b16 %v1642
        %v2962 = vunpack.c.h.b16 %v1642
        %v2963 = vunpack.c.l.b16 %v1643
        %v2964 = vunpack.c.h.b16 %v1643
        %v2965 = vunpack.c.l.b16 %v1644
        %v2966 = vunpack.c.h.b16 %v1644
        %v2967 = vunpack.c.l.b16 %v1645
        %v2968 = vunpack.c.h.b16 %v1645
        %v2969 = vunpack.c.l.b16 %v1646
        %v2970 = vunpack.c.h.b16 %v1646
        %v2971 = vunpack.c.l.b16 %v1647
        %v2972 = vunpack.c.h.b16 %v1647
        %v2973 = vunpack.c.l.b16 %v1648
        %v2974 = vunpack.c.h.b16 %v1648
        %v2975 = vunpack.c.l.b16 %v1649
        %v2976 = vunpack.c.h.b16 %v1649
        %v2977 = vunpack.c.l.b16 %v1650
        %v2978 = vunpack.c.h.b16 %v1650
        %v2979 = vunpack.c.l.b16 %v1651
        %v2980 = vunpack.c.h.b16 %v1651
        %v2981 = vunpack.c.l.b16 %v1652
        %v2982 = vunpack.c.h.b16 %v1652
        %v2983 = vunpack.c.l.b16 %v1653
        %v2984 = vunpack.c.h.b16 %v1653
        %v2985 = vunpack.c.l.b16 %v1654
        %v2986 = vunpack.c.h.b16 %v1654
        %v2987 = vunpack.c.l.b16 %v1655
        %v2988 = vunpack.c.h.b16 %v1655
        %v2989 = vunpack.c.l.b16 %v1656
        %v2990 = vunpack.c.h.b16 %v1656
        %v2991 = vunpack.c.l.b16 %v1657
        %v2992 = vunpack.c.h.b16 %v1657
        %v2993 = vunpack.c.l.b16 %v1658
        %v2994 = vunpack.c.h.b16 %v1658
        %v2995 = vunpack.c.l.b16 %v1659
        %v2996 = vunpack.c.h.b16 %v1659
        %v2997 = vunpack.c.l.b16 %v1660
        %v2998 = vunpack.c.h.b16 %v1660
        %v2999 = vunpack.c.l.b16 %v1661
        %v3000 = vunpack.c.h.b16 %v1661
        %v3001 = vunpack.c.l.b16 %v1662
        %v3002 = vunpack.c.h.b16 %v1662
        %v3003 = vunpack.c.l.b16 %v1663
        %v3004 = vunpack.c.h.b16 %v1663
        %v3005 = vunpack.c.l.b16 %v1664
        %v3006 = vunpack.c.h.b16 %v1664
        %v3007 = vunpack.c.l.b16 %v1665
        %v3008 = vunpack.c.h.b16 %v1665
        %v3009 = vunpack.c.l.b16 %v1666
        %v3010 = vunpack.c.h.b16 %v1666
        %v3011 = vunpack.c.l.b16 %v1667
        %v3012 = vunpack.c.h.b16 %v1667
        %v3013 = vunpack.c.l.b16 %v1668
        %v3014 = vunpack.c.h.b16 %v1668
        %v3015 = vunpack.c.l.b16 %v1669
        %v3016 = vunpack.c.h.b16 %v1669
        %v3017 = vunpack.c.l.b16 %v1670
        %v3018 = vunpack.c.h.b16 %v1670
        %v3019 = vunpack.c.l.b16 %v1671
        %v3020 = vunpack.c.h.b16 %v1671
        %v3021 = vunpack.c.l.b16 %v1672
        %v3022 = vunpack.c.h.b16 %v1672
        %v3023 = vunpack.c.l.b16 %v1673
        %v3024 = vunpack.c.h.b16 %v1673
        %v3025 = vunpack.c.l.b16 %v1674
        %v3026 = vunpack.c.h.b16 %v1674
        %v3027 = vunpack.c.l.b16 %v1675
        %v3028 = vunpack.c.h.b16 %v1675
        %v3029 = vunpack.c.l.b16 %v1676
        %v3030 = vunpack.c.h.b16 %v1676
        %v3031 = vunpack.c.l.b16 %v1677
        %v3032 = vunpack.c.h.b16 %v1677
        %v3033 = vunpack.c.l.b16 %v1678
        %v3034 = vunpack.c.h.b16 %v1678
        %v3035 = vunpack.c.l.b16 %v1679
        %v3036 = vunpack.c.h.b16 %v1679
        %v3037 = vunpack.c.l.b16 %v1680
        %v3038 = vunpack.c.h.b16 %v1680
        %v3039 = vunpack.c.l.b16 %v1681
        %v3040 = vunpack.c.h.b16 %v1681
        %v3041 = vunpack.c.l.b16 %v1682
        %v3042 = vunpack.c.h.b16 %v1682
        %v3043 = vunpack.c.l.b16 %v1683
        %v3044 = vunpack.c.h.b16 %v1683
        %v3045 = vunpack.c.l.b16 %v1684
        %v3046 = vunpack.c.h.b16 %v1684
        %v3047 = vunpack.c.l.b16 %v1685
        %v3048 = vunpack.c.h.b16 %v1685
        %v3049 = vunpack.c.l.b16 %v1686
        %v3050 = vunpack.c.h.b16 %v1686
        %v3051 = vunpack.c.l.b16 %v1687
        %v3052 = vunpack.c.h.b16 %v1687
        %v3053 = vunpack.c.l.b16 %v1688
        %v3054 = vunpack.c.h.b16 %v1688
        %v3055 = vunpack.c.l.b16 %v1689
        %v3056 = vunpack.c.h.b16 %v1689
        %v3057 = vunpack.c.l.b16 %v1690
        %v3058 = vunpack.c.h.b16 %v1690
        %v3059 = vunpack.c.l.b16 %v1691
        %v3060 = vunpack.c.h.b16 %v1691
        %v3061 = vunpack.c.l.b16 %v1692
        %v3062 = vunpack.c.h.b16 %v1692
        %v3063 = vunpack.c.l.b16 %v1693
        %v3064 = vunpack.c.h.b16 %v1693
        %v3065 = vunpack.c.l.b16 %v1694
        %v3066 = vunpack.c.h.b16 %v1694
        %v3067 = vunpack.c.l.b16 %v1695
        %v3068 = vunpack.c.h.b16 %v1695
        %v3069 = vunpack.c.l.b16 %v1696
        %v3070 = vunpack.c.h.b16 %v1696
        %v3071 = vunpack.c.l.b16 %v1697
        %v3072 = vunpack.c.h.b16 %v1697
        %v3073 = vunpack.c.l.b16 %v1698
        %v3074 = vunpack.c.h.b16 %v1698
        %v3075 = vunpack.c.l.b16 %v1699
        %v3076 = vunpack.c.h.b16 %v1699
        %v3077 = vunpack.c.l.b16 %v1700
        %v3078 = vunpack.c.h.b16 %v1700
        %v3079 = vunpack.c.l.b16 %v1701
        %v3080 = vunpack.c.h.b16 %v1701
        %v3081 = vunpack.c.l.b16 %v1702
        %v3082 = vunpack.c.h.b16 %v1702
        %v3083 = vunpack.c.l.b16 %v1703
        %v3084 = vunpack.c.h.b16 %v1703
        %v3085 = vunpack.c.l.b16 %v1704
        %v3086 = vunpack.c.h.b16 %v1704
        %v3087 = vunpack.c.l.b16 %v1705
        %v3088 = vunpack.c.h.b16 %v1705
        %v3089 = vunpack.c.l.b16 %v1706
        %v3090 = vunpack.c.h.b16 %v1706
        %v3091 = vunpack.c.l.b16 %v1707
        %v3092 = vunpack.c.h.b16 %v1707
        %v3093 = vunpack.c.l.b16 %v1708
        %v3094 = vunpack.c.h.b16 %v1708
        %v3095 = vunpack.c.l.b16 %v1709
        %v3096 = vunpack.c.h.b16 %v1709
        %v3097 = vunpack.c.l.b16 %v1710
        %v3098 = vunpack.c.h.b16 %v1710
        %v3099 = vunpack.c.l.b16 %v1711
        %v3100 = vunpack.c.h.b16 %v1711
        %v3101 = vunpack.c.l.b16 %v1712
        %v3102 = vunpack.c.h.b16 %v1712
        %v3103 = vunpack.c.l.b16 %v1713
        %v3104 = vunpack.c.h.b16 %v1713
        %v3105 = vunpack.c.l.b16 %v1714
        %v3106 = vunpack.c.h.b16 %v1714
        %v3107 = vunpack.c.l.b16 %v1715
        %v3108 = vunpack.c.h.b16 %v1715
        %v3109 = vunpack.c.l.b16 %v1716
        %v3110 = vunpack.c.h.b16 %v1716
        %v3111 = vunpack.c.l.b16 %v1717
        %v3112 = vunpack.c.h.b16 %v1717
        %v3113 = vunpack.c.l.b16 %v1718
        %v3114 = vunpack.c.h.b16 %v1718
        %v3115 = vunpack.c.l.b16 %v1719
        %v3116 = vunpack.c.h.b16 %v1719
        %v3117 = vunpack.c.l.b16 %v1720
        %v3118 = vunpack.c.h.b16 %v1720
        %v3119 = vunpack.c.l.b16 %v1721
        %v3120 = vunpack.c.h.b16 %v1721
        %v3121 = vunpack.c.l.b16 %v1722
        %v3122 = vunpack.c.h.b16 %v1722
        %v3123 = vunpack.c.l.b16 %v1723
        %v3124 = vunpack.c.h.b16 %v1723
        %v3125 = vunpack.c.l.b16 %v1724
        %v3126 = vunpack.c.h.b16 %v1724
        %v3127 = vunpack.c.l.b16 %v1725
        %v3128 = vunpack.c.h.b16 %v1725
        %v3129 = vunpack.c.l.b16 %v1726
        %v3130 = vunpack.c.h.b16 %v1726
        %v3131 = vunpack.c.l.b16 %v1727
        %v3132 = vunpack.c.h.b16 %v1727
        %v3133 = vunpack.c.l.b16 %v1728
        %v3134 = vunpack.c.h.b16 %v1728
        %v3135 = vunpack.c.l.b16 %v1729
        %v3136 = vunpack.c.h.b16 %v1729
        %v3137 = vunpack.c.l.b16 %v1730
        %v3138 = vunpack.c.h.b16 %v1730
        %v3139 = vunpack.c.l.b16 %v1731
        %v3140 = vunpack.c.h.b16 %v1731
        %v3141 = vunpack.c.l.b16 %v1732
        %v3142 = vunpack.c.h.b16 %v1732
        %v3143 = vunpack.c.l.b16 %v1733
        %v3144 = vunpack.c.h.b16 %v1733
        %v3145 = vunpack.c.l.b16 %v1734
        %v3146 = vunpack.c.h.b16 %v1734
        %v3147 = vunpack.c.l.b16 %v1735
        %v3148 = vunpack.c.h.b16 %v1735
        %v3149 = vunpack.c.l.b16 %v1736
        %v3150 = vunpack.c.h.b16 %v1736
        %v3151 = vunpack.c.l.b16 %v1737
        %v3152 = vunpack.c.h.b16 %v1737
        %v3153 = vunpack.c.l.b16 %v1738
        %v3154 = vunpack.c.h.b16 %v1738
        %v3155 = vunpack.c.l.b16 %v1739
        %v3156 = vunpack.c.h.b16 %v1739
        %v3157 = vunpack.c.l.b16 %v1740
        %v3158 = vunpack.c.h.b16 %v1740
        %v3159 = vunpack.c.l.b16 %v1741
        %v3160 = vunpack.c.h.b16 %v1741
        %v3161 = vunpack.c.l.b16 %v1742
        %v3162 = vunpack.c.h.b16 %v1742
        %v3163 = vunpack.c.l.b16 %v1743
        %v3164 = vunpack.c.h.b16 %v1743
        %v3165 = vunpack.c.l.b16 %v1744
        %v3166 = vunpack.c.h.b16 %v1744
        %v3167 = vunpack.c.l.b16 %v1745
        %v3168 = vunpack.c.h.b16 %v1745
        %v3169 = vunpack.c.l.b16 %v1746
        %v3170 = vunpack.c.h.b16 %v1746
        %v3171 = vunpack.c.l.b16 %v1747
        %v3172 = vunpack.c.h.b16 %v1747
        %v3173 = vunpack.c.l.b16 %v1748
        %v3174 = vunpack.c.h.b16 %v1748
        %v3175 = vunpack.c.l.b16 %v1749
        %v3176 = vunpack.c.h.b16 %v1749
        %v3177 = vunpack.c.l.b16 %v1750
        %v3178 = vunpack.c.h.b16 %v1750
        %v3179 = vunpack.c.l.b16 %v1751
        %v3180 = vunpack.c.h.b16 %v1751
        %v3181 = vunpack.c.l.b16 %v1752
        %v3182 = vunpack.c.h.b16 %v1752
        %v3183 = vunpack.c.l.b16 %v1753
        %v3184 = vunpack.c.h.b16 %v1753
        %v3185 = vunpack.c.l.b16 %v1754
        %v3186 = vunpack.c.h.b16 %v1754
        %v3187 = vunpack.c.l.b16 %v1755
        %v3188 = vunpack.c.h.b16 %v1755
        %v3189 = vunpack.c.l.b16 %v1756
        %v3190 = vunpack.c.h.b16 %v1756
        %v3191 = vunpack.c.l.b16 %v1757
        %v3192 = vunpack.c.h.b16 %v1757
        %v3193 = vunpack.c.l.b16 %v1758
        %v3194 = vunpack.c.h.b16 %v1758
        %v3195 = vunpack.c.l.b16 %v1759
        %v3196 = vunpack.c.h.b16 %v1759
        %v3197 = vunpack.c.l.b16 %v1760
        %v3198 = vunpack.c.h.b16 %v1760
        %v3199 = vunpack.c.l.b16 %v1761
        %v3200 = vunpack.c.h.b16 %v1761
        %v3201 = vunpack.c.l.b16 %v1762
        %v3202 = vunpack.c.h.b16 %v1762
        %v3203 = vunpack.c.l.b16 %v1763
        %v3204 = vunpack.c.h.b16 %v1763
        %v3205 = vunpack.c.l.b16 %v1764
        %v3206 = vunpack.c.h.b16 %v1764
        %v3207 = vunpack.c.l.b16 %v1765
        %v3208 = vunpack.c.h.b16 %v1765
        %v3209 = vunpack.c.l.b16 %v1766
        %v3210 = vunpack.c.h.b16 %v1766
        %v3211 = vunpack.c.l.b16 %v1767
        %v3212 = vunpack.c.h.b16 %v1767
        %v3213 = vunpack.c.l.b16 %v1768
        %v3214 = vunpack.c.h.b16 %v1768
        %v3215 = vunpack.c.l.b16 %v1769
        %v3216 = vunpack.c.h.b16 %v1769
        %v3217 = vunpack.c.l.b16 %v1770
        %v3218 = vunpack.c.h.b16 %v1770
        %v3219 = vunpack.c.l.b16 %v1771
        %v3220 = vunpack.c.h.b16 %v1771
        %v3221 = vunpack.c.l.b16 %v1772
        %v3222 = vunpack.c.h.b16 %v1772
        %v3223 = vunpack.c.l.b16 %v1773
        %v3224 = vunpack.c.h.b16 %v1773
        %v3225 = vunpack.c.l.b16 %v1774
        %v3226 = vunpack.c.h.b16 %v1774
        %v3227 = vunpack.c.l.b16 %v1775
        %v3228 = vunpack.c.h.b16 %v1775
        %v3229 = vunpack.c.l.b16 %v1776
        %v3230 = vunpack.c.h.b16 %v1776
        %v3231 = vunpack.c.l.b16 %v1777
        %v3232 = vunpack.c.h.b16 %v1777
        %v3233 = vunpack.c.l.b16 %v1778
        %v3234 = vunpack.c.h.b16 %v1778
        %v3235 = vunpack.c.l.b16 %v1779
        %v3236 = vunpack.c.h.b16 %v1779
        %v3237 = vunpack.c.l.b16 %v1780
        %v3238 = vunpack.c.h.b16 %v1780
        %v3239 = vunpack.c.l.b16 %v1781
        %v3240 = vunpack.c.h.b16 %v1781
        %v3241 = vunpack.c.l.b16 %v1782
        %v3242 = vunpack.c.h.b16 %v1782
        %v3243 = vunpack.c.l.b16 %v1783
        %v3244 = vunpack.c.h.b16 %v1783
        %v3245 = vunpack.c.l.b16 %v1784
        %v3246 = vunpack.c.h.b16 %v1784
        %v3247 = vunpack.c.l.b16 %v1785
        %v3248 = vunpack.c.h.b16 %v1785
        %v3249 = vunpack.c.l.b16 %v1786
        %v3250 = vunpack.c.h.b16 %v1786
        %v3251 = vunpack.c.l.b16 %v1787
        %v3252 = vunpack.c.h.b16 %v1787
        %v3253 = vunpack.c.l.b16 %v1788
        %v3254 = vunpack.c.h.b16 %v1788
        %v3255 = vunpack.c.l.b16 %v1789
        %v3256 = vunpack.c.h.b16 %v1789
        %v3257 = vunpack.c.l.b16 %v1790
        %v3258 = vunpack.c.h.b16 %v1790
        %v3259 = vunpack.c.l.b16 %v1791
        %v3260 = vunpack.c.h.b16 %v1791
        %v3261 = vunpack.c.l.b16 %v1792
        %v3262 = vunpack.c.h.b16 %v1792
        %v3263 = vunpack.c.l.b16 %v1793
        %v3264 = vunpack.c.h.b16 %v1793
        %v3265 = vunpack.c.l.b16 %v1794
        %v3266 = vunpack.c.h.b16 %v1794
        %v3267 = vunpack.c.l.b16 %v1795
        %v3268 = vunpack.c.h.b16 %v1795
        %v3269 = vunpack.c.l.b16 %v1796
        %v3270 = vunpack.c.h.b16 %v1796
        %v3271 = vunpack.c.l.b16 %v1797
        %v3272 = vunpack.c.h.b16 %v1797
        %v3273 = vunpack.c.l.b16 %v1798
        %v3274 = vunpack.c.h.b16 %v1798
        %v3275 = vunpack.c.l.b16 %v1799
        %v3276 = vunpack.c.h.b16 %v1799
        %v3277 = vunpack.c.l.b16 %v1800
        %v3278 = vunpack.c.h.b16 %v1800
        %v3279 = vunpack.c.l.b16 %v1801
        %v3280 = vunpack.c.h.b16 %v1801
        %v3281 = vunpack.c.l.b16 %v1802
        %v3282 = vunpack.c.h.b16 %v1802
        %v3283 = vunpack.c.l.b16 %v1803
        %v3284 = vunpack.c.h.b16 %v1803
        %v3285 = vunpack.c.l.b16 %v1804
        %v3286 = vunpack.c.h.b16 %v1804
        %v3287 = vunpack.c.l.b16 %v1805
        %v3288 = vunpack.c.h.b16 %v1805
        %v3289 = vunpack.c.l.b16 %v1806
        %v3290 = vunpack.c.h.b16 %v1806
        %v3291 = vunpack.c.l.b16 %v1807
        %v3292 = vunpack.c.h.b16 %v1807
        %v3293 = vunpack.c.l.b16 %v1808
        %v3294 = vunpack.c.h.b16 %v1808
        %v3295 = vunpack.c.l.b16 %v1809
        %v3296 = vunpack.c.h.b16 %v1809
        %v3297 = vunpack.c.l.b16 %v1810
        %v3298 = vunpack.c.h.b16 %v1810
        %v3299 = vunpack.c.l.b16 %v1811
        %v3300 = vunpack.c.h.b16 %v1811
        %v3301 = vunpack.c.l.b16 %v1812
        %v3302 = vunpack.c.h.b16 %v1812
        %v3303 = vunpack.c.l.b16 %v1813
        %v3304 = vunpack.c.h.b16 %v1813
        %v3305 = vunpack.c.l.b16 %v1814
        %v3306 = vunpack.c.h.b16 %v1814
        %v3307 = vunpack.c.l.b16 %v1815
        %v3308 = vunpack.c.h.b16 %v1815
        %v3309 = vunpack.c.l.b16 %v1816
        %v3310 = vunpack.c.h.b16 %v1816
        %v3311 = vunpack.c.l.b16 %v1817
        %v3312 = vunpack.c.h.b16 %v1817
        %v3313 = vunpack.c.l.b16 %v1818
        %v3314 = vunpack.c.h.b16 %v1818
        %v3315 = vunpack.c.l.b16 %v1819
        %v3316 = vunpack.c.h.b16 %v1819
        %v3317 = vunpack.c.l.b16 %v1820
        %v3318 = vunpack.c.h.b16 %v1820
        %v3319 = vunpack.c.l.b16 %v1821
        %v3320 = vunpack.c.h.b16 %v1821
        %v3321 = vunpack.c.l.b16 %v1822
        %v3322 = vunpack.c.h.b16 %v1822
        %v3323 = vunpack.c.l.b16 %v1823
        %v3324 = vunpack.c.h.b16 %v1823
        %v3325 = vunpack.c.l.b16 %v1824
        %v3326 = vunpack.c.h.b16 %v1824
        %v3327 = vunpack.c.l.b16 %v1825
        %v3328 = vunpack.c.h.b16 %v1825
        %v3329 = vunpack.c.l.b16 %v1826
        %v3330 = vunpack.c.h.b16 %v1826
        %v3331 = vunpack.c.l.b16 %v1827
        %v3332 = vunpack.c.h.b16 %v1827
        %v3333 = vunpack.c.l.b16 %v1828
        %v3334 = vunpack.c.h.b16 %v1828
        %v3335 = vunpack.c.l.b16 %v1829
        %v3336 = vunpack.c.h.b16 %v1829
        %v3337 = vunpack.c.l.b16 %v1830
        %v3338 = vunpack.c.h.b16 %v1830
        %v3339 = vunpack.c.l.b16 %v1831
        %v3340 = vunpack.c.h.b16 %v1831
        %v3341 = vunpack.c.l.b16 %v1832
        %v3342 = vunpack.c.h.b16 %v1832
        %v3343 = vunpack.c.l.b16 %v1833
        %v3344 = vunpack.c.h.b16 %v1833
        %v3345 = vunpack.c.l.b16 %v1834
        %v3346 = vunpack.c.h.b16 %v1834
        %v3347 = vunpack.c.l.b16 %v1835
        %v3348 = vunpack.c.h.b16 %v1835
        %v3349 = vunpack.c.l.b16 %v1836
        %v3350 = vunpack.c.h.b16 %v1836
        %v3351 = vunpack.c.l.b16 %v1837
        %v3352 = vunpack.c.h.b16 %v1837
        %v3353 = vunpack.c.l.b16 %v1838
        %v3354 = vunpack.c.h.b16 %v1838
        %v3355 = vunpack.c.l.b16 %v1839
        %v3356 = vunpack.c.h.b16 %v1839
        %v3357 = vunpack.c.l.b16 %v1840
        %v3358 = vunpack.c.h.b16 %v1840
        %v3359 = vunpack.c.l.b16 %v1841
        %v3360 = vunpack.c.h.b16 %v1841
        %v3361 = vunpack.c.l.b16 %v1842
        %v3362 = vunpack.c.h.b16 %v1842
        %v3363 = vunpack.c.l.b16 %v1843
        %v3364 = vunpack.c.h.b16 %v1843
        %v3365 = vunpack.c.l.b16 %v1844
        %v3366 = vunpack.c.h.b16 %v1844
        %v3367 = vunpack.c.l.b16 %v1845
        %v3368 = vunpack.c.h.b16 %v1845
        %v3369 = vunpack.c.l.b16 %v1846
        %v3370 = vunpack.c.h.b16 %v1846
        %v3371 = vunpack.c.l.b16 %v1847
        %v3372 = vunpack.c.h.b16 %v1847
        %v3373 = vunpack.c.l.b16 %v1848
        %v3374 = vunpack.c.h.b16 %v1848
        %v3375 = vunpack.c.l.b16 %v1849
        %v3376 = vunpack.c.h.b16 %v1849
        %v3377 = vunpack.c.l.b16 %v1850
        %v3378 = vunpack.c.h.b16 %v1850
        %v3379 = vunpack.c.l.b16 %v1851
        %v3380 = vunpack.c.h.b16 %v1851
        %v3381 = vunpack.c.l.b16 %v1852
        %v3382 = vunpack.c.h.b16 %v1852
        %v3383 = vunpack.c.l.b16 %v1853
        %v3384 = vunpack.c.h.b16 %v1853
        %v3385 = vunpack.c.l.b16 %v1854
        %v3386 = vunpack.c.h.b16 %v1854
        %v3387 = vunpack.c.l.b16 %v1855
        %v3388 = vunpack.c.h.b16 %v1855
        %v3389 = vunpack.c.l.b16 %v1856
        %v3390 = vunpack.c.h.b16 %v1856
        %v3391 = vunpack.c.l.b16 %v1857
        %v3392 = vunpack.c.h.b16 %v1857
        %v3393 = vunpack.c.l.b16 %v1858
        %v3394 = vunpack.c.h.b16 %v1858
        %v3395 = vunpack.c.l.b16 %v1859
        %v3396 = vunpack.c.h.b16 %v1859
        %v3397 = vunpack.c.l.b16 %v1860
        %v3398 = vunpack.c.h.b16 %v1860
        %v3399 = vunpack.c.l.b16 %v1861
        %v3400 = vunpack.c.h.b16 %v1861
        %v3401 = vunpack.c.l.b16 %v1862
        %v3402 = vunpack.c.h.b16 %v1862
        %v3403 = vunpack.c.l.b16 %v1863
        %v3404 = vunpack.c.h.b16 %v1863
        %v3405 = vunpack.c.l.b16 %v1864
        %v3406 = vunpack.c.h.b16 %v1864
        %v3407 = vunpack.c.l.b16 %v1865
        %v3408 = vunpack.c.h.b16 %v1865
        %v3409 = vunpack.c.l.b16 %v1866
        %v3410 = vunpack.c.h.b16 %v1866
        %v3411 = vunpack.c.l.b16 %v1867
        %v3412 = vunpack.c.h.b16 %v1867
        %v3413 = vunpack.c.l.b16 %v1868
        %v3414 = vunpack.c.h.b16 %v1868
        %v3415 = vunpack.c.l.b16 %v1869
        %v3416 = vunpack.c.h.b16 %v1869
        %v3417 = vunpack.c.l.b16 %v1870
        %v3418 = vunpack.c.h.b16 %v1870
        %v3419 = vunpack.c.l.b16 %v1871
        %v3420 = vunpack.c.h.b16 %v1871
        %v3421 = vunpack.c.l.b16 %v1872
        %v3422 = vunpack.c.h.b16 %v1872
        %v3423 = vunpack.c.l.b16 %v1873
        %v3424 = vunpack.c.h.b16 %v1873
        %v3425 = vunpack.c.l.b16 %v1874
        %v3426 = vunpack.c.h.b16 %v1874
        %v3427 = vunpack.c.l.b16 %v1875
        %v3428 = vunpack.c.h.b16 %v1875
        %v3429 = vunpack.c.l.b16 %v1876
        %v3430 = vunpack.c.h.b16 %v1876
        %v3431 = vunpack.c.l.b16 %v1877
        %v3432 = vunpack.c.h.b16 %v1877
        %v3433 = vunpack.c.l.b16 %v1878
        %v3434 = vunpack.c.h.b16 %v1878
        %v3435 = vunpack.c.l.b16 %v1879
        %v3436 = vunpack.c.h.b16 %v1879
        %v3437 = vunpack.c.l.b16 %v1880
        %v3438 = vunpack.c.h.b16 %v1880
        %v3439 = vunpack.c.l.b16 %v1881
        %v3440 = vunpack.c.h.b16 %v1881
        %v3441 = vunpack.c.l.b16 %v1882
        %v3442 = vunpack.c.h.b16 %v1882
        %v3443 = vunpack.c.l.b16 %v1883
        %v3444 = vunpack.c.h.b16 %v1883
        %v3445 = vunpack.c.l.b16 %v1884
        %v3446 = vunpack.c.h.b16 %v1884
        %v3447 = vunpack.c.l.b16 %v1885
        %v3448 = vunpack.c.h.b16 %v1885
        %v3449 = vunpack.c.l.b16 %v1886
        %v3450 = vunpack.c.h.b16 %v1886
        %v3451 = vunpack.c.l.b16 %v1887
        %v3452 = vunpack.c.h.b16 %v1887
        %v3453 = vunpack.c.l.b16 %v1888
        %v3454 = vunpack.c.h.b16 %v1888
        %v3455 = vunpack.c.l.b16 %v1889
        %v3456 = vunpack.c.h.b16 %v1889
        %v3457 = vunpack.c.l.b16 %v1890
        %v3458 = vunpack.c.h.b16 %v1890
        %v3459 = vunpack.c.l.b16 %v1891
        %v3460 = vunpack.c.h.b16 %v1891
        %v3461 = vunpack.c.l.b16 %v1892
        %v3462 = vunpack.c.h.b16 %v1892
        %v3463 = vunpack.c.l.b16 %v1893
        %v3464 = vunpack.c.h.b16 %v1893
        %v3465 = vunpack.c.l.b16 %v1894
        %v3466 = vunpack.c.h.b16 %v1894
        %v3467 = vunpack.c.l.b16 %v1895
        %v3468 = vunpack.c.h.b16 %v1895
        %v3469 = vunpack.c.l.b16 %v1896
        %v3470 = vunpack.c.h.b16 %v1896
        %v3471 = vunpack.c.l.b16 %v1897
        %v3472 = vunpack.c.h.b16 %v1897
        %v3473 = vunpack.c.l.b16 %v1898
        %v3474 = vunpack.c.h.b16 %v1898
        %v3475 = vunpack.c.l.b16 %v1899
        %v3476 = vunpack.c.h.b16 %v1899
        %v3477 = vunpack.c.l.b16 %v1900
        %v3478 = vunpack.c.h.b16 %v1900
        %v3479 = vpack.c.b16 %v2463, %v2455
        %v3480 = vpack.c.b16 %v2464, %v2456
        %v3481 = vpack.c.b16 %v2465, %v2457
        %v3482 = vpack.c.b16 %v2466, %v2458
        %v3483 = vpack.c.b16 %v2467, %v2459
        %v3484 = vpack.c.b16 %v2468, %v2460
        %v3485 = vpack.c.b16 %v2469, %v2461
        %v3486 = vpack.c.b16 %v2470, %v2462
        %v3487 = vpack.c.b16 %v2479, %v2471
        %v3488 = vpack.c.b16 %v2480, %v2472
        %v3489 = vpack.c.b16 %v2481, %v2473
        %v3490 = vpack.c.b16 %v2482, %v2474
        %v3491 = vpack.c.b16 %v2483, %v2475
        %v3492 = vpack.c.b16 %v2484, %v2476
        %v3493 = vpack.c.b16 %v2485, %v2477
        %v3494 = vpack.c.b16 %v2486, %v2478
        %v3495 = vpack.c.b16 %v2495, %v2487
        %v3496 = vpack.c.b16 %v2496, %v2488
        %v3497 = vpack.c.b16 %v2497, %v2489
        %v3498 = vpack.c.b16 %v2498, %v2490
        %v3499 = vpack.c.b16 %v2499, %v2491
        %v3500 = vpack.c.b16 %v2500, %v2492
        %v3501 = vpack.c.b16 %v2501, %v2493
        %v3502 = vpack.c.b16 %v2502, %v2494
        %v3503 = vpack.c.b16 %v2511, %v2503
        %v3504 = vpack.c.b16 %v2512, %v2504
        %v3505 = vpack.c.b16 %v2513, %v2505
        %v3506 = vpack.c.b16 %v2514, %v2506
        %v3507 = vpack.c.b16 %v2515, %v2507
        %v3508 = vpack.c.b16 %v2516, %v2508
        %v3509 = vpack.c.b16 %v2517, %v2509
        %v3510 = vpack.c.b16 %v2518, %v2510
        %v3511 = vpack.c.b16 %v2527, %v2519
        %v3512 = vpack.c.b16 %v2528, %v2520
        %v3513 = vpack.c.b16 %v2529, %v2521
        %v3514 = vpack.c.b16 %v2530, %v2522
        %v3515 = vpack.c.b16 %v2531, %v2523
        %v3516 = vpack.c.b16 %v2532, %v2524
        %v3517 = vpack.c.b16 %v2533, %v2525
        %v3518 = vpack.c.b16 %v2534, %v2526
        %v3519 = vpack.c.b16 %v2543, %v2535
        %v3520 = vpack.c.b16 %v2544, %v2536
        %v3521 = vpack.c.b16 %v2545, %v2537
        %v3522 = vpack.c.b16 %v2546, %v2538
        %v3523 = vpack.c.b16 %v2547, %v2539
        %v3524 = vpack.c.b16 %v2548, %v2540
        %v3525 = vpack.c.b16 %v2549, %v2541
        %v3526 = vpack.c.b16 %v2550, %v2542
        %v3527 = vpack.c.b16 %v2559, %v2551
        %v3528 = vpack.c.b16 %v2560, %v2552
        %v3529 = vpack.c.b16 %v2561, %v2553
        %v3530 = vpack.c.b16 %v2562, %v2554
        %v3531 = vpack.c.b16 %v2563, %v2555
        %v3532 = vpack.c.b16 %v2564, %v2556
        %v3533 = vpack.c.b16 %v2565, %v2557
        %v3534 = vpack.c.b16 %v2566, %v2558
        %v3535 = vpack.c.b16 %v2575, %v2567
        %v3536 = vpack.c.b16 %v2576, %v2568
        %v3537 = vpack.c.b16 %v2577, %v2569
        %v3538 = vpack.c.b16 %v2578, %v2570
        %v3539 = vpack.c.b16 %v2579, %v2571
        %v3540 = vpack.c.b16 %v2580, %v2572
        %v3541 = vpack.c.b16 %v2581, %v2573
        %v3542 = vpack.c.b16 %v2582, %v2574
        %v3543 = vpack.c.b16 %v2591, %v2583
        %v3544 = vpack.c.b16 %v2592, %v2584
        %v3545 = vpack.c.b16 %v2593, %v2585
        %v3546 = vpack.c.b16 %v2594, %v2586
        %v3547 = vpack.c.b16 %v2595, %v2587
        %v3548 = vpack.c.b16 %v2596, %v2588
        %v3549 = vpack.c.b16 %v2597, %v2589
        %v3550 = vpack.c.b16 %v2598, %v2590
        %v3551 = vpack.c.b16 %v2607, %v2599
        %v3552 = vpack.c.b16 %v2608, %v2600
        %v3553 = vpack.c.b16 %v2609, %v2601
        %v3554 = vpack.c.b16 %v2610, %v2602
        %v3555 = vpack.c.b16 %v2611, %v2603
        %v3556 = vpack.c.b16 %v2612, %v2604
        %v3557 = vpack.c.b16 %v2613, %v2605
        %v3558 = vpack.c.b16 %v2614, %v2606
        %v3559 = vpack.c.b16 %v2623, %v2615
        %v3560 = vpack.c.b16 %v2624, %v2616
        %v3561 = vpack.c.b16 %v2625, %v2617
        %v3562 = vpack.c.b16 %v2626, %v2618
        %v3563 = vpack.c.b16 %v2627, %v2619
        %v3564 = vpack.c.b16 %v2628, %v2620
        %v3565 = vpack.c.b16 %v2629, %v2621
        %v3566 = vpack.c.b16 %v2630, %v2622
        %v3567 = vpack.c.b16 %v2639, %v2631
        %v3568 = vpack.c.b16 %v2640, %v2632
        %v3569 = vpack.c.b16 %v2641, %v2633
        %v3570 = vpack.c.b16 %v2642, %v2634
        %v3571 = vpack.c.b16 %v2643, %v2635
        %v3572 = vpack.c.b16 %v2644, %v2636
        %v3573 = vpack.c.b16 %v2645, %v2637
        %v3574 = vpack.c.b16 %v2646, %v2638
        %v3575 = vpack.c.b16 %v2655, %v2647
        %v3576 = vpack.c.b16 %v2656, %v2648
        %v3577 = vpack.c.b16 %v2657, %v2649
        %v3578 = vpack.c.b16 %v2658, %v2650
        %v3579 = vpack.c.b16 %v2659, %v2651
        %v3580 = vpack.c.b16 %v2660, %v2652
        %v3581 = vpack.c.b16 %v2661, %v2653
        %v3582 = vpack.c.b16 %v2662, %v2654
        %v3583 = vpack.c.b16 %v2671, %v2663
        %v3584 = vpack.c.b16 %v2672, %v2664
        %v3585 = vpack.c.b16 %v2673, %v2665
        %v3586 = vpack.c.b16 %v2674, %v2666
        %v3587 = vpack.c.b16 %v2675, %v2667
        %v3588 = vpack.c.b16 %v2676, %v2668
        %v3589 = vpack.c.b16 %v2677, %v2669
        %v3590 = vpack.c.b16 %v2678, %v2670
        %v3591 = vpack.c.b16 %v2687, %v2679
        %v3592 = vpack.c.b16 %v2688, %v2680
        %v3593 = vpack.c.b16 %v2689, %v2681
        %v3594 = vpack.c.b16 %v2690, %v2682
        %v3595 = vpack.c.b16 %v2691, %v2683
        %v3596 = vpack.c.b16 %v2692, %v2684
        %v3597 = vpack.c.b16 %v2693, %v2685
        %v3598 = vpack.c.b16 %v2694, %v2686
        %v3599 = vpack.c.b16 %v2703, %v2695
        %v3600 = vpack.c.b16 %v2704, %v2696
        %v3601 = vpack.c.b16 %v2705, %v2697
        %v3602 = vpack.c.b16 %v2706, %v2698
        %v3603 = vpack.c.b16 %v2707, %v2699
        %v3604 = vpack.c.b16 %v2708, %v2700
        %v3605 = vpack.c.b16 %v2709, %v2701
        %v3606 = vpack.c.b16 %v2710, %v2702
        %v3607 = vpack.c.b16 %v2719, %v2711
        %v3608 = vpack.c.b16 %v2720, %v2712
        %v3609 = vpack.c.b16 %v2721, %v2713
        %v3610 = vpack.c.b16 %v2722, %v2714
        %v3611 = vpack.c.b16 %v2723, %v2715
        %v3612 = vpack.c.b16 %v2724, %v2716
        %v3613 = vpack.c.b16 %v2725, %v2717
        %v3614 = vpack.c.b16 %v2726, %v2718
        %v3615 = vpack.c.b16 %v2735, %v2727
        %v3616 = vpack.c.b16 %v2736, %v2728
        %v3617 = vpack.c.b16 %v2737, %v2729
        %v3618 = vpack.c.b16 %v2738, %v2730
        %v3619 = vpack.c.b16 %v2739, %v2731
        %v3620 = vpack.c.b16 %v2740, %v2732
        %v3621 = vpack.c.b16 %v2741, %v2733
        %v3622 = vpack.c.b16 %v2742, %v2734
        %v3623 = vpack.c.b16 %v2751, %v2743
        %v3624 = vpack.c.b16 %v2752, %v2744
        %v3625 = vpack.c.b16 %v2753, %v2745
        %v3626 = vpack.c.b16 %v2754, %v2746
        %v3627 = vpack.c.b16 %v2755, %v2747
        %v3628 = vpack.c.b16 %v2756, %v2748
        %v3629 = vpack.c.b16 %v2757, %v2749
        %v3630 = vpack.c.b16 %v2758, %v2750
        %v3631 = vpack.c.b16 %v2767, %v2759
        %v3632 = vpack.c.b16 %v2768, %v2760
        %v3633 = vpack.c.b16 %v2769, %v2761
        %v3634 = vpack.c.b16 %v2770, %v2762
        %v3635 = vpack.c.b16 %v2771, %v2763
        %v3636 = vpack.c.b16 %v2772, %v2764
        %v3637 = vpack.c.b16 %v2773, %v2765
        %v3638 = vpack.c.b16 %v2774, %v2766
        %v3639 = vpack.c.b16 %v2783, %v2775
        %v3640 = vpack.c.b16 %v2784, %v2776
        %v3641 = vpack.c.b16 %v2785, %v2777
        %v3642 = vpack.c.b16 %v2786, %v2778
        %v3643 = vpack.c.b16 %v2787, %v2779
        %v3644 = vpack.c.b16 %v2788, %v2780
        %v3645 = vpack.c.b16 %v2789, %v2781
        %v3646 = vpack.c.b16 %v2790, %v2782
        %v3647 = vpack.c.b16 %v2799, %v2791
        %v3648 = vpack.c.b16 %v2800, %v2792
        %v3649 = vpack.c.b16 %v2801, %v2793
        %v3650 = vpack.c.b16 %v2802, %v2794
        %v3651 = vpack.c.b16 %v2803, %v2795
        %v3652 = vpack.c.b16 %v2804, %v2796
        %v3653 = vpack.c.b16 %v2805, %v2797
        %v3654 = vpack.c.b16 %v2806, %v2798
        %v3655 = vpack.c.b16 %v2815, %v2807
        %v3656 = vpack.c.b16 %v2816, %v2808
        %v3657 = vpack.c.b16 %v2817, %v2809
        %v3658 = vpack.c.b16 %v2818, %v2810
        %v3659 = vpack.c.b16 %v2819, %v2811
        %v3660 = vpack.c.b16 %v2820, %v2812
        %v3661 = vpack.c.b16 %v2821, %v2813
        %v3662 = vpack.c.b16 %v2822, %v2814
        %v3663 = vpack.c.b16 %v2831, %v2823
        %v3664 = vpack.c.b16 %v2832, %v2824
        %v3665 = vpack.c.b16 %v2833, %v2825
        %v3666 = vpack.c.b16 %v2834, %v2826
        %v3667 = vpack.c.b16 %v2835, %v2827
        %v3668 = vpack.c.b16 %v2836, %v2828
        %v3669 = vpack.c.b16 %v2837, %v2829
        %v3670 = vpack.c.b16 %v2838, %v2830
        %v3671 = vpack.c.b16 %v2847, %v2839
        %v3672 = vpack.c.b16 %v2848, %v2840
        %v3673 = vpack.c.b16 %v2849, %v2841
        %v3674 = vpack.c.b16 %v2850, %v2842
        %v3675 = vpack.c.b16 %v2851, %v2843
        %v3676 = vpack.c.b16 %v2852, %v2844
        %v3677 = vpack.c.b16 %v2853, %v2845
        %v3678 = vpack.c.b16 %v2854, %v2846
        %v3679 = vpack.c.b16 %v2863, %v2855
        %v3680 = vpack.c.b16 %v2864, %v2856
        %v3681 = vpack.c.b16 %v2865, %v2857
        %v3682 = vpack.c.b16 %v2866, %v2858
        %v3683 = vpack.c.b16 %v2867, %v2859
        %v3684 = vpack.c.b16 %v2868, %v2860
        %v3685 = vpack.c.b16 %v2869, %v2861
        %v3686 = vpack.c.b16 %v2870, %v2862
        %v3687 = vpack.c.b16 %v2879, %v2871
        %v3688 = vpack.c.b16 %v2880, %v2872
        %v3689 = vpack.c.b16 %v2881, %v2873
        %v3690 = vpack.c.b16 %v2882, %v2874
        %v3691 = vpack.c.b16 %v2883, %v2875
        %v3692 = vpack.c.b16 %v2884, %v2876
        %v3693 = vpack.c.b16 %v2885, %v2877
        %v3694 = vpack.c.b16 %v2886, %v2878
        %v3695 = vpack.c.b16 %v2895, %v2887
        %v3696 = vpack.c.b16 %v2896, %v2888
        %v3697 = vpack.c.b16 %v2897, %v2889
        %v3698 = vpack.c.b16 %v2898, %v2890
        %v3699 = vpack.c.b16 %v2899, %v2891
        %v3700 = vpack.c.b16 %v2900, %v2892
        %v3701 = vpack.c.b16 %v2901, %v2893
        %v3702 = vpack.c.b16 %v2902, %v2894
        %v3703 = vpack.c.b16 %v2911, %v2903
        %v3704 = vpack.c.b16 %v2912, %v2904
        %v3705 = vpack.c.b16 %v2913, %v2905
        %v3706 = vpack.c.b16 %v2914, %v2906
        %v3707 = vpack.c.b16 %v2915, %v2907
        %v3708 = vpack.c.b16 %v2916, %v2908
        %v3709 = vpack.c.b16 %v2917, %v2909
        %v3710 = vpack.c.b16 %v2918, %v2910
        %v3711 = vpack.c.b16 %v2927, %v2919
        %v3712 = vpack.c.b16 %v2928, %v2920
        %v3713 = vpack.c.b16 %v2929, %v2921
        %v3714 = vpack.c.b16 %v2930, %v2922
        %v3715 = vpack.c.b16 %v2931, %v2923
        %v3716 = vpack.c.b16 %v2932, %v2924
        %v3717 = vpack.c.b16 %v2933, %v2925
        %v3718 = vpack.c.b16 %v2934, %v2926
        %v3719 = vpack.c.b16 %v2943, %v2935
        %v3720 = vpack.c.b16 %v2944, %v2936
        %v3721 = vpack.c.b16 %v2945, %v2937
        %v3722 = vpack.c.b16 %v2946, %v2938
        %v3723 = vpack.c.b16 %v2947, %v2939
        %v3724 = vpack.c.b16 %v2948, %v2940
        %v3725 = vpack.c.b16 %v2949, %v2941
        %v3726 = vpack.c.b16 %v2950, %v2942
        %v3727 = vpack.c.b16 %v2959, %v2951
        %v3728 = vpack.c.b16 %v2960, %v2952
        %v3729 = vpack.c.b16 %v2961, %v2953
        %v3730 = vpack.c.b16 %v2962, %v2954
        %v3731 = vpack.c.b16 %v2963, %v2955
        %v3732 = vpack.c.b16 %v2964, %v2956
        %v3733 = vpack.c.b16 %v2965, %v2957
        %v3734 = vpack.c.b16 %v2966, %v2958
        %v3735 = vpack.c.b16 %v2975, %v2967
        %v3736 = vpack.c.b16 %v2976, %v2968
        %v3737 = vpack.c.b16 %v2977, %v2969
        %v3738 = vpack.c.b16 %v2978, %v2970
        %v3739 = vpack.c.b16 %v2979, %v2971
        %v3740 = vpack.c.b16 %v2980, %v2972
        %v3741 = vpack.c.b16 %v2981, %v2973
        %v3742 = vpack.c.b16 %v2982, %v2974
        %v3743 = vpack.c.b16 %v2991, %v2983
        %v3744 = vpack.c.b16 %v2992, %v2984
        %v3745 = vpack.c.b16 %v2993, %v2985
        %v3746 = vpack.c.b16 %v2994, %v2986
        %v3747 = vpack.c.b16 %v2995, %v2987
        %v3748 = vpack.c.b16 %v2996, %v2988
        %v3749 = vpack.c.b16 %v2997, %v2989
        %v3750 = vpack.c.b16 %v2998, %v2990
        %v3751 = vpack.c.b16 %v3007, %v2999
        %v3752 = vpack.c.b16 %v3008, %v3000
        %v3753 = vpack.c.b16 %v3009, %v3001
        %v3754 = vpack.c.b16 %v3010, %v3002
        %v3755 = vpack.c.b16 %v3011, %v3003
        %v3756 = vpack.c.b16 %v3012, %v3004
        %v3757 = vpack.c.b16 %v3013, %v3005
        %v3758 = vpack.c.b16 %v3014, %v3006
        %v3759 = vpack.c.b16 %v3023, %v3015
        %v3760 = vpack.c.b16 %v3024, %v3016
        %v3761 = vpack.c.b16 %v3025, %v3017
        %v3762 = vpack.c.b16 %v3026, %v3018
        %v3763 = vpack.c.b16 %v3027, %v3019
        %v3764 = vpack.c.b16 %v3028, %v3020
        %v3765 = vpack.c.b16 %v3029, %v3021
        %v3766 = vpack.c.b16 %v3030, %v3022
        %v3767 = vpack.c.b16 %v3039, %v3031
        %v3768 = vpack.c.b16 %v3040, %v3032
        %v3769 = vpack.c.b16 %v3041, %v3033
        %v3770 = vpack.c.b16 %v3042, %v3034
        %v3771 = vpack.c.b16 %v3043, %v3035
        %v3772 = vpack.c.b16 %v3044, %v3036
        %v3773 = vpack.c.b16 %v3045, %v3037
        %v3774 = vpack.c.b16 %v3046, %v3038
        %v3775 = vpack.c.b16 %v3055, %v3047
        %v3776 = vpack.c.b16 %v3056, %v3048
        %v3777 = vpack.c.b16 %v3057, %v3049
        %v3778 = vpack.c.b16 %v3058, %v3050
        %v3779 = vpack.c.b16 %v3059, %v3051
        %v3780 = vpack.c.b16 %v3060, %v3052
        %v3781 = vpack.c.b16 %v3061, %v3053
        %v3782 = vpack.c.b16 %v3062, %v3054
        %v3783 = vpack.c.b16 %v3071, %v3063
        %v3784 = vpack.c.b16 %v3072, %v3064
        %v3785 = vpack.c.b16 %v3073, %v3065
        %v3786 = vpack.c.b16 %v3074, %v3066
        %v3787 = vpack.c.b16 %v3075, %v3067
        %v3788 = vpack.c.b16 %v3076, %v3068
        %v3789 = vpack.c.b16 %v3077, %v3069
        %v3790 = vpack.c.b16 %v3078, %v3070
        %v3791 = vpack.c.b16 %v3087, %v3079
        %v3792 = vpack.c.b16 %v3088, %v3080
        %v3793 = vpack.c.b16 %v3089, %v3081
        %v3794 = vpack.c.b16 %v3090, %v3082
        %v3795 = vpack.c.b16 %v3091, %v3083
        %v3796 = vpack.c.b16 %v3092, %v3084
        %v3797 = vpack.c.b16 %v3093, %v3085
        %v3798 = vpack.c.b16 %v3094, %v3086
        %v3799 = vpack.c.b16 %v3103, %v3095
        %v3800 = vpack.c.b16 %v3104, %v3096
        %v3801 = vpack.c.b16 %v3105, %v3097
        %v3802 = vpack.c.b16 %v3106, %v3098
        %v3803 = vpack.c.b16 %v3107, %v3099
        %v3804 = vpack.c.b16 %v3108, %v3100
        %v3805 = vpack.c.b16 %v3109, %v3101
        %v3806 = vpack.c.b16 %v3110, %v3102
        %v3807 = vpack.c.b16 %v3119, %v3111
        %v3808 = vpack.c.b16 %v3120, %v3112
        %v3809 = vpack.c.b16 %v3121, %v3113
        %v3810 = vpack.c.b16 %v3122, %v3114
        %v3811 = vpack.c.b16 %v3123, %v3115
        %v3812 = vpack.c.b16 %v3124, %v3116
        %v3813 = vpack.c.b16 %v3125, %v3117
        %v3814 = vpack.c.b16 %v3126, %v3118
        %v3815 = vpack.c.b16 %v3135, %v3127
        %v3816 = vpack.c.b16 %v3136, %v3128
        %v3817 = vpack.c.b16 %v3137, %v3129
        %v3818 = vpack.c.b16 %v3138, %v3130
        %v3819 = vpack.c.b16 %v3139, %v3131
        %v3820 = vpack.c.b16 %v3140, %v3132
        %v3821 = vpack.c.b16 %v3141, %v3133
        %v3822 = vpack.c.b16 %v3142, %v3134
        %v3823 = vpack.c.b16 %v3151, %v3143
        %v3824 = vpack.c.b16 %v3152, %v3144
        %v3825 = vpack.c.b16 %v3153, %v3145
        %v3826 = vpack.c.b16 %v3154, %v3146
        %v3827 = vpack.c.b16 %v3155, %v3147
        %v3828 = vpack.c.b16 %v3156, %v3148
        %v3829 = vpack.c.b16 %v3157, %v3149
        %v3830 = vpack.c.b16 %v3158, %v3150
        %v3831 = vpack.c.b16 %v3167, %v3159
        %v3832 = vpack.c.b16 %v3168, %v3160
        %v3833 = vpack.c.b16 %v3169, %v3161
        %v3834 = vpack.c.b16 %v3170, %v3162
        %v3835 = vpack.c.b16 %v3171, %v3163
        %v3836 = vpack.c.b16 %v3172, %v3164
        %v3837 = vpack.c.b16 %v3173, %v3165
        %v3838 = vpack.c.b16 %v3174, %v3166
        %v3839 = vpack.c.b16 %v3183, %v3175
        %v3840 = vpack.c.b16 %v3184, %v3176
        %v3841 = vpack.c.b16 %v3185, %v3177
        %v3842 = vpack.c.b16 %v3186, %v3178
        %v3843 = vpack.c.b16 %v3187, %v3179
        %v3844 = vpack.c.b16 %v3188, %v3180
        %v3845 = vpack.c.b16 %v3189, %v3181
        %v3846 = vpack.c.b16 %v3190, %v3182
        %v3847 = vpack.c.b16 %v3199, %v3191
        %v3848 = vpack.c.b16 %v3200, %v3192
        %v3849 = vpack.c.b16 %v3201, %v3193
        %v3850 = vpack.c.b16 %v3202, %v3194
        %v3851 = vpack.c.b16 %v3203, %v3195
        %v3852 = vpack.c.b16 %v3204, %v3196
        %v3853 = vpack.c.b16 %v3205, %v3197
        %v3854 = vpack.c.b16 %v3206, %v3198
        %v3855 = vpack.c.b16 %v3215, %v3207
        %v3856 = vpack.c.b16 %v3216, %v3208
        %v3857 = vpack.c.b16 %v3217, %v3209
        %v3858 = vpack.c.b16 %v3218, %v3210
        %v3859 = vpack.c.b16 %v3219, %v3211
        %v3860 = vpack.c.b16 %v3220, %v3212
        %v3861 = vpack.c.b16 %v3221, %v3213
        %v3862 = vpack.c.b16 %v3222, %v3214
        %v3863 = vpack.c.b16 %v3231, %v3223
        %v3864 = vpack.c.b16 %v3232, %v3224
        %v3865 = vpack.c.b16 %v3233, %v3225
        %v3866 = vpack.c.b16 %v3234, %v3226
        %v3867 = vpack.c.b16 %v3235, %v3227
        %v3868 = vpack.c.b16 %v3236, %v3228
        %v3869 = vpack.c.b16 %v3237, %v3229
        %v3870 = vpack.c.b16 %v3238, %v3230
        %v3871 = vpack.c.b16 %v3247, %v3239
        %v3872 = vpack.c.b16 %v3248, %v3240
        %v3873 = vpack.c.b16 %v3249, %v3241
        %v3874 = vpack.c.b16 %v3250, %v3242
        %v3875 = vpack.c.b16 %v3251, %v3243
        %v3876 = vpack.c.b16 %v3252, %v3244
        %v3877 = vpack.c.b16 %v3253, %v3245
        %v3878 = vpack.c.b16 %v3254, %v3246
        %v3879 = vpack.c.b16 %v3263, %v3255
        %v3880 = vpack.c.b16 %v3264, %v3256
        %v3881 = vpack.c.b16 %v3265, %v3257
        %v3882 = vpack.c.b16 %v3266, %v3258
        %v3883 = vpack.c.b16 %v3267, %v3259
        %v3884 = vpack.c.b16 %v3268, %v3260
        %v3885 = vpack.c.b16 %v3269, %v3261
        %v3886 = vpack.c.b16 %v3270, %v3262
        %v3887 = vpack.c.b16 %v3279, %v3271
        %v3888 = vpack.c.b16 %v3280, %v3272
        %v3889 = vpack.c.b16 %v3281, %v3273
        %v3890 = vpack.c.b16 %v3282, %v3274
        %v3891 = vpack.c.b16 %v3283, %v3275
        %v3892 = vpack.c.b16 %v3284, %v3276
        %v3893 = vpack.c.b16 %v3285, %v3277
        %v3894 = vpack.c.b16 %v3286, %v3278
        %v3895 = vpack.c.b16 %v3295, %v3287
        %v3896 = vpack.c.b16 %v3296, %v3288
        %v3897 = vpack.c.b16 %v3297, %v3289
        %v3898 = vpack.c.b16 %v3298, %v3290
        %v3899 = vpack.c.b16 %v3299, %v3291
        %v3900 = vpack.c.b16 %v3300, %v3292
        %v3901 = vpack.c.b16 %v3301, %v3293
        %v3902 = vpack.c.b16 %v3302, %v3294
        %v3903 = vpack.c.b16 %v3311, %v3303
        %v3904 = vpack.c.b16 %v3312, %v3304
        %v3905 = vpack.c.b16 %v3313, %v3305
        %v3906 = vpack.c.b16 %v3314, %v3306
        %v3907 = vpack.c.b16 %v3315, %v3307
        %v3908 = vpack.c.b16 %v3316, %v3308
        %v3909 = vpack.c.b16 %v3317, %v3309
        %v3910 = vpack.c.b16 %v3318, %v3310
        %v3911 = vpack.c.b16 %v3327, %v3319
        %v3912 = vpack.c.b16 %v3328, %v3320
        %v3913 = vpack.c.b16 %v3329, %v3321
        %v3914 = vpack.c.b16 %v3330, %v3322
        %v3915 = vpack.c.b16 %v3331, %v3323
        %v3916 = vpack.c.b16 %v3332, %v3324
        %v3917 = vpack.c.b16 %v3333, %v3325
        %v3918 = vpack.c.b16 %v3334, %v3326
        %v3919 = vpack.c.b16 %v3343, %v3335
        %v3920 = vpack.c.b16 %v3344, %v3336
        %v3921 = vpack.c.b16 %v3345, %v3337
        %v3922 = vpack.c.b16 %v3346, %v3338
        %v3923 = vpack.c.b16 %v3347, %v3339
        %v3924 = vpack.c.b16 %v3348, %v3340
        %v3925 = vpack.c.b16 %v3349, %v3341
        %v3926 = vpack.c.b16 %v3350, %v3342
        %v3927 = vpack.c.b16 %v3359, %v3351
        %v3928 = vpack.c.b16 %v3360, %v3352
        %v3929 = vpack.c.b16 %v3361, %v3353
        %v3930 = vpack.c.b16 %v3362, %v3354
        %v3931 = vpack.c.b16 %v3363, %v3355
        %v3932 = vpack.c.b16 %v3364, %v3356
        %v3933 = vpack.c.b16 %v3365, %v3357
        %v3934 = vpack.c.b16 %v3366, %v3358
        %v3935 = vpack.c.b16 %v3375, %v3367
        %v3936 = vpack.c.b16 %v3376, %v3368
        %v3937 = vpack.c.b16 %v3377, %v3369
        %v3938 = vpack.c.b16 %v3378, %v3370
        %v3939 = vpack.c.b16 %v3379, %v3371
        %v3940 = vpack.c.b16 %v3380, %v3372
        %v3941 = vpack.c.b16 %v3381, %v3373
        %v3942 = vpack.c.b16 %v3382, %v3374
        %v3943 = vpack.c.b16 %v3391, %v3383
        %v3944 = vpack.c.b16 %v3392, %v3384
        %v3945 = vpack.c.b16 %v3393, %v3385
        %v3946 = vpack.c.b16 %v3394, %v3386
        %v3947 = vpack.c.b16 %v3395, %v3387
        %v3948 = vpack.c.b16 %v3396, %v3388
        %v3949 = vpack.c.b16 %v3397, %v3389
        %v3950 = vpack.c.b16 %v3398, %v3390
        %v3951 = vpack.c.b16 %v3407, %v3399
        %v3952 = vpack.c.b16 %v3408, %v3400
        %v3953 = vpack.c.b16 %v3409, %v3401
        %v3954 = vpack.c.b16 %v3410, %v3402
        %v3955 = vpack.c.b16 %v3411, %v3403
        %v3956 = vpack.c.b16 %v3412, %v3404
        %v3957 = vpack.c.b16 %v3413, %v3405
        %v3958 = vpack.c.b16 %v3414, %v3406
        %v3959 = vpack.c.b16 %v3423, %v3415
        %v3960 = vpack.c.b16 %v3424, %v3416
        %v3961 = vpack.c.b16 %v3425, %v3417
        %v3962 = vpack.c.b16 %v3426, %v3418
        %v3963 = vpack.c.b16 %v3427, %v3419
        %v3964 = vpack.c.b16 %v3428, %v3420
        %v3965 = vpack.c.b16 %v3429, %v3421
        %v3966 = vpack.c.b16 %v3430, %v3422
        %v3967 = vpack.c.b16 %v3439, %v3431
        %v3968 = vpack.c.b16 %v3440, %v3432
        %v3969 = vpack.c.b16 %v3441, %v3433
        %v3970 = vpack.c.b16 %v3442, %v3434
        %v3971 = vpack.c.b16 %v3443, %v3435
        %v3972 = vpack.c.b16 %v3444, %v3436
        %v3973 = vpack.c.b16 %v3445, %v3437
        %v3974 = vpack.c.b16 %v3446, %v3438
        %v3975 = vpack.c.b16 %v3455, %v3447
        %v3976 = vpack.c.b16 %v3456, %v3448
        %v3977 = vpack.c.b16 %v3457, %v3449
        %v3978 = vpack.c.b16 %v3458, %v3450
        %v3979 = vpack.c.b16 %v3459, %v3451
        %v3980 = vpack.c.b16 %v3460, %v3452
        %v3981 = vpack.c.b16 %v3461, %v3453
        %v3982 = vpack.c.b16 %v3462, %v3454
        %v3983 = vpack.c.b16 %v3471, %v3463
        %v3984 = vpack.c.b16 %v3472, %v3464
        %v3985 = vpack.c.b16 %v3473, %v3465
        %v3986 = vpack.c.b16 %v3474, %v3466
        %v3987 = vpack.c.b16 %v3475, %v3467
        %v3988 = vpack.c.b16 %v3476, %v3468
        %v3989 = vpack.c.b16 %v3477, %v3469
        %v3990 = vpack.c.b16 %v3478, %v3470
        %4503 = vmatprep.subr.bf16.mxu0 %v3536
        %4504 = vmatpush1.bf16.msra.mxu0 %v3535
        %4505 = vmatprep.subr.bf16.mxu0 %v3528
        %4506 = vmatpush1.bf16.msra.mxu0 %v3527
        %4507 = vmatprep.subr.bf16.mxu0 %v3520
        %4508 = vmatpush1.bf16.msra.mxu0 %v3519
        %4509 = vmatprep.subr.bf16.mxu0 %v3512
        %4510 = vmatpush1.bf16.msra.mxu0 %v3511
        %4511 = vmatprep.subr.bf16.mxu0 %v3504
        %4512 = vmatpush1.bf16.msra.mxu0 %v3503
        %4513 = vmatprep.subr.bf16.mxu0 %v3496
        %4514 = vmatpush1.bf16.msra.mxu0 %v3495
        %4515 = vmatprep.subr.bf16.mxu0 %v3488
        %4516 = vmatpush1.bf16.msra.mxu0 %v3487
        %4517 = vmatprep.subr.bf16.mxu0 %v3480
        %4518 = vmatpush1.bf16.msra.mxu0 %v3479
        %4519 = vmatprep.subr.bf16.mxu0 %v3600
        %4520 = vmatpush2.bf16.msra.mxu0 %v3599
        %4521 = vmatprep.subr.bf16.mxu0 %v3592
        %4522 = vmatpush2.bf16.msra.mxu0 %v3591
        %4523 = vmatprep.subr.bf16.mxu0 %v3584
        %4524 = vmatpush2.bf16.msra.mxu0 %v3583
        %4525 = vmatprep.subr.bf16.mxu0 %v3576
        %4526 = vmatpush2.bf16.msra.mxu0 %v3575
        %4527 = vmatprep.subr.bf16.mxu0 %v3568
        %4528 = vmatpush2.bf16.msra.mxu0 %v3567
        %4529 = vmatprep.subr.bf16.mxu0 %v3560
        %4530 = vmatpush2.bf16.msra.mxu0 %v3559
        %4531 = vmatprep.subr.bf16.mxu0 %v3552
        %4532 = vmatpush2.bf16.msra.mxu0 %v3551
        %4533 = vmatprep.subr.bf16.mxu0 %v3544
        %4534 = vmatpush2.bf16.msra.mxu0 %v3543
        %4535 = vmatprep.mubr.bf16.mxu0 %v1382
        %4536 = vmatmul.mubr.bf16.gmra.mxu0 %v1381
        %v4537 = vpop.f32.mrf.mxu0
        %v4538 = vadd.f32 %v1906, %v4537
        %v4539 = vpop.f32.mrf.mxu0
        %v4540 = vadd.f32 %v1910, %v4539
        %v4541 = vpop.f32.mrf.mxu0
        %v4542 = vpop.f32.mrf.mxu0
        %4543 = vdwg.mxu0
        %4544 = vmatprep.subr.bf16.mxu0 %v3664
        %4545 = vmatpush1.bf16.msra.mxu0 %v3663
        %4546 = vmatprep.subr.bf16.mxu0 %v3656
        %4547 = vmatpush1.bf16.msra.mxu0 %v3655
        %4548 = vmatprep.subr.bf16.mxu0 %v3648
        %4549 = vmatpush1.bf16.msra.mxu0 %v3647
        %4550 = vmatprep.subr.bf16.mxu0 %v3640
        %4551 = vmatpush1.bf16.msra.mxu0 %v3639
        %4552 = vmatprep.subr.bf16.mxu0 %v3632
        %4553 = vmatpush1.bf16.msra.mxu0 %v3631
        %4554 = vmatprep.subr.bf16.mxu0 %v3624
        %4555 = vmatpush1.bf16.msra.mxu0 %v3623
        %4556 = vmatprep.subr.bf16.mxu0 %v3616
        %4557 = vmatpush1.bf16.msra.mxu0 %v3615
        %4558 = vmatprep.subr.bf16.mxu0 %v3608
        %4559 = vmatpush1.bf16.msra.mxu0 %v3607
        %4560 = vmatprep.subr.bf16.mxu0 %v3728
        %4561 = vmatpush2.bf16.msra.mxu0 %v3727
        %4562 = vmatprep.subr.bf16.mxu0 %v3720
        %4563 = vmatpush2.bf16.msra.mxu0 %v3719
        %4564 = vmatprep.subr.bf16.mxu0 %v3712
        %4565 = vmatpush2.bf16.msra.mxu0 %v3711
        %4566 = vmatprep.subr.bf16.mxu0 %v3704
        %4567 = vmatpush2.bf16.msra.mxu0 %v3703
        %4568 = vmatprep.subr.bf16.mxu0 %v3696
        %4569 = vmatpush2.bf16.msra.mxu0 %v3695
        %4570 = vmatprep.subr.bf16.mxu0 %v3688
        %4571 = vmatpush2.bf16.msra.mxu0 %v3687
        %4572 = vmatprep.subr.bf16.mxu0 %v3680
        %4573 = vmatpush2.bf16.msra.mxu0 %v3679
        %4574 = vmatprep.subr.bf16.mxu0 %v3672
        %4575 = vmatpush2.bf16.msra.mxu0 %v3671
        %4576 = vmatprep.mubr.bf16.mxu0 %v1384
        %4577 = vmatmul.mubr.bf16.gmra.mxu0 %v1383
        %v4578 = vpop.f32.mrf.mxu0
        %v4579 = vadd.f32 %v4538, %v4578
        %v4580 = vpop.f32.mrf.mxu0
        %v4581 = vadd.f32 %v4540, %v4580
        %v4582 = vpop.f32.mrf.mxu0
        %v4583 = vpop.f32.mrf.mxu0
        %4584 = vdwg.mxu0
        %4585 = vmatprep.subr.bf16.mxu0 %v3792
        %4586 = vmatpush1.bf16.msra.mxu0 %v3791
        %4587 = vmatprep.subr.bf16.mxu0 %v3784
        %4588 = vmatpush1.bf16.msra.mxu0 %v3783
        %4589 = vmatprep.subr.bf16.mxu0 %v3776
        %4590 = vmatpush1.bf16.msra.mxu0 %v3775
        %4591 = vmatprep.subr.bf16.mxu0 %v3768
        %4592 = vmatpush1.bf16.msra.mxu0 %v3767
        %4593 = vmatprep.subr.bf16.mxu0 %v3760
        %4594 = vmatpush1.bf16.msra.mxu0 %v3759
        %4595 = vmatprep.subr.bf16.mxu0 %v3752
        %4596 = vmatpush1.bf16.msra.mxu0 %v3751
        %4597 = vmatprep.subr.bf16.mxu0 %v3744
        %4598 = vmatpush1.bf16.msra.mxu0 %v3743
        %4599 = vmatprep.subr.bf16.mxu0 %v3736
        %4600 = vmatpush1.bf16.msra.mxu0 %v3735
        %4601 = vmatprep.subr.bf16.mxu0 %v3856
        %4602 = vmatpush2.bf16.msra.mxu0 %v3855
        %4603 = vmatprep.subr.bf16.mxu0 %v3848
        %4604 = vmatpush2.bf16.msra.mxu0 %v3847
        %4605 = vmatprep.subr.bf16.mxu0 %v3840
        %4606 = vmatpush2.bf16.msra.mxu0 %v3839
        %4607 = vmatprep.subr.bf16.mxu0 %v3832
        %4608 = vmatpush2.bf16.msra.mxu0 %v3831
        %4609 = vmatprep.subr.bf16.mxu0 %v3824
        %4610 = vmatpush2.bf16.msra.mxu0 %v3823
        %4611 = vmatprep.subr.bf16.mxu0 %v3816
        %4612 = vmatpush2.bf16.msra.mxu0 %v3815
        %4613 = vmatprep.subr.bf16.mxu0 %v3808
        %4614 = vmatpush2.bf16.msra.mxu0 %v3807
        %4615 = vmatprep.subr.bf16.mxu0 %v3800
        %4616 = vmatpush2.bf16.msra.mxu0 %v3799
        %4617 = vmatprep.mubr.bf16.mxu0 %v1386
        %4618 = vmatmul.mubr.bf16.gmra.mxu0 %v1385
        %v4619 = vpop.f32.mrf.mxu0
        %v4620 = vadd.f32 %v4579, %v4619
        %v4621 = vpop.f32.mrf.mxu0
        %v4622 = vadd.f32 %v4581, %v4621
        %v4623 = vpop.f32.mrf.mxu0
        %v4624 = vpop.f32.mrf.mxu0
        %4625 = vdwg.mxu0
        %4626 = vmatprep.subr.bf16.mxu0 %v3920
        %4627 = vmatpush1.bf16.msra.mxu0 %v3919
        %4628 = vmatprep.subr.bf16.mxu0 %v3912
        %4629 = vmatpush1.bf16.msra.mxu0 %v3911
        %4630 = vmatprep.subr.bf16.mxu0 %v3904
        %4631 = vmatpush1.bf16.msra.mxu0 %v3903
        %4632 = vmatprep.subr.bf16.mxu0 %v3896
        %4633 = vmatpush1.bf16.msra.mxu0 %v3895
        %4634 = vmatprep.subr.bf16.mxu0 %v3888
        %4635 = vmatpush1.bf16.msra.mxu0 %v3887
        %4636 = vmatprep.subr.bf16.mxu0 %v3880
        %4637 = vmatpush1.bf16.msra.mxu0 %v3879
        %4638 = vmatprep.subr.bf16.mxu0 %v3872
        %4639 = vmatpush1.bf16.msra.mxu0 %v3871
        %4640 = vmatprep.subr.bf16.mxu0 %v3864
        %4641 = vmatpush1.bf16.msra.mxu0 %v3863
        %4642 = vmatprep.subr.bf16.mxu0 %v3984
        %4643 = vmatpush2.bf16.msra.mxu0 %v3983
        %4644 = vmatprep.subr.bf16.mxu0 %v3976
        %4645 = vmatpush2.bf16.msra.mxu0 %v3975
        %4646 = vmatprep.subr.bf16.mxu0 %v3968
        %4647 = vmatpush2.bf16.msra.mxu0 %v3967
        %4648 = vmatprep.subr.bf16.mxu0 %v3960
        %4649 = vmatpush2.bf16.msra.mxu0 %v3959
        %4650 = vmatprep.subr.bf16.mxu0 %v3952
        %4651 = vmatpush2.bf16.msra.mxu0 %v3951
        %4652 = vmatprep.subr.bf16.mxu0 %v3944
        %4653 = vmatpush2.bf16.msra.mxu0 %v3943
        %4654 = vmatprep.subr.bf16.mxu0 %v3936
        %4655 = vmatpush2.bf16.msra.mxu0 %v3935
        %4656 = vmatprep.subr.bf16.mxu0 %v3928
        %4657 = vmatpush2.bf16.msra.mxu0 %v3927
        %4658 = vmatprep.mubr.bf16.mxu0 %v1388
        %4659 = vmatmul.mubr.bf16.gmra.mxu0 %v1387
        %v4660 = vpop.f32.mrf.mxu0
        %v4661 = vadd.f32 %v4620, %v4660
        %v4662 = vpop.f32.mrf.mxu0
        %v4663 = vadd.f32 %v4622, %v4662
        %v4664 = vpop.f32.mrf.mxu0
        %v4665 = vpop.f32.mrf.mxu0
        %4666 = vdwg.mxu0
        %4667 = vmatprep.subr.bf16.mxu0 %v3538
        %4668 = vmatpush1.bf16.msra.mxu0 %v3537
        %4669 = vmatprep.subr.bf16.mxu0 %v3530
        %4670 = vmatpush1.bf16.msra.mxu0 %v3529
        %4671 = vmatprep.subr.bf16.mxu0 %v3522
        %4672 = vmatpush1.bf16.msra.mxu0 %v3521
        %4673 = vmatprep.subr.bf16.mxu0 %v3514
        %4674 = vmatpush1.bf16.msra.mxu0 %v3513
        %4675 = vmatprep.subr.bf16.mxu0 %v3506
        %4676 = vmatpush1.bf16.msra.mxu0 %v3505
        %4677 = vmatprep.subr.bf16.mxu0 %v3498
        %4678 = vmatpush1.bf16.msra.mxu0 %v3497
        %4679 = vmatprep.subr.bf16.mxu0 %v3490
        %4680 = vmatpush1.bf16.msra.mxu0 %v3489
        %4681 = vmatprep.subr.bf16.mxu0 %v3482
        %4682 = vmatpush1.bf16.msra.mxu0 %v3481
        %4683 = vmatprep.subr.bf16.mxu0 %v3602
        %4684 = vmatpush2.bf16.msra.mxu0 %v3601
        %4685 = vmatprep.subr.bf16.mxu0 %v3594
        %4686 = vmatpush2.bf16.msra.mxu0 %v3593
        %4687 = vmatprep.subr.bf16.mxu0 %v3586
        %4688 = vmatpush2.bf16.msra.mxu0 %v3585
        %4689 = vmatprep.subr.bf16.mxu0 %v3578
        %4690 = vmatpush2.bf16.msra.mxu0 %v3577
        %4691 = vmatprep.subr.bf16.mxu0 %v3570
        %4692 = vmatpush2.bf16.msra.mxu0 %v3569
        %4693 = vmatprep.subr.bf16.mxu0 %v3562
        %4694 = vmatpush2.bf16.msra.mxu0 %v3561
        %4695 = vmatprep.subr.bf16.mxu0 %v3554
        %4696 = vmatpush2.bf16.msra.mxu0 %v3553
        %4697 = vmatprep.subr.bf16.mxu0 %v3546
        %4698 = vmatpush2.bf16.msra.mxu0 %v3545
        %4699 = vmatprep.mubr.bf16.mxu0 %v1382
        %4700 = vmatmul.mubr.bf16.gmra.mxu0 %v1381
        %v4701 = vpop.f32.mrf.mxu0
        %v4702 = vadd.f32 %v1914, %v4701
        %v4703 = vpop.f32.mrf.mxu0
        %v4704 = vadd.f32 %v1918, %v4703
        %v4705 = vpop.f32.mrf.mxu0
        %v4706 = vpop.f32.mrf.mxu0
        %4707 = vdwg.mxu0
        %4708 = vmatprep.subr.bf16.mxu0 %v3666
        %4709 = vmatpush1.bf16.msra.mxu0 %v3665
        %4710 = vmatprep.subr.bf16.mxu0 %v3658
        %4711 = vmatpush1.bf16.msra.mxu0 %v3657
        %4712 = vmatprep.subr.bf16.mxu0 %v3650
        %4713 = vmatpush1.bf16.msra.mxu0 %v3649
        %4714 = vmatprep.subr.bf16.mxu0 %v3642
        %4715 = vmatpush1.bf16.msra.mxu0 %v3641
        %4716 = vmatprep.subr.bf16.mxu0 %v3634
        %4717 = vmatpush1.bf16.msra.mxu0 %v3633
        %4718 = vmatprep.subr.bf16.mxu0 %v3626
        %4719 = vmatpush1.bf16.msra.mxu0 %v3625
        %4720 = vmatprep.subr.bf16.mxu0 %v3618
        %4721 = vmatpush1.bf16.msra.mxu0 %v3617
        %4722 = vmatprep.subr.bf16.mxu0 %v3610
        %4723 = vmatpush1.bf16.msra.mxu0 %v3609
        %4724 = vmatprep.subr.bf16.mxu0 %v3730
        %4725 = vmatpush2.bf16.msra.mxu0 %v3729
        %4726 = vmatprep.subr.bf16.mxu0 %v3722
        %4727 = vmatpush2.bf16.msra.mxu0 %v3721
        %4728 = vmatprep.subr.bf16.mxu0 %v3714
        %4729 = vmatpush2.bf16.msra.mxu0 %v3713
        %4730 = vmatprep.subr.bf16.mxu0 %v3706
        %4731 = vmatpush2.bf16.msra.mxu0 %v3705
        %4732 = vmatprep.subr.bf16.mxu0 %v3698
        %4733 = vmatpush2.bf16.msra.mxu0 %v3697
        %4734 = vmatprep.subr.bf16.mxu0 %v3690
        %4735 = vmatpush2.bf16.msra.mxu0 %v3689
        %4736 = vmatprep.subr.bf16.mxu0 %v3682
        %4737 = vmatpush2.bf16.msra.mxu0 %v3681
        %4738 = vmatprep.subr.bf16.mxu0 %v3674
        %4739 = vmatpush2.bf16.msra.mxu0 %v3673
        %4740 = vmatprep.mubr.bf16.mxu0 %v1384
        %4741 = vmatmul.mubr.bf16.gmra.mxu0 %v1383
        %v4742 = vpop.f32.mrf.mxu0
        %v4743 = vadd.f32 %v4702, %v4742
        %v4744 = vpop.f32.mrf.mxu0
        %v4745 = vadd.f32 %v4704, %v4744
        %v4746 = vpop.f32.mrf.mxu0
        %v4747 = vpop.f32.mrf.mxu0
        %4748 = vdwg.mxu0
        %4749 = vmatprep.subr.bf16.mxu0 %v3794
        %4750 = vmatpush1.bf16.msra.mxu0 %v3793
        %4751 = vmatprep.subr.bf16.mxu0 %v3786
        %4752 = vmatpush1.bf16.msra.mxu0 %v3785
        %4753 = vmatprep.subr.bf16.mxu0 %v3778
        %4754 = vmatpush1.bf16.msra.mxu0 %v3777
        %4755 = vmatprep.subr.bf16.mxu0 %v3770
        %4756 = vmatpush1.bf16.msra.mxu0 %v3769
        %4757 = vmatprep.subr.bf16.mxu0 %v3762
        %4758 = vmatpush1.bf16.msra.mxu0 %v3761
        %4759 = vmatprep.subr.bf16.mxu0 %v3754
        %4760 = vmatpush1.bf16.msra.mxu0 %v3753
        %4761 = vmatprep.subr.bf16.mxu0 %v3746
        %4762 = vmatpush1.bf16.msra.mxu0 %v3745
        %4763 = vmatprep.subr.bf16.mxu0 %v3738
        %4764 = vmatpush1.bf16.msra.mxu0 %v3737
        %4765 = vmatprep.subr.bf16.mxu0 %v3858
        %4766 = vmatpush2.bf16.msra.mxu0 %v3857
        %4767 = vmatprep.subr.bf16.mxu0 %v3850
        %4768 = vmatpush2.bf16.msra.mxu0 %v3849
        %4769 = vmatprep.subr.bf16.mxu0 %v3842
        %4770 = vmatpush2.bf16.msra.mxu0 %v3841
        %4771 = vmatprep.subr.bf16.mxu0 %v3834
        %4772 = vmatpush2.bf16.msra.mxu0 %v3833
        %4773 = vmatprep.subr.bf16.mxu0 %v3826
        %4774 = vmatpush2.bf16.msra.mxu0 %v3825
        %4775 = vmatprep.subr.bf16.mxu0 %v3818
        %4776 = vmatpush2.bf16.msra.mxu0 %v3817
        %4777 = vmatprep.subr.bf16.mxu0 %v3810
        %4778 = vmatpush2.bf16.msra.mxu0 %v3809
        %4779 = vmatprep.subr.bf16.mxu0 %v3802
        %4780 = vmatpush2.bf16.msra.mxu0 %v3801
        %4781 = vmatprep.mubr.bf16.mxu0 %v1386
        %4782 = vmatmul.mubr.bf16.gmra.mxu0 %v1385
        %v4783 = vpop.f32.mrf.mxu0
        %v4784 = vadd.f32 %v4743, %v4783
        %v4785 = vpop.f32.mrf.mxu0
        %v4786 = vadd.f32 %v4745, %v4785
        %v4787 = vpop.f32.mrf.mxu0
        %v4788 = vpop.f32.mrf.mxu0
        %4789 = vdwg.mxu0
        %4790 = vmatprep.subr.bf16.mxu0 %v3922
        %4791 = vmatpush1.bf16.msra.mxu0 %v3921
        %4792 = vmatprep.subr.bf16.mxu0 %v3914
        %4793 = vmatpush1.bf16.msra.mxu0 %v3913
        %4794 = vmatprep.subr.bf16.mxu0 %v3906
        %4795 = vmatpush1.bf16.msra.mxu0 %v3905
        %4796 = vmatprep.subr.bf16.mxu0 %v3898
        %4797 = vmatpush1.bf16.msra.mxu0 %v3897
        %4798 = vmatprep.subr.bf16.mxu0 %v3890
        %4799 = vmatpush1.bf16.msra.mxu0 %v3889
        %4800 = vmatprep.subr.bf16.mxu0 %v3882
        %4801 = vmatpush1.bf16.msra.mxu0 %v3881
        %4802 = vmatprep.subr.bf16.mxu0 %v3874
        %4803 = vmatpush1.bf16.msra.mxu0 %v3873
        %4804 = vmatprep.subr.bf16.mxu0 %v3866
        %4805 = vmatpush1.bf16.msra.mxu0 %v3865
        %4806 = vmatprep.subr.bf16.mxu0 %v3986
        %4807 = vmatpush2.bf16.msra.mxu0 %v3985
        %4808 = vmatprep.subr.bf16.mxu0 %v3978
        %4809 = vmatpush2.bf16.msra.mxu0 %v3977
        %4810 = vmatprep.subr.bf16.mxu0 %v3970
        %4811 = vmatpush2.bf16.msra.mxu0 %v3969
        %4812 = vmatprep.subr.bf16.mxu0 %v3962
        %4813 = vmatpush2.bf16.msra.mxu0 %v3961
        %4814 = vmatprep.subr.bf16.mxu0 %v3954
        %4815 = vmatpush2.bf16.msra.mxu0 %v3953
        %4816 = vmatprep.subr.bf16.mxu0 %v3946
        %4817 = vmatpush2.bf16.msra.mxu0 %v3945
        %4818 = vmatprep.subr.bf16.mxu0 %v3938
        %4819 = vmatpush2.bf16.msra.mxu0 %v3937
        %4820 = vmatprep.subr.bf16.mxu0 %v3930
        %4821 = vmatpush2.bf16.msra.mxu0 %v3929
        %4822 = vmatprep.mubr.bf16.mxu0 %v1388
        %4823 = vmatmul.mubr.bf16.gmra.mxu0 %v1387
        %v4824 = vpop.f32.mrf.mxu0
        %v4825 = vadd.f32 %v4784, %v4824
        %v4826 = vpop.f32.mrf.mxu0
        %v4827 = vadd.f32 %v4786, %v4826
        %v4828 = vpop.f32.mrf.mxu0
        %v4829 = vpop.f32.mrf.mxu0
        %4830 = vdwg.mxu0
        %4831 = vmatprep.subr.bf16.mxu0 %v3540
        %4832 = vmatpush1.bf16.msra.mxu0 %v3539
        %4833 = vmatprep.subr.bf16.mxu0 %v3532
        %4834 = vmatpush1.bf16.msra.mxu0 %v3531
        %4835 = vmatprep.subr.bf16.mxu0 %v3524
        %4836 = vmatpush1.bf16.msra.mxu0 %v3523
        %4837 = vmatprep.subr.bf16.mxu0 %v3516
        %4838 = vmatpush1.bf16.msra.mxu0 %v3515
        %4839 = vmatprep.subr.bf16.mxu0 %v3508
        %4840 = vmatpush1.bf16.msra.mxu0 %v3507
        %4841 = vmatprep.subr.bf16.mxu0 %v3500
        %4842 = vmatpush1.bf16.msra.mxu0 %v3499
        %4843 = vmatprep.subr.bf16.mxu0 %v3492
        %4844 = vmatpush1.bf16.msra.mxu0 %v3491
        %4845 = vmatprep.subr.bf16.mxu0 %v3484
        %4846 = vmatpush1.bf16.msra.mxu0 %v3483
        %4847 = vmatprep.subr.bf16.mxu0 %v3604
        %4848 = vmatpush2.bf16.msra.mxu0 %v3603
        %4849 = vmatprep.subr.bf16.mxu0 %v3596
        %4850 = vmatpush2.bf16.msra.mxu0 %v3595
        %4851 = vmatprep.subr.bf16.mxu0 %v3588
        %4852 = vmatpush2.bf16.msra.mxu0 %v3587
        %4853 = vmatprep.subr.bf16.mxu0 %v3580
        %4854 = vmatpush2.bf16.msra.mxu0 %v3579
        %4855 = vmatprep.subr.bf16.mxu0 %v3572
        %4856 = vmatpush2.bf16.msra.mxu0 %v3571
        %4857 = vmatprep.subr.bf16.mxu0 %v3564
        %4858 = vmatpush2.bf16.msra.mxu0 %v3563
        %4859 = vmatprep.subr.bf16.mxu0 %v3556
        %4860 = vmatpush2.bf16.msra.mxu0 %v3555
        %4861 = vmatprep.subr.bf16.mxu0 %v3548
        %4862 = vmatpush2.bf16.msra.mxu0 %v3547
        %4863 = vmatprep.mubr.bf16.mxu0 %v1382
        %4864 = vmatmul.mubr.bf16.gmra.mxu0 %v1381
        %v4865 = vpop.f32.mrf.mxu0
        %v4866 = vadd.f32 %v1922, %v4865
        %v4867 = vpop.f32.mrf.mxu0
        %v4868 = vadd.f32 %v1926, %v4867
        %v4869 = vpop.f32.mrf.mxu0
        %v4870 = vpop.f32.mrf.mxu0
        %4871 = vdwg.mxu0
        %4872 = vmatprep.subr.bf16.mxu0 %v3668
        %4873 = vmatpush1.bf16.msra.mxu0 %v3667
        %4874 = vmatprep.subr.bf16.mxu0 %v3660
        %4875 = vmatpush1.bf16.msra.mxu0 %v3659
        %4876 = vmatprep.subr.bf16.mxu0 %v3652
        %4877 = vmatpush1.bf16.msra.mxu0 %v3651
        %4878 = vmatprep.subr.bf16.mxu0 %v3644
        %4879 = vmatpush1.bf16.msra.mxu0 %v3643
        %4880 = vmatprep.subr.bf16.mxu0 %v3636
        %4881 = vmatpush1.bf16.msra.mxu0 %v3635
        %4882 = vmatprep.subr.bf16.mxu0 %v3628
        %4883 = vmatpush1.bf16.msra.mxu0 %v3627
        %4884 = vmatprep.subr.bf16.mxu0 %v3620
        %4885 = vmatpush1.bf16.msra.mxu0 %v3619
        %4886 = vmatprep.subr.bf16.mxu0 %v3612
        %4887 = vmatpush1.bf16.msra.mxu0 %v3611
        %4888 = vmatprep.subr.bf16.mxu0 %v3732
        %4889 = vmatpush2.bf16.msra.mxu0 %v3731
        %4890 = vmatprep.subr.bf16.mxu0 %v3724
        %4891 = vmatpush2.bf16.msra.mxu0 %v3723
        %4892 = vmatprep.subr.bf16.mxu0 %v3716
        %4893 = vmatpush2.bf16.msra.mxu0 %v3715
        %4894 = vmatprep.subr.bf16.mxu0 %v3708
        %4895 = vmatpush2.bf16.msra.mxu0 %v3707
        %4896 = vmatprep.subr.bf16.mxu0 %v3700
        %4897 = vmatpush2.bf16.msra.mxu0 %v3699
        %4898 = vmatprep.subr.bf16.mxu0 %v3692
        %4899 = vmatpush2.bf16.msra.mxu0 %v3691
        %4900 = vmatprep.subr.bf16.mxu0 %v3684
        %4901 = vmatpush2.bf16.msra.mxu0 %v3683
        %4902 = vmatprep.subr.bf16.mxu0 %v3676
        %4903 = vmatpush2.bf16.msra.mxu0 %v3675
        %4904 = vmatprep.mubr.bf16.mxu0 %v1384
        %4905 = vmatmul.mubr.bf16.gmra.mxu0 %v1383
        %v4906 = vpop.f32.mrf.mxu0
        %v4907 = vadd.f32 %v4866, %v4906
        %v4908 = vpop.f32.mrf.mxu0
        %v4909 = vadd.f32 %v4868, %v4908
        %v4910 = vpop.f32.mrf.mxu0
        %v4911 = vpop.f32.mrf.mxu0
        %4912 = vdwg.mxu0
        %4913 = vmatprep.subr.bf16.mxu0 %v3796
        %4914 = vmatpush1.bf16.msra.mxu0 %v3795
        %4915 = vmatprep.subr.bf16.mxu0 %v3788
        %4916 = vmatpush1.bf16.msra.mxu0 %v3787
        %4917 = vmatprep.subr.bf16.mxu0 %v3780
        %4918 = vmatpush1.bf16.msra.mxu0 %v3779
        %4919 = vmatprep.subr.bf16.mxu0 %v3772
        %4920 = vmatpush1.bf16.msra.mxu0 %v3771
        %4921 = vmatprep.subr.bf16.mxu0 %v3764
        %4922 = vmatpush1.bf16.msra.mxu0 %v3763
        %4923 = vmatprep.subr.bf16.mxu0 %v3756
        %4924 = vmatpush1.bf16.msra.mxu0 %v3755
        %4925 = vmatprep.subr.bf16.mxu0 %v3748
        %4926 = vmatpush1.bf16.msra.mxu0 %v3747
        %4927 = vmatprep.subr.bf16.mxu0 %v3740
        %4928 = vmatpush1.bf16.msra.mxu0 %v3739
        %4929 = vmatprep.subr.bf16.mxu0 %v3860
        %4930 = vmatpush2.bf16.msra.mxu0 %v3859
        %4931 = vmatprep.subr.bf16.mxu0 %v3852
        %4932 = vmatpush2.bf16.msra.mxu0 %v3851
        %4933 = vmatprep.subr.bf16.mxu0 %v3844
        %4934 = vmatpush2.bf16.msra.mxu0 %v3843
        %4935 = vmatprep.subr.bf16.mxu0 %v3836
        %4936 = vmatpush2.bf16.msra.mxu0 %v3835
        %4937 = vmatprep.subr.bf16.mxu0 %v3828
        %4938 = vmatpush2.bf16.msra.mxu0 %v3827
        %4939 = vmatprep.subr.bf16.mxu0 %v3820
        %4940 = vmatpush2.bf16.msra.mxu0 %v3819
        %4941 = vmatprep.subr.bf16.mxu0 %v3812
        %4942 = vmatpush2.bf16.msra.mxu0 %v3811
        %4943 = vmatprep.subr.bf16.mxu0 %v3804
        %4944 = vmatpush2.bf16.msra.mxu0 %v3803
        %4945 = vmatprep.mubr.bf16.mxu0 %v1386
        %4946 = vmatmul.mubr.bf16.gmra.mxu0 %v1385
        %v4947 = vpop.f32.mrf.mxu0
        %v4948 = vadd.f32 %v4907, %v4947
        %v4949 = vpop.f32.mrf.mxu0
        %v4950 = vadd.f32 %v4909, %v4949
        %v4951 = vpop.f32.mrf.mxu0
        %v4952 = vpop.f32.mrf.mxu0
        %4953 = vdwg.mxu0
        %4954 = vmatprep.subr.bf16.mxu0 %v3924
        %4955 = vmatpush1.bf16.msra.mxu0 %v3923
        %4956 = vmatprep.subr.bf16.mxu0 %v3916
        %4957 = vmatpush1.bf16.msra.mxu0 %v3915
        %4958 = vmatprep.subr.bf16.mxu0 %v3908
        %4959 = vmatpush1.bf16.msra.mxu0 %v3907
        %4960 = vmatprep.subr.bf16.mxu0 %v3900
        %4961 = vmatpush1.bf16.msra.mxu0 %v3899
        %4962 = vmatprep.subr.bf16.mxu0 %v3892
        %4963 = vmatpush1.bf16.msra.mxu0 %v3891
        %4964 = vmatprep.subr.bf16.mxu0 %v3884
        %4965 = vmatpush1.bf16.msra.mxu0 %v3883
        %4966 = vmatprep.subr.bf16.mxu0 %v3876
        %4967 = vmatpush1.bf16.msra.mxu0 %v3875
        %4968 = vmatprep.subr.bf16.mxu0 %v3868
        %4969 = vmatpush1.bf16.msra.mxu0 %v3867
        %4970 = vmatprep.subr.bf16.mxu0 %v3988
        %4971 = vmatpush2.bf16.msra.mxu0 %v3987
        %4972 = vmatprep.subr.bf16.mxu0 %v3980
        %4973 = vmatpush2.bf16.msra.mxu0 %v3979
        %4974 = vmatprep.subr.bf16.mxu0 %v3972
        %4975 = vmatpush2.bf16.msra.mxu0 %v3971
        %4976 = vmatprep.subr.bf16.mxu0 %v3964
        %4977 = vmatpush2.bf16.msra.mxu0 %v3963
        %4978 = vmatprep.subr.bf16.mxu0 %v3956
        %4979 = vmatpush2.bf16.msra.mxu0 %v3955
        %4980 = vmatprep.subr.bf16.mxu0 %v3948
        %4981 = vmatpush2.bf16.msra.mxu0 %v3947
        %4982 = vmatprep.subr.bf16.mxu0 %v3940
        %4983 = vmatpush2.bf16.msra.mxu0 %v3939
        %4984 = vmatprep.subr.bf16.mxu0 %v3932
        %4985 = vmatpush2.bf16.msra.mxu0 %v3931
        %4986 = vmatprep.mubr.bf16.mxu0 %v1388
        %4987 = vmatmul.mubr.bf16.gmra.mxu0 %v1387
        %v4988 = vpop.f32.mrf.mxu0
        %v4989 = vadd.f32 %v4948, %v4988
        %v4990 = vpop.f32.mrf.mxu0
        %v4991 = vadd.f32 %v4950, %v4990
        %v4992 = vpop.f32.mrf.mxu0
        %v4993 = vpop.f32.mrf.mxu0
        %4994 = vdwg.mxu0
        %4995 = vmatprep.subr.bf16.mxu0 %v3542
        %4996 = vmatpush1.bf16.msra.mxu0 %v3541
        %4997 = vmatprep.subr.bf16.mxu0 %v3534
        %4998 = vmatpush1.bf16.msra.mxu0 %v3533
        %4999 = vmatprep.subr.bf16.mxu0 %v3526
        %5000 = vmatpush1.bf16.msra.mxu0 %v3525
        %5001 = vmatprep.subr.bf16.mxu0 %v3518
        %5002 = vmatpush1.bf16.msra.mxu0 %v3517
        %5003 = vmatprep.subr.bf16.mxu0 %v3510
        %5004 = vmatpush1.bf16.msra.mxu0 %v3509
        %5005 = vmatprep.subr.bf16.mxu0 %v3502
        %5006 = vmatpush1.bf16.msra.mxu0 %v3501
        %5007 = vmatprep.subr.bf16.mxu0 %v3494
        %5008 = vmatpush1.bf16.msra.mxu0 %v3493
        %5009 = vmatprep.subr.bf16.mxu0 %v3486
        %5010 = vmatpush1.bf16.msra.mxu0 %v3485
        %5011 = vmatprep.subr.bf16.mxu0 %v3606
        %5012 = vmatpush2.bf16.msra.mxu0 %v3605
        %5013 = vmatprep.subr.bf16.mxu0 %v3598
        %5014 = vmatpush2.bf16.msra.mxu0 %v3597
        %5015 = vmatprep.subr.bf16.mxu0 %v3590
        %5016 = vmatpush2.bf16.msra.mxu0 %v3589
        %5017 = vmatprep.subr.bf16.mxu0 %v3582
        %5018 = vmatpush2.bf16.msra.mxu0 %v3581
        %5019 = vmatprep.subr.bf16.mxu0 %v3574
        %5020 = vmatpush2.bf16.msra.mxu0 %v3573
        %5021 = vmatprep.subr.bf16.mxu0 %v3566
        %5022 = vmatpush2.bf16.msra.mxu0 %v3565
        %5023 = vmatprep.subr.bf16.mxu0 %v3558
        %5024 = vmatpush2.bf16.msra.mxu0 %v3557
        %5025 = vmatprep.subr.bf16.mxu0 %v3550
        %5026 = vmatpush2.bf16.msra.mxu0 %v3549
        %5027 = vmatprep.mubr.bf16.mxu0 %v1382
        %5028 = vmatmul.mubr.bf16.gmra.mxu0 %v1381
        %v5029 = vpop.f32.mrf.mxu0
        %v5030 = vadd.f32 %v1930, %v5029
        %v5031 = vpop.f32.mrf.mxu0
        %v5032 = vadd.f32 %v1934, %v5031
        %v5033 = vpop.f32.mrf.mxu0
        %v5034 = vpop.f32.mrf.mxu0
        %5035 = vdwg.mxu0
        %5036 = vmatprep.subr.bf16.mxu0 %v3670
        %5037 = vmatpush1.bf16.msra.mxu0 %v3669
        %5038 = vmatprep.subr.bf16.mxu0 %v3662
        %5039 = vmatpush1.bf16.msra.mxu0 %v3661
        %5040 = vmatprep.subr.bf16.mxu0 %v3654
        %5041 = vmatpush1.bf16.msra.mxu0 %v3653
        %5042 = vmatprep.subr.bf16.mxu0 %v3646
        %5043 = vmatpush1.bf16.msra.mxu0 %v3645
        %5044 = vmatprep.subr.bf16.mxu0 %v3638
        %5045 = vmatpush1.bf16.msra.mxu0 %v3637
        %5046 = vmatprep.subr.bf16.mxu0 %v3630
        %5047 = vmatpush1.bf16.msra.mxu0 %v3629
        %5048 = vmatprep.subr.bf16.mxu0 %v3622
        %5049 = vmatpush1.bf16.msra.mxu0 %v3621
        %5050 = vmatprep.subr.bf16.mxu0 %v3614
        %5051 = vmatpush1.bf16.msra.mxu0 %v3613
        %5052 = vmatprep.subr.bf16.mxu0 %v3734
        %5053 = vmatpush2.bf16.msra.mxu0 %v3733
        %5054 = vmatprep.subr.bf16.mxu0 %v3726
        %5055 = vmatpush2.bf16.msra.mxu0 %v3725
        %5056 = vmatprep.subr.bf16.mxu0 %v3718
        %5057 = vmatpush2.bf16.msra.mxu0 %v3717
        %5058 = vmatprep.subr.bf16.mxu0 %v3710
        %5059 = vmatpush2.bf16.msra.mxu0 %v3709
        %5060 = vmatprep.subr.bf16.mxu0 %v3702
        %5061 = vmatpush2.bf16.msra.mxu0 %v3701
        %5062 = vmatprep.subr.bf16.mxu0 %v3694
        %5063 = vmatpush2.bf16.msra.mxu0 %v3693
        %5064 = vmatprep.subr.bf16.mxu0 %v3686
        %5065 = vmatpush2.bf16.msra.mxu0 %v3685
        %5066 = vmatprep.subr.bf16.mxu0 %v3678
        %5067 = vmatpush2.bf16.msra.mxu0 %v3677
        %5068 = vmatprep.mubr.bf16.mxu0 %v1384
        %5069 = vmatmul.mubr.bf16.gmra.mxu0 %v1383
        %v5070 = vpop.f32.mrf.mxu0
        %v5071 = vadd.f32 %v5030, %v5070
        %v5072 = vpop.f32.mrf.mxu0
        %v5073 = vadd.f32 %v5032, %v5072
        %v5074 = vpop.f32.mrf.mxu0
        %v5075 = vpop.f32.mrf.mxu0
        %5076 = vdwg.mxu0
        %5077 = vmatprep.subr.bf16.mxu0 %v3798
        %5078 = vmatpush1.bf16.msra.mxu0 %v3797
        %5079 = vmatprep.subr.bf16.mxu0 %v3790
        %5080 = vmatpush1.bf16.msra.mxu0 %v3789
        %5081 = vmatprep.subr.bf16.mxu0 %v3782
        %5082 = vmatpush1.bf16.msra.mxu0 %v3781
        %5083 = vmatprep.subr.bf16.mxu0 %v3774
        %5084 = vmatpush1.bf16.msra.mxu0 %v3773
        %5085 = vmatprep.subr.bf16.mxu0 %v3766
        %5086 = vmatpush1.bf16.msra.mxu0 %v3765
        %5087 = vmatprep.subr.bf16.mxu0 %v3758
        %5088 = vmatpush1.bf16.msra.mxu0 %v3757
        %5089 = vmatprep.subr.bf16.mxu0 %v3750
        %5090 = vmatpush1.bf16.msra.mxu0 %v3749
        %5091 = vmatprep.subr.bf16.mxu0 %v3742
        %5092 = vmatpush1.bf16.msra.mxu0 %v3741
        %5093 = vmatprep.subr.bf16.mxu0 %v3862
        %5094 = vmatpush2.bf16.msra.mxu0 %v3861
        %5095 = vmatprep.subr.bf16.mxu0 %v3854
        %5096 = vmatpush2.bf16.msra.mxu0 %v3853
        %5097 = vmatprep.subr.bf16.mxu0 %v3846
        %5098 = vmatpush2.bf16.msra.mxu0 %v3845
        %5099 = vmatprep.subr.bf16.mxu0 %v3838
        %5100 = vmatpush2.bf16.msra.mxu0 %v3837
        %5101 = vmatprep.subr.bf16.mxu0 %v3830
        %5102 = vmatpush2.bf16.msra.mxu0 %v3829
        %5103 = vmatprep.subr.bf16.mxu0 %v3822
        %5104 = vmatpush2.bf16.msra.mxu0 %v3821
        %5105 = vmatprep.subr.bf16.mxu0 %v3814
        %5106 = vmatpush2.bf16.msra.mxu0 %v3813
        %5107 = vmatprep.subr.bf16.mxu0 %v3806
        %5108 = vmatpush2.bf16.msra.mxu0 %v3805
        %5109 = vmatprep.mubr.bf16.mxu0 %v1386
        %5110 = vmatmul.mubr.bf16.gmra.mxu0 %v1385
        %v5111 = vpop.f32.mrf.mxu0
        %v5112 = vadd.f32 %v5071, %v5111
        %v5113 = vpop.f32.mrf.mxu0
        %v5114 = vadd.f32 %v5073, %v5113
        %v5115 = vpop.f32.mrf.mxu0
        %v5116 = vpop.f32.mrf.mxu0
        %5117 = vdwg.mxu0
        %5118 = vmatprep.subr.bf16.mxu0 %v3926
        %5119 = vmatpush1.bf16.msra.mxu0 %v3925
        %5120 = vmatprep.subr.bf16.mxu0 %v3918
        %5121 = vmatpush1.bf16.msra.mxu0 %v3917
        %5122 = vmatprep.subr.bf16.mxu0 %v3910
        %5123 = vmatpush1.bf16.msra.mxu0 %v3909
        %5124 = vmatprep.subr.bf16.mxu0 %v3902
        %5125 = vmatpush1.bf16.msra.mxu0 %v3901
        %5126 = vmatprep.subr.bf16.mxu0 %v3894
        %5127 = vmatpush1.bf16.msra.mxu0 %v3893
        %5128 = vmatprep.subr.bf16.mxu0 %v3886
        %5129 = vmatpush1.bf16.msra.mxu0 %v3885
        %5130 = vmatprep.subr.bf16.mxu0 %v3878
        %5131 = vmatpush1.bf16.msra.mxu0 %v3877
        %5132 = vmatprep.subr.bf16.mxu0 %v3870
        %5133 = vmatpush1.bf16.msra.mxu0 %v3869
        %5134 = vmatprep.subr.bf16.mxu0 %v3990
        %5135 = vmatpush2.bf16.msra.mxu0 %v3989
        %5136 = vmatprep.subr.bf16.mxu0 %v3982
        %5137 = vmatpush2.bf16.msra.mxu0 %v3981
        %5138 = vmatprep.subr.bf16.mxu0 %v3974
        %5139 = vmatpush2.bf16.msra.mxu0 %v3973
        %5140 = vmatprep.subr.bf16.mxu0 %v3966
        %5141 = vmatpush2.bf16.msra.mxu0 %v3965
        %5142 = vmatprep.subr.bf16.mxu0 %v3958
        %5143 = vmatpush2.bf16.msra.mxu0 %v3957
        %5144 = vmatprep.subr.bf16.mxu0 %v3950
        %5145 = vmatpush2.bf16.msra.mxu0 %v3949
        %5146 = vmatprep.subr.bf16.mxu0 %v3942
        %5147 = vmatpush2.bf16.msra.mxu0 %v3941
        %5148 = vmatprep.subr.bf16.mxu0 %v3934
        %5149 = vmatpush2.bf16.msra.mxu0 %v3933
        %5150 = vmatprep.mubr.bf16.mxu0 %v1388
        %5151 = vmatmul.mubr.bf16.gmra.mxu0 %v1387
        %v5152 = vpop.f32.mrf.mxu0
        %v5153 = vadd.f32 %v5112, %v5152
        %v5154 = vpop.f32.mrf.mxu0
        %v5155 = vadd.f32 %v5114, %v5154
        %v5156 = vpop.f32.mrf.mxu0
        %v5157 = vpop.f32.mrf.mxu0
        %5158 = vdwg.mxu0
        %v5159 = vsel %vm1103, %v4661, 0.0
        %v5160 = vrot.slane %v5159, 4
        %v5161 = vadd.f32 %v5159, %v5160
        %v5162 = vrot.slane %v5161, 2
        %v5163 = vadd.f32 %v5161, %v5162
        %v5164 = vrot.slane %v5163, 1
        %v5165 = vadd.f32 %v5163, %v5164
        %v5166 = vsel %vm1103, %v4663, 0.0
        %v5167 = vrot.slane %v5166, 4
        %v5168 = vadd.f32 %v5166, %v5167
        %v5169 = vrot.slane %v5168, 2
        %v5170 = vadd.f32 %v5168, %v5169
        %v5171 = vrot.slane %v5170, 1
        %v5172 = vadd.f32 %v5170, %v5171
        %v5173 = vsel %vm1103, %v4825, 0.0
        %v5174 = vrot.slane %v5173, 4
        %v5175 = vadd.f32 %v5173, %v5174
        %v5176 = vrot.slane %v5175, 2
        %v5177 = vadd.f32 %v5175, %v5176
        %v5178 = vrot.slane %v5177, 1
        %v5179 = vadd.f32 %v5177, %v5178
        %v5180 = vsel %vm1103, %v4827, 0.0
        %v5181 = vrot.slane %v5180, 4
        %v5182 = vadd.f32 %v5180, %v5181
        %v5183 = vrot.slane %v5182, 2
        %v5184 = vadd.f32 %v5182, %v5183
        %v5185 = vrot.slane %v5184, 1
        %v5186 = vadd.f32 %v5184, %v5185
        %v5187 = vsel %vm1103, %v4989, 0.0
        %v5188 = vrot.slane %v5187, 4
        %v5189 = vadd.f32 %v5187, %v5188
        %v5190 = vrot.slane %v5189, 2
        %v5191 = vadd.f32 %v5189, %v5190
        %v5192 = vrot.slane %v5191, 1
        %v5193 = vadd.f32 %v5191, %v5192
        %v5194 = vsel %vm1103, %v4991, 0.0
        %v5195 = vrot.slane %v5194, 4
        %v5196 = vadd.f32 %v5194, %v5195
        %v5197 = vrot.slane %v5196, 2
        %v5198 = vadd.f32 %v5196, %v5197
        %v5199 = vrot.slane %v5198, 1
        %v5200 = vadd.f32 %v5198, %v5199
        %v5201 = vsel %vm1103, %v5153, 0.0
        %v5202 = vrot.slane %v5201, 4
        %v5203 = vadd.f32 %v5201, %v5202
        %v5204 = vrot.slane %v5203, 2
        %v5205 = vadd.f32 %v5203, %v5204
        %v5206 = vrot.slane %v5205, 1
        %v5207 = vadd.f32 %v5205, %v5206
        %v5208 = vsel %vm1103, %v5155, 0.0
        %v5209 = vrot.slane %v5208, 4
        %v5210 = vadd.f32 %v5208, %v5209
        %v5211 = vrot.slane %v5210, 2
        %v5212 = vadd.f32 %v5210, %v5211
        %v5213 = vrot.slane %v5212, 1
        %v5214 = vadd.f32 %v5212, %v5213
        %v5215 = vmul.f32 %v5165, %v1160
        %v5216 = vmul.f32 %v5172, %v1160
        %v5217 = vmul.f32 %v5179, %v1160
        %v5218 = vmul.f32 %v5186, %v1160
        %v5219 = vmul.f32 %v5193, %v1160
        %v5220 = vmul.f32 %v5200, %v1160
        %v5221 = vmul.f32 %v5207, %v1160
        %v5222 = vmul.f32 %v5214, %v1160
        %v5223 = vsub.f32 %v4661, %v5215
        %v5224 = vsub.f32 %v4663, %v5216
        %v5225 = vsub.f32 %v4825, %v5217
        %v5226 = vsub.f32 %v4827, %v5218
        %v5227 = vsub.f32 %v4989, %v5219
        %v5228 = vsub.f32 %v4991, %v5220
        %v5229 = vsub.f32 %v5153, %v5221
        %v5230 = vsub.f32 %v5155, %v5222
        %v5231 = vmul.f32 %v5223, %v5223
        %v5232 = vmul.f32 %v5224, %v5224
        %v5233 = vmul.f32 %v5225, %v5225
        %v5234 = vmul.f32 %v5226, %v5226
        %v5235 = vmul.f32 %v5227, %v5227
        %v5236 = vmul.f32 %v5228, %v5228
        %v5237 = vmul.f32 %v5229, %v5229
        %v5238 = vmul.f32 %v5230, %v5230
        %v5239 = vsel %vm1103, %v5231, 0.0
        %v5240 = vrot.slane %v5239, 4
        %v5241 = vadd.f32 %v5239, %v5240
        %v5242 = vrot.slane %v5241, 2
        %v5243 = vadd.f32 %v5241, %v5242
        %v5244 = vrot.slane %v5243, 1
        %v5245 = vadd.f32 %v5243, %v5244
        %v5246 = vsel %vm1103, %v5232, 0.0
        %v5247 = vrot.slane %v5246, 4
        %v5248 = vadd.f32 %v5246, %v5247
        %v5249 = vrot.slane %v5248, 2
        %v5250 = vadd.f32 %v5248, %v5249
        %v5251 = vrot.slane %v5250, 1
        %v5252 = vadd.f32 %v5250, %v5251
        %v5253 = vsel %vm1103, %v5233, 0.0
        %v5254 = vrot.slane %v5253, 4
        %v5255 = vadd.f32 %v5253, %v5254
        %v5256 = vrot.slane %v5255, 2
        %v5257 = vadd.f32 %v5255, %v5256
        %v5258 = vrot.slane %v5257, 1
        %v5259 = vadd.f32 %v5257, %v5258
        %v5260 = vsel %vm1103, %v5234, 0.0
        %v5261 = vrot.slane %v5260, 4
        %v5262 = vadd.f32 %v5260, %v5261
        %v5263 = vrot.slane %v5262, 2
        %v5264 = vadd.f32 %v5262, %v5263
        %v5265 = vrot.slane %v5264, 1
        %v5266 = vadd.f32 %v5264, %v5265
        %v5267 = vsel %vm1103, %v5235, 0.0
        %v5268 = vrot.slane %v5267, 4
        %v5269 = vadd.f32 %v5267, %v5268
        %v5270 = vrot.slane %v5269, 2
        %v5271 = vadd.f32 %v5269, %v5270
        %v5272 = vrot.slane %v5271, 1
        %v5273 = vadd.f32 %v5271, %v5272
        %v5274 = vsel %vm1103, %v5236, 0.0
        %v5275 = vrot.slane %v5274, 4
        %v5276 = vadd.f32 %v5274, %v5275
        %v5277 = vrot.slane %v5276, 2
        %v5278 = vadd.f32 %v5276, %v5277
        %v5279 = vrot.slane %v5278, 1
        %v5280 = vadd.f32 %v5278, %v5279
        %v5281 = vsel %vm1103, %v5237, 0.0
        %v5282 = vrot.slane %v5281, 4
        %v5283 = vadd.f32 %v5281, %v5282
        %v5284 = vrot.slane %v5283, 2
        %v5285 = vadd.f32 %v5283, %v5284
        %v5286 = vrot.slane %v5285, 1
        %v5287 = vadd.f32 %v5285, %v5286
        %v5288 = vsel %vm1103, %v5238, 0.0
        %v5289 = vrot.slane %v5288, 4
        %v5290 = vadd.f32 %v5288, %v5289
        %v5291 = vrot.slane %v5290, 2
        %v5292 = vadd.f32 %v5290, %v5291
        %v5293 = vrot.slane %v5292, 1
        %v5294 = vadd.f32 %v5292, %v5293
        %v5295 = vmul.f32 %v5245, %v1160
        %v5296 = vmul.f32 %v5252, %v1160
        %v5297 = vmul.f32 %v5259, %v1160
        %v5298 = vmul.f32 %v5266, %v1160
        %v5299 = vmul.f32 %v5273, %v1160
        %v5300 = vmul.f32 %v5280, %v1160
        %v5301 = vmul.f32 %v5287, %v1160
        %v5302 = vmul.f32 %v5294, %v1160
        %v5303 = vadd.f32 %v5295, 1e-05
        %v5304 = vadd.f32 %v5296, 1e-05
        %v5305 = vadd.f32 %v5297, 1e-05
        %v5306 = vadd.f32 %v5298, 1e-05
        %v5307 = vadd.f32 %v5299, 1e-05
        %v5308 = vadd.f32 %v5300, 1e-05
        %v5309 = vadd.f32 %v5301, 1e-05
        %v5310 = vadd.f32 %v5302, 1e-05
        %v5311 = vrsqrt.pop %v5303
        %v5312 = vrsqrt.pop %v5304
        %v5313 = vrsqrt.pop %v5305
        %v5314 = vrsqrt.pop %v5306
        %v5315 = vrsqrt.pop %v5307
        %v5316 = vrsqrt.pop %v5308
        %v5317 = vrsqrt.pop %v5309
        %v5318 = vrsqrt.pop %v5310
        %v5319 = vmul.f32 %v5223, %v5311
        %v5320 = vmul.f32 %v5224, %v5312
        %v5321 = vmul.f32 %v5225, %v5313
        %v5322 = vmul.f32 %v5226, %v5314
        %v5323 = vmul.f32 %v5227, %v5315
        %v5324 = vmul.f32 %v5228, %v5316
        %v5325 = vmul.f32 %v5229, %v5317
        %v5326 = vmul.f32 %v5230, %v5318
        %v5327 = vld [vmem:[%s444] sm:$0xff]
        %v5329 = vlaneseq
        %v5330 = vshrl.u32 %v5329, 7
        %v5331 = vsub.s32 0, %v5330
        %v5332 = vrot.slane %v5327, %v5331
        %v5333 = vlaneseq
        %v5334 = vshrl.u32 %v5333, 7
        %v5335 = vsub.s32 1, %v5334
        %v5336 = vrot.slane %v5327, %v5335
        %v5337 = vlaneseq
        %v5338 = vshrl.u32 %v5337, 7
        %v5339 = vsub.s32 2, %v5338
        %v5340 = vrot.slane %v5327, %v5339
        %v5341 = vlaneseq
        %v5342 = vshrl.u32 %v5341, 7
        %v5343 = vsub.s32 3, %v5342
        %v5344 = vrot.slane %v5327, %v5343
        %v5345 = vlaneseq
        %v5346 = vshrl.u32 %v5345, 7
        %v5347 = vsub.s32 4, %v5346
        %v5348 = vrot.slane %v5327, %v5347
        %v5349 = vlaneseq
        %v5350 = vshrl.u32 %v5349, 7
        %v5351 = vsub.s32 5, %v5350
        %v5352 = vrot.slane %v5327, %v5351
        %v5353 = vlaneseq
        %v5354 = vshrl.u32 %v5353, 7
        %v5355 = vsub.s32 6, %v5354
        %v5356 = vrot.slane %v5327, %v5355
        %v5357 = vlaneseq
        %v5358 = vshrl.u32 %v5357, 7
        %v5359 = vsub.s32 7, %v5358
        %v5360 = vrot.slane %v5327, %v5359
        %v5369 = vmul.f32 %v5319, %v5332
        %v5370 = vmul.f32 %v5320, %v5336
        %v5371 = vmul.f32 %v5321, %v5340
        %v5372 = vmul.f32 %v5322, %v5344
        %v5373 = vmul.f32 %v5323, %v5348
        %v5374 = vmul.f32 %v5324, %v5352
        %v5375 = vmul.f32 %v5325, %v5356
        %v5376 = vmul.f32 %v5326, %v5360
        %v5377 = vld [vmem:[%s453] sm:$0xff]
        %v5379 = vlaneseq
        %v5380 = vshrl.u32 %v5379, 7
        %v5381 = vsub.s32 0, %v5380
        %v5382 = vrot.slane %v5377, %v5381
        %v5383 = vlaneseq
        %v5384 = vshrl.u32 %v5383, 7
        %v5385 = vsub.s32 1, %v5384
        %v5386 = vrot.slane %v5377, %v5385
        %v5387 = vlaneseq
        %v5388 = vshrl.u32 %v5387, 7
        %v5389 = vsub.s32 2, %v5388
        %v5390 = vrot.slane %v5377, %v5389
        %v5391 = vlaneseq
        %v5392 = vshrl.u32 %v5391, 7
        %v5393 = vsub.s32 3, %v5392
        %v5394 = vrot.slane %v5377, %v5393
        %v5395 = vlaneseq
        %v5396 = vshrl.u32 %v5395, 7
        %v5397 = vsub.s32 4, %v5396
        %v5398 = vrot.slane %v5377, %v5397
        %v5399 = vlaneseq
        %v5400 = vshrl.u32 %v5399, 7
        %v5401 = vsub.s32 5, %v5400
        %v5402 = vrot.slane %v5377, %v5401
        %v5403 = vlaneseq
        %v5404 = vshrl.u32 %v5403, 7
        %v5405 = vsub.s32 6, %v5404
        %v5406 = vrot.slane %v5377, %v5405
        %v5407 = vlaneseq
        %v5408 = vshrl.u32 %v5407, 7
        %v5409 = vsub.s32 7, %v5408
        %v5410 = vrot.slane %v5377, %v5409
        %v5419 = vadd.f32 %v5369, %v5382
        %v5420 = vadd.f32 %v5370, %v5386
        %v5421 = vadd.f32 %v5371, %v5390
        %v5422 = vadd.f32 %v5372, %v5394
        %v5423 = vadd.f32 %v5373, %v5398
        %v5424 = vadd.f32 %v5374, %v5402
        %v5425 = vadd.f32 %v5375, %v5406
        %v5426 = vadd.f32 %v5376, %v5410
        %v5427 = vmax.f32 %v5419, 0.0
        %v5428 = vmax.f32 %v5420, 0.0
        %v5429 = vmax.f32 %v5421, 0.0
        %v5430 = vmax.f32 %v5422, 0.0
        %v5431 = vmax.f32 %v5423, 0.0
        %v5432 = vmax.f32 %v5424, 0.0
        %v5433 = vmax.f32 %v5425, 0.0
        %v5434 = vmax.f32 %v5426, 0.0
        %v5435 = vpack.c.bf16 %v5427, %v5427
        %v5436 = vpack.c.bf16 %v5428, %v5428
        %v5437 = vpack.c.bf16 %v5429, %v5429
        %v5438 = vpack.c.bf16 %v5430, %v5430
        %v5439 = vpack.c.bf16 %v5431, %v5431
        %v5440 = vpack.c.bf16 %v5432, %v5432
        %v5441 = vpack.c.bf16 %v5433, %v5433
        %v5442 = vpack.c.bf16 %v5434, %v5434
        %v5451 = vcombine.low %v5435, %v5436
        %v5452 = vcombine.low %v5437, %v5438
        %v5453 = vcombine.low %v5439, %v5440
        %v5454 = vcombine.low %v5441, %v5442
        %v5456 = vunpack.c.l.s4 1966171168
        %v5457 = vunpack.c.0.s8 %v5456
        %v5458 = vlaneseq
        %v5459 = vshrl.u32 %v5458, 7
        %v5460 = vsub.s32 %v5457, %v5459
        %v5461 = vrot.slane %v5451, %v5460
        %v5463 = vunpack.c.l.s4 1966171168
        %v5464 = vunpack.c.0.s8 %v5463
        %v5465 = vlaneseq
        %v5466 = vshrl.u32 %v5465, 7
        %v5467 = vsub.s32 %v5464, %v5466
        %v5468 = vrot.slane %v5452, %v5467
        %v5470 = vunpack.c.l.s4 1966171168
        %v5471 = vunpack.c.0.s8 %v5470
        %v5472 = vlaneseq
        %v5473 = vshrl.u32 %v5472, 7
        %v5474 = vsub.s32 %v5471, %v5473
        %v5475 = vrot.slane %v5453, %v5474
        %v5477 = vunpack.c.l.s4 1966171168
        %v5478 = vunpack.c.0.s8 %v5477
        %v5479 = vlaneseq
        %v5480 = vshrl.u32 %v5479, 7
        %v5481 = vsub.s32 %v5478, %v5480
        %v5482 = vrot.slane %v5454, %v5481
        %v5483 = vcombine.low %v5461, %v5468
        %v5484 = vcombine.low %v5475, %v5482
        %v5486 = vunpack.c.l.s4 1966171168
        %v5487 = vunpack.c.0.s8 %v5486
        %v5488 = vlaneseq
        %v5489 = vshrl.u32 %v5488, 7
        %v5490 = vsub.s32 %v5487, %v5489
        %v5491 = vrot.slane %v5483, %v5490
        %v5493 = vunpack.c.l.s4 1966171168
        %v5494 = vunpack.c.0.s8 %v5493
        %v5495 = vlaneseq
        %v5496 = vshrl.u32 %v5495, 7
        %v5497 = vsub.s32 %v5494, %v5496
        %v5498 = vrot.slane %v5484, %v5497
        %v5499 = vcombine.low %v5491, %v5498
        %5501 = vst [vmem:[%s509] sm:$0xff] %v5499
        %s5502 = smul.u32 8, %s23
        %p5503 = scmp.lt.s32.totalorder %s5502, 15
        %s5504 = scalar_select %p5503, %s5502, 15
        %s5505 = scalar_lea.vmem %s9, %s5504
        // Predicated region
        $region89: #{_lambda_.3} parent=55 // pred_check
          %p5506 = pneg %p250
        $region90: #{_lambda_.3} parent=55 // pred_check_branch
          %5508 = sbr.rel (%p5506) target = $region92
        $region91: #{_lambda_.3} parent=55 // pred_region
          %s5509 = smul.u32 8, %s23
        $region92: #{_lambda_.3} parent=55 // pred_fallthru
          _
      $region56: #{_lambda_.3} parent=5 // pred_fallthru
        _
      %p5510 = scmp.le.s32.totalorder 2, %s18
      // Predicated region
      $region93: #{_lambda_.3} parent=5 // pred_check
        %p5511 = pneg %p5510
      $region94: #{_lambda_.3} parent=5 // pred_check_branch
        %5513 = sbr.rel (%p5511) target = $region96
      $region95: #{_lambda_.3} parent=5 // pred_region
        %s5514 = ssub.s32 %s18, 2
        // Predicated region
        $region97: #{_lambda_.3} parent=95 // pred_check
          %p5515 = pneg %p256
        $region98: #{_lambda_.3} parent=95 // pred_check_branch
          %5517 = sbr.rel (%p5515) target = $region100
        $region99: #{_lambda_.3} parent=95 // pred_region
          %s5518 = smul.u32 8, %s24
          %p5519 = scmp.lt.s32.totalorder %s5518, 15
          %s5520 = scalar_select %p5519, %s5518, 15
          %s5521 = scalar_lea.vmem %s9, %s5520
        $region100: #{_lambda_.3} parent=95 // pred_fallthru
          _
      $region96: #{_lambda_.3} parent=5 // pred_fallthru
        _
    $region6: #{_lambda_.3} parent=1 // loop_footer
      %s22 = sadd.s32 1, %s18
    $region7: #{_lambda_.3} parent=1 // loop_footer_branch
      %17 = sbr.rel target = $region3
    $region8: #{_lambda_.3} parent=1 // loop_exit
      _
    %5522 = vsyncpa [#allocation3], 1
    %s5523 = scalar_lea.sflag [#allocation3], 1
    %5524 = vsyncpa %s5523, 1
    %5525 = vsyncpa [#allocation5], 1
    %5526 = vsyncpa [#allocation8], 1

</llo_original>
